<compile_context>
chip_gen: v7x
topology: tpu7x:2x2x1
jax: 0.10.0
libtpu: 0.0.40
codegen_flags: <defaults>
</compile_context>

<pallas_src>
import functools
import math

import jax
import jax.numpy as jnp
from jax.experimental import pallas as pl
from jax.experimental.pallas import tpu as pltpu

EPS = 1e-5                           # PyTorch BatchNorm default eps
VMEM_LIMIT_BYTES = 32 * 1024 * 1024  # explicit scoped-VMEM budget (fits every gen)
OUT_PAD = 128                        # lane-dense padding of the (B, 3*K) output


# ---------------------------------------------------------------------------
# Kernels
# ---------------------------------------------------------------------------
def _conv1_stats_kernel(x_ref, w1_ref, b1_ref, sum_ref, ssq_ref):
    """conv1 on a flattened row tile; emit per-channel sum / sumsq for bn1."""
    j = pl.program_id(1)
    h = jnp.dot(x_ref[...], w1_ref[...],
                preferred_element_type=jnp.float32) + b1_ref[...]
    tile_sum = jnp.sum(h, axis=0, keepdims=True)[None]          # (1, 1, 64)
    tile_ssq = jnp.sum(h * h, axis=0, keepdims=True)[None]

    @pl.when(j == 0)
    def _init():
        sum_ref[...] = tile_sum
        ssq_ref[...] = tile_ssq

    @pl.when(j > 0)
    def _acc():
        sum_ref[...] += tile_sum
        ssq_ref[...] += tile_ssq


def _conv2_stats_kernel(x_ref, s1_ref, t1_ref, w1_ref, b1_ref, w2_ref, b2_ref,
                        sum_ref, ssq_ref):
    """Recompute conv1 from x (cheap), apply folded bn1+ReLU, conv2; emit bn2
    sum / sumsq.  h1 / h2 never touch HBM."""
    j = pl.program_id(1)
    h1 = jnp.dot(x_ref[...], w1_ref[...],
                 preferred_element_type=jnp.float32) + b1_ref[...]
    a1 = jnp.maximum(h1 * s1_ref[...] + t1_ref[...], 0.0)
    h2 = jnp.dot(a1, w2_ref[...],
                 preferred_element_type=jnp.float32) + b2_ref[...]

    tile_sum = jnp.sum(h2, axis=0, keepdims=True)[None]          # (1, 1, 128)
    tile_ssq = jnp.sum(h2 * h2, axis=0, keepdims=True)[None]

    @pl.when(j == 0)
    def _init():
        sum_ref[...] = tile_sum
        ssq_ref[...] = tile_ssq

    @pl.when(j > 0)
    def _acc():
        sum_ref[...] += tile_sum
        ssq_ref[...] += tile_ssq


def _conv3_pool_kernel(x_ref, s1_ref, t1_ref, w1_ref, b1_ref,
                       s2_ref, t2_ref, w2_ref, b2_ref, w3_ref, b3_ref,
                       sum_ref, ssq_ref, max_ref, min_ref):
    """Recompute conv1/conv2 with folded bn1/bn2 + ReLU, conv3.  Emit only
    reductions: bn3 sum/sumsq plus per-(batch, channel) max/min of the pre-bn3
    activation (max-pool commutes past bn3's affine + ReLU), so the (rows, 1024)
    activation never leaves VMEM.  The per-channel sum is computed via an MXU
    matvec (colsum(a2) @ W3 + rows*b3) instead of a full VPU reduction of h3."""
    j = pl.program_id(1)
    rows = x_ref.shape[0]

    h1 = jnp.dot(x_ref[...], w1_ref[...],
                 preferred_element_type=jnp.float32) + b1_ref[...]
    a1 = jnp.maximum(h1 * s1_ref[...] + t1_ref[...], 0.0)
    h2 = jnp.dot(a1, w2_ref[...],
                 preferred_element_type=jnp.float32) + b2_ref[...]
    a2 = jnp.maximum(h2 * s2_ref[...] + t2_ref[...], 0.0)
    h3 = jnp.dot(a2, w3_ref[...],
                 preferred_element_type=jnp.float32) + b3_ref[...]

    tile_sum = (jnp.dot(jnp.sum(a2, axis=0, keepdims=True), w3_ref[...],
                        preferred_element_type=jnp.float32)
                + rows * b3_ref[...])[None]                      # (1, 1, 1024)
    tile_ssq = jnp.sum(h3 * h3, axis=0, keepdims=True)[None]
    tile_max = jnp.max(h3, axis=0, keepdims=True)[None]
    tile_min = jnp.min(h3, axis=0, keepdims=True)[None]

    @pl.when(j == 0)
    def _init():
        sum_ref[...] = tile_sum
        ssq_ref[...] = tile_ssq
        max_ref[...] = tile_max
        min_ref[...] = tile_min

    @pl.when(j > 0)
    def _acc():
        sum_ref[...] += tile_sum
        ssq_ref[...] += tile_ssq
        max_ref[...] = jnp.maximum(max_ref[...], tile_max)
        min_ref[...] = jnp.minimum(min_ref[...], tile_min)


def _head_kernel(mx_ref, mn_ref, s3_ref, t3_ref,
                 w4, b4, g4, be4, w5, b5, g5, be5, w6, b6, out_ref):
    """bn3+ReLU+max-pool reconstruction + FC head (all tiny: B rows, all VMEM).
    bn4/bn5 use two-pass (centered) variance for numerical robustness."""
    s3 = s3_ref[...]
    t3 = t3_ref[...]
    # max_n relu(s*h + t) == relu(s*max_n h + t) if s >= 0 else relu(s*min_n h + t)
    pooled = jnp.maximum(
        jnp.where(s3 >= 0.0, mx_ref[...] * s3, mn_ref[...] * s3) + t3, 0.0)

    def bn_relu(h, gamma, beta):
        n = h.shape[0]
        mean = jnp.sum(h, axis=0, keepdims=True) / n
        d = h - mean
        var = jnp.sum(d * d, axis=0, keepdims=True) / n
        return jnp.maximum(d * (gamma[...] * jax.lax.rsqrt(var + EPS)) + beta[...],
                           0.0)

    f = jnp.dot(pooled, w4[...], preferred_element_type=jnp.float32) + b4[...]
    f = bn_relu(f, g4, be4)
    f = jnp.dot(f, w5[...], preferred_element_type=jnp.float32) + b5[...]
    f = bn_relu(f, g5, be5)
    out_ref[...] = jnp.dot(f, w6[...], preferred_element_type=jnp.float32) + b6[...]


# ---------------------------------------------------------------------------
# Wrapper
# ---------------------------------------------------------------------------
def _largest_tile(n, cap):
    """Largest multiple-of-8 divisor of n not exceeding cap."""
    best = None
    for t in range(8, min(n, cap) + 1, 8):
        if n % t == 0:
            best = t
    assert best is not None, "need a multiple-of-8 row count"
    return best


def _fold_bn(sum_p, ssq_p, gamma, beta, count):
    """Fold training-mode BatchNorm (biased var) into y = x * s + t (pre-ReLU).
    One-pass E[x^2]-E[x]^2 is fine here: conv outputs have O(1) mean/std ratio."""
    total = jnp.sum(sum_p, axis=0)            # (1, C)
    total_sq = jnp.sum(ssq_p, axis=0)         # (1, C)
    mean = total / count
    var = jnp.maximum(total_sq / count - mean * mean, 0.0)
    s = gamma * jax.lax.rsqrt(var + EPS)
    t = beta - mean * s
    return s, t


def input_transform_net(x_nchw, params, *, point_num, K=3):
    """x_nchw: (B, Cin, N, 3) float32, PyTorch NCHW convention. Returns (B, 3, K)."""
    B, Cin, N, W = x_nchw.shape
    assert W == 3, "conv1 has kernel (1, 3): width must be 3"
    assert N == point_num
    assert K == 3, "fc3 identity-bias init (torch.eye(3)) only matches K == 3"
    assert N % 8 == 0, "point_num must be a multiple of 8 (sublane alignment)"
    rows = B * N
    assert rows % 16 == 0, "B * point_num must be a multiple of 16"

    (w1, b1, g1, be1, w2, b2, g2, be2, w3, b3, g3, be3,
     w4, b4, g4, be4, w5, b5, g5, be5, w6, b6) = params

    cin_w = Cin * 3

    # im2col for the (1,3) conv: per-point feature = concat over (ic, kw), matching
    # PyTorch's conv-weight flatten order.  Materialized once; the recompute design
    # reads it three times, so a single XLA transpose beats in-kernel rearrangement.
    x_feat = jnp.transpose(x_nchw, (0, 2, 1, 3)).reshape(rows, cin_w)

    # Tiling: stages A/B flatten over B*N rows with a 2-wide leading parallel axis
    # (v7x dual-TC); stage C keeps batch separation for the per-batch max/min and
    # caps the row tile at 1024 to respect v7x's smaller VMEM.
    half = rows // 2
    tile_ab = _largest_tile(half, 4096)
    n_ab = half // tile_ab
    tile_c = _largest_tile(N, 1024)
    n_c = N // tile_c

    stage_cp = pltpu.CompilerParams(
        dimension_semantics=("parallel", "arbitrary"),
        vmem_limit_bytes=VMEM_LIMIT_BYTES)

    def full(a):                      # resident (constant-index) operand
        return pl.BlockSpec(a.shape, lambda p, j: (0,) * a.ndim)

    def rows_ab(c):                   # flattened-row tile for stages A/B
        return pl.BlockSpec((tile_ab, c), lambda p, j: (p * n_ab + j, 0))

    def rows_c(c):                    # per-batch row tile for stage C
        return pl.BlockSpec((tile_c, c), lambda b, j: (b * n_c + j, 0))

    def stat_spec(c):                 # per-leading-index resident stat block
        return pl.BlockSpec((1, 1, c), lambda p, j: (p, 0, 0))

    def stat_shape(npar, c):
        return jax.ShapeDtypeStruct((npar, 1, c), jnp.float32)

    # ---- stage A: conv1 (1,3) == matmul over the im2col patch; bn1 stats ----
    sum1, ssq1 = pl.pallas_call(
        _conv1_stats_kernel,
        grid=(2, n_ab),
        in_specs=[rows_ab(cin_w), full(w1), full(b1)],
        out_specs=(stat_spec(64), stat_spec(64)),
        out_shape=(stat_shape(2, 64), stat_shape(2, 64)),
        compiler_params=stage_cp,
        cost_estimate=pl.CostEstimate(
            flops=2 * rows * cin_w * 64, transcendentals=0,
            bytes_accessed=4 * (rows * cin_w + cin_w * 64 + 64 + 4 * 64)),
    )(x_feat, w1, b1)
    s1, t1 = _fold_bn(sum1, ssq1, g1, be1, rows)

    # ---- stage B: recompute conv1, bn1+relu, conv2; bn2 stats ---------------
    sum2, ssq2 = pl.pallas_call(
        _conv2_stats_kernel,
        grid=(2, n_ab),
        in_specs=[rows_ab(cin_w), full(s1), full(t1), full(w1), full(b1),
                  full(w2), full(b2)],
        out_specs=(stat_spec(128), stat_spec(128)),
        out_shape=(stat_shape(2, 128), stat_shape(2, 128)),
        compiler_params=stage_cp,
        cost_estimate=pl.CostEstimate(
            flops=2 * rows * (cin_w * 64 + 64 * 128), transcendentals=0,
            bytes_accessed=4 * (rows * cin_w + cin_w * 64 + 64 * 128
                                + 4 * 64 + 4 * 128)),
    )(x_feat, s1, t1, w1, b1, w2, b2)
    s2, t2 = _fold_bn(sum2, ssq2, g2, be2, rows)

    # ---- stage C: recompute conv1/conv2, conv3; bn3 stats + per-batch max/min
    sum3, ssq3, max3, min3 = pl.pallas_call(
        _conv3_pool_kernel,
        grid=(B, n_c),
        in_specs=[rows_c(cin_w), full(s1), full(t1), full(w1), full(b1),
                  full(s2), full(t2), full(w2), full(b2), full(w3), full(b3)],
        out_specs=(stat_spec(1024),) * 4,
        out_shape=(stat_shape(B, 1024),) * 4,
        compiler_params=stage_cp,
        cost_estimate=pl.CostEstimate(
            flops=2 * rows * (cin_w * 64 + 64 * 128 + 128 * 1024),
            transcendentals=0,
            bytes_accessed=4 * (rows * cin_w + cin_w * 64 + 64 * 128
                                + 128 * 1024 + 4 * B * 1024)),
    )(x_feat, s1, t1, w1, b1, s2, t2, w2, b2, w3, b3)
    s3, t3 = _fold_bn(sum3, ssq3, g3, be3, rows)

    # ---- head: bn3+relu+maxpool reconstruction, fc1/bn4, fc2/bn5, fc3 -------
    # Lane-dense output: pad 3*K up to 128 lanes, slice back in the wrapper.
    w6p = jnp.zeros((256, OUT_PAD), jnp.float32).at[:, :3 * K].set(w6)
    b6p = jnp.zeros((1, OUT_PAD), jnp.float32).at[:, :3 * K].set(b6)

    vmem = pl.BlockSpec(memory_space=pltpu.MemorySpace.VMEM)
    head_args = (max3.reshape(B, 1024), min3.reshape(B, 1024), s3, t3,
                 w4, b4, g4, be4, w5, b5, g5, be5, w6p, b6p)
    out = pl.pallas_call(
        _head_kernel,
        out_shape=jax.ShapeDtypeStruct((B, OUT_PAD), jnp.float32),
        in_specs=[vmem] * len(head_args),
        out_specs=vmem,
        compiler_params=pltpu.CompilerParams(vmem_limit_bytes=VMEM_LIMIT_BYTES),
        cost_estimate=pl.CostEstimate(
            flops=2 * B * (1024 * 512 + 512 * 256 + 256 * OUT_PAD),
            transcendentals=0,
            bytes_accessed=4 * (1024 * 512 + 512 * 256 + 256 * OUT_PAD
                                + 4 * B * 1024)),
    )(*head_args)

    return out[:, :3 * K].reshape(B, 3, K)


# ---------------------------------------------------------------------------
# Params / reference
# ---------------------------------------------------------------------------
def _xavier_normal(key, shape, fan_in, fan_out):
    std = math.sqrt(2.0 / (fan_in + fan_out))
    return (std * jax.random.normal(key, shape, dtype=jnp.float32)).astype(jnp.float32)


def init_params(key, input_channel_num=3, K=3):
    """Deterministic parameter init mirroring the module's __init__ shapes.
    Conv/linear weights: xavier-normal. Biases: zero (fc3 bias = eye(3) flat).
    BatchNorm gamma=1, beta=0."""
    Cin = input_channel_num
    ks = jax.random.split(key, 6)

    def ones_row(c):
        return jnp.ones((1, c), jnp.float32)

    def zeros_row(c):
        return jnp.zeros((1, c), jnp.float32)

    w1 = _xavier_normal(ks[0], (64, Cin, 1, 3), Cin * 3, 64 * 3).reshape(64, Cin * 3).T
    w2 = _xavier_normal(ks[1], (128, 64, 1, 1), 64, 128).reshape(128, 64).T
    w3 = _xavier_normal(ks[2], (1024, 128, 1, 1), 128, 1024).reshape(1024, 128).T
    w4 = _xavier_normal(ks[3], (512, 1024), 1024, 512).T
    w5 = _xavier_normal(ks[4], (256, 512), 512, 256).T
    w6 = _xavier_normal(ks[5], (3 * K, 256), 256, 3 * K).T
    b6 = jnp.eye(3, dtype=jnp.float32).reshape(1, 3 * K)   # valid only for K == 3

    return (
        w1, zeros_row(64), ones_row(64), zeros_row(64),        # conv1 / bn1
        w2, zeros_row(128), ones_row(128), zeros_row(128),     # conv2 / bn2
        w3, zeros_row(1024), ones_row(1024), zeros_row(1024),  # conv3 / bn3
        w4, zeros_row(512), ones_row(512), zeros_row(512),     # fc1  / bn4
        w5, zeros_row(256), ones_row(256), zeros_row(256),     # fc2  / bn5
        w6, b6,                                                # fc3
    )


def _reference_forward(x_nchw, params, K=3):
    """Pure-JAX f32 reference mirroring the PyTorch module (training-mode BN)."""
    (w1, b1, g1, be1, w2, b2, g2, be2, w3, b3, g3, be3,
     w4, b4, g4, be4, w5, b5, g5, be5, w6, b6) = params
    B, Cin, N, _ = x_nchw.shape
    x = jnp.transpose(x_nchw, (0, 2, 1, 3)).reshape(B * N, Cin * 3)

    def bn_relu(h, g, be):
        mean = jnp.mean(h, axis=0, keepdims=True)
        var = jnp.mean((h - mean) ** 2, axis=0, keepdims=True)
        return jnp.maximum((h - mean) * jax.lax.rsqrt(var + EPS) * g + be, 0.0)

    h = jnp.dot(x, w1, preferred_element_type=jnp.float32) + b1
    h = bn_relu(h, g1, be1)
    h = jnp.dot(h, w2, preferred_element_type=jnp.float32) + b2
    h = bn_relu(h, g2, be2)
    h = jnp.dot(h, w3, preferred_element_type=jnp.float32) + b3
    h = bn_relu(h, g3, be3)
    pooled = jnp.max(h.reshape(B, N, 1024), axis=1)
    f = jnp.dot(pooled, w4, preferred_element_type=jnp.float32) + b4
    f = bn_relu(f, g4, be4)
    f = jnp.dot(f, w5, preferred_element_type=jnp.float32) + b5
    f = bn_relu(f, g5, be5)
    out = jnp.dot(f, w6, preferred_element_type=jnp.float32) + b6
    return out.reshape(B, 3, K)


if __name__ == "__main__":
    key = jax.random.PRNGKey(0)
    kx, kp = jax.random.split(key)

    # B >= 3 keeps training-mode BN in the FC head out of its degenerate (+/-1)
    # regime, so the kernel-vs-reference check is numerically well-conditioned.
    B, Cin, N, K = 4, 3, 64, 3
    x = jax.random.normal(kx, (B, Cin, N, 3), dtype=jnp.float32)
    params = init_params(kp, input_channel_num=Cin, K=K)

    fwd = jax.jit(functools.partial(input_transform_net, point_num=N, K=K))
    out = jax.block_until_ready(fwd(x, params))
    assert out.shape == (B, 3, K) and out.dtype == jnp.float32

    # Tolerance check vs a pure-JAX f32 reference (guards the folded-affine BN,
    # the pool-commute rewrite, the partial-stat accumulation and the MXU-matvec
    # column sum).
    ref = jax.block_until_ready(
        jax.jit(functools.partial(_reference_forward, K=K))(x, params))
    err = float(jnp.max(jnp.abs(out - ref)))
    assert err < 5e-3, f"mismatch vs reference: max abs err {err}"
    print("KERNEL_OK")
</pallas_src>

<mosaic_0001>
module attributes {stable_mosaic.version = 11 : i64} {
  func.func @_conv1_stats_kernel(%arg0: i32, %arg1: i32, %arg2: memref<128x9xf32, #tpu.memory_space<vmem>>, %arg3: memref<9x64xf32, #tpu.memory_space<vmem>>, %arg4: memref<1x64xf32, #tpu.memory_space<vmem>>, %arg5: memref<1x1x64xf32, #tpu.memory_space<vmem>>, %arg6: memref<1x1x64xf32, #tpu.memory_space<vmem>>) attributes {dimension_semantics = [#tpu.dimension_semantics<parallel>, #tpu.dimension_semantics<arbitrary>], iteration_bounds = array<i64: 2, 1>, scalar_prefetch = 0 : i64, scratch_operands = 0 : i64, tpu.core_type = #tpu.core_type<tc>, window_params = [{transform_indices = @transform_0, window_bounds = array<i64: 128, 9>}, {pipeline_mode = #tpu.pipeline_mode<synchronous>, transform_indices = @transform_1, window_bounds = array<i64: 9, 64>}, {pipeline_mode = #tpu.pipeline_mode<synchronous>, transform_indices = @transform_2, window_bounds = array<i64: 1, 64>}, {transform_indices = @transform_3, window_bounds = array<i64: 1, 1, 64>}, {transform_indices = @transform_4, window_bounds = array<i64: 1, 1, 64>}]} {
    %c0 = arith.constant 0 : index
    %c0_0 = arith.constant 0 : index
    %0 = vector.load %arg2[%c0, %c0_0] : memref<128x9xf32, #tpu.memory_space<vmem>>, vector<128x9xf32>
    %c0_1 = arith.constant 0 : index
    %c0_2 = arith.constant 0 : index
    %1 = vector.load %arg3[%c0_1, %c0_2] : memref<9x64xf32, #tpu.memory_space<vmem>>, vector<9x64xf32>
    %cst = arith.constant dense<0.000000e+00> : vector<128x64xf32>
    %2 = tpu.matmul %0, %1, %cst {dimension_numbers = #tpu.dot_dimension_numbers<[1], [0], [0], [1], [0, 0, 1, 1], [], []>} : vector<128x9xf32>, vector<9x64xf32>, vector<128x64xf32> -> vector<128x64xf32>
    %c0_3 = arith.constant 0 : index
    %c0_4 = arith.constant 0 : index
    %3 = vector.load %arg4[%c0_3, %c0_4] : memref<1x64xf32, #tpu.memory_space<vmem>>, vector<1x64xf32>
    %4 = vector.broadcast %3 : vector<1x64xf32> to vector<128x64xf32>
    %5 = arith.addf %2, %4 : vector<128x64xf32>
    %cst_5 = arith.constant dense<0.000000e+00> : vector<64xf32>
    %6 = vector.multi_reduction <add>, %5, %cst_5 [0] : vector<128x64xf32> to vector<64xf32>
    %7 = vector.shape_cast %6 : vector<64xf32> to vector<1x64xf32>
    %8 = vector.shape_cast %7 : vector<1x64xf32> to vector<1x1x64xf32>
    %9 = arith.mulf %5, %5 : vector<128x64xf32>
    %cst_6 = arith.constant dense<0.000000e+00> : vector<64xf32>
    %10 = vector.multi_reduction <add>, %9, %cst_6 [0] : vector<128x64xf32> to vector<64xf32>
    %11 = vector.shape_cast %10 : vector<64xf32> to vector<1x64xf32>
    %12 = vector.shape_cast %11 : vector<1x64xf32> to vector<1x1x64xf32>
    %c0_i32 = arith.constant 0 : i32
    %13 = arith.cmpi eq, %arg1, %c0_i32 : i32
    %14 = arith.extui %13 : i1 to i32
    %c0_i32_7 = arith.constant 0 : i32
    %15 = arith.cmpi ne, %14, %c0_i32_7 : i32
    scf.if %15 {
      %c0_10 = arith.constant 0 : index
      %c0_11 = arith.constant 0 : index
      %c0_12 = arith.constant 0 : index
      %19 = vector.load %arg5[%c0_10, %c0_11, %c0_12] : memref<1x1x64xf32, #tpu.memory_space<vmem>>, vector<1x1x64xf32>
      tpu.vector_store %arg5[%c0_10, %c0_11, %c0_12], %8 {strides = array<i32>} : memref<1x1x64xf32, #tpu.memory_space<vmem>>, vector<1x1x64xf32>,
      %c0_13 = arith.constant 0 : index
      %c0_14 = arith.constant 0 : index
      %c0_15 = arith.constant 0 : index
      %20 = vector.load %arg6[%c0_13, %c0_14, %c0_15] : memref<1x1x64xf32, #tpu.memory_space<vmem>>, vector<1x1x64xf32>
      tpu.vector_store %arg6[%c0_13, %c0_14, %c0_15], %12 {strides = array<i32>} : memref<1x1x64xf32, #tpu.memory_space<vmem>>, vector<1x1x64xf32>,
    } else {
    }
    %c0_i32_8 = arith.constant 0 : i32
    %16 = arith.cmpi sgt, %arg1, %c0_i32_8 : i32
    %17 = arith.extui %16 : i1 to i32
    %c0_i32_9 = arith.constant 0 : i32
    %18 = arith.cmpi ne, %17, %c0_i32_9 : i32
    scf.if %18 {
      %c0_10 = arith.constant 0 : index
      %c0_11 = arith.constant 0 : index
      %c0_12 = arith.constant 0 : index
      %19 = vector.load %arg5[%c0_10, %c0_11, %c0_12] : memref<1x1x64xf32, #tpu.memory_space<vmem>>, vector<1x1x64xf32>
      %20 = arith.addf %19, %8 : vector<1x1x64xf32>
      %c0_13 = arith.constant 0 : index
      %c0_14 = arith.constant 0 : index
      %c0_15 = arith.constant 0 : index
      %21 = vector.load %arg5[%c0_13, %c0_14, %c0_15] : memref<1x1x64xf32, #tpu.memory_space<vmem>>, vector<1x1x64xf32>
      tpu.vector_store %arg5[%c0_13, %c0_14, %c0_15], %20 {strides = array<i32>} : memref<1x1x64xf32, #tpu.memory_space<vmem>>, vector<1x1x64xf32>,
      %c0_16 = arith.constant 0 : index
      %c0_17 = arith.constant 0 : index
      %c0_18 = arith.constant 0 : index
      %22 = vector.load %arg6[%c0_16, %c0_17, %c0_18] : memref<1x1x64xf32, #tpu.memory_space<vmem>>, vector<1x1x64xf32>
      %23 = arith.addf %22, %12 : vector<1x1x64xf32>
      %c0_19 = arith.constant 0 : index
      %c0_20 = arith.constant 0 : index
      %c0_21 = arith.constant 0 : index
      %24 = vector.load %arg6[%c0_19, %c0_20, %c0_21] : memref<1x1x64xf32, #tpu.memory_space<vmem>>, vector<1x1x64xf32>
      tpu.vector_store %arg6[%c0_19, %c0_20, %c0_21], %23 {strides = array<i32>} : memref<1x1x64xf32, #tpu.memory_space<vmem>>, vector<1x1x64xf32>,
    } else {
    }
    return
  }
  func.func @transform_0(%arg0: i32, %arg1: i32) -> (i32, i32) {
    %c1_i32 = arith.constant 1 : i32
    %0 = arith.muli %arg0, %c1_i32 : i32
    %1 = arith.addi %0, %arg1 : i32
    %c0_i32 = arith.constant 0 : i32
    %c0_i32_0 = arith.constant 0 : i32
    return %1, %c0_i32 : i32, i32
  }
  func.func @transform_1(%arg0: i32, %arg1: i32) -> (i32, i32) {
    %c0_i32 = arith.constant 0 : i32
    %c0_i32_0 = arith.constant 0 : i32
    %c0_i32_1 = arith.constant 0 : i32
    return %c0_i32, %c0_i32_0 : i32, i32
  }
  func.func @transform_2(%arg0: i32, %arg1: i32) -> (i32, i32) {
    %c0_i32 = arith.constant 0 : i32
    %c0_i32_0 = arith.constant 0 : i32
    %c0_i32_1 = arith.constant 0 : i32
    return %c0_i32, %c0_i32_0 : i32, i32
  }
  func.func @transform_3(%arg0: i32, %arg1: i32) -> (i32, i32, i32) {
    %c0_i32 = arith.constant 0 : i32
    %c0_i32_0 = arith.constant 0 : i32
    %c0_i32_1 = arith.constant 0 : i32
    return %arg0, %c0_i32, %c0_i32_0 : i32, i32, i32
  }
  func.func @transform_4(%arg0: i32, %arg1: i32) -> (i32, i32, i32) {
    %c0_i32 = arith.constant 0 : i32
    %c0_i32_0 = arith.constant 0 : i32
    %c0_i32_1 = arith.constant 0 : i32
    return %arg0, %c0_i32, %c0_i32_0 : i32, i32, i32
  }
}

module attributes {stable_mosaic.version = 11 : i64} {
  func.func @_conv2_stats_kernel(%arg0: i32, %arg1: i32, %arg2: memref<128x9xf32, #tpu.memory_space<vmem>>, %arg3: memref<1x64xf32, #tpu.memory_space<vmem>>, %arg4: memref<1x64xf32, #tpu.memory_space<vmem>>, %arg5: memref<9x64xf32, #tpu.memory_space<vmem>>, %arg6: memref<1x64xf32, #tpu.memory_space<vmem>>, %arg7: memref<64x128xf32, #tpu.memory_space<vmem>>, %arg8: memref<1x128xf32, #tpu.memory_space<vmem>>, %arg9: memref<1x1x128xf32, #tpu.memory_space<vmem>>, %arg10: memref<1x1x128xf32, #tpu.memory_space<vmem>>) attributes {dimension_semantics = [#tpu.dimension_semantics<parallel>, #tpu.dimension_semantics<arbitrary>], iteration_bounds = array<i64: 2, 1>, scalar_prefetch = 0 : i64, scratch_operands = 0 : i64, tpu.core_type = #tpu.core_type<tc>, window_params = [{transform_indices = @transform_0, window_bounds = array<i64: 128, 9>}, {pipeline_mode = #tpu.pipeline_mode<synchronous>, transform_indices = @transform_1, window_bounds = array<i64: 1, 64>}, {pipeline_mode = #tpu.pipeline_mode<synchronous>, transform_indices = @transform_2, window_bounds = array<i64: 1, 64>}, {pipeline_mode = #tpu.pipeline_mode<synchronous>, transform_indices = @transform_3, window_bounds = array<i64: 9, 64>}, {pipeline_mode = #tpu.pipeline_mode<synchronous>, transform_indices = @transform_4, window_bounds = array<i64: 1, 64>}, {pipeline_mode = #tpu.pipeline_mode<synchronous>, transform_indices = @transform_5, window_bounds = array<i64: 64, 128>}, {pipeline_mode = #tpu.pipeline_mode<synchronous>, transform_indices = @transform_6, window_bounds = array<i64: 1, 128>}, {transform_indices = @transform_7, window_bounds = array<i64: 1, 1, 128>}, {transform_indices = @transform_8, window_bounds = array<i64: 1, 1, 128>}]} {
    %c0 = arith.constant 0 : index
    %c0_0 = arith.constant 0 : index
    %0 = vector.load %arg2[%c0, %c0_0] : memref<128x9xf32, #tpu.memory_space<vmem>>, vector<128x9xf32>
    %c0_1 = arith.constant 0 : index
    %c0_2 = arith.constant 0 : index
    %1 = vector.load %arg5[%c0_1, %c0_2] : memref<9x64xf32, #tpu.memory_space<vmem>>, vector<9x64xf32>
    %cst = arith.constant dense<0.000000e+00> : vector<128x64xf32>
    %2 = tpu.matmul %0, %1, %cst {dimension_numbers = #tpu.dot_dimension_numbers<[1], [0], [0], [1], [0, 0, 1, 1], [], []>} : vector<128x9xf32>, vector<9x64xf32>, vector<128x64xf32> -> vector<128x64xf32>
    %c0_3 = arith.constant 0 : index
    %c0_4 = arith.constant 0 : index
    %3 = vector.load %arg6[%c0_3, %c0_4] : memref<1x64xf32, #tpu.memory_space<vmem>>, vector<1x64xf32>
    %4 = vector.broadcast %3 : vector<1x64xf32> to vector<128x64xf32>
    %5 = arith.addf %2, %4 : vector<128x64xf32>
    %c0_5 = arith.constant 0 : index
    %c0_6 = arith.constant 0 : index
    %6 = vector.load %arg3[%c0_5, %c0_6] : memref<1x64xf32, #tpu.memory_space<vmem>>, vector<1x64xf32>
    %7 = vector.broadcast %6 : vector<1x64xf32> to vector<128x64xf32>
    %8 = arith.mulf %5, %7 : vector<128x64xf32>
    %c0_7 = arith.constant 0 : index
    %c0_8 = arith.constant 0 : index
    %9 = vector.load %arg4[%c0_7, %c0_8] : memref<1x64xf32, #tpu.memory_space<vmem>>, vector<1x64xf32>
    %10 = vector.broadcast %9 : vector<1x64xf32> to vector<128x64xf32>
    %11 = arith.addf %8, %10 : vector<128x64xf32>
    %cst_9 = arith.constant 0.000000e+00 : f32
    %12 = vector.broadcast %cst_9 : f32 to vector<128x64xf32>
    %13 = arith.maximumf %11, %12 : vector<128x64xf32>
    %c0_10 = arith.constant 0 : index
    %c0_11 = arith.constant 0 : index
    %14 = vector.load %arg7[%c0_10, %c0_11] : memref<64x128xf32, #tpu.memory_space<vmem>>, vector<64x128xf32>
    %cst_12 = arith.constant dense<0.000000e+00> : vector<128x128xf32>
    %15 = tpu.matmul %13, %14, %cst_12 {dimension_numbers = #tpu.dot_dimension_numbers<[1], [0], [0], [1], [0, 0, 1, 1], [], []>} : vector<128x64xf32>, vector<64x128xf32>, vector<128x128xf32> -> vector<128x128xf32>
    %c0_13 = arith.constant 0 : index
    %c0_14 = arith.constant 0 : index
    %16 = vector.load %arg8[%c0_13, %c0_14] : memref<1x128xf32, #tpu.memory_space<vmem>>, vector<1x128xf32>
    %17 = vector.broadcast %16 : vector<1x128xf32> to vector<128x128xf32>
    %18 = arith.addf %15, %17 : vector<128x128xf32>
    %cst_15 = arith.constant dense<0.000000e+00> : vector<128xf32>
    %19 = vector.multi_reduction <add>, %18, %cst_15 [0] : vector<128x128xf32> to vector<128xf32>
    %20 = vector.shape_cast %19 : vector<128xf32> to vector<1x128xf32>
    %21 = vector.shape_cast %20 : vector<1x128xf32> to vector<1x1x128xf32>
    %22 = arith.mulf %18, %18 : vector<128x128xf32>
    %cst_16 = arith.constant dense<0.000000e+00> : vector<128xf32>
    %23 = vector.multi_reduction <add>, %22, %cst_16 [0] : vector<128x128xf32> to vector<128xf32>
    %24 = vector.shape_cast %23 : vector<128xf32> to vector<1x128xf32>
    %25 = vector.shape_cast %24 : vector<1x128xf32> to vector<1x1x128xf32>
    %c0_i32 = arith.constant 0 : i32
    %26 = arith.cmpi eq, %arg1, %c0_i32 : i32
    %27 = arith.extui %26 : i1 to i32
    %c0_i32_17 = arith.constant 0 : i32
    %28 = arith.cmpi ne, %27, %c0_i32_17 : i32
    scf.if %28 {
      %c0_20 = arith.constant 0 : index
      %c0_21 = arith.constant 0 : index
      %c0_22 = arith.constant 0 : index
      %32 = vector.load %arg9[%c0_20, %c0_21, %c0_22] : memref<1x1x128xf32, #tpu.memory_space<vmem>>, vector<1x1x128xf32>
      tpu.vector_store %arg9[%c0_20, %c0_21, %c0_22], %21 {strides = array<i32>} : memref<1x1x128xf32, #tpu.memory_space<vmem>>, vector<1x1x128xf32>,
      %c0_23 = arith.constant 0 : index
      %c0_24 = arith.constant 0 : index
      %c0_25 = arith.constant 0 : index
      %33 = vector.load %arg10[%c0_23, %c0_24, %c0_25] : memref<1x1x128xf32, #tpu.memory_space<vmem>>, vector<1x1x128xf32>
      tpu.vector_store %arg10[%c0_23, %c0_24, %c0_25], %25 {strides = array<i32>} : memref<1x1x128xf32, #tpu.memory_space<vmem>>, vector<1x1x128xf32>,
    } else {
    }
    %c0_i32_18 = arith.constant 0 : i32
    %29 = arith.cmpi sgt, %arg1, %c0_i32_18 : i32
    %30 = arith.extui %29 : i1 to i32
    %c0_i32_19 = arith.constant 0 : i32
    %31 = arith.cmpi ne, %30, %c0_i32_19 : i32
    scf.if %31 {
      %c0_20 = arith.constant 0 : index
      %c0_21 = arith.constant 0 : index
      %c0_22 = arith.constant 0 : index
      %32 = vector.load %arg9[%c0_20, %c0_21, %c0_22] : memref<1x1x128xf32, #tpu.memory_space<vmem>>, vector<1x1x128xf32>
      %33 = arith.addf %32, %21 : vector<1x1x128xf32>
      %c0_23 = arith.constant 0 : index
      %c0_24 = arith.constant 0 : index
      %c0_25 = arith.constant 0 : index
      %34 = vector.load %arg9[%c0_23, %c0_24, %c0_25] : memref<1x1x128xf32, #tpu.memory_space<vmem>>, vector<1x1x128xf32>
      tpu.vector_store %arg9[%c0_23, %c0_24, %c0_25], %33 {strides = array<i32>} : memref<1x1x128xf32, #tpu.memory_space<vmem>>, vector<1x1x128xf32>,
      %c0_26 = arith.constant 0 : index
      %c0_27 = arith.constant 0 : index
      %c0_28 = arith.constant 0 : index
      %35 = vector.load %arg10[%c0_26, %c0_27, %c0_28] : memref<1x1x128xf32, #tpu.memory_space<vmem>>, vector<1x1x128xf32>
      %36 = arith.addf %35, %25 : vector<1x1x128xf32>
      %c0_29 = arith.constant 0 : index
      %c0_30 = arith.constant 0 : index
      %c0_31 = arith.constant 0 : index
      %37 = vector.load %arg10[%c0_29, %c0_30, %c0_31] : memref<1x1x128xf32, #tpu.memory_space<vmem>>, vector<1x1x128xf32>
      tpu.vector_store %arg10[%c0_29, %c0_30, %c0_31], %36 {strides = array<i32>} : memref<1x1x128xf32, #tpu.memory_space<vmem>>, vector<1x1x128xf32>,
    } else {
    }
    return
  }
  func.func @transform_0(%arg0: i32, %arg1: i32) -> (i32, i32) {
    %c1_i32 = arith.constant 1 : i32
    %0 = arith.muli %arg0, %c1_i32 : i32
    %1 = arith.addi %0, %arg1 : i32
    %c0_i32 = arith.constant 0 : i32
    %c0_i32_0 = arith.constant 0 : i32
    return %1, %c0_i32 : i32, i32
  }
  func.func @transform_1(%arg0: i32, %arg1: i32) -> (i32, i32) {
    %c0_i32 = arith.constant 0 : i32
    %c0_i32_0 = arith.constant 0 : i32
    %c0_i32_1 = arith.constant 0 : i32
    return %c0_i32, %c0_i32_0 : i32, i32
  }
  func.func @transform_2(%arg0: i32, %arg1: i32) -> (i32, i32) {
    %c0_i32 = arith.constant 0 : i32
    %c0_i32_0 = arith.constant 0 : i32
    %c0_i32_1 = arith.constant 0 : i32
    return %c0_i32, %c0_i32_0 : i32, i32
  }
  func.func @transform_3(%arg0: i32, %arg1: i32) -> (i32, i32) {
    %c0_i32 = arith.constant 0 : i32
    %c0_i32_0 = arith.constant 0 : i32
    %c0_i32_1 = arith.constant 0 : i32
    return %c0_i32, %c0_i32_0 : i32, i32
  }
  func.func @transform_4(%arg0: i32, %arg1: i32) -> (i32, i32) {
    %c0_i32 = arith.constant 0 : i32
    %c0_i32_0 = arith.constant 0 : i32
    %c0_i32_1 = arith.constant 0 : i32
    return %c0_i32, %c0_i32_0 : i32, i32
  }
  func.func @transform_5(%arg0: i32, %arg1: i32) -> (i32, i32) {
    %c0_i32 = arith.constant 0 : i32
    %c0_i32_0 = arith.constant 0 : i32
    %c0_i32_1 = arith.constant 0 : i32
    return %c0_i32, %c0_i32_0 : i32, i32
  }
  func.func @transform_6(%arg0: i32, %arg1: i32) -> (i32, i32) {
    %c0_i32 = arith.constant 0 : i32
    %c0_i32_0 = arith.constant 0 : i32
    %c0_i32_1 = arith.constant 0 : i32
    return %c0_i32, %c0_i32_0 : i32, i32
  }
  func.func @transform_7(%arg0: i32, %arg1: i32) -> (i32, i32, i32) {
    %c0_i32 = arith.constant 0 : i32
    %c0_i32_0 = arith.constant 0 : i32
    %c0_i32_1 = arith.constant 0 : i32
    return %arg0, %c0_i32, %c0_i32_0 : i32, i32, i32
  }
  func.func @transform_8(%arg0: i32, %arg1: i32) -> (i32, i32, i32) {
    %c0_i32 = arith.constant 0 : i32
    %c0_i32_0 = arith.constant 0 : i32
    %c0_i32_1 = arith.constant 0 : i32
    return %arg0, %c0_i32, %c0_i32_0 : i32, i32, i32
  }
}

module attributes {stable_mosaic.version = 11 : i64} {
  func.func @_conv3_pool_kernel(%arg0: i32, %arg1: i32, %arg2: memref<64x9xf32, #tpu.memory_space<vmem>>, %arg3: memref<1x64xf32, #tpu.memory_space<vmem>>, %arg4: memref<1x64xf32, #tpu.memory_space<vmem>>, %arg5: memref<9x64xf32, #tpu.memory_space<vmem>>, %arg6: memref<1x64xf32, #tpu.memory_space<vmem>>, %arg7: memref<1x128xf32, #tpu.memory_space<vmem>>, %arg8: memref<1x128xf32, #tpu.memory_space<vmem>>, %arg9: memref<64x128xf32, #tpu.memory_space<vmem>>, %arg10: memref<1x128xf32, #tpu.memory_space<vmem>>, %arg11: memref<128x1024xf32, #tpu.memory_space<vmem>>, %arg12: memref<1x1024xf32, #tpu.memory_space<vmem>>, %arg13: memref<1x1x1024xf32, #tpu.memory_space<vmem>>, %arg14: memref<1x1x1024xf32, #tpu.memory_space<vmem>>, %arg15: memref<1x1x1024xf32, #tpu.memory_space<vmem>>, %arg16: memref<1x1x1024xf32, #tpu.memory_space<vmem>>) attributes {dimension_semantics = [#tpu.dimension_semantics<parallel>, #tpu.dimension_semantics<arbitrary>], iteration_bounds = array<i64: 4, 1>, scalar_prefetch = 0 : i64, scratch_operands = 0 : i64, tpu.core_type = #tpu.core_type<tc>, window_params = [{transform_indices = @transform_0, window_bounds = array<i64: 64, 9>}, {pipeline_mode = #tpu.pipeline_mode<synchronous>, transform_indices = @transform_1, window_bounds = array<i64: 1, 64>}, {pipeline_mode = #tpu.pipeline_mode<synchronous>, transform_indices = @transform_2, window_bounds = array<i64: 1, 64>}, {pipeline_mode = #tpu.pipeline_mode<synchronous>, transform_indices = @transform_3, window_bounds = array<i64: 9, 64>}, {pipeline_mode = #tpu.pipeline_mode<synchronous>, transform_indices = @transform_4, window_bounds = array<i64: 1, 64>}, {pipeline_mode = #tpu.pipeline_mode<synchronous>, transform_indices = @transform_5, window_bounds = array<i64: 1, 128>}, {pipeline_mode = #tpu.pipeline_mode<synchronous>, transform_indices = @transform_6, window_bounds = array<i64: 1, 128>}, {pipeline_mode = #tpu.pipeline_mode<synchronous>, transform_indices = @transform_7, window_bounds = array<i64: 64, 128>}, {pipeline_mode = #tpu.pipeline_mode<synchronous>, transform_indices = @transform_8, window_bounds = array<i64: 1, 128>}, {pipeline_mode = #tpu.pipeline_mode<synchronous>, transform_indices = @transform_9, window_bounds = array<i64: 128, 1024>}, {pipeline_mode = #tpu.pipeline_mode<synchronous>, transform_indices = @transform_10, window_bounds = array<i64: 1, 1024>}, {transform_indices = @transform_11, window_bounds = array<i64: 1, 1, 1024>}, {transform_indices = @transform_12, window_bounds = array<i64: 1, 1, 1024>}, {transform_indices = @transform_13, window_bounds = array<i64: 1, 1, 1024>}, {transform_indices = @transform_14, window_bounds = array<i64: 1, 1, 1024>}]} {
    %c0 = arith.constant 0 : index
    %c0_0 = arith.constant 0 : index
    %0 = vector.load %arg2[%c0, %c0_0] : memref<64x9xf32, #tpu.memory_space<vmem>>, vector<64x9xf32>
    %c0_1 = arith.constant 0 : index
    %c0_2 = arith.constant 0 : index
    %1 = vector.load %arg5[%c0_1, %c0_2] : memref<9x64xf32, #tpu.memory_space<vmem>>, vector<9x64xf32>
    %cst = arith.constant dense<0.000000e+00> : vector<64x64xf32>
    %2 = tpu.matmul %0, %1, %cst {dimension_numbers = #tpu.dot_dimension_numbers<[1], [0], [0], [1], [0, 0, 1, 1], [], []>} : vector<64x9xf32>, vector<9x64xf32>, vector<64x64xf32> -> vector<64x64xf32>
    %c0_3 = arith.constant 0 : index
    %c0_4 = arith.constant 0 : index
    %3 = vector.load %arg6[%c0_3, %c0_4] : memref<1x64xf32, #tpu.memory_space<vmem>>, vector<1x64xf32>
    %4 = vector.broadcast %3 : vector<1x64xf32> to vector<64x64xf32>
    %5 = arith.addf %2, %4 : vector<64x64xf32>
    %c0_5 = arith.constant 0 : index
    %c0_6 = arith.constant 0 : index
    %6 = vector.load %arg3[%c0_5, %c0_6] : memref<1x64xf32, #tpu.memory_space<vmem>>, vector<1x64xf32>
    %7 = vector.broadcast %6 : vector<1x64xf32> to vector<64x64xf32>
    %8 = arith.mulf %5, %7 : vector<64x64xf32>
    %c0_7 = arith.constant 0 : index
    %c0_8 = arith.constant 0 : index
    %9 = vector.load %arg4[%c0_7, %c0_8] : memref<1x64xf32, #tpu.memory_space<vmem>>, vector<1x64xf32>
    %10 = vector.broadcast %9 : vector<1x64xf32> to vector<64x64xf32>
    %11 = arith.addf %8, %10 : vector<64x64xf32>
    %cst_9 = arith.constant 0.000000e+00 : f32
    %12 = vector.broadcast %cst_9 : f32 to vector<64x64xf32>
    %13 = arith.maximumf %11, %12 : vector<64x64xf32>
    %c0_10 = arith.constant 0 : index
    %c0_11 = arith.constant 0 : index
    %14 = vector.load %arg9[%c0_10, %c0_11] : memref<64x128xf32, #tpu.memory_space<vmem>>, vector<64x128xf32>
    %cst_12 = arith.constant dense<0.000000e+00> : vector<64x128xf32>
    %15 = tpu.matmul %13, %14, %cst_12 {dimension_numbers = #tpu.dot_dimension_numbers<[1], [0], [0], [1], [0, 0, 1, 1], [], []>} : vector<64x64xf32>, vector<64x128xf32>, vector<64x128xf32> -> vector<64x128xf32>
    %c0_13 = arith.constant 0 : index
    %c0_14 = arith.constant 0 : index
    %16 = vector.load %arg10[%c0_13, %c0_14] : memref<1x128xf32, #tpu.memory_space<vmem>>, vector<1x128xf32>
    %17 = vector.broadcast %16 : vector<1x128xf32> to vector<64x128xf32>
    %18 = arith.addf %15, %17 : vector<64x128xf32>
    %c0_15 = arith.constant 0 : index
    %c0_16 = arith.constant 0 : index
    %19 = vector.load %arg7[%c0_15, %c0_16] : memref<1x128xf32, #tpu.memory_space<vmem>>, vector<1x128xf32>
    %20 = vector.broadcast %19 : vector<1x128xf32> to vector<64x128xf32>
    %21 = arith.mulf %18, %20 : vector<64x128xf32>
    %c0_17 = arith.constant 0 : index
    %c0_18 = arith.constant 0 : index
    %22 = vector.load %arg8[%c0_17, %c0_18] : memref<1x128xf32, #tpu.memory_space<vmem>>, vector<1x128xf32>
    %23 = vector.broadcast %22 : vector<1x128xf32> to vector<64x128xf32>
    %24 = arith.addf %21, %23 : vector<64x128xf32>
    %cst_19 = arith.constant 0.000000e+00 : f32
    %25 = vector.broadcast %cst_19 : f32 to vector<64x128xf32>
    %26 = arith.maximumf %24, %25 : vector<64x128xf32>
    %c0_20 = arith.constant 0 : index
    %c0_21 = arith.constant 0 : index
    %27 = vector.load %arg11[%c0_20, %c0_21] : memref<128x1024xf32, #tpu.memory_space<vmem>>, vector<128x1024xf32>
    %cst_22 = arith.constant dense<0.000000e+00> : vector<64x1024xf32>
    %28 = tpu.matmul %26, %27, %cst_22 {dimension_numbers = #tpu.dot_dimension_numbers<[1], [0], [0], [1], [0, 0, 1, 1], [], []>} : vector<64x128xf32>, vector<128x1024xf32>, vector<64x1024xf32> -> vector<64x1024xf32>
    %c0_23 = arith.constant 0 : index
    %c0_24 = arith.constant 0 : index
    %29 = vector.load %arg12[%c0_23, %c0_24] : memref<1x1024xf32, #tpu.memory_space<vmem>>, vector<1x1024xf32>
    %30 = vector.broadcast %29 : vector<1x1024xf32> to vector<64x1024xf32>
    %31 = arith.addf %28, %30 : vector<64x1024xf32>
    %cst_25 = arith.constant dense<0.000000e+00> : vector<128xf32>
    %32 = vector.multi_reduction <add>, %26, %cst_25 [0] : vector<64x128xf32> to vector<128xf32>
    %33 = vector.shape_cast %32 : vector<128xf32> to vector<1x128xf32>
    %c0_26 = arith.constant 0 : index
    %c0_27 = arith.constant 0 : index
    %34 = vector.load %arg11[%c0_26, %c0_27] : memref<128x1024xf32, #tpu.memory_space<vmem>>, vector<128x1024xf32>
    %cst_28 = arith.constant dense<0.000000e+00> : vector<1x1024xf32>
    %35 = tpu.matmul %33, %34, %cst_28 {dimension_numbers = #tpu.dot_dimension_numbers<[1], [0], [0], [1], [0, 0, 1, 1], [], []>} : vector<1x128xf32>, vector<128x1024xf32>, vector<1x1024xf32> -> vector<1x1024xf32>
    %c0_29 = arith.constant 0 : index
    %c0_30 = arith.constant 0 : index
    %36 = vector.load %arg12[%c0_29, %c0_30] : memref<1x1024xf32, #tpu.memory_space<vmem>>, vector<1x1024xf32>
    %cst_31 = arith.constant 6.400000e+01 : f32
    %37 = vector.broadcast %cst_31 : f32 to vector<1x1024xf32>
    %38 = arith.mulf %37, %36 : vector<1x1024xf32>
    %39 = arith.addf %35, %38 : vector<1x1024xf32>
    %40 = vector.shape_cast %39 : vector<1x1024xf32> to vector<1x1x1024xf32>
    %41 = arith.mulf %31, %31 : vector<64x1024xf32>
    %cst_32 = arith.constant dense<0.000000e+00> : vector<1024xf32>
    %42 = vector.multi_reduction <add>, %41, %cst_32 [0] : vector<64x1024xf32> to vector<1024xf32>
    %43 = vector.shape_cast %42 : vector<1024xf32> to vector<1x1024xf32>
    %44 = vector.shape_cast %43 : vector<1x1024xf32> to vector<1x1x1024xf32>
    %cst_33 = arith.constant dense<0xFF800000> : vector<1024xf32>
    %45 = vector.multi_reduction <maximumf>, %31, %cst_33 [0] : vector<64x1024xf32> to vector<1024xf32>
    %46 = vector.shape_cast %45 : vector<1024xf32> to vector<1x1024xf32>
    %47 = vector.shape_cast %46 : vector<1x1024xf32> to vector<1x1x1024xf32>
    %cst_34 = arith.constant dense<0x7F800000> : vector<1024xf32>
    %48 = vector.multi_reduction <minimumf>, %31, %cst_34 [0] : vector<64x1024xf32> to vector<1024xf32>
    %49 = vector.shape_cast %48 : vector<1024xf32> to vector<1x1024xf32>
    %50 = vector.shape_cast %49 : vector<1x1024xf32> to vector<1x1x1024xf32>
    %c0_i32 = arith.constant 0 : i32
    %51 = arith.cmpi eq, %arg1, %c0_i32 : i32
    %52 = arith.extui %51 : i1 to i32
    %c0_i32_35 = arith.constant 0 : i32
    %53 = arith.cmpi ne, %52, %c0_i32_35 : i32
    scf.if %53 {
      %c0_38 = arith.constant 0 : index
      %c0_39 = arith.constant 0 : index
      %c0_40 = arith.constant 0 : index
      %57 = vector.load %arg13[%c0_38, %c0_39, %c0_40] : memref<1x1x1024xf32, #tpu.memory_space<vmem>>, vector<1x1x1024xf32>
      tpu.vector_store %arg13[%c0_38, %c0_39, %c0_40], %40 {strides = array<i32>} : memref<1x1x1024xf32, #tpu.memory_space<vmem>>, vector<1x1x1024xf32>,
      %c0_41 = arith.constant 0 : index
      %c0_42 = arith.constant 0 : index
      %c0_43 = arith.constant 0 : index
      %58 = vector.load %arg14[%c0_41, %c0_42, %c0_43] : memref<1x1x1024xf32, #tpu.memory_space<vmem>>, vector<1x1x1024xf32>
      tpu.vector_store %arg14[%c0_41, %c0_42, %c0_43], %44 {strides = array<i32>} : memref<1x1x1024xf32, #tpu.memory_space<vmem>>, vector<1x1x1024xf32>,
      %c0_44 = arith.constant 0 : index
      %c0_45 = arith.constant 0 : index
      %c0_46 = arith.constant 0 : index
      %59 = vector.load %arg15[%c0_44, %c0_45, %c0_46] : memref<1x1x1024xf32, #tpu.memory_space<vmem>>, vector<1x1x1024xf32>
      tpu.vector_store %arg15[%c0_44, %c0_45, %c0_46], %47 {strides = array<i32>} : memref<1x1x1024xf32, #tpu.memory_space<vmem>>, vector<1x1x1024xf32>,
      %c0_47 = arith.constant 0 : index
      %c0_48 = arith.constant 0 : index
      %c0_49 = arith.constant 0 : index
      %60 = vector.load %arg16[%c0_47, %c0_48, %c0_49] : memref<1x1x1024xf32, #tpu.memory_space<vmem>>, vector<1x1x1024xf32>
      tpu.vector_store %arg16[%c0_47, %c0_48, %c0_49], %50 {strides = array<i32>} : memref<1x1x1024xf32, #tpu.memory_space<vmem>>, vector<1x1x1024xf32>,
    } else {
    }
    %c0_i32_36 = arith.constant 0 : i32
    %54 = arith.cmpi sgt, %arg1, %c0_i32_36 : i32
    %55 = arith.extui %54 : i1 to i32
    %c0_i32_37 = arith.constant 0 : i32
    %56 = arith.cmpi ne, %55, %c0_i32_37 : i32
    scf.if %56 {
      %c0_38 = arith.constant 0 : index
      %c0_39 = arith.constant 0 : index
      %c0_40 = arith.constant 0 : index
      %57 = vector.load %arg13[%c0_38, %c0_39, %c0_40] : memref<1x1x1024xf32, #tpu.memory_space<vmem>>, vector<1x1x1024xf32>
      %58 = arith.addf %57, %40 : vector<1x1x1024xf32>
      %c0_41 = arith.constant 0 : index
      %c0_42 = arith.constant 0 : index
      %c0_43 = arith.constant 0 : index
      %59 = vector.load %arg13[%c0_41, %c0_42, %c0_43] : memref<1x1x1024xf32, #tpu.memory_space<vmem>>, vector<1x1x1024xf32>
      tpu.vector_store %arg13[%c0_41, %c0_42, %c0_43], %58 {strides = array<i32>} : memref<1x1x1024xf32, #tpu.memory_space<vmem>>, vector<1x1x1024xf32>,
      %c0_44 = arith.constant 0 : index
      %c0_45 = arith.constant 0 : index
      %c0_46 = arith.constant 0 : index
      %60 = vector.load %arg14[%c0_44, %c0_45, %c0_46] : memref<1x1x1024xf32, #tpu.memory_space<vmem>>, vector<1x1x1024xf32>
      %61 = arith.addf %60, %44 : vector<1x1x1024xf32>
      %c0_47 = arith.constant 0 : index
      %c0_48 = arith.constant 0 : index
      %c0_49 = arith.constant 0 : index
      %62 = vector.load %arg14[%c0_47, %c0_48, %c0_49] : memref<1x1x1024xf32, #tpu.memory_space<vmem>>, vector<1x1x1024xf32>
      tpu.vector_store %arg14[%c0_47, %c0_48, %c0_49], %61 {strides = array<i32>} : memref<1x1x1024xf32, #tpu.memory_space<vmem>>, vector<1x1x1024xf32>,
      %c0_50 = arith.constant 0 : index
      %c0_51 = arith.constant 0 : index
      %c0_52 = arith.constant 0 : index
      %63 = vector.load %arg15[%c0_50, %c0_51, %c0_52] : memref<1x1x1024xf32, #tpu.memory_space<vmem>>, vector<1x1x1024xf32>
      %64 = arith.maximumf %63, %47 : vector<1x1x1024xf32>
      %c0_53 = arith.constant 0 : index
      %c0_54 = arith.constant 0 : index
      %c0_55 = arith.constant 0 : index
      %65 = vector.load %arg15[%c0_53, %c0_54, %c0_55] : memref<1x1x1024xf32, #tpu.memory_space<vmem>>, vector<1x1x1024xf32>
      tpu.vector_store %arg15[%c0_53, %c0_54, %c0_55], %64 {strides = array<i32>} : memref<1x1x1024xf32, #tpu.memory_space<vmem>>, vector<1x1x1024xf32>,
      %c0_56 = arith.constant 0 : index
      %c0_57 = arith.constant 0 : index
      %c0_58 = arith.constant 0 : index
      %66 = vector.load %arg16[%c0_56, %c0_57, %c0_58] : memref<1x1x1024xf32, #tpu.memory_space<vmem>>, vector<1x1x1024xf32>
      %67 = arith.minimumf %66, %50 : vector<1x1x1024xf32>
      %c0_59 = arith.constant 0 : index
      %c0_60 = arith.constant 0 : index
      %c0_61 = arith.constant 0 : index
      %68 = vector.load %arg16[%c0_59, %c0_60, %c0_61] : memref<1x1x1024xf32, #tpu.memory_space<vmem>>, vector<1x1x1024xf32>
      tpu.vector_store %arg16[%c0_59, %c0_60, %c0_61], %67 {strides = array<i32>} : memref<1x1x1024xf32, #tpu.memory_space<vmem>>, vector<1x1x1024xf32>,
    } else {
    }
    return
  }
  func.func @transform_0(%arg0: i32, %arg1: i32) -> (i32, i32) {
    %c1_i32 = arith.constant 1 : i32
    %0 = arith.muli %arg0, %c1_i32 : i32
    %1 = arith.addi %0, %arg1 : i32
    %c0_i32 = arith.constant 0 : i32
    %c0_i32_0 = arith.constant 0 : i32
    return %1, %c0_i32 : i32, i32
  }
  func.func @transform_1(%arg0: i32, %arg1: i32) -> (i32, i32) {
    %c0_i32 = arith.constant 0 : i32
    %c0_i32_0 = arith.constant 0 : i32
    %c0_i32_1 = arith.constant 0 : i32
    return %c0_i32, %c0_i32_0 : i32, i32
  }
  func.func @transform_2(%arg0: i32, %arg1: i32) -> (i32, i32) {
    %c0_i32 = arith.constant 0 : i32
    %c0_i32_0 = arith.constant 0 : i32
    %c0_i32_1 = arith.constant 0 : i32
    return %c0_i32, %c0_i32_0 : i32, i32
  }
  func.func @transform_3(%arg0: i32, %arg1: i32) -> (i32, i32) {
    %c0_i32 = arith.constant 0 : i32
    %c0_i32_0 = arith.constant 0 : i32
    %c0_i32_1 = arith.constant 0 : i32
    return %c0_i32, %c0_i32_0 : i32, i32
  }
  func.func @transform_4(%arg0: i32, %arg1: i32) -> (i32, i32) {
    %c0_i32 = arith.constant 0 : i32
    %c0_i32_0 = arith.constant 0 : i32
    %c0_i32_1 = arith.constant 0 : i32
    return %c0_i32, %c0_i32_0 : i32, i32
  }
  func.func @transform_5(%arg0: i32, %arg1: i32) -> (i32, i32) {
    %c0_i32 = arith.constant 0 : i32
    %c0_i32_0 = arith.constant 0 : i32
    %c0_i32_1 = arith.constant 0 : i32
    return %c0_i32, %c0_i32_0 : i32, i32
  }
  func.func @transform_6(%arg0: i32, %arg1: i32) -> (i32, i32) {
    %c0_i32 = arith.constant 0 : i32
    %c0_i32_0 = arith.constant 0 : i32
    %c0_i32_1 = arith.constant 0 : i32
    return %c0_i32, %c0_i32_0 : i32, i32
  }
  func.func @transform_7(%arg0: i32, %arg1: i32) -> (i32, i32) {
    %c0_i32 = arith.constant 0 : i32
    %c0_i32_0 = arith.constant 0 : i32
    %c0_i32_1 = arith.constant 0 : i32
    return %c0_i32, %c0_i32_0 : i32, i32
  }
  func.func @transform_8(%arg0: i32, %arg1: i32) -> (i32, i32) {
    %c0_i32 = arith.constant 0 : i32
    %c0_i32_0 = arith.constant 0 : i32
    %c0_i32_1 = arith.constant 0 : i32
    return %c0_i32, %c0_i32_0 : i32, i32
  }
  func.func @transform_9(%arg0: i32, %arg1: i32) -> (i32, i32) {
    %c0_i32 = arith.constant 0 : i32
    %c0_i32_0 = arith.constant 0 : i32
    %c0_i32_1 = arith.constant 0 : i32
    return %c0_i32, %c0_i32_0 : i32, i32
  }
  func.func @transform_10(%arg0: i32, %arg1: i32) -> (i32, i32) {
    %c0_i32 = arith.constant 0 : i32
    %c0_i32_0 = arith.constant 0 : i32
    %c0_i32_1 = arith.constant 0 : i32
    return %c0_i32, %c0_i32_0 : i32, i32
  }
  func.func @transform_11(%arg0: i32, %arg1: i32) -> (i32, i32, i32) {
    %c0_i32 = arith.constant 0 : i32
    %c0_i32_0 = arith.constant 0 : i32
    %c0_i32_1 = arith.constant 0 : i32
    return %arg0, %c0_i32, %c0_i32_0 : i32, i32, i32
  }
  func.func @transform_12(%arg0: i32, %arg1: i32) -> (i32, i32, i32) {
    %c0_i32 = arith.constant 0 : i32
    %c0_i32_0 = arith.constant 0 : i32
    %c0_i32_1 = arith.constant 0 : i32
    return %arg0, %c0_i32, %c0_i32_0 : i32, i32, i32
  }
  func.func @transform_13(%arg0: i32, %arg1: i32) -> (i32, i32, i32) {
    %c0_i32 = arith.constant 0 : i32
    %c0_i32_0 = arith.constant 0 : i32
    %c0_i32_1 = arith.constant 0 : i32
    return %arg0, %c0_i32, %c0_i32_0 : i32, i32, i32
  }
  func.func @transform_14(%arg0: i32, %arg1: i32) -> (i32, i32, i32) {
    %c0_i32 = arith.constant 0 : i32
    %c0_i32_0 = arith.constant 0 : i32
    %c0_i32_1 = arith.constant 0 : i32
    return %arg0, %c0_i32, %c0_i32_0 : i32, i32, i32
  }
}

module attributes {stable_mosaic.version = 11 : i64} {
  func.func @_head_kernel(%arg0: memref<4x1024xf32, #tpu.memory_space<vmem>>, %arg1: memref<4x1024xf32, #tpu.memory_space<vmem>>, %arg2: memref<1x1024xf32, #tpu.memory_space<vmem>>, %arg3: memref<1x1024xf32, #tpu.memory_space<vmem>>, %arg4: memref<1024x512xf32, #tpu.memory_space<vmem>>, %arg5: memref<1x512xf32, #tpu.memory_space<vmem>>, %arg6: memref<1x512xf32, #tpu.memory_space<vmem>>, %arg7: memref<1x512xf32, #tpu.memory_space<vmem>>, %arg8: memref<512x256xf32, #tpu.memory_space<vmem>>, %arg9: memref<1x256xf32, #tpu.memory_space<vmem>>, %arg10: memref<1x256xf32, #tpu.memory_space<vmem>>, %arg11: memref<1x256xf32, #tpu.memory_space<vmem>>, %arg12: memref<256x128xf32, #tpu.memory_space<vmem>>, %arg13: memref<1x128xf32, #tpu.memory_space<vmem>>, %arg14: memref<4x128xf32, #tpu.memory_space<vmem>>) attributes {dimension_semantics = [], scalar_prefetch = 0 : i64, scratch_operands = 0 : i64, tpu.core_type = #tpu.core_type<tc>} {
    %c0 = arith.constant 0 : index
    %c0_0 = arith.constant 0 : index
    %0 = vector.load %arg2[%c0, %c0_0] : memref<1x1024xf32, #tpu.memory_space<vmem>>, vector<1x1024xf32>
    %c0_1 = arith.constant 0 : index
    %c0_2 = arith.constant 0 : index
    %1 = vector.load %arg3[%c0_1, %c0_2] : memref<1x1024xf32, #tpu.memory_space<vmem>>, vector<1x1024xf32>
    %cst = arith.constant 0.000000e+00 : f32
    %2 = vector.broadcast %cst : f32 to vector<1x1024xf32>
    %3 = arith.cmpf oge, %0, %2 : vector<1x1024xf32>
    %c0_3 = arith.constant 0 : index
    %c0_4 = arith.constant 0 : index
    %4 = vector.load %arg0[%c0_3, %c0_4] : memref<4x1024xf32, #tpu.memory_space<vmem>>, vector<4x1024xf32>
    %5 = vector.broadcast %0 : vector<1x1024xf32> to vector<4x1024xf32>
    %6 = arith.mulf %4, %5 : vector<4x1024xf32>
    %c0_5 = arith.constant 0 : index
    %c0_6 = arith.constant 0 : index
    %7 = vector.load %arg1[%c0_5, %c0_6] : memref<4x1024xf32, #tpu.memory_space<vmem>>, vector<4x1024xf32>
    %8 = vector.broadcast %0 : vector<1x1024xf32> to vector<4x1024xf32>
    %9 = arith.mulf %7, %8 : vector<4x1024xf32>
    %10 = vector.shape_cast %3 : vector<1x1024xi1> to vector<1x1024xi1>
    %11 = vector.broadcast %10 : vector<1x1024xi1> to vector<4x1024xi1>
    %12 = arith.select %11, %6, %9 : vector<4x1024xi1>, vector<4x1024xf32>
    %13 = vector.broadcast %1 : vector<1x1024xf32> to vector<4x1024xf32>
    %14 = arith.addf %12, %13 : vector<4x1024xf32>
    %cst_7 = arith.constant 0.000000e+00 : f32
    %15 = vector.broadcast %cst_7 : f32 to vector<4x1024xf32>
    %16 = arith.maximumf %14, %15 : vector<4x1024xf32>
    %c0_8 = arith.constant 0 : index
    %c0_9 = arith.constant 0 : index
    %17 = vector.load %arg4[%c0_8, %c0_9] : memref<1024x512xf32, #tpu.memory_space<vmem>>, vector<1024x512xf32>
    %cst_10 = arith.constant dense<0.000000e+00> : vector<4x512xf32>
    %18 = tpu.matmul %16, %17, %cst_10 {dimension_numbers = #tpu.dot_dimension_numbers<[1], [0], [0], [1], [0, 0, 1, 1], [], []>} : vector<4x1024xf32>, vector<1024x512xf32>, vector<4x512xf32> -> vector<4x512xf32>
    %c0_11 = arith.constant 0 : index
    %c0_12 = arith.constant 0 : index
    %19 = vector.load %arg5[%c0_11, %c0_12] : memref<1x512xf32, #tpu.memory_space<vmem>>, vector<1x512xf32>
    %20 = vector.broadcast %19 : vector<1x512xf32> to vector<4x512xf32>
    %21 = arith.addf %18, %20 : vector<4x512xf32>
    %cst_13 = arith.constant dense<0.000000e+00> : vector<512xf32>
    %22 = vector.multi_reduction <add>, %21, %cst_13 [0] : vector<4x512xf32> to vector<512xf32>
    %23 = vector.shape_cast %22 : vector<512xf32> to vector<1x512xf32>
    %cst_14 = arith.constant 4.000000e+00 : f32
    %24 = vector.broadcast %cst_14 : f32 to vector<1x512xf32>
    %25 = arith.divf %23, %24 : vector<1x512xf32>
    %26 = vector.broadcast %25 : vector<1x512xf32> to vector<4x512xf32>
    %27 = arith.subf %21, %26 : vector<4x512xf32>
    %28 = arith.mulf %27, %27 : vector<4x512xf32>
    %cst_15 = arith.constant dense<0.000000e+00> : vector<512xf32>
    %29 = vector.multi_reduction <add>, %28, %cst_15 [0] : vector<4x512xf32> to vector<512xf32>
    %30 = vector.shape_cast %29 : vector<512xf32> to vector<1x512xf32>
    %cst_16 = arith.constant 4.000000e+00 : f32
    %31 = vector.broadcast %cst_16 : f32 to vector<1x512xf32>
    %32 = arith.divf %30, %31 : vector<1x512xf32>
    %c0_17 = arith.constant 0 : index
    %c0_18 = arith.constant 0 : index
    %33 = vector.load %arg6[%c0_17, %c0_18] : memref<1x512xf32, #tpu.memory_space<vmem>>, vector<1x512xf32>
    %cst_19 = arith.constant 9.99999974E-6 : f32
    %34 = vector.broadcast %cst_19 : f32 to vector<1x512xf32>
    %35 = arith.addf %32, %34 : vector<1x512xf32>
    %36 = math.rsqrt %35 : vector<1x512xf32>
    %37 = arith.mulf %33, %36 : vector<1x512xf32>
    %38 = vector.broadcast %37 : vector<1x512xf32> to vector<4x512xf32>
    %39 = arith.mulf %27, %38 : vector<4x512xf32>
    %c0_20 = arith.constant 0 : index
    %c0_21 = arith.constant 0 : index
    %40 = vector.load %arg7[%c0_20, %c0_21] : memref<1x512xf32, #tpu.memory_space<vmem>>, vector<1x512xf32>
    %41 = vector.broadcast %40 : vector<1x512xf32> to vector<4x512xf32>
    %42 = arith.addf %39, %41 : vector<4x512xf32>
    %cst_22 = arith.constant 0.000000e+00 : f32
    %43 = vector.broadcast %cst_22 : f32 to vector<4x512xf32>
    %44 = arith.maximumf %42, %43 : vector<4x512xf32>
    %c0_23 = arith.constant 0 : index
    %c0_24 = arith.constant 0 : index
    %45 = vector.load %arg8[%c0_23, %c0_24] : memref<512x256xf32, #tpu.memory_space<vmem>>, vector<512x256xf32>
    %cst_25 = arith.constant dense<0.000000e+00> : vector<4x256xf32>
    %46 = tpu.matmul %44, %45, %cst_25 {dimension_numbers = #tpu.dot_dimension_numbers<[1], [0], [0], [1], [0, 0, 1, 1], [], []>} : vector<4x512xf32>, vector<512x256xf32>, vector<4x256xf32> -> vector<4x256xf32>
    %c0_26 = arith.constant 0 : index
    %c0_27 = arith.constant 0 : index
    %47 = vector.load %arg9[%c0_26, %c0_27] : memref<1x256xf32, #tpu.memory_space<vmem>>, vector<1x256xf32>
    %48 = vector.broadcast %47 : vector<1x256xf32> to vector<4x256xf32>
    %49 = arith.addf %46, %48 : vector<4x256xf32>
    %cst_28 = arith.constant dense<0.000000e+00> : vector<256xf32>
    %50 = vector.multi_reduction <add>, %49, %cst_28 [0] : vector<4x256xf32> to vector<256xf32>
    %51 = vector.shape_cast %50 : vector<256xf32> to vector<1x256xf32>
    %cst_29 = arith.constant 4.000000e+00 : f32
    %52 = vector.broadcast %cst_29 : f32 to vector<1x256xf32>
    %53 = arith.divf %51, %52 : vector<1x256xf32>
    %54 = vector.broadcast %53 : vector<1x256xf32> to vector<4x256xf32>
    %55 = arith.subf %49, %54 : vector<4x256xf32>
    %56 = arith.mulf %55, %55 : vector<4x256xf32>
    %cst_30 = arith.constant dense<0.000000e+00> : vector<256xf32>
    %57 = vector.multi_reduction <add>, %56, %cst_30 [0] : vector<4x256xf32> to vector<256xf32>
    %58 = vector.shape_cast %57 : vector<256xf32> to vector<1x256xf32>
    %cst_31 = arith.constant 4.000000e+00 : f32
    %59 = vector.broadcast %cst_31 : f32 to vector<1x256xf32>
    %60 = arith.divf %58, %59 : vector<1x256xf32>
    %c0_32 = arith.constant 0 : index
    %c0_33 = arith.constant 0 : index
    %61 = vector.load %arg10[%c0_32, %c0_33] : memref<1x256xf32, #tpu.memory_space<vmem>>, vector<1x256xf32>
    %cst_34 = arith.constant 9.99999974E-6 : f32
    %62 = vector.broadcast %cst_34 : f32 to vector<1x256xf32>
    %63 = arith.addf %60, %62 : vector<1x256xf32>
    %64 = math.rsqrt %63 : vector<1x256xf32>
    %65 = arith.mulf %61, %64 : vector<1x256xf32>
    %66 = vector.broadcast %65 : vector<1x256xf32> to vector<4x256xf32>
    %67 = arith.mulf %55, %66 : vector<4x256xf32>
    %c0_35 = arith.constant 0 : index
    %c0_36 = arith.constant 0 : index
    %68 = vector.load %arg11[%c0_35, %c0_36] : memref<1x256xf32, #tpu.memory_space<vmem>>, vector<1x256xf32>
    %69 = vector.broadcast %68 : vector<1x256xf32> to vector<4x256xf32>
    %70 = arith.addf %67, %69 : vector<4x256xf32>
    %cst_37 = arith.constant 0.000000e+00 : f32
    %71 = vector.broadcast %cst_37 : f32 to vector<4x256xf32>
    %72 = arith.maximumf %70, %71 : vector<4x256xf32>
    %c0_38 = arith.constant 0 : index
    %c0_39 = arith.constant 0 : index
    %73 = vector.load %arg12[%c0_38, %c0_39] : memref<256x128xf32, #tpu.memory_space<vmem>>, vector<256x128xf32>
    %cst_40 = arith.constant dense<0.000000e+00> : vector<4x128xf32>
    %74 = tpu.matmul %72, %73, %cst_40 {dimension_numbers = #tpu.dot_dimension_numbers<[1], [0], [0], [1], [0, 0, 1, 1], [], []>} : vector<4x256xf32>, vector<256x128xf32>, vector<4x128xf32> -> vector<4x128xf32>
    %c0_41 = arith.constant 0 : index
    %c0_42 = arith.constant 0 : index
    %75 = vector.load %arg13[%c0_41, %c0_42] : memref<1x128xf32, #tpu.memory_space<vmem>>, vector<1x128xf32>
    %76 = vector.broadcast %75 : vector<1x128xf32> to vector<4x128xf32>
    %77 = arith.addf %74, %76 : vector<4x128xf32>
    %c0_43 = arith.constant 0 : index
    %c0_44 = arith.constant 0 : index
    %78 = vector.load %arg14[%c0_43, %c0_44] : memref<4x128xf32, #tpu.memory_space<vmem>>, vector<4x128xf32>
    tpu.vector_store %arg14[%c0_43, %c0_44], %77 {strides = array<i32>} : memref<4x128xf32, #tpu.memory_space<vmem>>, vector<4x128xf32>,
    return
  }
}

</mosaic_0001>

<llo_original>
// kernel: input_transform_net.4
$region0: #{input_transform_net.4}
  #allocation0 [shape = 'u32[]', space=smem, size = 0x4, offset = 0x4, fixed_abs, tag = 'smem constant byte address 0x4 - core index']
  #allocation1 [shape = 'u32[144,128]{1,0:T(1,128)}', space=vmem, size = 0x12000, scoped, tag = 'internal scratch']
  %s0 = inlined_call_operand.vmem [shape: f32[256,9], index: 0, kind: input, shape index: {}]
  %s1 = inlined_call_operand.hbm [shape: f32[9,64], index: 1, kind: input, shape index: {}]
  %s2 = inlined_call_operand.hbm [shape: f32[1,64], index: 2, kind: input, shape index: {}]
  %s3 = inlined_call_operand.vmem [shape: f32[2,1,64], index: 3, kind: output, shape index: {0}]
  %s4 = inlined_call_operand.vmem [shape: f32[2,1,64], index: 4, kind: output, shape index: {1}]
  %5 = xla_tuple %s3, %s4
  %s6 = sld [smem:[#allocation0]]
  $region69: #{input_transform_net.4} parent=0
    _
  %s8 = ssub.s32 1, %s6
  %s9 = scalar_select 0, %s8, %s6
  $region1: #{input_transform_net.4} parent=0
    #allocation2 [shape = 'u8[8192]{0}', space=vmem, size = 0x2000, scoped, tag = 'input window, operand 1, single buffered']
    #allocation3 [shape = 's32[2]{0}', space=sflag, size = 0x8, scoped, tag = 'scoped memory for input_transform_net.4']
    #allocation4 [shape = 'u8[512]{0}', space=vmem, size = 0x400, scoped, tag = 'input window, operand 2, single buffered']
    #allocation5 [shape = 's32[1]{0}', space=sflag, size = 0x4, scoped, tag = 'scoped memory for input_transform_net.4']
    %10 = vsyncpa [#allocation3], 0
    %11 = vsyncpa [#allocation5], 0
    loop: start=0, step=1, limit=4
    $region2: #{input_transform_net.4} parent=1 // loop_pre_header
      _
    $region3: #{input_transform_net.4} parent=1 // loop_header
      %s13 = sphi 0, %s17
      %p14 = scmp.ge.s32.totalorder %s13, 4
      %s20 = sphi 0, %s32
      %s21 = sphi 0, %s28
      %s22 = sphi 0, %s20
      %s23 = sphi 0, %s21
      %s24 = sphi 0, %s22
      %s25 = sphi 0, %s23
      %s37 = sphi 0, %s39
      %s40 = sphi 0, %s37
      %s41 = sphi 0, %s40
      %s57 = sphi 0, %s41
      %s61 = sphi 0, %s61
      %s63 = sphi 0, %s61
      %s64 = sphi 0, %s63
      %s78 = sphi 0, %s64
      %s82 = sphi 0, %s82
      %s84 = sphi 0, %s82
      %s85 = sphi 0, %s84
      %s99 = sphi 0, %s85
      %s105 = sphi 0, %s107
      %s108 = sphi 0, %s105
      %s109 = sphi 0, %s108
      %s125 = sphi 0, %s109
      %s131 = sphi 0, %s133
      %s134 = sphi 0, %s131
      %s135 = sphi 0, %s134
      %s151 = sphi 0, %s135
    $region4: #{input_transform_net.4} parent=1 // loop_header_branch
      %16 = sbr.rel (%p14) target = $region8
    $region5: #{input_transform_net.4} parent=1 // loop_body
      %s18 = ssub.s32 %s13, 1
      %s19 = ssub.s32 %s13, 2
      %s26 = sadd.s32 1, %s21
      %p27 = scmp.ge.s32.totalorder %s26, 1
      %s28 = scalar_select %p27, 0, %s26
      %s29 = sadd.s32 1, %s20
      %s30 = scalar_select %p27, %s29, %s20
      %p31 = scmp.ge.s32.totalorder %s30, 2
      %s32 = scalar_select %p31, 0, %s30
      %s33 = sadd.s32 %s20, %s21
      %s34 = sadd.s32 %s32, %s28
      %s35 = ssub.s32 %s33, %s34
      %p36 = scmp.eq.s32.totalorder %s35, 0
      %s38 = sadd.s32 %s37, 1
      %s39 = scalar_select %p36, %s37, %s38
      %p42 = pneg %p36
      %p43 = scmp.eq.s32.totalorder %s13, 1
      %p44 = por %p42, %p43
      %p45 = scmp.ne.s32.totalorder %s37, %s40
      %p46 = scmp.eq.s32.totalorder %s13, 0
      %p47 = por %p45, %p46
      %p48 = scmp.ne.s32.totalorder %s37, %s40
      %p49 = scmp.eq.s32.totalorder %s18, 1
      %p50 = por %p48, %p49
      %p51 = scmp.ne.s32.totalorder %s40, %s41
      %p52 = scmp.eq.s32.totalorder %s18, 0
      %p53 = por %p51, %p52
      %p54 = scmp.ne.s32.totalorder %s40, %s41
      %p55 = scmp.eq.s32.totalorder %s19, 1
      %p56 = por %p54, %p55
      %p58 = scmp.ne.s32.totalorder %s41, %s57
      %p59 = scmp.eq.s32.totalorder %s19, 0
      %p60 = por %p58, %p59
      %s62 = sadd.s32 %s61, 1
      %p65 = scmp.eq.s32.totalorder %s13, 1
      %p66 = scmp.ne.s32.totalorder %s61, %s63
      %p67 = scmp.eq.s32.totalorder %s13, 0
      %p68 = por %p66, %p67
      %p69 = scmp.ne.s32.totalorder %s61, %s63
      %p70 = scmp.eq.s32.totalorder %s18, 1
      %p71 = por %p69, %p70
      %p72 = scmp.ne.s32.totalorder %s63, %s64
      %p73 = scmp.eq.s32.totalorder %s18, 0
      %p74 = por %p72, %p73
      %p75 = scmp.ne.s32.totalorder %s63, %s64
      %p76 = scmp.eq.s32.totalorder %s19, 1
      %p77 = por %p75, %p76
      %p79 = scmp.ne.s32.totalorder %s64, %s78
      %p80 = scmp.eq.s32.totalorder %s19, 0
      %p81 = por %p79, %p80
      %s83 = sadd.s32 %s82, 1
      %p86 = scmp.eq.s32.totalorder %s13, 1
      %p87 = scmp.ne.s32.totalorder %s82, %s84
      %p88 = scmp.eq.s32.totalorder %s13, 0
      %p89 = por %p87, %p88
      %p90 = scmp.ne.s32.totalorder %s82, %s84
      %p91 = scmp.eq.s32.totalorder %s18, 1
      %p92 = por %p90, %p91
      %p93 = scmp.ne.s32.totalorder %s84, %s85
      %p94 = scmp.eq.s32.totalorder %s18, 0
      %p95 = por %p93, %p94
      %p96 = scmp.ne.s32.totalorder %s84, %s85
      %p97 = scmp.eq.s32.totalorder %s19, 1
      %p98 = por %p96, %p97
      %p100 = scmp.ne.s32.totalorder %s85, %s99
      %p101 = scmp.eq.s32.totalorder %s19, 0
      %p102 = por %p100, %p101
      %s103 = ssub.s32 %s20, %s32
      %p104 = scmp.eq.s32.totalorder %s103, 0
      %s106 = sadd.s32 %s105, 1
      %s107 = scalar_select %p104, %s105, %s106
      %p110 = pneg %p104
      %p111 = scmp.eq.s32.totalorder %s13, 1
      %p112 = por %p110, %p111
      %p113 = scmp.ne.s32.totalorder %s105, %s108
      %p114 = scmp.eq.s32.totalorder %s13, 0
      %p115 = por %p113, %p114
      %p116 = scmp.ne.s32.totalorder %s105, %s108
      %p117 = scmp.eq.s32.totalorder %s18, 1
      %p118 = por %p116, %p117
      %p119 = scmp.ne.s32.totalorder %s108, %s109
      %p120 = scmp.eq.s32.totalorder %s18, 0
      %p121 = por %p119, %p120
      %p122 = scmp.ne.s32.totalorder %s108, %s109
      %p123 = scmp.eq.s32.totalorder %s19, 1
      %p124 = por %p122, %p123
      %p126 = scmp.ne.s32.totalorder %s109, %s125
      %p127 = scmp.eq.s32.totalorder %s19, 0
      %p128 = por %p126, %p127
      %s129 = ssub.s32 %s20, %s32
      %p130 = scmp.eq.s32.totalorder %s129, 0
      %s132 = sadd.s32 %s131, 1
      %s133 = scalar_select %p130, %s131, %s132
      %p136 = pneg %p130
      %p137 = scmp.eq.s32.totalorder %s13, 1
      %p138 = por %p136, %p137
      %p139 = scmp.ne.s32.totalorder %s131, %s134
      %p140 = scmp.eq.s32.totalorder %s13, 0
      %p141 = por %p139, %p140
      %p142 = scmp.ne.s32.totalorder %s131, %s134
      %p143 = scmp.eq.s32.totalorder %s18, 1
      %p144 = por %p142, %p143
      %p145 = scmp.ne.s32.totalorder %s134, %s135
      %p146 = scmp.eq.s32.totalorder %s18, 0
      %p147 = por %p145, %p146
      %p148 = scmp.ne.s32.totalorder %s134, %s135
      %p149 = scmp.eq.s32.totalorder %s19, 1
      %p150 = por %p148, %p149
      %p152 = scmp.ne.s32.totalorder %s135, %s151
      %p153 = scmp.eq.s32.totalorder %s19, 0
      %p154 = por %p152, %p153
      %p155 = scmp.le.s32.totalorder 1, %s13
      %p156 = scmp.lt.s32.totalorder %s13, 3
      %p157 = pnand %p155, %p156
      %p158 = pneg %p157
      // Predicated region
      $region9: #{input_transform_net.4} parent=5 // pred_check
        _
      $region10: #{input_transform_net.4} parent=5 // pred_check_branch
        %160 = sbr.rel (%p157) target = $region12
      $region11: #{input_transform_net.4} parent=5 // pred_region
        %s161 = ssub.s32 %s13, 1
        // Predicated region
        $region13: #{input_transform_net.4} parent=11 // pred_check
          %p162 = pneg %p74
        $region14: #{input_transform_net.4} parent=11 // pred_check_branch
          %164 = sbr.rel (%p162) target = $region16
        $region15: #{input_transform_net.4} parent=11 // pred_region
          %s166 = ssub.s32 256, 256
          %167 = vsyncadd [#allocation3], %s166
          %s168 = sshll.u32 [#allocation2], 4
          %s169 = int_to_ptr.vmem [resolvable:$true] %s168
          %174 = dma.hbm_to_vmem [thread:$0]  %s1, 256, %s169, [#allocation3], 128, 128, 8
        $region16: #{input_transform_net.4} parent=11 // pred_fallthru
          _
        // Predicated region
        $region17: #{input_transform_net.4} parent=11 // pred_check
          %p175 = pneg %p95
        $region18: #{input_transform_net.4} parent=11 // pred_check_branch
          %177 = sbr.rel (%p175) target = $region20
        $region19: #{input_transform_net.4} parent=11 // pred_region
          %s179 = ssub.s32 16, 16
          %180 = vsyncadd [#allocation5], %s179
          %s182 = sshll.u32 [#allocation4], 4
          %s183 = int_to_ptr.vmem [resolvable:$true] %s182
          %185 = dma.hbm_to_vmem [thread:$0]  %s2, 16, %s183, [#allocation5]
        $region20: #{input_transform_net.4} parent=11 // pred_fallthru
          _
      $region12: #{input_transform_net.4} parent=5 // pred_fallthru
        _
      %p186 = scmp.lt.s32.totalorder %s13, 2
      // Predicated region
      $region21: #{input_transform_net.4} parent=5 // pred_check
        %p187 = pneg %p186
      $region22: #{input_transform_net.4} parent=5 // pred_check_branch
        %189 = sbr.rel (%p187) target = $region24
      $region23: #{input_transform_net.4} parent=5 // pred_region
        // Predicated region
        $region25: #{input_transform_net.4} parent=23 // pred_check
          %p190 = pneg %p47
        $region26: #{input_transform_net.4} parent=23 // pred_check_branch
          %192 = sbr.rel (%p190) target = $region28
        $region27: #{input_transform_net.4} parent=23 // pred_region
          %s193 = sadd.s32 %s20, %s21
          %s194 = smul.u32 16, %s193
          %p195 = scmp.lt.s32.totalorder %s194, 31
          %s196 = scalar_select %p195, %s194, 31
          %s197 = smul.addr %s196, 8
          %s198 = scalar_lea.vmem %s0, %s197
          %s199 = sadd.s32 %s20, %s21
          %s200 = smul.u32 16, %s199
        $region28: #{input_transform_net.4} parent=23 // pred_fallthru
          _
      $region24: #{input_transform_net.4} parent=5 // pred_fallthru
        _
      %p201 = scmp.le.s32.totalorder 1, %s13
      %p202 = scmp.lt.s32.totalorder %s13, 3
      %p203 = pnand %p201, %p202
      %p204 = pneg %p203
      // Predicated region
      $region29: #{input_transform_net.4} parent=5 // pred_check
        _
      $region30: #{input_transform_net.4} parent=5 // pred_check_branch
        %206 = sbr.rel (%p203) target = $region32
      $region31: #{input_transform_net.4} parent=5 // pred_region
        %s207 = ssub.s32 %s13, 1
        // Predicated region
        $region33: #{input_transform_net.4} parent=31 // pred_check
          %p208 = pneg %p74
        $region34: #{input_transform_net.4} parent=31 // pred_check_branch
          %210 = sbr.rel (%p208) target = $region36
        $region35: #{input_transform_net.4} parent=31 // pred_region
          %211 = dma.done [#allocation3], 256
        $region36: #{input_transform_net.4} parent=31 // pred_fallthru
          _
        // Predicated region
        $region37: #{input_transform_net.4} parent=31 // pred_check
          %p212 = pneg %p95
        $region38: #{input_transform_net.4} parent=31 // pred_check_branch
          %214 = sbr.rel (%p212) target = $region40
        $region39: #{input_transform_net.4} parent=31 // pred_region
          %215 = dma.done [#allocation5], 16
        $region40: #{input_transform_net.4} parent=31 // pred_fallthru
          _
        %s216 = sadd.s32 %s22, %s23
        %s217 = smul.u32 16, %s216
        %p218 = scmp.lt.s32.totalorder %s217, 31
        %s219 = scalar_select %p218, %s217, 31
        %s220 = smul.addr %s219, 8
        %s221 = scalar_lea.vmem %s0, %s220
        %p222 = pneg %p53
        %p223 = pneg %p50
        %p224 = pneg %p74
        %p225 = pneg %p71
        %p226 = pneg %p95
        %p227 = pneg %p92
        %p228 = pneg %p121
        %p229 = pneg %p118
        %p230 = scmp.lt.s32.totalorder %s22, 1
        %s231 = scalar_select %p230, %s22, 1
        %s232 = scalar_lea.vmem %s3, %s231
        %p233 = pneg %p147
        %p234 = pneg %p144
        %p235 = scmp.lt.s32.totalorder %s22, 1
        %s236 = scalar_select %p235, %s22, 1
        %s237 = scalar_lea.vmem %s4, %s236
        %s238 = sadd.s32 %s22, %s23
        %s239 = smul.u32 16, %s238
        %p240 = scmp.lt.s32.totalorder %s239, 31
        %s241 = scalar_select %p240, %s239, 31
        %s242 = smul.addr %s241, 8
        %s243 = scalar_lea.vmem %s0, %s242
        %s244 = sadd.s32 %s22, %s23
        %s245 = smul.u32 16, %s244
        %p246 = scmp.lt.s32.totalorder %s22, 1
        %s247 = scalar_select %p246, %s22, 1
        %s248 = scalar_lea.vmem %s3, %s247
        %p249 = scmp.lt.s32.totalorder %s22, 1
        %s250 = scalar_select %p249, %s22, 1
        %s251 = scalar_lea.vmem %s4, %s250
        %v252 = vld [vmem:[%s243] sm:$0xff]
        %v253 = vld [vmem:[%s243 + $0x8] sm:$0xff]
        %v254 = vld [vmem:[%s243 + $0x10] sm:$0xff]
        %v255 = vld [vmem:[%s243 + $0x18] sm:$0xff]
        %v256 = vld [vmem:[%s243 + $0x20] sm:$0xff]
        %v257 = vld [vmem:[%s243 + $0x28] sm:$0xff]
        %v258 = vld [vmem:[%s243 + $0x30] sm:$0xff]
        %v259 = vld [vmem:[%s243 + $0x38] sm:$0xff]
        %v260 = vld [vmem:[%s243 + $0x40] sm:$0xff]
        %v261 = vld [vmem:[%s243 + $0x48] sm:$0xff]
        %v262 = vld [vmem:[%s243 + $0x50] sm:$0xff]
        %v263 = vld [vmem:[%s243 + $0x58] sm:$0xff]
        %v264 = vld [vmem:[%s243 + $0x60] sm:$0xff]
        %v265 = vld [vmem:[%s243 + $0x68] sm:$0xff]
        %v266 = vld [vmem:[%s243 + $0x70] sm:$0xff]
        %v267 = vld [vmem:[%s243 + $0x78] sm:$0xff]
        %v268 = vld [vmem:[#allocation2] sm:$0xff]
        %v269 = vld [vmem:[#allocation2 + $0x8] sm:$0x1]
        %v270 = vld [vmem:[#allocation4] sm:$0x1]
        %v272 = vlaneseq
        %v273 = vshrl.u32 %v272, 7
        %v274 = vsub.s32 0, %v273
        %v275 = vrot.slane %v270, %v274
        %vm277 = vcmask 72704
        %v279 = vsel %vm277, %v252, 0
        %v282 = vsel %vm277, %v253, 0
        %v285 = vsel %vm277, %v254, 0
        %v288 = vsel %vm277, %v255, 0
        %v291 = vsel %vm277, %v256, 0
        %v294 = vsel %vm277, %v257, 0
        %v297 = vsel %vm277, %v258, 0
        %v300 = vsel %vm277, %v259, 0
        %v303 = vsel %vm277, %v260, 0
        %v306 = vsel %vm277, %v261, 0
        %v309 = vsel %vm277, %v262, 0
        %v312 = vsel %vm277, %v263, 0
        %v315 = vsel %vm277, %v264, 0
        %v318 = vsel %vm277, %v265, 0
        %v321 = vsel %vm277, %v266, 0
        %v324 = vsel %vm277, %v267, 0
        %vm326 = vcmask 1040384
        %v328 = vsel %vm326, %v269, 0
        %330 = vmatprep.subr.mxu0 0.0
        %331 = vmatpush1.msra.mxu0 %v268
        %332 = vmatprep.subr.mxu0 0.0
        %333 = vmatpush1.msra.mxu0 %v328
        %334 = vmatprep.subr.mxu0 0.0
        %335 = vmatpush1.msra.mxu0 0.0
        %336 = vmatprep.subr.mxu0 0.0
        %337 = vmatpush1.msra.mxu0 0.0
        %338 = vmatprep.subr.mxu0 0.0
        %339 = vmatpush1.msra.mxu0 0.0
        %340 = vmatprep.subr.mxu0 0.0
        %341 = vmatpush1.msra.mxu0 0.0
        %342 = vmatprep.subr.mxu0 0.0
        %343 = vmatpush1.msra.mxu0 0.0
        %344 = vmatprep.subr.mxu0 0.0
        %345 = vmatpush1.msra.mxu0 0.0
        %346 = vmatprep.subr.mxu0 0.0
        %347 = vmatpush1.msra.mxu0 0.0
        %348 = vmatprep.subr.mxu0 0.0
        %349 = vmatpush1.msra.mxu0 0.0
        %350 = vmatprep.subr.mxu0 0.0
        %351 = vmatpush1.msra.mxu0 0.0
        %352 = vmatprep.subr.mxu0 0.0
        %353 = vmatpush1.msra.mxu0 0.0
        %354 = vmatprep.subr.mxu0 0.0
        %355 = vmatpush1.msra.mxu0 0.0
        %356 = vmatprep.subr.mxu0 0.0
        %357 = vmatpush1.msra.mxu0 0.0
        %358 = vmatprep.subr.mxu0 0.0
        %359 = vmatpush1.msra.mxu0 0.0
        %360 = vmatprep.subr.mxu0 0.0
        %361 = vmatpush1.msra.mxu0 0.0
        %362 = vmatprep.subr.mxu0 0.0
        %363 = vmatpush1.msra.mxu0 0.0
        %364 = vmatprep.subr.mxu0 0.0
        %365 = vmatpush1.msra.mxu0 0.0
        %366 = vmatprep.subr.mxu0 0.0
        %367 = vmatpush1.msra.mxu0 0.0
        %368 = vmatprep.subr.mxu0 0.0
        %369 = vmatpush1.msra.mxu0 0.0
        %370 = vmatprep.subr.mxu0 0.0
        %371 = vmatpush1.msra.mxu0 0.0
        %372 = vmatprep.subr.mxu0 0.0
        %373 = vmatpush1.msra.mxu0 0.0
        %374 = vmatprep.subr.mxu0 0.0
        %375 = vmatpush1.msra.mxu0 0.0
        %376 = vmatprep.subr.mxu0 0.0
        %377 = vmatpush1.msra.mxu0 0.0
        %378 = vmatprep.subr.mxu0 0.0
        %379 = vmatpush1.msra.mxu0 0.0
        %380 = vmatprep.subr.mxu0 0.0
        %381 = vmatpush1.msra.mxu0 0.0
        %382 = vmatprep.subr.mxu0 0.0
        %383 = vmatpush1.msra.mxu0 0.0
        %384 = vmatprep.subr.mxu0 0.0
        %385 = vmatpush1.msra.mxu0 0.0
        %386 = vmatprep.subr.mxu0 0.0
        %387 = vmatpush1.msra.mxu0 0.0
        %388 = vmatprep.subr.mxu0 0.0
        %389 = vmatpush1.msra.mxu0 0.0
        %390 = vmatprep.subr.mxu0 0.0
        %391 = vmatpush1.msra.mxu0 0.0
        %392 = vmatprep.subr.mxu0 0.0
        %393 = vmatpush1.msra.mxu0 0.0
        %394 = vmatprep.mubr.f32.mxu0 0.0
        %395 = vmatmul.mubr.f32.gmra.mrb[0].mxu0 %v279
        %v396 = vpop.f32.mrb[0].mxu0
        %v397 = vadd.f32 %v275, %v396
        %v398 = vpop.f32.mrb[0].mxu0
        %399 = vmatprep.mubr.f32.mxu0 0.0
        %400 = vmatmul.mubr.f32.gmra.mrb[0].mxu0 %v282
        %v401 = vpop.f32.mrb[0].mxu0
        %v402 = vadd.f32 %v275, %v401
        %v403 = vpop.f32.mrb[0].mxu0
        %404 = vmatprep.mubr.f32.mxu0 0.0
        %405 = vmatmul.mubr.f32.gmra.mrb[0].mxu0 %v285
        %v406 = vpop.f32.mrb[0].mxu0
        %v407 = vadd.f32 %v275, %v406
        %v408 = vpop.f32.mrb[0].mxu0
        %409 = vmatprep.mubr.f32.mxu0 0.0
        %410 = vmatmul.mubr.f32.gmra.mrb[0].mxu0 %v288
        %v411 = vpop.f32.mrb[0].mxu0
        %v412 = vadd.f32 %v275, %v411
        %v413 = vpop.f32.mrb[0].mxu0
        %414 = vmatprep.mubr.f32.mxu0 0.0
        %415 = vmatmul.mubr.f32.gmra.mrb[0].mxu0 %v291
        %v416 = vpop.f32.mrb[0].mxu0
        %v417 = vadd.f32 %v275, %v416
        %v418 = vpop.f32.mrb[0].mxu0
        %419 = vmatprep.mubr.f32.mxu0 0.0
        %420 = vmatmul.mubr.f32.gmra.mrb[0].mxu0 %v294
        %v421 = vpop.f32.mrb[0].mxu0
        %v422 = vadd.f32 %v275, %v421
        %v423 = vpop.f32.mrb[0].mxu0
        %424 = vmatprep.mubr.f32.mxu0 0.0
        %425 = vmatmul.mubr.f32.gmra.mrb[0].mxu0 %v297
        %v426 = vpop.f32.mrb[0].mxu0
        %v427 = vadd.f32 %v275, %v426
        %v428 = vpop.f32.mrb[0].mxu0
        %429 = vmatprep.mubr.f32.mxu0 0.0
        %430 = vmatmul.mubr.f32.gmra.mrb[0].mxu0 %v300
        %v431 = vpop.f32.mrb[0].mxu0
        %v432 = vadd.f32 %v275, %v431
        %v433 = vpop.f32.mrb[0].mxu0
        %434 = vmatprep.mubr.f32.mxu0 0.0
        %435 = vmatmul.mubr.f32.gmra.mrb[0].mxu0 %v303
        %v436 = vpop.f32.mrb[0].mxu0
        %v437 = vadd.f32 %v275, %v436
        %v438 = vpop.f32.mrb[0].mxu0
        %439 = vmatprep.mubr.f32.mxu0 0.0
        %440 = vmatmul.mubr.f32.gmra.mrb[0].mxu0 %v306
        %v441 = vpop.f32.mrb[0].mxu0
        %v442 = vadd.f32 %v275, %v441
        %v443 = vpop.f32.mrb[0].mxu0
        %444 = vmatprep.mubr.f32.mxu0 0.0
        %445 = vmatmul.mubr.f32.gmra.mrb[0].mxu0 %v309
        %v446 = vpop.f32.mrb[0].mxu0
        %v447 = vadd.f32 %v275, %v446
        %v448 = vpop.f32.mrb[0].mxu0
        %449 = vmatprep.mubr.f32.mxu0 0.0
        %450 = vmatmul.mubr.f32.gmra.mrb[0].mxu0 %v312
        %v451 = vpop.f32.mrb[0].mxu0
        %v452 = vadd.f32 %v275, %v451
        %v453 = vpop.f32.mrb[0].mxu0
        %454 = vmatprep.mubr.f32.mxu0 0.0
        %455 = vmatmul.mubr.f32.gmra.mrb[0].mxu0 %v315
        %v456 = vpop.f32.mrb[0].mxu0
        %v457 = vadd.f32 %v275, %v456
        %v458 = vpop.f32.mrb[0].mxu0
        %459 = vmatprep.mubr.f32.mxu0 0.0
        %460 = vmatmul.mubr.f32.gmra.mrb[0].mxu0 %v318
        %v461 = vpop.f32.mrb[0].mxu0
        %v462 = vadd.f32 %v275, %v461
        %v463 = vpop.f32.mrb[0].mxu0
        %464 = vmatprep.mubr.f32.mxu0 0.0
        %465 = vmatmul.mubr.f32.gmra.mrb[0].mxu0 %v321
        %v466 = vpop.f32.mrb[0].mxu0
        %v467 = vadd.f32 %v275, %v466
        %v468 = vpop.f32.mrb[0].mxu0
        %469 = vmatprep.mubr.f32.mxu0 0.0
        %470 = vmatmul.mubr.f32.gmra.mrb[0].mxu0 %v324
        %v471 = vpop.f32.mrb[0].mxu0
        %v472 = vadd.f32 %v275, %v471
        %v473 = vpop.f32.mrb[0].mxu0
        %474 = vdwg.mxu0
        %vm475 = vcmask 523264
        %v476 = vsel %vm475, %v397, 0.0
        %v477 = vsel %vm475, %v402, 0.0
        %v478 = vadd.f32 %v476, %v477
        %v479 = vsel %vm475, %v407, 0.0
        %v480 = vadd.f32 %v478, %v479
        %v481 = vsel %vm475, %v412, 0.0
        %v482 = vadd.f32 %v480, %v481
        %v483 = vsel %vm475, %v417, 0.0
        %v484 = vadd.f32 %v482, %v483
        %v485 = vsel %vm475, %v422, 0.0
        %v486 = vadd.f32 %v484, %v485
        %v487 = vsel %vm475, %v427, 0.0
        %v488 = vadd.f32 %v486, %v487
        %v489 = vsel %vm475, %v432, 0.0
        %v490 = vadd.f32 %v488, %v489
        %v491 = vsel %vm475, %v437, 0.0
        %v492 = vadd.f32 %v490, %v491
        %v493 = vsel %vm475, %v442, 0.0
        %v494 = vadd.f32 %v492, %v493
        %v495 = vsel %vm475, %v447, 0.0
        %v496 = vadd.f32 %v494, %v495
        %v497 = vsel %vm475, %v452, 0.0
        %v498 = vadd.f32 %v496, %v497
        %v499 = vsel %vm475, %v457, 0.0
        %v500 = vadd.f32 %v498, %v499
        %v501 = vsel %vm475, %v462, 0.0
        %v502 = vadd.f32 %v500, %v501
        %v503 = vsel %vm475, %v467, 0.0
        %v504 = vadd.f32 %v502, %v503
        %v505 = vsel %vm475, %v472, 0.0
        %v506 = vadd.f32 %v504, %v505
        %v507 = vrot.slane %v506, 4
        %v508 = vadd.f32 %v506, %v507
        %v509 = vrot.slane %v508, 2
        %v510 = vadd.f32 %v508, %v509
        %v511 = vrot.slane %v510, 1
        %v512 = vadd.f32 %v510, %v511
        %v513 = vmul.f32 %v397, %v397
        %v514 = vmul.f32 %v402, %v402
        %v515 = vmul.f32 %v407, %v407
        %v516 = vmul.f32 %v412, %v412
        %v517 = vmul.f32 %v417, %v417
        %v518 = vmul.f32 %v422, %v422
        %v519 = vmul.f32 %v427, %v427
        %v520 = vmul.f32 %v432, %v432
        %v521 = vmul.f32 %v437, %v437
        %v522 = vmul.f32 %v442, %v442
        %v523 = vmul.f32 %v447, %v447
        %v524 = vmul.f32 %v452, %v452
        %v525 = vmul.f32 %v457, %v457
        %v526 = vmul.f32 %v462, %v462
        %v527 = vmul.f32 %v467, %v467
        %v528 = vmul.f32 %v472, %v472
        %v529 = vsel %vm475, %v513, 0.0
        %v530 = vsel %vm475, %v514, 0.0
        %v531 = vadd.f32 %v529, %v530
        %v532 = vsel %vm475, %v515, 0.0
        %v533 = vadd.f32 %v531, %v532
        %v534 = vsel %vm475, %v516, 0.0
        %v535 = vadd.f32 %v533, %v534
        %v536 = vsel %vm475, %v517, 0.0
        %v537 = vadd.f32 %v535, %v536
        %v538 = vsel %vm475, %v518, 0.0
        %v539 = vadd.f32 %v537, %v538
        %v540 = vsel %vm475, %v519, 0.0
        %v541 = vadd.f32 %v539, %v540
        %v542 = vsel %vm475, %v520, 0.0
        %v543 = vadd.f32 %v541, %v542
        %v544 = vsel %vm475, %v521, 0.0
        %v545 = vadd.f32 %v543, %v544
        %v546 = vsel %vm475, %v522, 0.0
        %v547 = vadd.f32 %v545, %v546
        %v548 = vsel %vm475, %v523, 0.0
        %v549 = vadd.f32 %v547, %v548
        %v550 = vsel %vm475, %v524, 0.0
        %v551 = vadd.f32 %v549, %v550
        %v552 = vsel %vm475, %v525, 0.0
        %v553 = vadd.f32 %v551, %v552
        %v554 = vsel %vm475, %v526, 0.0
        %v555 = vadd.f32 %v553, %v554
        %v556 = vsel %vm475, %v527, 0.0
        %v557 = vadd.f32 %v555, %v556
        %v558 = vsel %vm475, %v528, 0.0
        %v559 = vadd.f32 %v557, %v558
        %v560 = vrot.slane %v559, 4
        %v561 = vadd.f32 %v559, %v560
        %v562 = vrot.slane %v561, 2
        %v563 = vadd.f32 %v561, %v562
        %v564 = vrot.slane %v563, 1
        %v565 = vadd.f32 %v563, %v564
        %p566 = scmp.eq.s32.totalorder %s23, 0
        // Predicated region
        $region41: #{input_transform_net.4} parent=31 // pred_check
          %p567 = pneg %p566
        $region42: #{input_transform_net.4} parent=31 // pred_check_branch
          %569 = sbr.rel (%p567) target = $region44
        $region43: #{input_transform_net.4} parent=31 // pred_region
          %vm570 = vcmask 516096
          %571 = vst.msk [vmem:[%s248] sm:$0x1] %vm570, %v512
          %572 = vst.msk [vmem:[%s251] sm:$0x1] %vm570, %v565
        $region44: #{input_transform_net.4} parent=31 // pred_fallthru
          _
        %p573 = scmp.gt.s32.totalorder %s23, 0
        // Predicated region
        $region45: #{input_transform_net.4} parent=31 // pred_check
          %p574 = pneg %p573
        $region46: #{input_transform_net.4} parent=31 // pred_check_branch
          %576 = sbr.rel (%p574) target = $region48
        $region47: #{input_transform_net.4} parent=31 // pred_region
          %v577 = vld [vmem:[%s248] sm:$0x1]
          %v578 = vadd.f32 %v577, %v512
          %vm579 = vcmask 516096
          %580 = vst.msk [vmem:[%s248] sm:$0x1] %vm579, %v578
          %v581 = vld [vmem:[%s251] sm:$0x1]
          %v582 = vadd.f32 %v581, %v565
          %583 = vst.msk [vmem:[%s251] sm:$0x1] %vm579, %v582
        $region48: #{input_transform_net.4} parent=31 // pred_fallthru
          _
        %p584 = scmp.lt.s32.totalorder %s22, 1
        %s585 = scalar_select %p584, %s22, 1
        %s586 = scalar_lea.vmem %s3, %s585
        %p587 = scmp.lt.s32.totalorder %s22, 1
        %s588 = scalar_select %p587, %s22, 1
        %s589 = scalar_lea.vmem %s4, %s588
        // Predicated region
        $region49: #{input_transform_net.4} parent=31 // pred_check
          %p590 = pneg %p118
        $region50: #{input_transform_net.4} parent=31 // pred_check_branch
          %592 = sbr.rel (%p590) target = $region52
        $region51: #{input_transform_net.4} parent=31 // pred_region
          _
        $region52: #{input_transform_net.4} parent=31 // pred_fallthru
          _
        // Predicated region
        $region53: #{input_transform_net.4} parent=31 // pred_check
          %p593 = pneg %p144
        $region54: #{input_transform_net.4} parent=31 // pred_check_branch
          %595 = sbr.rel (%p593) target = $region56
        $region55: #{input_transform_net.4} parent=31 // pred_region
          _
        $region56: #{input_transform_net.4} parent=31 // pred_fallthru
          _
      $region32: #{input_transform_net.4} parent=5 // pred_fallthru
        _
      %p596 = scmp.le.s32.totalorder 2, %s13
      // Predicated region
      $region57: #{input_transform_net.4} parent=5 // pred_check
        %p597 = pneg %p596
      $region58: #{input_transform_net.4} parent=5 // pred_check_branch
        %599 = sbr.rel (%p597) target = $region60
      $region59: #{input_transform_net.4} parent=5 // pred_region
        %s600 = ssub.s32 %s13, 2
        // Predicated region
        $region61: #{input_transform_net.4} parent=59 // pred_check
          %p601 = pneg %p124
        $region62: #{input_transform_net.4} parent=59 // pred_check_branch
          %603 = sbr.rel (%p601) target = $region64
        $region63: #{input_transform_net.4} parent=59 // pred_region
          %p604 = scmp.lt.s32.totalorder %s24, 1
          %s605 = scalar_select %p604, %s24, 1
          %s606 = scalar_lea.vmem %s3, %s605
        $region64: #{input_transform_net.4} parent=59 // pred_fallthru
          _
        // Predicated region
        $region65: #{input_transform_net.4} parent=59 // pred_check
          %p607 = pneg %p150
        $region66: #{input_transform_net.4} parent=59 // pred_check_branch
          %609 = sbr.rel (%p607) target = $region68
        $region67: #{input_transform_net.4} parent=59 // pred_region
          %p610 = scmp.lt.s32.totalorder %s24, 1
          %s611 = scalar_select %p610, %s24, 1
          %s612 = scalar_lea.vmem %s4, %s611
        $region68: #{input_transform_net.4} parent=59 // pred_fallthru
          _
      $region60: #{input_transform_net.4} parent=5 // pred_fallthru
        _
    $region6: #{input_transform_net.4} parent=1 // loop_footer
      %s17 = sadd.s32 1, %s13
    $region7: #{input_transform_net.4} parent=1 // loop_footer_branch
      %12 = sbr.rel target = $region3
    $region8: #{input_transform_net.4} parent=1 // loop_exit
      _
    %613 = vsyncpa [#allocation3], 1
    %s614 = scalar_lea.sflag [#allocation3], 1
    %615 = vsyncpa %s614, 1
    %616 = vsyncpa [#allocation5], 1

// kernel: input_transform_net.5
$region0: #{input_transform_net.5}
  #allocation0 [shape = 'u32[]', space=smem, size = 0x4, offset = 0x4, fixed_abs, tag = 'smem constant byte address 0x4 - core index']
  #allocation1 [shape = 'u32[144,128]{1,0:T(1,128)}', space=vmem, size = 0x12000, scoped, tag = 'internal scratch']
  %s0 = inlined_call_operand.vmem [shape: f32[256,9], index: 0, kind: input, shape index: {}]
  %s1 = inlined_call_operand.vmem [shape: f32[1,64], index: 1, kind: input, shape index: {}]
  %s2 = inlined_call_operand.vmem [shape: f32[1,64], index: 2, kind: input, shape index: {}]
  %s3 = inlined_call_operand.hbm [shape: f32[9,64], index: 3, kind: input, shape index: {}]
  %s4 = inlined_call_operand.hbm [shape: f32[1,64], index: 4, kind: input, shape index: {}]
  %s5 = inlined_call_operand.hbm [shape: f32[64,128], index: 5, kind: input, shape index: {}]
  %s6 = inlined_call_operand.hbm [shape: f32[1,128], index: 6, kind: input, shape index: {}]
  %s7 = inlined_call_operand.vmem [shape: f32[2,1,128], index: 7, kind: output, shape index: {0}]
  %s8 = inlined_call_operand.vmem [shape: f32[2,1,128], index: 8, kind: output, shape index: {1}]
  %9 = xla_tuple %s7, %s8
  %s10 = sld [smem:[#allocation0]]
  $region93: #{input_transform_net.5} parent=0
    _
  %s12 = ssub.s32 1, %s10
  %s13 = scalar_select 0, %s12, %s10
  $region1: #{input_transform_net.5} parent=0
    #allocation2 [shape = 'u8[8192]{0}', space=vmem, size = 0x2000, scoped, tag = 'input window, operand 3, single buffered']
    #allocation3 [shape = 's32[2]{0}', space=sflag, size = 0x8, scoped, tag = 'scoped memory for input_transform_net.5']
    #allocation4 [shape = 'u8[512]{0}', space=vmem, size = 0x400, scoped, tag = 'input window, operand 4, single buffered']
    #allocation5 [shape = 's32[1]{0}', space=sflag, size = 0x4, scoped, tag = 'scoped memory for input_transform_net.5']
    #allocation6 [shape = 'u8[32768]{0}', space=vmem, size = 0x8000, scoped, tag = 'input window, operand 5, single buffered']
    #allocation7 [shape = 'u8[512]{0}', space=vmem, size = 0x400, scoped, tag = 'input window, operand 6, single buffered']
    #allocation8 [shape = 's32[1]{0}', space=sflag, size = 0x4, scoped, tag = 'scoped memory for input_transform_net.5']
    %14 = vsyncpa [#allocation3], 0
    %15 = vsyncpa [#allocation5], 0
    %16 = vsyncpa [#allocation8], 0
    loop: start=0, step=1, limit=4
    $region2: #{input_transform_net.5} parent=1 // loop_pre_header
      _
    $region3: #{input_transform_net.5} parent=1 // loop_header
      %s18 = sphi 0, %s22
      %p19 = scmp.ge.s32.totalorder %s18, 4
      %s25 = sphi 0, %s37
      %s26 = sphi 0, %s33
      %s27 = sphi 0, %s25
      %s28 = sphi 0, %s26
      %s29 = sphi 0, %s27
      %s30 = sphi 0, %s28
      %s42 = sphi 0, %s44
      %s45 = sphi 0, %s42
      %s46 = sphi 0, %s45
      %s62 = sphi 0, %s46
      %s66 = sphi 0, %s66
      %s68 = sphi 0, %s66
      %s69 = sphi 0, %s68
      %s83 = sphi 0, %s69
      %s87 = sphi 0, %s87
      %s89 = sphi 0, %s87
      %s90 = sphi 0, %s89
      %s104 = sphi 0, %s90
      %s108 = sphi 0, %s108
      %s110 = sphi 0, %s108
      %s111 = sphi 0, %s110
      %s125 = sphi 0, %s111
      %s129 = sphi 0, %s129
      %s131 = sphi 0, %s129
      %s132 = sphi 0, %s131
      %s146 = sphi 0, %s132
      %s150 = sphi 0, %s150
      %s152 = sphi 0, %s150
      %s153 = sphi 0, %s152
      %s167 = sphi 0, %s153
      %s171 = sphi 0, %s171
      %s173 = sphi 0, %s171
      %s174 = sphi 0, %s173
      %s188 = sphi 0, %s174
      %s194 = sphi 0, %s196
      %s197 = sphi 0, %s194
      %s198 = sphi 0, %s197
      %s214 = sphi 0, %s198
      %s220 = sphi 0, %s222
      %s223 = sphi 0, %s220
      %s224 = sphi 0, %s223
      %s240 = sphi 0, %s224
    $region4: #{input_transform_net.5} parent=1 // loop_header_branch
      %21 = sbr.rel (%p19) target = $region8
    $region5: #{input_transform_net.5} parent=1 // loop_body
      %s23 = ssub.s32 %s18, 1
      %s24 = ssub.s32 %s18, 2
      %s31 = sadd.s32 1, %s26
      %p32 = scmp.ge.s32.totalorder %s31, 1
      %s33 = scalar_select %p32, 0, %s31
      %s34 = sadd.s32 1, %s25
      %s35 = scalar_select %p32, %s34, %s25
      %p36 = scmp.ge.s32.totalorder %s35, 2
      %s37 = scalar_select %p36, 0, %s35
      %s38 = sadd.s32 %s25, %s26
      %s39 = sadd.s32 %s37, %s33
      %s40 = ssub.s32 %s38, %s39
      %p41 = scmp.eq.s32.totalorder %s40, 0
      %s43 = sadd.s32 %s42, 1
      %s44 = scalar_select %p41, %s42, %s43
      %p47 = pneg %p41
      %p48 = scmp.eq.s32.totalorder %s18, 1
      %p49 = por %p47, %p48
      %p50 = scmp.ne.s32.totalorder %s42, %s45
      %p51 = scmp.eq.s32.totalorder %s18, 0
      %p52 = por %p50, %p51
      %p53 = scmp.ne.s32.totalorder %s42, %s45
      %p54 = scmp.eq.s32.totalorder %s23, 1
      %p55 = por %p53, %p54
      %p56 = scmp.ne.s32.totalorder %s45, %s46
      %p57 = scmp.eq.s32.totalorder %s23, 0
      %p58 = por %p56, %p57
      %p59 = scmp.ne.s32.totalorder %s45, %s46
      %p60 = scmp.eq.s32.totalorder %s24, 1
      %p61 = por %p59, %p60
      %p63 = scmp.ne.s32.totalorder %s46, %s62
      %p64 = scmp.eq.s32.totalorder %s24, 0
      %p65 = por %p63, %p64
      %s67 = sadd.s32 %s66, 1
      %p70 = scmp.eq.s32.totalorder %s18, 1
      %p71 = scmp.ne.s32.totalorder %s66, %s68
      %p72 = scmp.eq.s32.totalorder %s18, 0
      %p73 = por %p71, %p72
      %p74 = scmp.ne.s32.totalorder %s66, %s68
      %p75 = scmp.eq.s32.totalorder %s23, 1
      %p76 = por %p74, %p75
      %p77 = scmp.ne.s32.totalorder %s68, %s69
      %p78 = scmp.eq.s32.totalorder %s23, 0
      %p79 = por %p77, %p78
      %p80 = scmp.ne.s32.totalorder %s68, %s69
      %p81 = scmp.eq.s32.totalorder %s24, 1
      %p82 = por %p80, %p81
      %p84 = scmp.ne.s32.totalorder %s69, %s83
      %p85 = scmp.eq.s32.totalorder %s24, 0
      %p86 = por %p84, %p85
      %s88 = sadd.s32 %s87, 1
      %p91 = scmp.eq.s32.totalorder %s18, 1
      %p92 = scmp.ne.s32.totalorder %s87, %s89
      %p93 = scmp.eq.s32.totalorder %s18, 0
      %p94 = por %p92, %p93
      %p95 = scmp.ne.s32.totalorder %s87, %s89
      %p96 = scmp.eq.s32.totalorder %s23, 1
      %p97 = por %p95, %p96
      %p98 = scmp.ne.s32.totalorder %s89, %s90
      %p99 = scmp.eq.s32.totalorder %s23, 0
      %p100 = por %p98, %p99
      %p101 = scmp.ne.s32.totalorder %s89, %s90
      %p102 = scmp.eq.s32.totalorder %s24, 1
      %p103 = por %p101, %p102
      %p105 = scmp.ne.s32.totalorder %s90, %s104
      %p106 = scmp.eq.s32.totalorder %s24, 0
      %p107 = por %p105, %p106
      %s109 = sadd.s32 %s108, 1
      %p112 = scmp.eq.s32.totalorder %s18, 1
      %p113 = scmp.ne.s32.totalorder %s108, %s110
      %p114 = scmp.eq.s32.totalorder %s18, 0
      %p115 = por %p113, %p114
      %p116 = scmp.ne.s32.totalorder %s108, %s110
      %p117 = scmp.eq.s32.totalorder %s23, 1
      %p118 = por %p116, %p117
      %p119 = scmp.ne.s32.totalorder %s110, %s111
      %p120 = scmp.eq.s32.totalorder %s23, 0
      %p121 = por %p119, %p120
      %p122 = scmp.ne.s32.totalorder %s110, %s111
      %p123 = scmp.eq.s32.totalorder %s24, 1
      %p124 = por %p122, %p123
      %p126 = scmp.ne.s32.totalorder %s111, %s125
      %p127 = scmp.eq.s32.totalorder %s24, 0
      %p128 = por %p126, %p127
      %s130 = sadd.s32 %s129, 1
      %p133 = scmp.eq.s32.totalorder %s18, 1
      %p134 = scmp.ne.s32.totalorder %s129, %s131
      %p135 = scmp.eq.s32.totalorder %s18, 0
      %p136 = por %p134, %p135
      %p137 = scmp.ne.s32.totalorder %s129, %s131
      %p138 = scmp.eq.s32.totalorder %s23, 1
      %p139 = por %p137, %p138
      %p140 = scmp.ne.s32.totalorder %s131, %s132
      %p141 = scmp.eq.s32.totalorder %s23, 0
      %p142 = por %p140, %p141
      %p143 = scmp.ne.s32.totalorder %s131, %s132
      %p144 = scmp.eq.s32.totalorder %s24, 1
      %p145 = por %p143, %p144
      %p147 = scmp.ne.s32.totalorder %s132, %s146
      %p148 = scmp.eq.s32.totalorder %s24, 0
      %p149 = por %p147, %p148
      %s151 = sadd.s32 %s150, 1
      %p154 = scmp.eq.s32.totalorder %s18, 1
      %p155 = scmp.ne.s32.totalorder %s150, %s152
      %p156 = scmp.eq.s32.totalorder %s18, 0
      %p157 = por %p155, %p156
      %p158 = scmp.ne.s32.totalorder %s150, %s152
      %p159 = scmp.eq.s32.totalorder %s23, 1
      %p160 = por %p158, %p159
      %p161 = scmp.ne.s32.totalorder %s152, %s153
      %p162 = scmp.eq.s32.totalorder %s23, 0
      %p163 = por %p161, %p162
      %p164 = scmp.ne.s32.totalorder %s152, %s153
      %p165 = scmp.eq.s32.totalorder %s24, 1
      %p166 = por %p164, %p165
      %p168 = scmp.ne.s32.totalorder %s153, %s167
      %p169 = scmp.eq.s32.totalorder %s24, 0
      %p170 = por %p168, %p169
      %s172 = sadd.s32 %s171, 1
      %p175 = scmp.eq.s32.totalorder %s18, 1
      %p176 = scmp.ne.s32.totalorder %s171, %s173
      %p177 = scmp.eq.s32.totalorder %s18, 0
      %p178 = por %p176, %p177
      %p179 = scmp.ne.s32.totalorder %s171, %s173
      %p180 = scmp.eq.s32.totalorder %s23, 1
      %p181 = por %p179, %p180
      %p182 = scmp.ne.s32.totalorder %s173, %s174
      %p183 = scmp.eq.s32.totalorder %s23, 0
      %p184 = por %p182, %p183
      %p185 = scmp.ne.s32.totalorder %s173, %s174
      %p186 = scmp.eq.s32.totalorder %s24, 1
      %p187 = por %p185, %p186
      %p189 = scmp.ne.s32.totalorder %s174, %s188
      %p190 = scmp.eq.s32.totalorder %s24, 0
      %p191 = por %p189, %p190
      %s192 = ssub.s32 %s25, %s37
      %p193 = scmp.eq.s32.totalorder %s192, 0
      %s195 = sadd.s32 %s194, 1
      %s196 = scalar_select %p193, %s194, %s195
      %p199 = pneg %p193
      %p200 = scmp.eq.s32.totalorder %s18, 1
      %p201 = por %p199, %p200
      %p202 = scmp.ne.s32.totalorder %s194, %s197
      %p203 = scmp.eq.s32.totalorder %s18, 0
      %p204 = por %p202, %p203
      %p205 = scmp.ne.s32.totalorder %s194, %s197
      %p206 = scmp.eq.s32.totalorder %s23, 1
      %p207 = por %p205, %p206
      %p208 = scmp.ne.s32.totalorder %s197, %s198
      %p209 = scmp.eq.s32.totalorder %s23, 0
      %p210 = por %p208, %p209
      %p211 = scmp.ne.s32.totalorder %s197, %s198
      %p212 = scmp.eq.s32.totalorder %s24, 1
      %p213 = por %p211, %p212
      %p215 = scmp.ne.s32.totalorder %s198, %s214
      %p216 = scmp.eq.s32.totalorder %s24, 0
      %p217 = por %p215, %p216
      %s218 = ssub.s32 %s25, %s37
      %p219 = scmp.eq.s32.totalorder %s218, 0
      %s221 = sadd.s32 %s220, 1
      %s222 = scalar_select %p219, %s220, %s221
      %p225 = pneg %p219
      %p226 = scmp.eq.s32.totalorder %s18, 1
      %p227 = por %p225, %p226
      %p228 = scmp.ne.s32.totalorder %s220, %s223
      %p229 = scmp.eq.s32.totalorder %s18, 0
      %p230 = por %p228, %p229
      %p231 = scmp.ne.s32.totalorder %s220, %s223
      %p232 = scmp.eq.s32.totalorder %s23, 1
      %p233 = por %p231, %p232
      %p234 = scmp.ne.s32.totalorder %s223, %s224
      %p235 = scmp.eq.s32.totalorder %s23, 0
      %p236 = por %p234, %p235
      %p237 = scmp.ne.s32.totalorder %s223, %s224
      %p238 = scmp.eq.s32.totalorder %s24, 1
      %p239 = por %p237, %p238
      %p241 = scmp.ne.s32.totalorder %s224, %s240
      %p242 = scmp.eq.s32.totalorder %s24, 0
      %p243 = por %p241, %p242
      %p244 = scmp.le.s32.totalorder 1, %s18
      %p245 = scmp.lt.s32.totalorder %s18, 3
      %p246 = pnand %p244, %p245
      %p247 = pneg %p246
      // Predicated region
      $region9: #{input_transform_net.5} parent=5 // pred_check
        _
      $region10: #{input_transform_net.5} parent=5 // pred_check_branch
        %249 = sbr.rel (%p246) target = $region12
      $region11: #{input_transform_net.5} parent=5 // pred_region
        %s250 = ssub.s32 %s18, 1
        // Predicated region
        $region13: #{input_transform_net.5} parent=11 // pred_check
          %p251 = pneg %p79
        $region14: #{input_transform_net.5} parent=11 // pred_check_branch
          %253 = sbr.rel (%p251) target = $region16
        $region15: #{input_transform_net.5} parent=11 // pred_region
          _
        $region16: #{input_transform_net.5} parent=11 // pred_fallthru
          _
        // Predicated region
        $region17: #{input_transform_net.5} parent=11 // pred_check
          %p254 = pneg %p100
        $region18: #{input_transform_net.5} parent=11 // pred_check_branch
          %256 = sbr.rel (%p254) target = $region20
        $region19: #{input_transform_net.5} parent=11 // pred_region
          _
        $region20: #{input_transform_net.5} parent=11 // pred_fallthru
          _
        // Predicated region
        $region21: #{input_transform_net.5} parent=11 // pred_check
          %p257 = pneg %p121
        $region22: #{input_transform_net.5} parent=11 // pred_check_branch
          %259 = sbr.rel (%p257) target = $region24
        $region23: #{input_transform_net.5} parent=11 // pred_region
          %s261 = ssub.s32 256, 256
          %262 = vsyncadd [#allocation3], %s261
          %s263 = sshll.u32 [#allocation2], 4
          %s264 = int_to_ptr.vmem [resolvable:$true] %s263
          %269 = dma.hbm_to_vmem [thread:$0]  %s3, 256, %s264, [#allocation3], 128, 128, 8
        $region24: #{input_transform_net.5} parent=11 // pred_fallthru
          _
        // Predicated region
        $region25: #{input_transform_net.5} parent=11 // pred_check
          %p270 = pneg %p142
        $region26: #{input_transform_net.5} parent=11 // pred_check_branch
          %272 = sbr.rel (%p270) target = $region28
        $region27: #{input_transform_net.5} parent=11 // pred_region
          %s274 = ssub.s32 16, 16
          %275 = vsyncadd [#allocation5], %s274
          %s277 = sshll.u32 [#allocation4], 4
          %s278 = int_to_ptr.vmem [resolvable:$true] %s277
          %280 = dma.hbm_to_vmem [thread:$0]  %s4, 16, %s278, [#allocation5]
        $region28: #{input_transform_net.5} parent=11 // pred_fallthru
          _
        // Predicated region
        $region29: #{input_transform_net.5} parent=11 // pred_check
          %p281 = pneg %p163
        $region30: #{input_transform_net.5} parent=11 // pred_check_branch
          %283 = sbr.rel (%p281) target = $region32
        $region31: #{input_transform_net.5} parent=11 // pred_region
          %s285 = ssub.s32 1024, 1024
          %286 = vsyncadd [#allocation5], %s285
          %s287 = sshll.u32 [#allocation6], 4
          %s288 = int_to_ptr.vmem [resolvable:$true] %s287
          %293 = dma.hbm_to_vmem [thread:$0]  %s5, 1024, %s288, [#allocation5], 128, 128, 8
        $region32: #{input_transform_net.5} parent=11 // pred_fallthru
          _
        // Predicated region
        $region33: #{input_transform_net.5} parent=11 // pred_check
          %p294 = pneg %p184
        $region34: #{input_transform_net.5} parent=11 // pred_check_branch
          %296 = sbr.rel (%p294) target = $region36
        $region35: #{input_transform_net.5} parent=11 // pred_region
          %s298 = ssub.s32 16, 16
          %299 = vsyncadd [#allocation8], %s298
          %s301 = sshll.u32 [#allocation7], 4
          %s302 = int_to_ptr.vmem [resolvable:$true] %s301
          %304 = dma.hbm_to_vmem [thread:$0]  %s6, 16, %s302, [#allocation8]
        $region36: #{input_transform_net.5} parent=11 // pred_fallthru
          _
      $region12: #{input_transform_net.5} parent=5 // pred_fallthru
        _
      %p305 = scmp.lt.s32.totalorder %s18, 2
      // Predicated region
      $region37: #{input_transform_net.5} parent=5 // pred_check
        %p306 = pneg %p305
      $region38: #{input_transform_net.5} parent=5 // pred_check_branch
        %308 = sbr.rel (%p306) target = $region40
      $region39: #{input_transform_net.5} parent=5 // pred_region
        // Predicated region
        $region41: #{input_transform_net.5} parent=39 // pred_check
          %p309 = pneg %p52
        $region42: #{input_transform_net.5} parent=39 // pred_check_branch
          %311 = sbr.rel (%p309) target = $region44
        $region43: #{input_transform_net.5} parent=39 // pred_region
          %s312 = sadd.s32 %s25, %s26
          %s313 = smul.u32 16, %s312
          %p314 = scmp.lt.s32.totalorder %s313, 31
          %s315 = scalar_select %p314, %s313, 31
          %s316 = smul.addr %s315, 8
          %s317 = scalar_lea.vmem %s0, %s316
          %s318 = sadd.s32 %s25, %s26
          %s319 = smul.u32 16, %s318
        $region44: #{input_transform_net.5} parent=39 // pred_fallthru
          _
      $region40: #{input_transform_net.5} parent=5 // pred_fallthru
        _
      %p320 = scmp.le.s32.totalorder 1, %s18
      %p321 = scmp.lt.s32.totalorder %s18, 3
      %p322 = pnand %p320, %p321
      %p323 = pneg %p322
      // Predicated region
      $region45: #{input_transform_net.5} parent=5 // pred_check
        _
      $region46: #{input_transform_net.5} parent=5 // pred_check_branch
        %325 = sbr.rel (%p322) target = $region48
      $region47: #{input_transform_net.5} parent=5 // pred_region
        %s326 = ssub.s32 %s18, 1
        // Predicated region
        $region49: #{input_transform_net.5} parent=47 // pred_check
          %p327 = pneg %p121
        $region50: #{input_transform_net.5} parent=47 // pred_check_branch
          %329 = sbr.rel (%p327) target = $region52
        $region51: #{input_transform_net.5} parent=47 // pred_region
          %330 = dma.done [#allocation3], 256
        $region52: #{input_transform_net.5} parent=47 // pred_fallthru
          _
        // Predicated region
        $region53: #{input_transform_net.5} parent=47 // pred_check
          %p331 = pneg %p142
        $region54: #{input_transform_net.5} parent=47 // pred_check_branch
          %333 = sbr.rel (%p331) target = $region56
        $region55: #{input_transform_net.5} parent=47 // pred_region
          %334 = dma.done [#allocation5], 16
        $region56: #{input_transform_net.5} parent=47 // pred_fallthru
          _
        // Predicated region
        $region57: #{input_transform_net.5} parent=47 // pred_check
          %p335 = pneg %p163
        $region58: #{input_transform_net.5} parent=47 // pred_check_branch
          %337 = sbr.rel (%p335) target = $region60
        $region59: #{input_transform_net.5} parent=47 // pred_region
          %338 = dma.done [#allocation5], 1024
        $region60: #{input_transform_net.5} parent=47 // pred_fallthru
          _
        // Predicated region
        $region61: #{input_transform_net.5} parent=47 // pred_check
          %p339 = pneg %p184
        $region62: #{input_transform_net.5} parent=47 // pred_check_branch
          %341 = sbr.rel (%p339) target = $region64
        $region63: #{input_transform_net.5} parent=47 // pred_region
          %342 = dma.done [#allocation8], 16
        $region64: #{input_transform_net.5} parent=47 // pred_fallthru
          _
        %s343 = sadd.s32 %s27, %s28
        %s344 = smul.u32 16, %s343
        %p345 = scmp.lt.s32.totalorder %s344, 31
        %s346 = scalar_select %p345, %s344, 31
        %s347 = smul.addr %s346, 8
        %s348 = scalar_lea.vmem %s0, %s347
        %p349 = pneg %p58
        %p350 = pneg %p55
        %p351 = pneg %p79
        %p352 = pneg %p76
        %p353 = pneg %p100
        %p354 = pneg %p97
        %p355 = pneg %p121
        %p356 = pneg %p118
        %p357 = pneg %p142
        %p358 = pneg %p139
        %p359 = pneg %p163
        %p360 = pneg %p160
        %p361 = pneg %p184
        %p362 = pneg %p181
        %p363 = pneg %p210
        %p364 = pneg %p207
        %p365 = scmp.lt.s32.totalorder %s27, 1
        %s366 = scalar_select %p365, %s27, 1
        %s367 = scalar_lea.vmem %s7, %s366
        %p368 = pneg %p236
        %p369 = pneg %p233
        %p370 = scmp.lt.s32.totalorder %s27, 1
        %s371 = scalar_select %p370, %s27, 1
        %s372 = scalar_lea.vmem %s8, %s371
        %s373 = sadd.s32 %s27, %s28
        %s374 = smul.u32 16, %s373
        %p375 = scmp.lt.s32.totalorder %s374, 31
        %s376 = scalar_select %p375, %s374, 31
        %s377 = smul.addr %s376, 8
        %s378 = scalar_lea.vmem %s0, %s377
        %s379 = sadd.s32 %s27, %s28
        %s380 = smul.u32 16, %s379
        %p381 = scmp.lt.s32.totalorder %s27, 1
        %s382 = scalar_select %p381, %s27, 1
        %s383 = scalar_lea.vmem %s7, %s382
        %p384 = scmp.lt.s32.totalorder %s27, 1
        %s385 = scalar_select %p384, %s27, 1
        %s386 = scalar_lea.vmem %s8, %s385
        %v387 = vld [vmem:[%s378] sm:$0xff]
        %v388 = vld [vmem:[%s378 + $0x8] sm:$0xff]
        %v389 = vld [vmem:[%s378 + $0x10] sm:$0xff]
        %v390 = vld [vmem:[%s378 + $0x18] sm:$0xff]
        %v391 = vld [vmem:[%s378 + $0x20] sm:$0xff]
        %v392 = vld [vmem:[%s378 + $0x28] sm:$0xff]
        %v393 = vld [vmem:[%s378 + $0x30] sm:$0xff]
        %v394 = vld [vmem:[%s378 + $0x38] sm:$0xff]
        %v395 = vld [vmem:[%s378 + $0x40] sm:$0xff]
        %v396 = vld [vmem:[%s378 + $0x48] sm:$0xff]
        %v397 = vld [vmem:[%s378 + $0x50] sm:$0xff]
        %v398 = vld [vmem:[%s378 + $0x58] sm:$0xff]
        %v399 = vld [vmem:[%s378 + $0x60] sm:$0xff]
        %v400 = vld [vmem:[%s378 + $0x68] sm:$0xff]
        %v401 = vld [vmem:[%s378 + $0x70] sm:$0xff]
        %v402 = vld [vmem:[%s378 + $0x78] sm:$0xff]
        %v403 = vld [vmem:[#allocation2] sm:$0xff]
        %v404 = vld [vmem:[#allocation2 + $0x8] sm:$0x1]
        %v405 = vld [vmem:[#allocation4] sm:$0x1]
        %v407 = vlaneseq
        %v408 = vshrl.u32 %v407, 7
        %v409 = vsub.s32 0, %v408
        %v410 = vrot.slane %v405, %v409
        %vm412 = vcmask 72704
        %v414 = vsel %vm412, %v387, 0
        %v417 = vsel %vm412, %v388, 0
        %v420 = vsel %vm412, %v389, 0
        %v423 = vsel %vm412, %v390, 0
        %v426 = vsel %vm412, %v391, 0
        %v429 = vsel %vm412, %v392, 0
        %v432 = vsel %vm412, %v393, 0
        %v435 = vsel %vm412, %v394, 0
        %v438 = vsel %vm412, %v395, 0
        %v441 = vsel %vm412, %v396, 0
        %v444 = vsel %vm412, %v397, 0
        %v447 = vsel %vm412, %v398, 0
        %v450 = vsel %vm412, %v399, 0
        %v453 = vsel %vm412, %v400, 0
        %v456 = vsel %vm412, %v401, 0
        %v459 = vsel %vm412, %v402, 0
        %vm461 = vcmask 1040384
        %v463 = vsel %vm461, %v404, 0
        %465 = vmatprep.subr.mxu0 0.0
        %466 = vmatpush1.msra.mxu0 %v403
        %467 = vmatprep.subr.mxu0 0.0
        %468 = vmatpush1.msra.mxu0 %v463
        %469 = vmatprep.subr.mxu0 0.0
        %470 = vmatpush1.msra.mxu0 0.0
        %471 = vmatprep.subr.mxu0 0.0
        %472 = vmatpush1.msra.mxu0 0.0
        %473 = vmatprep.subr.mxu0 0.0
        %474 = vmatpush1.msra.mxu0 0.0
        %475 = vmatprep.subr.mxu0 0.0
        %476 = vmatpush1.msra.mxu0 0.0
        %477 = vmatprep.subr.mxu0 0.0
        %478 = vmatpush1.msra.mxu0 0.0
        %479 = vmatprep.subr.mxu0 0.0
        %480 = vmatpush1.msra.mxu0 0.0
        %481 = vmatprep.subr.mxu0 0.0
        %482 = vmatpush1.msra.mxu0 0.0
        %483 = vmatprep.subr.mxu0 0.0
        %484 = vmatpush1.msra.mxu0 0.0
        %485 = vmatprep.subr.mxu0 0.0
        %486 = vmatpush1.msra.mxu0 0.0
        %487 = vmatprep.subr.mxu0 0.0
        %488 = vmatpush1.msra.mxu0 0.0
        %489 = vmatprep.subr.mxu0 0.0
        %490 = vmatpush1.msra.mxu0 0.0
        %491 = vmatprep.subr.mxu0 0.0
        %492 = vmatpush1.msra.mxu0 0.0
        %493 = vmatprep.subr.mxu0 0.0
        %494 = vmatpush1.msra.mxu0 0.0
        %495 = vmatprep.subr.mxu0 0.0
        %496 = vmatpush1.msra.mxu0 0.0
        %497 = vmatprep.subr.mxu0 0.0
        %498 = vmatpush1.msra.mxu0 0.0
        %499 = vmatprep.subr.mxu0 0.0
        %500 = vmatpush1.msra.mxu0 0.0
        %501 = vmatprep.subr.mxu0 0.0
        %502 = vmatpush1.msra.mxu0 0.0
        %503 = vmatprep.subr.mxu0 0.0
        %504 = vmatpush1.msra.mxu0 0.0
        %505 = vmatprep.subr.mxu0 0.0
        %506 = vmatpush1.msra.mxu0 0.0
        %507 = vmatprep.subr.mxu0 0.0
        %508 = vmatpush1.msra.mxu0 0.0
        %509 = vmatprep.subr.mxu0 0.0
        %510 = vmatpush1.msra.mxu0 0.0
        %511 = vmatprep.subr.mxu0 0.0
        %512 = vmatpush1.msra.mxu0 0.0
        %513 = vmatprep.subr.mxu0 0.0
        %514 = vmatpush1.msra.mxu0 0.0
        %515 = vmatprep.subr.mxu0 0.0
        %516 = vmatpush1.msra.mxu0 0.0
        %517 = vmatprep.subr.mxu0 0.0
        %518 = vmatpush1.msra.mxu0 0.0
        %519 = vmatprep.subr.mxu0 0.0
        %520 = vmatpush1.msra.mxu0 0.0
        %521 = vmatprep.subr.mxu0 0.0
        %522 = vmatpush1.msra.mxu0 0.0
        %523 = vmatprep.subr.mxu0 0.0
        %524 = vmatpush1.msra.mxu0 0.0
        %525 = vmatprep.subr.mxu0 0.0
        %526 = vmatpush1.msra.mxu0 0.0
        %527 = vmatprep.subr.mxu0 0.0
        %528 = vmatpush1.msra.mxu0 0.0
        %529 = vmatprep.mubr.f32.mxu0 0.0
        %530 = vmatmul.mubr.f32.gmra.mrb[0].mxu0 %v414
        %v531 = vpop.f32.mrb[0].mxu0
        %v532 = vadd.f32 %v410, %v531
        %v533 = vpop.f32.mrb[0].mxu0
        %534 = vmatprep.mubr.f32.mxu0 0.0
        %535 = vmatmul.mubr.f32.gmra.mrb[0].mxu0 %v417
        %v536 = vpop.f32.mrb[0].mxu0
        %v537 = vadd.f32 %v410, %v536
        %v538 = vpop.f32.mrb[0].mxu0
        %539 = vmatprep.mubr.f32.mxu0 0.0
        %540 = vmatmul.mubr.f32.gmra.mrb[0].mxu0 %v420
        %v541 = vpop.f32.mrb[0].mxu0
        %v542 = vadd.f32 %v410, %v541
        %v543 = vpop.f32.mrb[0].mxu0
        %544 = vmatprep.mubr.f32.mxu0 0.0
        %545 = vmatmul.mubr.f32.gmra.mrb[0].mxu0 %v423
        %v546 = vpop.f32.mrb[0].mxu0
        %v547 = vadd.f32 %v410, %v546
        %v548 = vpop.f32.mrb[0].mxu0
        %549 = vmatprep.mubr.f32.mxu0 0.0
        %550 = vmatmul.mubr.f32.gmra.mrb[0].mxu0 %v426
        %v551 = vpop.f32.mrb[0].mxu0
        %v552 = vadd.f32 %v410, %v551
        %v553 = vpop.f32.mrb[0].mxu0
        %554 = vmatprep.mubr.f32.mxu0 0.0
        %555 = vmatmul.mubr.f32.gmra.mrb[0].mxu0 %v429
        %v556 = vpop.f32.mrb[0].mxu0
        %v557 = vadd.f32 %v410, %v556
        %v558 = vpop.f32.mrb[0].mxu0
        %559 = vmatprep.mubr.f32.mxu0 0.0
        %560 = vmatmul.mubr.f32.gmra.mrb[0].mxu0 %v432
        %v561 = vpop.f32.mrb[0].mxu0
        %v562 = vadd.f32 %v410, %v561
        %v563 = vpop.f32.mrb[0].mxu0
        %564 = vmatprep.mubr.f32.mxu0 0.0
        %565 = vmatmul.mubr.f32.gmra.mrb[0].mxu0 %v435
        %v566 = vpop.f32.mrb[0].mxu0
        %v567 = vadd.f32 %v410, %v566
        %v568 = vpop.f32.mrb[0].mxu0
        %569 = vmatprep.mubr.f32.mxu0 0.0
        %570 = vmatmul.mubr.f32.gmra.mrb[0].mxu0 %v438
        %v571 = vpop.f32.mrb[0].mxu0
        %v572 = vadd.f32 %v410, %v571
        %v573 = vpop.f32.mrb[0].mxu0
        %574 = vmatprep.mubr.f32.mxu0 0.0
        %575 = vmatmul.mubr.f32.gmra.mrb[0].mxu0 %v441
        %v576 = vpop.f32.mrb[0].mxu0
        %v577 = vadd.f32 %v410, %v576
        %v578 = vpop.f32.mrb[0].mxu0
        %579 = vmatprep.mubr.f32.mxu0 0.0
        %580 = vmatmul.mubr.f32.gmra.mrb[0].mxu0 %v444
        %v581 = vpop.f32.mrb[0].mxu0
        %v582 = vadd.f32 %v410, %v581
        %v583 = vpop.f32.mrb[0].mxu0
        %584 = vmatprep.mubr.f32.mxu0 0.0
        %585 = vmatmul.mubr.f32.gmra.mrb[0].mxu0 %v447
        %v586 = vpop.f32.mrb[0].mxu0
        %v587 = vadd.f32 %v410, %v586
        %v588 = vpop.f32.mrb[0].mxu0
        %589 = vmatprep.mubr.f32.mxu0 0.0
        %590 = vmatmul.mubr.f32.gmra.mrb[0].mxu0 %v450
        %v591 = vpop.f32.mrb[0].mxu0
        %v592 = vadd.f32 %v410, %v591
        %v593 = vpop.f32.mrb[0].mxu0
        %594 = vmatprep.mubr.f32.mxu0 0.0
        %595 = vmatmul.mubr.f32.gmra.mrb[0].mxu0 %v453
        %v596 = vpop.f32.mrb[0].mxu0
        %v597 = vadd.f32 %v410, %v596
        %v598 = vpop.f32.mrb[0].mxu0
        %599 = vmatprep.mubr.f32.mxu0 0.0
        %600 = vmatmul.mubr.f32.gmra.mrb[0].mxu0 %v456
        %v601 = vpop.f32.mrb[0].mxu0
        %v602 = vadd.f32 %v410, %v601
        %v603 = vpop.f32.mrb[0].mxu0
        %604 = vmatprep.mubr.f32.mxu0 0.0
        %605 = vmatmul.mubr.f32.gmra.mrb[0].mxu0 %v459
        %v606 = vpop.f32.mrb[0].mxu0
        %v607 = vadd.f32 %v410, %v606
        %v608 = vpop.f32.mrb[0].mxu0
        %609 = vdwg.mxu0
        %v610 = vld [vmem:[%s1] sm:$0x1]
        %v612 = vlaneseq
        %v613 = vshrl.u32 %v612, 7
        %v614 = vsub.s32 0, %v613
        %v615 = vrot.slane %v610, %v614
        %v617 = vmul.f32 %v532, %v615
        %v618 = vmul.f32 %v537, %v615
        %v619 = vmul.f32 %v542, %v615
        %v620 = vmul.f32 %v547, %v615
        %v621 = vmul.f32 %v552, %v615
        %v622 = vmul.f32 %v557, %v615
        %v623 = vmul.f32 %v562, %v615
        %v624 = vmul.f32 %v567, %v615
        %v625 = vmul.f32 %v572, %v615
        %v626 = vmul.f32 %v577, %v615
        %v627 = vmul.f32 %v582, %v615
        %v628 = vmul.f32 %v587, %v615
        %v629 = vmul.f32 %v592, %v615
        %v630 = vmul.f32 %v597, %v615
        %v631 = vmul.f32 %v602, %v615
        %v632 = vmul.f32 %v607, %v615
        %v633 = vld [vmem:[%s2] sm:$0x1]
        %v635 = vlaneseq
        %v636 = vshrl.u32 %v635, 7
        %v637 = vsub.s32 0, %v636
        %v638 = vrot.slane %v633, %v637
        %v640 = vadd.f32 %v617, %v638
        %v641 = vadd.f32 %v618, %v638
        %v642 = vadd.f32 %v619, %v638
        %v643 = vadd.f32 %v620, %v638
        %v644 = vadd.f32 %v621, %v638
        %v645 = vadd.f32 %v622, %v638
        %v646 = vadd.f32 %v623, %v638
        %v647 = vadd.f32 %v624, %v638
        %v648 = vadd.f32 %v625, %v638
        %v649 = vadd.f32 %v626, %v638
        %v650 = vadd.f32 %v627, %v638
        %v651 = vadd.f32 %v628, %v638
        %v652 = vadd.f32 %v629, %v638
        %v653 = vadd.f32 %v630, %v638
        %v654 = vadd.f32 %v631, %v638
        %v655 = vadd.f32 %v632, %v638
        %v656 = vmax.f32 %v640, 0.0
        %v657 = vmax.f32 %v641, 0.0
        %v658 = vmax.f32 %v642, 0.0
        %v659 = vmax.f32 %v643, 0.0
        %v660 = vmax.f32 %v644, 0.0
        %v661 = vmax.f32 %v645, 0.0
        %v662 = vmax.f32 %v646, 0.0
        %v663 = vmax.f32 %v647, 0.0
        %v664 = vmax.f32 %v648, 0.0
        %v665 = vmax.f32 %v649, 0.0
        %v666 = vmax.f32 %v650, 0.0
        %v667 = vmax.f32 %v651, 0.0
        %v668 = vmax.f32 %v652, 0.0
        %v669 = vmax.f32 %v653, 0.0
        %v670 = vmax.f32 %v654, 0.0
        %v671 = vmax.f32 %v655, 0.0
        %v672 = vld [vmem:[#allocation6] sm:$0xff]
        %v673 = vld [vmem:[#allocation6 + $0x8] sm:$0xff]
        %v674 = vld [vmem:[#allocation6 + $0x10] sm:$0xff]
        %v675 = vld [vmem:[#allocation6 + $0x18] sm:$0xff]
        %v676 = vld [vmem:[#allocation6 + $0x20] sm:$0xff]
        %v677 = vld [vmem:[#allocation6 + $0x28] sm:$0xff]
        %v678 = vld [vmem:[#allocation6 + $0x30] sm:$0xff]
        %v679 = vld [vmem:[#allocation6 + $0x38] sm:$0xff]
        %v680 = vld [vmem:[#allocation7] sm:$0x1]
        %v682 = vlaneseq
        %v683 = vshrl.u32 %v682, 7
        %v684 = vsub.s32 0, %v683
        %v685 = vrot.slane %v680, %v684
        %vm687 = vcmask 523264
        %v689 = vsel %vm687, %v656, 0
        %v692 = vsel %vm687, %v657, 0
        %v695 = vsel %vm687, %v658, 0
        %v698 = vsel %vm687, %v659, 0
        %v701 = vsel %vm687, %v660, 0
        %v704 = vsel %vm687, %v661, 0
        %v707 = vsel %vm687, %v662, 0
        %v710 = vsel %vm687, %v663, 0
        %v713 = vsel %vm687, %v664, 0
        %v716 = vsel %vm687, %v665, 0
        %v719 = vsel %vm687, %v666, 0
        %v722 = vsel %vm687, %v667, 0
        %v725 = vsel %vm687, %v668, 0
        %v728 = vsel %vm687, %v669, 0
        %v731 = vsel %vm687, %v670, 0
        %v734 = vsel %vm687, %v671, 0
        %736 = vmatprep.subr.mxu0 0.0
        %737 = vmatpush1.msra.mxu0 %v672
        %738 = vmatprep.subr.mxu0 0.0
        %739 = vmatpush1.msra.mxu0 %v673
        %740 = vmatprep.subr.mxu0 0.0
        %741 = vmatpush1.msra.mxu0 %v674
        %742 = vmatprep.subr.mxu0 0.0
        %743 = vmatpush1.msra.mxu0 %v675
        %744 = vmatprep.subr.mxu0 0.0
        %745 = vmatpush1.msra.mxu0 %v676
        %746 = vmatprep.subr.mxu0 0.0
        %747 = vmatpush1.msra.mxu0 %v677
        %748 = vmatprep.subr.mxu0 0.0
        %749 = vmatpush1.msra.mxu0 %v678
        %750 = vmatprep.subr.mxu0 0.0
        %751 = vmatpush1.msra.mxu0 %v679
        %752 = vmatprep.subr.mxu0 0.0
        %753 = vmatpush1.msra.mxu0 0.0
        %754 = vmatprep.subr.mxu0 0.0
        %755 = vmatpush1.msra.mxu0 0.0
        %756 = vmatprep.subr.mxu0 0.0
        %757 = vmatpush1.msra.mxu0 0.0
        %758 = vmatprep.subr.mxu0 0.0
        %759 = vmatpush1.msra.mxu0 0.0
        %760 = vmatprep.subr.mxu0 0.0
        %761 = vmatpush1.msra.mxu0 0.0
        %762 = vmatprep.subr.mxu0 0.0
        %763 = vmatpush1.msra.mxu0 0.0
        %764 = vmatprep.subr.mxu0 0.0
        %765 = vmatpush1.msra.mxu0 0.0
        %766 = vmatprep.subr.mxu0 0.0
        %767 = vmatpush1.msra.mxu0 0.0
        %768 = vmatprep.subr.mxu0 0.0
        %769 = vmatpush1.msra.mxu0 0.0
        %770 = vmatprep.subr.mxu0 0.0
        %771 = vmatpush1.msra.mxu0 0.0
        %772 = vmatprep.subr.mxu0 0.0
        %773 = vmatpush1.msra.mxu0 0.0
        %774 = vmatprep.subr.mxu0 0.0
        %775 = vmatpush1.msra.mxu0 0.0
        %776 = vmatprep.subr.mxu0 0.0
        %777 = vmatpush1.msra.mxu0 0.0
        %778 = vmatprep.subr.mxu0 0.0
        %779 = vmatpush1.msra.mxu0 0.0
        %780 = vmatprep.subr.mxu0 0.0
        %781 = vmatpush1.msra.mxu0 0.0
        %782 = vmatprep.subr.mxu0 0.0
        %783 = vmatpush1.msra.mxu0 0.0
        %784 = vmatprep.subr.mxu0 0.0
        %785 = vmatpush1.msra.mxu0 0.0
        %786 = vmatprep.subr.mxu0 0.0
        %787 = vmatpush1.msra.mxu0 0.0
        %788 = vmatprep.subr.mxu0 0.0
        %789 = vmatpush1.msra.mxu0 0.0
        %790 = vmatprep.subr.mxu0 0.0
        %791 = vmatpush1.msra.mxu0 0.0
        %792 = vmatprep.subr.mxu0 0.0
        %793 = vmatpush1.msra.mxu0 0.0
        %794 = vmatprep.subr.mxu0 0.0
        %795 = vmatpush1.msra.mxu0 0.0
        %796 = vmatprep.subr.mxu0 0.0
        %797 = vmatpush1.msra.mxu0 0.0
        %798 = vmatprep.subr.mxu0 0.0
        %799 = vmatpush1.msra.mxu0 0.0
        %800 = vmatprep.mubr.f32.mxu0 0.0
        %801 = vmatmul.mubr.f32.gmra.mrb[0].mxu0 %v689
        %v802 = vpop.f32.mrb[0].mxu0
        %v803 = vadd.f32 %v685, %v802
        %v804 = vpop.f32.mrb[0].mxu0
        %805 = vmatprep.mubr.f32.mxu0 0.0
        %806 = vmatmul.mubr.f32.gmra.mrb[0].mxu0 %v692
        %v807 = vpop.f32.mrb[0].mxu0
        %v808 = vadd.f32 %v685, %v807
        %v809 = vpop.f32.mrb[0].mxu0
        %810 = vmatprep.mubr.f32.mxu0 0.0
        %811 = vmatmul.mubr.f32.gmra.mrb[0].mxu0 %v695
        %v812 = vpop.f32.mrb[0].mxu0
        %v813 = vadd.f32 %v685, %v812
        %v814 = vpop.f32.mrb[0].mxu0
        %815 = vmatprep.mubr.f32.mxu0 0.0
        %816 = vmatmul.mubr.f32.gmra.mrb[0].mxu0 %v698
        %v817 = vpop.f32.mrb[0].mxu0
        %v818 = vadd.f32 %v685, %v817
        %v819 = vpop.f32.mrb[0].mxu0
        %820 = vmatprep.mubr.f32.mxu0 0.0
        %821 = vmatmul.mubr.f32.gmra.mrb[0].mxu0 %v701
        %v822 = vpop.f32.mrb[0].mxu0
        %v823 = vadd.f32 %v685, %v822
        %v824 = vpop.f32.mrb[0].mxu0
        %825 = vmatprep.mubr.f32.mxu0 0.0
        %826 = vmatmul.mubr.f32.gmra.mrb[0].mxu0 %v704
        %v827 = vpop.f32.mrb[0].mxu0
        %v828 = vadd.f32 %v685, %v827
        %v829 = vpop.f32.mrb[0].mxu0
        %830 = vmatprep.mubr.f32.mxu0 0.0
        %831 = vmatmul.mubr.f32.gmra.mrb[0].mxu0 %v707
        %v832 = vpop.f32.mrb[0].mxu0
        %v833 = vadd.f32 %v685, %v832
        %v834 = vpop.f32.mrb[0].mxu0
        %835 = vmatprep.mubr.f32.mxu0 0.0
        %836 = vmatmul.mubr.f32.gmra.mrb[0].mxu0 %v710
        %v837 = vpop.f32.mrb[0].mxu0
        %v838 = vadd.f32 %v685, %v837
        %v839 = vpop.f32.mrb[0].mxu0
        %840 = vmatprep.mubr.f32.mxu0 0.0
        %841 = vmatmul.mubr.f32.gmra.mrb[0].mxu0 %v713
        %v842 = vpop.f32.mrb[0].mxu0
        %v843 = vadd.f32 %v685, %v842
        %v844 = vpop.f32.mrb[0].mxu0
        %845 = vmatprep.mubr.f32.mxu0 0.0
        %846 = vmatmul.mubr.f32.gmra.mrb[0].mxu0 %v716
        %v847 = vpop.f32.mrb[0].mxu0
        %v848 = vadd.f32 %v685, %v847
        %v849 = vpop.f32.mrb[0].mxu0
        %850 = vmatprep.mubr.f32.mxu0 0.0
        %851 = vmatmul.mubr.f32.gmra.mrb[0].mxu0 %v719
        %v852 = vpop.f32.mrb[0].mxu0
        %v853 = vadd.f32 %v685, %v852
        %v854 = vpop.f32.mrb[0].mxu0
        %855 = vmatprep.mubr.f32.mxu0 0.0
        %856 = vmatmul.mubr.f32.gmra.mrb[0].mxu0 %v722
        %v857 = vpop.f32.mrb[0].mxu0
        %v858 = vadd.f32 %v685, %v857
        %v859 = vpop.f32.mrb[0].mxu0
        %860 = vmatprep.mubr.f32.mxu0 0.0
        %861 = vmatmul.mubr.f32.gmra.mrb[0].mxu0 %v725
        %v862 = vpop.f32.mrb[0].mxu0
        %v863 = vadd.f32 %v685, %v862
        %v864 = vpop.f32.mrb[0].mxu0
        %865 = vmatprep.mubr.f32.mxu0 0.0
        %866 = vmatmul.mubr.f32.gmra.mrb[0].mxu0 %v728
        %v867 = vpop.f32.mrb[0].mxu0
        %v868 = vadd.f32 %v685, %v867
        %v869 = vpop.f32.mrb[0].mxu0
        %870 = vmatprep.mubr.f32.mxu0 0.0
        %871 = vmatmul.mubr.f32.gmra.mrb[0].mxu0 %v731
        %v872 = vpop.f32.mrb[0].mxu0
        %v873 = vadd.f32 %v685, %v872
        %v874 = vpop.f32.mrb[0].mxu0
        %875 = vmatprep.mubr.f32.mxu0 0.0
        %876 = vmatmul.mubr.f32.gmra.mrb[0].mxu0 %v734
        %v877 = vpop.f32.mrb[0].mxu0
        %v878 = vadd.f32 %v685, %v877
        %v879 = vpop.f32.mrb[0].mxu0
        %880 = vdwg.mxu0
        %v881 = vadd.f32 %v803, %v808
        %v882 = vadd.f32 %v881, %v813
        %v883 = vadd.f32 %v882, %v818
        %v884 = vadd.f32 %v883, %v823
        %v885 = vadd.f32 %v884, %v828
        %v886 = vadd.f32 %v885, %v833
        %v887 = vadd.f32 %v886, %v838
        %v888 = vadd.f32 %v887, %v843
        %v889 = vadd.f32 %v888, %v848
        %v890 = vadd.f32 %v889, %v853
        %v891 = vadd.f32 %v890, %v858
        %v892 = vadd.f32 %v891, %v863
        %v893 = vadd.f32 %v892, %v868
        %v894 = vadd.f32 %v893, %v873
        %v895 = vadd.f32 %v894, %v878
        %v896 = vrot.slane %v895, 4
        %v897 = vadd.f32 %v895, %v896
        %v898 = vrot.slane %v897, 2
        %v899 = vadd.f32 %v897, %v898
        %v900 = vrot.slane %v899, 1
        %v901 = vadd.f32 %v899, %v900
        %v902 = vmul.f32 %v803, %v803
        %v903 = vmul.f32 %v808, %v808
        %v904 = vmul.f32 %v813, %v813
        %v905 = vmul.f32 %v818, %v818
        %v906 = vmul.f32 %v823, %v823
        %v907 = vmul.f32 %v828, %v828
        %v908 = vmul.f32 %v833, %v833
        %v909 = vmul.f32 %v838, %v838
        %v910 = vmul.f32 %v843, %v843
        %v911 = vmul.f32 %v848, %v848
        %v912 = vmul.f32 %v853, %v853
        %v913 = vmul.f32 %v858, %v858
        %v914 = vmul.f32 %v863, %v863
        %v915 = vmul.f32 %v868, %v868
        %v916 = vmul.f32 %v873, %v873
        %v917 = vmul.f32 %v878, %v878
        %v918 = vadd.f32 %v902, %v903
        %v919 = vadd.f32 %v918, %v904
        %v920 = vadd.f32 %v919, %v905
        %v921 = vadd.f32 %v920, %v906
        %v922 = vadd.f32 %v921, %v907
        %v923 = vadd.f32 %v922, %v908
        %v924 = vadd.f32 %v923, %v909
        %v925 = vadd.f32 %v924, %v910
        %v926 = vadd.f32 %v925, %v911
        %v927 = vadd.f32 %v926, %v912
        %v928 = vadd.f32 %v927, %v913
        %v929 = vadd.f32 %v928, %v914
        %v930 = vadd.f32 %v929, %v915
        %v931 = vadd.f32 %v930, %v916
        %v932 = vadd.f32 %v931, %v917
        %v933 = vrot.slane %v932, 4
        %v934 = vadd.f32 %v932, %v933
        %v935 = vrot.slane %v934, 2
        %v936 = vadd.f32 %v934, %v935
        %v937 = vrot.slane %v936, 1
        %v938 = vadd.f32 %v936, %v937
        %p939 = scmp.eq.s32.totalorder %s28, 0
        // Predicated region
        $region65: #{input_transform_net.5} parent=47 // pred_check
          %p940 = pneg %p939
        $region66: #{input_transform_net.5} parent=47 // pred_check_branch
          %942 = sbr.rel (%p940) target = $region68
        $region67: #{input_transform_net.5} parent=47 // pred_region
          %943 = vst [vmem:[%s383] sm:$0x1] %v901
          %944 = vst [vmem:[%s386] sm:$0x1] %v938
        $region68: #{input_transform_net.5} parent=47 // pred_fallthru
          _
        %p945 = scmp.gt.s32.totalorder %s28, 0
        // Predicated region
        $region69: #{input_transform_net.5} parent=47 // pred_check
          %p946 = pneg %p945
        $region70: #{input_transform_net.5} parent=47 // pred_check_branch
          %948 = sbr.rel (%p946) target = $region72
        $region71: #{input_transform_net.5} parent=47 // pred_region
          %v949 = vld [vmem:[%s383] sm:$0x1]
          %v950 = vadd.f32 %v949, %v901
          %951 = vst [vmem:[%s383] sm:$0x1] %v950
          %v952 = vld [vmem:[%s386] sm:$0x1]
          %v953 = vadd.f32 %v952, %v938
          %954 = vst [vmem:[%s386] sm:$0x1] %v953
        $region72: #{input_transform_net.5} parent=47 // pred_fallthru
          _
        %p955 = scmp.lt.s32.totalorder %s27, 1
        %s956 = scalar_select %p955, %s27, 1
        %s957 = scalar_lea.vmem %s7, %s956
        %p958 = scmp.lt.s32.totalorder %s27, 1
        %s959 = scalar_select %p958, %s27, 1
        %s960 = scalar_lea.vmem %s8, %s959
        // Predicated region
        $region73: #{input_transform_net.5} parent=47 // pred_check
          %p961 = pneg %p207
        $region74: #{input_transform_net.5} parent=47 // pred_check_branch
          %963 = sbr.rel (%p961) target = $region76
        $region75: #{input_transform_net.5} parent=47 // pred_region
          _
        $region76: #{input_transform_net.5} parent=47 // pred_fallthru
          _
        // Predicated region
        $region77: #{input_transform_net.5} parent=47 // pred_check
          %p964 = pneg %p233
        $region78: #{input_transform_net.5} parent=47 // pred_check_branch
          %966 = sbr.rel (%p964) target = $region80
        $region79: #{input_transform_net.5} parent=47 // pred_region
          _
        $region80: #{input_transform_net.5} parent=47 // pred_fallthru
          _
      $region48: #{input_transform_net.5} parent=5 // pred_fallthru
        _
      %p967 = scmp.le.s32.totalorder 2, %s18
      // Predicated region
      $region81: #{input_transform_net.5} parent=5 // pred_check
        %p968 = pneg %p967
      $region82: #{input_transform_net.5} parent=5 // pred_check_branch
        %970 = sbr.rel (%p968) target = $region84
      $region83: #{input_transform_net.5} parent=5 // pred_region
        %s971 = ssub.s32 %s18, 2
        // Predicated region
        $region85: #{input_transform_net.5} parent=83 // pred_check
          %p972 = pneg %p213
        $region86: #{input_transform_net.5} parent=83 // pred_check_branch
          %974 = sbr.rel (%p972) target = $region88
        $region87: #{input_transform_net.5} parent=83 // pred_region
          %p975 = scmp.lt.s32.totalorder %s29, 1
          %s976 = scalar_select %p975, %s29, 1
          %s977 = scalar_lea.vmem %s7, %s976
        $region88: #{input_transform_net.5} parent=83 // pred_fallthru
          _
        // Predicated region
        $region89: #{input_transform_net.5} parent=83 // pred_check
          %p978 = pneg %p239
        $region90: #{input_transform_net.5} parent=83 // pred_check_branch
          %980 = sbr.rel (%p978) target = $region92
        $region91: #{input_transform_net.5} parent=83 // pred_region
          %p981 = scmp.lt.s32.totalorder %s29, 1
          %s982 = scalar_select %p981, %s29, 1
          %s983 = scalar_lea.vmem %s8, %s982
        $region92: #{input_transform_net.5} parent=83 // pred_fallthru
          _
      $region84: #{input_transform_net.5} parent=5 // pred_fallthru
        _
    $region6: #{input_transform_net.5} parent=1 // loop_footer
      %s22 = sadd.s32 1, %s18
    $region7: #{input_transform_net.5} parent=1 // loop_footer_branch
      %17 = sbr.rel target = $region3
    $region8: #{input_transform_net.5} parent=1 // loop_exit
      _
    %984 = vsyncpa [#allocation3], 1
    %s985 = scalar_lea.sflag [#allocation3], 1
    %986 = vsyncpa %s985, 1
    %987 = vsyncpa [#allocation5], 1
    %988 = vsyncpa [#allocation8], 1

// kernel: input_transform_net.6
$region0: #{input_transform_net.6}
  #allocation0 [shape = 'u32[]', space=smem, size = 0x4, offset = 0x4, fixed_abs, tag = 'smem constant byte address 0x4 - core index']
  #allocation1 [shape = 'u32[144,128]{1,0:T(1,128)}', space=vmem, size = 0x12000, scoped, tag = 'internal scratch']
  %s0 = inlined_call_operand.vmem [shape: f32[256,9], index: 0, kind: input, shape index: {}]
  %s1 = inlined_call_operand.vmem [shape: f32[1,64], index: 1, kind: input, shape index: {}]
  %s2 = inlined_call_operand.vmem [shape: f32[1,64], index: 2, kind: input, shape index: {}]
  %s3 = inlined_call_operand.hbm [shape: f32[9,64], index: 3, kind: input, shape index: {}]
  %s4 = inlined_call_operand.hbm [shape: f32[1,64], index: 4, kind: input, shape index: {}]
  %s5 = inlined_call_operand.vmem [shape: f32[1,128], index: 5, kind: input, shape index: {}]
  %s6 = inlined_call_operand.vmem [shape: f32[1,128], index: 6, kind: input, shape index: {}]
  %s7 = inlined_call_operand.hbm [shape: f32[64,128], index: 7, kind: input, shape index: {}]
  %s8 = inlined_call_operand.hbm [shape: f32[1,128], index: 8, kind: input, shape index: {}]
  %s9 = inlined_call_operand.hbm [shape: f32[128,1024], index: 9, kind: input, shape index: {}]
  %s10 = inlined_call_operand.hbm [shape: f32[1,1024], index: 10, kind: input, shape index: {}]
  %s11 = inlined_call_operand.vmem [shape: f32[4,1,1024], index: 11, kind: output, shape index: {0}]
  %s12 = inlined_call_operand.vmem [shape: f32[4,1,1024], index: 12, kind: output, shape index: {1}]
  %s13 = inlined_call_operand.vmem [shape: f32[4,1,1024], index: 13, kind: output, shape index: {2}]
  %s14 = inlined_call_operand.vmem [shape: f32[4,1,1024], index: 14, kind: output, shape index: {3}]
  %15 = xla_tuple %s11, %s12, %s13, %s14
  %s16 = sld [smem:[#allocation0]]
  $region133: #{input_transform_net.6} parent=0
    _
  %s18 = ssub.s32 1, %s16
  %s19 = scalar_select 0, %s18, %s16
  $region1: #{input_transform_net.6} parent=0
    #allocation2 [shape = 'u8[8192]{0}', space=vmem, size = 0x2000, scoped, tag = 'input window, operand 3, single buffered']
    #allocation3 [shape = 's32[2]{0}', space=sflag, size = 0x8, scoped, tag = 'scoped memory for input_transform_net.6']
    #allocation4 [shape = 'u8[512]{0}', space=vmem, size = 0x400, scoped, tag = 'input window, operand 4, single buffered']
    #allocation5 [shape = 's32[1]{0}', space=sflag, size = 0x4, scoped, tag = 'scoped memory for input_transform_net.6']
    #allocation6 [shape = 'u8[32768]{0}', space=vmem, size = 0x8000, scoped, tag = 'input window, operand 7, single buffered']
    #allocation7 [shape = 'u8[512]{0}', space=vmem, size = 0x400, scoped, tag = 'input window, operand 8, single buffered']
    #allocation8 [shape = 's32[1]{0}', space=sflag, size = 0x4, scoped, tag = 'scoped memory for input_transform_net.6']
    #allocation9 [shape = 'u8[524288]{0}', space=vmem, size = 0x80000, scoped, tag = 'input window, operand 9, single buffered']
    #allocation10 [shape = 'u8[4096]{0}', space=vmem, size = 0x1000, scoped, tag = 'input window, operand 10, single buffered']
    #allocation11 [shape = 's32[1]{0}', space=sflag, size = 0x4, scoped, tag = 'scoped memory for input_transform_net.6']
    %20 = vsyncpa [#allocation3], 0
    %21 = vsyncpa [#allocation5], 0
    %22 = vsyncpa [#allocation8], 0
    %23 = vsyncpa [#allocation11], 0
    loop: start=0, step=1, limit=6
    $region2: #{input_transform_net.6} parent=1 // loop_pre_header
      _
    $region3: #{input_transform_net.6} parent=1 // loop_header
      %s25 = sphi 0, %s29
      %p26 = scmp.ge.s32.totalorder %s25, 6
      %s32 = sphi 0, %s44
      %s33 = sphi 0, %s40
      %s34 = sphi 0, %s32
      %s35 = sphi 0, %s33
      %s36 = sphi 0, %s34
      %s37 = sphi 0, %s35
      %s49 = sphi 0, %s51
      %s52 = sphi 0, %s49
      %s53 = sphi 0, %s52
      %s69 = sphi 0, %s53
      %s73 = sphi 0, %s73
      %s75 = sphi 0, %s73
      %s76 = sphi 0, %s75
      %s90 = sphi 0, %s76
      %s94 = sphi 0, %s94
      %s96 = sphi 0, %s94
      %s97 = sphi 0, %s96
      %s111 = sphi 0, %s97
      %s115 = sphi 0, %s115
      %s117 = sphi 0, %s115
      %s118 = sphi 0, %s117
      %s132 = sphi 0, %s118
      %s136 = sphi 0, %s136
      %s138 = sphi 0, %s136
      %s139 = sphi 0, %s138
      %s153 = sphi 0, %s139
      %s157 = sphi 0, %s157
      %s159 = sphi 0, %s157
      %s160 = sphi 0, %s159
      %s174 = sphi 0, %s160
      %s178 = sphi 0, %s178
      %s180 = sphi 0, %s178
      %s181 = sphi 0, %s180
      %s195 = sphi 0, %s181
      %s199 = sphi 0, %s199
      %s201 = sphi 0, %s199
      %s202 = sphi 0, %s201
      %s216 = sphi 0, %s202
      %s220 = sphi 0, %s220
      %s222 = sphi 0, %s220
      %s223 = sphi 0, %s222
      %s237 = sphi 0, %s223
      %s241 = sphi 0, %s241
      %s243 = sphi 0, %s241
      %s244 = sphi 0, %s243
      %s258 = sphi 0, %s244
      %s262 = sphi 0, %s262
      %s264 = sphi 0, %s262
      %s265 = sphi 0, %s264
      %s279 = sphi 0, %s265
      %s285 = sphi 0, %s287
      %s288 = sphi 0, %s285
      %s289 = sphi 0, %s288
      %s305 = sphi 0, %s289
      %s311 = sphi 0, %s313
      %s314 = sphi 0, %s311
      %s315 = sphi 0, %s314
      %s331 = sphi 0, %s315
      %s337 = sphi 0, %s339
      %s340 = sphi 0, %s337
      %s341 = sphi 0, %s340
      %s357 = sphi 0, %s341
      %s363 = sphi 0, %s365
      %s366 = sphi 0, %s363
      %s367 = sphi 0, %s366
      %s383 = sphi 0, %s367
    $region4: #{input_transform_net.6} parent=1 // loop_header_branch
      %28 = sbr.rel (%p26) target = $region8
    $region5: #{input_transform_net.6} parent=1 // loop_body
      %s30 = ssub.s32 %s25, 1
      %s31 = ssub.s32 %s25, 2
      %s38 = sadd.s32 1, %s33
      %p39 = scmp.ge.s32.totalorder %s38, 1
      %s40 = scalar_select %p39, 0, %s38
      %s41 = sadd.s32 1, %s32
      %s42 = scalar_select %p39, %s41, %s32
      %p43 = scmp.ge.s32.totalorder %s42, 4
      %s44 = scalar_select %p43, 0, %s42
      %s45 = sadd.s32 %s32, %s33
      %s46 = sadd.s32 %s44, %s40
      %s47 = ssub.s32 %s45, %s46
      %p48 = scmp.eq.s32.totalorder %s47, 0
      %s50 = sadd.s32 %s49, 1
      %s51 = scalar_select %p48, %s49, %s50
      %p54 = pneg %p48
      %p55 = scmp.eq.s32.totalorder %s25, 3
      %p56 = por %p54, %p55
      %p57 = scmp.ne.s32.totalorder %s49, %s52
      %p58 = scmp.eq.s32.totalorder %s25, 0
      %p59 = por %p57, %p58
      %p60 = scmp.ne.s32.totalorder %s49, %s52
      %p61 = scmp.eq.s32.totalorder %s30, 3
      %p62 = por %p60, %p61
      %p63 = scmp.ne.s32.totalorder %s52, %s53
      %p64 = scmp.eq.s32.totalorder %s30, 0
      %p65 = por %p63, %p64
      %p66 = scmp.ne.s32.totalorder %s52, %s53
      %p67 = scmp.eq.s32.totalorder %s31, 3
      %p68 = por %p66, %p67
      %p70 = scmp.ne.s32.totalorder %s53, %s69
      %p71 = scmp.eq.s32.totalorder %s31, 0
      %p72 = por %p70, %p71
      %s74 = sadd.s32 %s73, 1
      %p77 = scmp.eq.s32.totalorder %s25, 3
      %p78 = scmp.ne.s32.totalorder %s73, %s75
      %p79 = scmp.eq.s32.totalorder %s25, 0
      %p80 = por %p78, %p79
      %p81 = scmp.ne.s32.totalorder %s73, %s75
      %p82 = scmp.eq.s32.totalorder %s30, 3
      %p83 = por %p81, %p82
      %p84 = scmp.ne.s32.totalorder %s75, %s76
      %p85 = scmp.eq.s32.totalorder %s30, 0
      %p86 = por %p84, %p85
      %p87 = scmp.ne.s32.totalorder %s75, %s76
      %p88 = scmp.eq.s32.totalorder %s31, 3
      %p89 = por %p87, %p88
      %p91 = scmp.ne.s32.totalorder %s76, %s90
      %p92 = scmp.eq.s32.totalorder %s31, 0
      %p93 = por %p91, %p92
      %s95 = sadd.s32 %s94, 1
      %p98 = scmp.eq.s32.totalorder %s25, 3
      %p99 = scmp.ne.s32.totalorder %s94, %s96
      %p100 = scmp.eq.s32.totalorder %s25, 0
      %p101 = por %p99, %p100
      %p102 = scmp.ne.s32.totalorder %s94, %s96
      %p103 = scmp.eq.s32.totalorder %s30, 3
      %p104 = por %p102, %p103
      %p105 = scmp.ne.s32.totalorder %s96, %s97
      %p106 = scmp.eq.s32.totalorder %s30, 0
      %p107 = por %p105, %p106
      %p108 = scmp.ne.s32.totalorder %s96, %s97
      %p109 = scmp.eq.s32.totalorder %s31, 3
      %p110 = por %p108, %p109
      %p112 = scmp.ne.s32.totalorder %s97, %s111
      %p113 = scmp.eq.s32.totalorder %s31, 0
      %p114 = por %p112, %p113
      %s116 = sadd.s32 %s115, 1
      %p119 = scmp.eq.s32.totalorder %s25, 3
      %p120 = scmp.ne.s32.totalorder %s115, %s117
      %p121 = scmp.eq.s32.totalorder %s25, 0
      %p122 = por %p120, %p121
      %p123 = scmp.ne.s32.totalorder %s115, %s117
      %p124 = scmp.eq.s32.totalorder %s30, 3
      %p125 = por %p123, %p124
      %p126 = scmp.ne.s32.totalorder %s117, %s118
      %p127 = scmp.eq.s32.totalorder %s30, 0
      %p128 = por %p126, %p127
      %p129 = scmp.ne.s32.totalorder %s117, %s118
      %p130 = scmp.eq.s32.totalorder %s31, 3
      %p131 = por %p129, %p130
      %p133 = scmp.ne.s32.totalorder %s118, %s132
      %p134 = scmp.eq.s32.totalorder %s31, 0
      %p135 = por %p133, %p134
      %s137 = sadd.s32 %s136, 1
      %p140 = scmp.eq.s32.totalorder %s25, 3
      %p141 = scmp.ne.s32.totalorder %s136, %s138
      %p142 = scmp.eq.s32.totalorder %s25, 0
      %p143 = por %p141, %p142
      %p144 = scmp.ne.s32.totalorder %s136, %s138
      %p145 = scmp.eq.s32.totalorder %s30, 3
      %p146 = por %p144, %p145
      %p147 = scmp.ne.s32.totalorder %s138, %s139
      %p148 = scmp.eq.s32.totalorder %s30, 0
      %p149 = por %p147, %p148
      %p150 = scmp.ne.s32.totalorder %s138, %s139
      %p151 = scmp.eq.s32.totalorder %s31, 3
      %p152 = por %p150, %p151
      %p154 = scmp.ne.s32.totalorder %s139, %s153
      %p155 = scmp.eq.s32.totalorder %s31, 0
      %p156 = por %p154, %p155
      %s158 = sadd.s32 %s157, 1
      %p161 = scmp.eq.s32.totalorder %s25, 3
      %p162 = scmp.ne.s32.totalorder %s157, %s159
      %p163 = scmp.eq.s32.totalorder %s25, 0
      %p164 = por %p162, %p163
      %p165 = scmp.ne.s32.totalorder %s157, %s159
      %p166 = scmp.eq.s32.totalorder %s30, 3
      %p167 = por %p165, %p166
      %p168 = scmp.ne.s32.totalorder %s159, %s160
      %p169 = scmp.eq.s32.totalorder %s30, 0
      %p170 = por %p168, %p169
      %p171 = scmp.ne.s32.totalorder %s159, %s160
      %p172 = scmp.eq.s32.totalorder %s31, 3
      %p173 = por %p171, %p172
      %p175 = scmp.ne.s32.totalorder %s160, %s174
      %p176 = scmp.eq.s32.totalorder %s31, 0
      %p177 = por %p175, %p176
      %s179 = sadd.s32 %s178, 1
      %p182 = scmp.eq.s32.totalorder %s25, 3
      %p183 = scmp.ne.s32.totalorder %s178, %s180
      %p184 = scmp.eq.s32.totalorder %s25, 0
      %p185 = por %p183, %p184
      %p186 = scmp.ne.s32.totalorder %s178, %s180
      %p187 = scmp.eq.s32.totalorder %s30, 3
      %p188 = por %p186, %p187
      %p189 = scmp.ne.s32.totalorder %s180, %s181
      %p190 = scmp.eq.s32.totalorder %s30, 0
      %p191 = por %p189, %p190
      %p192 = scmp.ne.s32.totalorder %s180, %s181
      %p193 = scmp.eq.s32.totalorder %s31, 3
      %p194 = por %p192, %p193
      %p196 = scmp.ne.s32.totalorder %s181, %s195
      %p197 = scmp.eq.s32.totalorder %s31, 0
      %p198 = por %p196, %p197
      %s200 = sadd.s32 %s199, 1
      %p203 = scmp.eq.s32.totalorder %s25, 3
      %p204 = scmp.ne.s32.totalorder %s199, %s201
      %p205 = scmp.eq.s32.totalorder %s25, 0
      %p206 = por %p204, %p205
      %p207 = scmp.ne.s32.totalorder %s199, %s201
      %p208 = scmp.eq.s32.totalorder %s30, 3
      %p209 = por %p207, %p208
      %p210 = scmp.ne.s32.totalorder %s201, %s202
      %p211 = scmp.eq.s32.totalorder %s30, 0
      %p212 = por %p210, %p211
      %p213 = scmp.ne.s32.totalorder %s201, %s202
      %p214 = scmp.eq.s32.totalorder %s31, 3
      %p215 = por %p213, %p214
      %p217 = scmp.ne.s32.totalorder %s202, %s216
      %p218 = scmp.eq.s32.totalorder %s31, 0
      %p219 = por %p217, %p218
      %s221 = sadd.s32 %s220, 1
      %p224 = scmp.eq.s32.totalorder %s25, 3
      %p225 = scmp.ne.s32.totalorder %s220, %s222
      %p226 = scmp.eq.s32.totalorder %s25, 0
      %p227 = por %p225, %p226
      %p228 = scmp.ne.s32.totalorder %s220, %s222
      %p229 = scmp.eq.s32.totalorder %s30, 3
      %p230 = por %p228, %p229
      %p231 = scmp.ne.s32.totalorder %s222, %s223
      %p232 = scmp.eq.s32.totalorder %s30, 0
      %p233 = por %p231, %p232
      %p234 = scmp.ne.s32.totalorder %s222, %s223
      %p235 = scmp.eq.s32.totalorder %s31, 3
      %p236 = por %p234, %p235
      %p238 = scmp.ne.s32.totalorder %s223, %s237
      %p239 = scmp.eq.s32.totalorder %s31, 0
      %p240 = por %p238, %p239
      %s242 = sadd.s32 %s241, 1
      %p245 = scmp.eq.s32.totalorder %s25, 3
      %p246 = scmp.ne.s32.totalorder %s241, %s243
      %p247 = scmp.eq.s32.totalorder %s25, 0
      %p248 = por %p246, %p247
      %p249 = scmp.ne.s32.totalorder %s241, %s243
      %p250 = scmp.eq.s32.totalorder %s30, 3
      %p251 = por %p249, %p250
      %p252 = scmp.ne.s32.totalorder %s243, %s244
      %p253 = scmp.eq.s32.totalorder %s30, 0
      %p254 = por %p252, %p253
      %p255 = scmp.ne.s32.totalorder %s243, %s244
      %p256 = scmp.eq.s32.totalorder %s31, 3
      %p257 = por %p255, %p256
      %p259 = scmp.ne.s32.totalorder %s244, %s258
      %p260 = scmp.eq.s32.totalorder %s31, 0
      %p261 = por %p259, %p260
      %s263 = sadd.s32 %s262, 1
      %p266 = scmp.eq.s32.totalorder %s25, 3
      %p267 = scmp.ne.s32.totalorder %s262, %s264
      %p268 = scmp.eq.s32.totalorder %s25, 0
      %p269 = por %p267, %p268
      %p270 = scmp.ne.s32.totalorder %s262, %s264
      %p271 = scmp.eq.s32.totalorder %s30, 3
      %p272 = por %p270, %p271
      %p273 = scmp.ne.s32.totalorder %s264, %s265
      %p274 = scmp.eq.s32.totalorder %s30, 0
      %p275 = por %p273, %p274
      %p276 = scmp.ne.s32.totalorder %s264, %s265
      %p277 = scmp.eq.s32.totalorder %s31, 3
      %p278 = por %p276, %p277
      %p280 = scmp.ne.s32.totalorder %s265, %s279
      %p281 = scmp.eq.s32.totalorder %s31, 0
      %p282 = por %p280, %p281
      %s283 = ssub.s32 %s32, %s44
      %p284 = scmp.eq.s32.totalorder %s283, 0
      %s286 = sadd.s32 %s285, 1
      %s287 = scalar_select %p284, %s285, %s286
      %p290 = pneg %p284
      %p291 = scmp.eq.s32.totalorder %s25, 3
      %p292 = por %p290, %p291
      %p293 = scmp.ne.s32.totalorder %s285, %s288
      %p294 = scmp.eq.s32.totalorder %s25, 0
      %p295 = por %p293, %p294
      %p296 = scmp.ne.s32.totalorder %s285, %s288
      %p297 = scmp.eq.s32.totalorder %s30, 3
      %p298 = por %p296, %p297
      %p299 = scmp.ne.s32.totalorder %s288, %s289
      %p300 = scmp.eq.s32.totalorder %s30, 0
      %p301 = por %p299, %p300
      %p302 = scmp.ne.s32.totalorder %s288, %s289
      %p303 = scmp.eq.s32.totalorder %s31, 3
      %p304 = por %p302, %p303
      %p306 = scmp.ne.s32.totalorder %s289, %s305
      %p307 = scmp.eq.s32.totalorder %s31, 0
      %p308 = por %p306, %p307
      %s309 = ssub.s32 %s32, %s44
      %p310 = scmp.eq.s32.totalorder %s309, 0
      %s312 = sadd.s32 %s311, 1
      %s313 = scalar_select %p310, %s311, %s312
      %p316 = pneg %p310
      %p317 = scmp.eq.s32.totalorder %s25, 3
      %p318 = por %p316, %p317
      %p319 = scmp.ne.s32.totalorder %s311, %s314
      %p320 = scmp.eq.s32.totalorder %s25, 0
      %p321 = por %p319, %p320
      %p322 = scmp.ne.s32.totalorder %s311, %s314
      %p323 = scmp.eq.s32.totalorder %s30, 3
      %p324 = por %p322, %p323
      %p325 = scmp.ne.s32.totalorder %s314, %s315
      %p326 = scmp.eq.s32.totalorder %s30, 0
      %p327 = por %p325, %p326
      %p328 = scmp.ne.s32.totalorder %s314, %s315
      %p329 = scmp.eq.s32.totalorder %s31, 3
      %p330 = por %p328, %p329
      %p332 = scmp.ne.s32.totalorder %s315, %s331
      %p333 = scmp.eq.s32.totalorder %s31, 0
      %p334 = por %p332, %p333
      %s335 = ssub.s32 %s32, %s44
      %p336 = scmp.eq.s32.totalorder %s335, 0
      %s338 = sadd.s32 %s337, 1
      %s339 = scalar_select %p336, %s337, %s338
      %p342 = pneg %p336
      %p343 = scmp.eq.s32.totalorder %s25, 3
      %p344 = por %p342, %p343
      %p345 = scmp.ne.s32.totalorder %s337, %s340
      %p346 = scmp.eq.s32.totalorder %s25, 0
      %p347 = por %p345, %p346
      %p348 = scmp.ne.s32.totalorder %s337, %s340
      %p349 = scmp.eq.s32.totalorder %s30, 3
      %p350 = por %p348, %p349
      %p351 = scmp.ne.s32.totalorder %s340, %s341
      %p352 = scmp.eq.s32.totalorder %s30, 0
      %p353 = por %p351, %p352
      %p354 = scmp.ne.s32.totalorder %s340, %s341
      %p355 = scmp.eq.s32.totalorder %s31, 3
      %p356 = por %p354, %p355
      %p358 = scmp.ne.s32.totalorder %s341, %s357
      %p359 = scmp.eq.s32.totalorder %s31, 0
      %p360 = por %p358, %p359
      %s361 = ssub.s32 %s32, %s44
      %p362 = scmp.eq.s32.totalorder %s361, 0
      %s364 = sadd.s32 %s363, 1
      %s365 = scalar_select %p362, %s363, %s364
      %p368 = pneg %p362
      %p369 = scmp.eq.s32.totalorder %s25, 3
      %p370 = por %p368, %p369
      %p371 = scmp.ne.s32.totalorder %s363, %s366
      %p372 = scmp.eq.s32.totalorder %s25, 0
      %p373 = por %p371, %p372
      %p374 = scmp.ne.s32.totalorder %s363, %s366
      %p375 = scmp.eq.s32.totalorder %s30, 3
      %p376 = por %p374, %p375
      %p377 = scmp.ne.s32.totalorder %s366, %s367
      %p378 = scmp.eq.s32.totalorder %s30, 0
      %p379 = por %p377, %p378
      %p380 = scmp.ne.s32.totalorder %s366, %s367
      %p381 = scmp.eq.s32.totalorder %s31, 3
      %p382 = por %p380, %p381
      %p384 = scmp.ne.s32.totalorder %s367, %s383
      %p385 = scmp.eq.s32.totalorder %s31, 0
      %p386 = por %p384, %p385
      %p387 = scmp.le.s32.totalorder 1, %s25
      %p388 = scmp.lt.s32.totalorder %s25, 5
      %p389 = pnand %p387, %p388
      %p390 = pneg %p389
      // Predicated region
      $region9: #{input_transform_net.6} parent=5 // pred_check
        _
      $region10: #{input_transform_net.6} parent=5 // pred_check_branch
        %392 = sbr.rel (%p389) target = $region12
      $region11: #{input_transform_net.6} parent=5 // pred_region
        %s393 = ssub.s32 %s25, 1
        // Predicated region
        $region13: #{input_transform_net.6} parent=11 // pred_check
          %p394 = pneg %p86
        $region14: #{input_transform_net.6} parent=11 // pred_check_branch
          %396 = sbr.rel (%p394) target = $region16
        $region15: #{input_transform_net.6} parent=11 // pred_region
          _
        $region16: #{input_transform_net.6} parent=11 // pred_fallthru
          _
        // Predicated region
        $region17: #{input_transform_net.6} parent=11 // pred_check
          %p397 = pneg %p107
        $region18: #{input_transform_net.6} parent=11 // pred_check_branch
          %399 = sbr.rel (%p397) target = $region20
        $region19: #{input_transform_net.6} parent=11 // pred_region
          _
        $region20: #{input_transform_net.6} parent=11 // pred_fallthru
          _
        // Predicated region
        $region21: #{input_transform_net.6} parent=11 // pred_check
          %p400 = pneg %p128
        $region22: #{input_transform_net.6} parent=11 // pred_check_branch
          %402 = sbr.rel (%p400) target = $region24
        $region23: #{input_transform_net.6} parent=11 // pred_region
          %s404 = ssub.s32 256, 256
          %405 = vsyncadd [#allocation3], %s404
          %s406 = sshll.u32 [#allocation2], 4
          %s407 = int_to_ptr.vmem [resolvable:$true] %s406
          %412 = dma.hbm_to_vmem [thread:$0]  %s3, 256, %s407, [#allocation3], 128, 128, 8
        $region24: #{input_transform_net.6} parent=11 // pred_fallthru
          _
        // Predicated region
        $region25: #{input_transform_net.6} parent=11 // pred_check
          %p413 = pneg %p149
        $region26: #{input_transform_net.6} parent=11 // pred_check_branch
          %415 = sbr.rel (%p413) target = $region28
        $region27: #{input_transform_net.6} parent=11 // pred_region
          %s417 = ssub.s32 16, 16
          %418 = vsyncadd [#allocation5], %s417
          %s420 = sshll.u32 [#allocation4], 4
          %s421 = int_to_ptr.vmem [resolvable:$true] %s420
          %423 = dma.hbm_to_vmem [thread:$0]  %s4, 16, %s421, [#allocation5]
        $region28: #{input_transform_net.6} parent=11 // pred_fallthru
          _
        // Predicated region
        $region29: #{input_transform_net.6} parent=11 // pred_check
          %p424 = pneg %p170
        $region30: #{input_transform_net.6} parent=11 // pred_check_branch
          %426 = sbr.rel (%p424) target = $region32
        $region31: #{input_transform_net.6} parent=11 // pred_region
          _
        $region32: #{input_transform_net.6} parent=11 // pred_fallthru
          _
        // Predicated region
        $region33: #{input_transform_net.6} parent=11 // pred_check
          %p427 = pneg %p191
        $region34: #{input_transform_net.6} parent=11 // pred_check_branch
          %429 = sbr.rel (%p427) target = $region36
        $region35: #{input_transform_net.6} parent=11 // pred_region
          _
        $region36: #{input_transform_net.6} parent=11 // pred_fallthru
          _
        // Predicated region
        $region37: #{input_transform_net.6} parent=11 // pred_check
          %p430 = pneg %p212
        $region38: #{input_transform_net.6} parent=11 // pred_check_branch
          %432 = sbr.rel (%p430) target = $region40
        $region39: #{input_transform_net.6} parent=11 // pred_region
          %s434 = ssub.s32 1024, 1024
          %435 = vsyncadd [#allocation5], %s434
          %s436 = sshll.u32 [#allocation6], 4
          %s437 = int_to_ptr.vmem [resolvable:$true] %s436
          %442 = dma.hbm_to_vmem [thread:$0]  %s7, 1024, %s437, [#allocation5], 128, 128, 8
        $region40: #{input_transform_net.6} parent=11 // pred_fallthru
          _
        // Predicated region
        $region41: #{input_transform_net.6} parent=11 // pred_check
          %p443 = pneg %p233
        $region42: #{input_transform_net.6} parent=11 // pred_check_branch
          %445 = sbr.rel (%p443) target = $region44
        $region43: #{input_transform_net.6} parent=11 // pred_region
          %s447 = ssub.s32 16, 16
          %448 = vsyncadd [#allocation8], %s447
          %s450 = sshll.u32 [#allocation7], 4
          %s451 = int_to_ptr.vmem [resolvable:$true] %s450
          %453 = dma.hbm_to_vmem [thread:$0]  %s8, 16, %s451, [#allocation8]
        $region44: #{input_transform_net.6} parent=11 // pred_fallthru
          _
        // Predicated region
        $region45: #{input_transform_net.6} parent=11 // pred_check
          %p454 = pneg %p254
        $region46: #{input_transform_net.6} parent=11 // pred_check_branch
          %456 = sbr.rel (%p454) target = $region48
        $region47: #{input_transform_net.6} parent=11 // pred_region
          %s458 = ssub.s32 16384, 16384
          %459 = vsyncadd [#allocation8], %s458
          %s460 = sshll.u32 [#allocation9], 4
          %s461 = int_to_ptr.vmem [resolvable:$true] %s460
          %466 = dma.hbm_to_vmem [thread:$0]  %s9, 16384, %s461, [#allocation8], 1024, 1024, 64
        $region48: #{input_transform_net.6} parent=11 // pred_fallthru
          _
        // Predicated region
        $region49: #{input_transform_net.6} parent=11 // pred_check
          %p467 = pneg %p275
        $region50: #{input_transform_net.6} parent=11 // pred_check_branch
          %469 = sbr.rel (%p467) target = $region52
        $region51: #{input_transform_net.6} parent=11 // pred_region
          %s471 = ssub.s32 128, 128
          %472 = vsyncadd [#allocation11], %s471
          %s474 = sshll.u32 [#allocation10], 4
          %s475 = int_to_ptr.vmem [resolvable:$true] %s474
          %477 = dma.hbm_to_vmem [thread:$0]  %s10, 128, %s475, [#allocation11]
        $region52: #{input_transform_net.6} parent=11 // pred_fallthru
          _
      $region12: #{input_transform_net.6} parent=5 // pred_fallthru
        _
      %p478 = scmp.lt.s32.totalorder %s25, 4
      // Predicated region
      $region53: #{input_transform_net.6} parent=5 // pred_check
        %p479 = pneg %p478
      $region54: #{input_transform_net.6} parent=5 // pred_check_branch
        %481 = sbr.rel (%p479) target = $region56
      $region55: #{input_transform_net.6} parent=5 // pred_region
        // Predicated region
        $region57: #{input_transform_net.6} parent=55 // pred_check
          %p482 = pneg %p59
        $region58: #{input_transform_net.6} parent=55 // pred_check_branch
          %484 = sbr.rel (%p482) target = $region60
        $region59: #{input_transform_net.6} parent=55 // pred_region
          %s485 = sadd.s32 %s32, %s33
          %s486 = smul.u32 8, %s485
          %p487 = scmp.lt.s32.totalorder %s486, 31
          %s488 = scalar_select %p487, %s486, 31
          %s489 = smul.addr %s488, 8
          %s490 = scalar_lea.vmem %s0, %s489
          %s491 = sadd.s32 %s32, %s33
          %s492 = smul.u32 8, %s491
        $region60: #{input_transform_net.6} parent=55 // pred_fallthru
          _
      $region56: #{input_transform_net.6} parent=5 // pred_fallthru
        _
      %p493 = scmp.le.s32.totalorder 1, %s25
      %p494 = scmp.lt.s32.totalorder %s25, 5
      %p495 = pnand %p493, %p494
      %p496 = pneg %p495
      // Predicated region
      $region61: #{input_transform_net.6} parent=5 // pred_check
        _
      $region62: #{input_transform_net.6} parent=5 // pred_check_branch
        %498 = sbr.rel (%p495) target = $region64
      $region63: #{input_transform_net.6} parent=5 // pred_region
        %s499 = ssub.s32 %s25, 1
        // Predicated region
        $region65: #{input_transform_net.6} parent=63 // pred_check
          %p500 = pneg %p128
        $region66: #{input_transform_net.6} parent=63 // pred_check_branch
          %502 = sbr.rel (%p500) target = $region68
        $region67: #{input_transform_net.6} parent=63 // pred_region
          %503 = dma.done [#allocation3], 256
        $region68: #{input_transform_net.6} parent=63 // pred_fallthru
          _
        // Predicated region
        $region69: #{input_transform_net.6} parent=63 // pred_check
          %p504 = pneg %p149
        $region70: #{input_transform_net.6} parent=63 // pred_check_branch
          %506 = sbr.rel (%p504) target = $region72
        $region71: #{input_transform_net.6} parent=63 // pred_region
          %507 = dma.done [#allocation5], 16
        $region72: #{input_transform_net.6} parent=63 // pred_fallthru
          _
        // Predicated region
        $region73: #{input_transform_net.6} parent=63 // pred_check
          %p508 = pneg %p212
        $region74: #{input_transform_net.6} parent=63 // pred_check_branch
          %510 = sbr.rel (%p508) target = $region76
        $region75: #{input_transform_net.6} parent=63 // pred_region
          %511 = dma.done [#allocation5], 1024
        $region76: #{input_transform_net.6} parent=63 // pred_fallthru
          _
        // Predicated region
        $region77: #{input_transform_net.6} parent=63 // pred_check
          %p512 = pneg %p233
        $region78: #{input_transform_net.6} parent=63 // pred_check_branch
          %514 = sbr.rel (%p512) target = $region80
        $region79: #{input_transform_net.6} parent=63 // pred_region
          %515 = dma.done [#allocation8], 16
        $region80: #{input_transform_net.6} parent=63 // pred_fallthru
          _
        // Predicated region
        $region81: #{input_transform_net.6} parent=63 // pred_check
          %p516 = pneg %p254
        $region82: #{input_transform_net.6} parent=63 // pred_check_branch
          %518 = sbr.rel (%p516) target = $region84
        $region83: #{input_transform_net.6} parent=63 // pred_region
          %519 = dma.done [#allocation8], 16384
        $region84: #{input_transform_net.6} parent=63 // pred_fallthru
          _
        // Predicated region
        $region85: #{input_transform_net.6} parent=63 // pred_check
          %p520 = pneg %p275
        $region86: #{input_transform_net.6} parent=63 // pred_check_branch
          %522 = sbr.rel (%p520) target = $region88
        $region87: #{input_transform_net.6} parent=63 // pred_region
          %523 = dma.done [#allocation11], 128
        $region88: #{input_transform_net.6} parent=63 // pred_fallthru
          _
        %s524 = sadd.s32 %s34, %s35
        %s525 = smul.u32 8, %s524
        %p526 = scmp.lt.s32.totalorder %s525, 31
        %s527 = scalar_select %p526, %s525, 31
        %s528 = smul.addr %s527, 8
        %s529 = scalar_lea.vmem %s0, %s528
        %p530 = pneg %p65
        %p531 = pneg %p62
        %p532 = pneg %p86
        %p533 = pneg %p83
        %p534 = pneg %p107
        %p535 = pneg %p104
        %p536 = pneg %p128
        %p537 = pneg %p125
        %p538 = pneg %p149
        %p539 = pneg %p146
        %p540 = pneg %p170
        %p541 = pneg %p167
        %p542 = pneg %p191
        %p543 = pneg %p188
        %p544 = pneg %p212
        %p545 = pneg %p209
        %p546 = pneg %p233
        %p547 = pneg %p230
        %p548 = pneg %p254
        %p549 = pneg %p251
        %p550 = pneg %p275
        %p551 = pneg %p272
        %p552 = pneg %p301
        %p553 = pneg %p298
        %p554 = scmp.lt.s32.totalorder %s34, 3
        %s555 = scalar_select %p554, %s34, 3
        %s556 = smul.addr %s555, 8
        %s557 = scalar_lea.vmem %s11, %s556
        %p558 = pneg %p327
        %p559 = pneg %p324
        %p560 = scmp.lt.s32.totalorder %s34, 3
        %s561 = scalar_select %p560, %s34, 3
        %s562 = smul.addr %s561, 8
        %s563 = scalar_lea.vmem %s12, %s562
        %p564 = pneg %p353
        %p565 = pneg %p350
        %p566 = scmp.lt.s32.totalorder %s34, 3
        %s567 = scalar_select %p566, %s34, 3
        %s568 = smul.addr %s567, 8
        %s569 = scalar_lea.vmem %s13, %s568
        %p570 = pneg %p379
        %p571 = pneg %p376
        %p572 = scmp.lt.s32.totalorder %s34, 3
        %s573 = scalar_select %p572, %s34, 3
        %s574 = smul.addr %s573, 8
        %s575 = scalar_lea.vmem %s14, %s574
        %s576 = sadd.s32 %s34, %s35
        %s577 = smul.u32 8, %s576
        %p578 = scmp.lt.s32.totalorder %s577, 31
        %s579 = scalar_select %p578, %s577, 31
        %s580 = smul.addr %s579, 8
        %s581 = scalar_lea.vmem %s0, %s580
        %s582 = sadd.s32 %s34, %s35
        %s583 = smul.u32 8, %s582
        %p584 = scmp.lt.s32.totalorder %s34, 3
        %s585 = scalar_select %p584, %s34, 3
        %s586 = smul.addr %s585, 8
        %s587 = scalar_lea.vmem %s11, %s586
        %p588 = scmp.lt.s32.totalorder %s34, 3
        %s589 = scalar_select %p588, %s34, 3
        %s590 = smul.addr %s589, 8
        %s591 = scalar_lea.vmem %s12, %s590
        %p592 = scmp.lt.s32.totalorder %s34, 3
        %s593 = scalar_select %p592, %s34, 3
        %s594 = smul.addr %s593, 8
        %s595 = scalar_lea.vmem %s13, %s594
        %p596 = scmp.lt.s32.totalorder %s34, 3
        %s597 = scalar_select %p596, %s34, 3
        %s598 = smul.addr %s597, 8
        %s599 = scalar_lea.vmem %s14, %s598
        %v600 = vld [vmem:[%s581] sm:$0xff]
        %v601 = vld [vmem:[%s581 + $0x8] sm:$0xff]
        %v602 = vld [vmem:[%s581 + $0x10] sm:$0xff]
        %v603 = vld [vmem:[%s581 + $0x18] sm:$0xff]
        %v604 = vld [vmem:[%s581 + $0x20] sm:$0xff]
        %v605 = vld [vmem:[%s581 + $0x28] sm:$0xff]
        %v606 = vld [vmem:[%s581 + $0x30] sm:$0xff]
        %v607 = vld [vmem:[%s581 + $0x38] sm:$0xff]
        %v608 = vld [vmem:[#allocation2] sm:$0xff]
        %v609 = vld [vmem:[#allocation2 + $0x8] sm:$0x1]
        %v610 = vld [vmem:[#allocation4] sm:$0x1]
        %v612 = vlaneseq
        %v613 = vshrl.u32 %v612, 7
        %v614 = vsub.s32 0, %v613
        %v615 = vrot.slane %v610, %v614
        %vm617 = vcmask 72704
        %v619 = vsel %vm617, %v600, 0
        %v622 = vsel %vm617, %v601, 0
        %v625 = vsel %vm617, %v602, 0
        %v628 = vsel %vm617, %v603, 0
        %v631 = vsel %vm617, %v604, 0
        %v634 = vsel %vm617, %v605, 0
        %v637 = vsel %vm617, %v606, 0
        %v640 = vsel %vm617, %v607, 0
        %vm642 = vcmask 1040384
        %v644 = vsel %vm642, %v609, 0
        %646 = vmatprep.subr.mxu0 0.0
        %647 = vmatpush1.msra.mxu0 %v608
        %648 = vmatprep.subr.mxu0 0.0
        %649 = vmatpush1.msra.mxu0 %v644
        %650 = vmatprep.subr.mxu0 0.0
        %651 = vmatpush1.msra.mxu0 0.0
        %652 = vmatprep.subr.mxu0 0.0
        %653 = vmatpush1.msra.mxu0 0.0
        %654 = vmatprep.subr.mxu0 0.0
        %655 = vmatpush1.msra.mxu0 0.0
        %656 = vmatprep.subr.mxu0 0.0
        %657 = vmatpush1.msra.mxu0 0.0
        %658 = vmatprep.subr.mxu0 0.0
        %659 = vmatpush1.msra.mxu0 0.0
        %660 = vmatprep.subr.mxu0 0.0
        %661 = vmatpush1.msra.mxu0 0.0
        %662 = vmatprep.subr.mxu0 0.0
        %663 = vmatpush1.msra.mxu0 0.0
        %664 = vmatprep.subr.mxu0 0.0
        %665 = vmatpush1.msra.mxu0 0.0
        %666 = vmatprep.subr.mxu0 0.0
        %667 = vmatpush1.msra.mxu0 0.0
        %668 = vmatprep.subr.mxu0 0.0
        %669 = vmatpush1.msra.mxu0 0.0
        %670 = vmatprep.subr.mxu0 0.0
        %671 = vmatpush1.msra.mxu0 0.0
        %672 = vmatprep.subr.mxu0 0.0
        %673 = vmatpush1.msra.mxu0 0.0
        %674 = vmatprep.subr.mxu0 0.0
        %675 = vmatpush1.msra.mxu0 0.0
        %676 = vmatprep.subr.mxu0 0.0
        %677 = vmatpush1.msra.mxu0 0.0
        %678 = vmatprep.subr.mxu0 0.0
        %679 = vmatpush1.msra.mxu0 0.0
        %680 = vmatprep.subr.mxu0 0.0
        %681 = vmatpush1.msra.mxu0 0.0
        %682 = vmatprep.subr.mxu0 0.0
        %683 = vmatpush1.msra.mxu0 0.0
        %684 = vmatprep.subr.mxu0 0.0
        %685 = vmatpush1.msra.mxu0 0.0
        %686 = vmatprep.subr.mxu0 0.0
        %687 = vmatpush1.msra.mxu0 0.0
        %688 = vmatprep.subr.mxu0 0.0
        %689 = vmatpush1.msra.mxu0 0.0
        %690 = vmatprep.subr.mxu0 0.0
        %691 = vmatpush1.msra.mxu0 0.0
        %692 = vmatprep.subr.mxu0 0.0
        %693 = vmatpush1.msra.mxu0 0.0
        %694 = vmatprep.subr.mxu0 0.0
        %695 = vmatpush1.msra.mxu0 0.0
        %696 = vmatprep.subr.mxu0 0.0
        %697 = vmatpush1.msra.mxu0 0.0
        %698 = vmatprep.subr.mxu0 0.0
        %699 = vmatpush1.msra.mxu0 0.0
        %700 = vmatprep.subr.mxu0 0.0
        %701 = vmatpush1.msra.mxu0 0.0
        %702 = vmatprep.subr.mxu0 0.0
        %703 = vmatpush1.msra.mxu0 0.0
        %704 = vmatprep.subr.mxu0 0.0
        %705 = vmatpush1.msra.mxu0 0.0
        %706 = vmatprep.subr.mxu0 0.0
        %707 = vmatpush1.msra.mxu0 0.0
        %708 = vmatprep.subr.mxu0 0.0
        %709 = vmatpush1.msra.mxu0 0.0
        %710 = vmatprep.mubr.f32.mxu0 0.0
        %711 = vmatmul.mubr.f32.gmra.mrb[0].mxu0 %v619
        %v712 = vpop.f32.mrb[0].mxu0
        %v713 = vadd.f32 %v615, %v712
        %v714 = vpop.f32.mrb[0].mxu0
        %715 = vmatprep.mubr.f32.mxu0 0.0
        %716 = vmatmul.mubr.f32.gmra.mrb[0].mxu0 %v622
        %v717 = vpop.f32.mrb[0].mxu0
        %v718 = vadd.f32 %v615, %v717
        %v719 = vpop.f32.mrb[0].mxu0
        %720 = vmatprep.mubr.f32.mxu0 0.0
        %721 = vmatmul.mubr.f32.gmra.mrb[0].mxu0 %v625
        %v722 = vpop.f32.mrb[0].mxu0
        %v723 = vadd.f32 %v615, %v722
        %v724 = vpop.f32.mrb[0].mxu0
        %725 = vmatprep.mubr.f32.mxu0 0.0
        %726 = vmatmul.mubr.f32.gmra.mrb[0].mxu0 %v628
        %v727 = vpop.f32.mrb[0].mxu0
        %v728 = vadd.f32 %v615, %v727
        %v729 = vpop.f32.mrb[0].mxu0
        %730 = vmatprep.mubr.f32.mxu0 0.0
        %731 = vmatmul.mubr.f32.gmra.mrb[0].mxu0 %v631
        %v732 = vpop.f32.mrb[0].mxu0
        %v733 = vadd.f32 %v615, %v732
        %v734 = vpop.f32.mrb[0].mxu0
        %735 = vmatprep.mubr.f32.mxu0 0.0
        %736 = vmatmul.mubr.f32.gmra.mrb[0].mxu0 %v634
        %v737 = vpop.f32.mrb[0].mxu0
        %v738 = vadd.f32 %v615, %v737
        %v739 = vpop.f32.mrb[0].mxu0
        %740 = vmatprep.mubr.f32.mxu0 0.0
        %741 = vmatmul.mubr.f32.gmra.mrb[0].mxu0 %v637
        %v742 = vpop.f32.mrb[0].mxu0
        %v743 = vadd.f32 %v615, %v742
        %v744 = vpop.f32.mrb[0].mxu0
        %745 = vmatprep.mubr.f32.mxu0 0.0
        %746 = vmatmul.mubr.f32.gmra.mrb[0].mxu0 %v640
        %v747 = vpop.f32.mrb[0].mxu0
        %v748 = vadd.f32 %v615, %v747
        %v749 = vpop.f32.mrb[0].mxu0
        %750 = vdwg.mxu0
        %v751 = vld [vmem:[%s1] sm:$0x1]
        %v753 = vlaneseq
        %v754 = vshrl.u32 %v753, 7
        %v755 = vsub.s32 0, %v754
        %v756 = vrot.slane %v751, %v755
        %v758 = vmul.f32 %v713, %v756
        %v759 = vmul.f32 %v718, %v756
        %v760 = vmul.f32 %v723, %v756
        %v761 = vmul.f32 %v728, %v756
        %v762 = vmul.f32 %v733, %v756
        %v763 = vmul.f32 %v738, %v756
        %v764 = vmul.f32 %v743, %v756
        %v765 = vmul.f32 %v748, %v756
        %v766 = vld [vmem:[%s2] sm:$0x1]
        %v768 = vlaneseq
        %v769 = vshrl.u32 %v768, 7
        %v770 = vsub.s32 0, %v769
        %v771 = vrot.slane %v766, %v770
        %v773 = vadd.f32 %v758, %v771
        %v774 = vadd.f32 %v759, %v771
        %v775 = vadd.f32 %v760, %v771
        %v776 = vadd.f32 %v761, %v771
        %v777 = vadd.f32 %v762, %v771
        %v778 = vadd.f32 %v763, %v771
        %v779 = vadd.f32 %v764, %v771
        %v780 = vadd.f32 %v765, %v771
        %v781 = vmax.f32 %v773, 0.0
        %v782 = vmax.f32 %v774, 0.0
        %v783 = vmax.f32 %v775, 0.0
        %v784 = vmax.f32 %v776, 0.0
        %v785 = vmax.f32 %v777, 0.0
        %v786 = vmax.f32 %v778, 0.0
        %v787 = vmax.f32 %v779, 0.0
        %v788 = vmax.f32 %v780, 0.0
        %v789 = vld [vmem:[#allocation6] sm:$0xff]
        %v790 = vld [vmem:[#allocation6 + $0x8] sm:$0xff]
        %v791 = vld [vmem:[#allocation6 + $0x10] sm:$0xff]
        %v792 = vld [vmem:[#allocation6 + $0x18] sm:$0xff]
        %v793 = vld [vmem:[#allocation6 + $0x20] sm:$0xff]
        %v794 = vld [vmem:[#allocation6 + $0x28] sm:$0xff]
        %v795 = vld [vmem:[#allocation6 + $0x30] sm:$0xff]
        %v796 = vld [vmem:[#allocation6 + $0x38] sm:$0xff]
        %v797 = vld [vmem:[#allocation7] sm:$0x1]
        %v799 = vlaneseq
        %v800 = vshrl.u32 %v799, 7
        %v801 = vsub.s32 0, %v800
        %v802 = vrot.slane %v797, %v801
        %vm804 = vcmask 523264
        %v806 = vsel %vm804, %v781, 0
        %v809 = vsel %vm804, %v782, 0
        %v812 = vsel %vm804, %v783, 0
        %v815 = vsel %vm804, %v784, 0
        %v818 = vsel %vm804, %v785, 0
        %v821 = vsel %vm804, %v786, 0
        %v824 = vsel %vm804, %v787, 0
        %v827 = vsel %vm804, %v788, 0
        %829 = vmatprep.subr.mxu0 0.0
        %830 = vmatpush1.msra.mxu0 %v789
        %831 = vmatprep.subr.mxu0 0.0
        %832 = vmatpush1.msra.mxu0 %v790
        %833 = vmatprep.subr.mxu0 0.0
        %834 = vmatpush1.msra.mxu0 %v791
        %835 = vmatprep.subr.mxu0 0.0
        %836 = vmatpush1.msra.mxu0 %v792
        %837 = vmatprep.subr.mxu0 0.0
        %838 = vmatpush1.msra.mxu0 %v793
        %839 = vmatprep.subr.mxu0 0.0
        %840 = vmatpush1.msra.mxu0 %v794
        %841 = vmatprep.subr.mxu0 0.0
        %842 = vmatpush1.msra.mxu0 %v795
        %843 = vmatprep.subr.mxu0 0.0
        %844 = vmatpush1.msra.mxu0 %v796
        %845 = vmatprep.subr.mxu0 0.0
        %846 = vmatpush1.msra.mxu0 0.0
        %847 = vmatprep.subr.mxu0 0.0
        %848 = vmatpush1.msra.mxu0 0.0
        %849 = vmatprep.subr.mxu0 0.0
        %850 = vmatpush1.msra.mxu0 0.0
        %851 = vmatprep.subr.mxu0 0.0
        %852 = vmatpush1.msra.mxu0 0.0
        %853 = vmatprep.subr.mxu0 0.0
        %854 = vmatpush1.msra.mxu0 0.0
        %855 = vmatprep.subr.mxu0 0.0
        %856 = vmatpush1.msra.mxu0 0.0
        %857 = vmatprep.subr.mxu0 0.0
        %858 = vmatpush1.msra.mxu0 0.0
        %859 = vmatprep.subr.mxu0 0.0
        %860 = vmatpush1.msra.mxu0 0.0
        %861 = vmatprep.subr.mxu0 0.0
        %862 = vmatpush1.msra.mxu0 0.0
        %863 = vmatprep.subr.mxu0 0.0
        %864 = vmatpush1.msra.mxu0 0.0
        %865 = vmatprep.subr.mxu0 0.0
        %866 = vmatpush1.msra.mxu0 0.0
        %867 = vmatprep.subr.mxu0 0.0
        %868 = vmatpush1.msra.mxu0 0.0
        %869 = vmatprep.subr.mxu0 0.0
        %870 = vmatpush1.msra.mxu0 0.0
        %871 = vmatprep.subr.mxu0 0.0
        %872 = vmatpush1.msra.mxu0 0.0
        %873 = vmatprep.subr.mxu0 0.0
        %874 = vmatpush1.msra.mxu0 0.0
        %875 = vmatprep.subr.mxu0 0.0
        %876 = vmatpush1.msra.mxu0 0.0
        %877 = vmatprep.subr.mxu0 0.0
        %878 = vmatpush1.msra.mxu0 0.0
        %879 = vmatprep.subr.mxu0 0.0
        %880 = vmatpush1.msra.mxu0 0.0
        %881 = vmatprep.subr.mxu0 0.0
        %882 = vmatpush1.msra.mxu0 0.0
        %883 = vmatprep.subr.mxu0 0.0
        %884 = vmatpush1.msra.mxu0 0.0
        %885 = vmatprep.subr.mxu0 0.0
        %886 = vmatpush1.msra.mxu0 0.0
        %887 = vmatprep.subr.mxu0 0.0
        %888 = vmatpush1.msra.mxu0 0.0
        %889 = vmatprep.subr.mxu0 0.0
        %890 = vmatpush1.msra.mxu0 0.0
        %891 = vmatprep.subr.mxu0 0.0
        %892 = vmatpush1.msra.mxu0 0.0
        %893 = vmatprep.mubr.f32.mxu0 0.0
        %894 = vmatmul.mubr.f32.gmra.mrb[0].mxu0 %v806
        %v895 = vpop.f32.mrb[0].mxu0
        %v896 = vadd.f32 %v802, %v895
        %v897 = vpop.f32.mrb[0].mxu0
        %898 = vmatprep.mubr.f32.mxu0 0.0
        %899 = vmatmul.mubr.f32.gmra.mrb[0].mxu0 %v809
        %v900 = vpop.f32.mrb[0].mxu0
        %v901 = vadd.f32 %v802, %v900
        %v902 = vpop.f32.mrb[0].mxu0
        %903 = vmatprep.mubr.f32.mxu0 0.0
        %904 = vmatmul.mubr.f32.gmra.mrb[0].mxu0 %v812
        %v905 = vpop.f32.mrb[0].mxu0
        %v906 = vadd.f32 %v802, %v905
        %v907 = vpop.f32.mrb[0].mxu0
        %908 = vmatprep.mubr.f32.mxu0 0.0
        %909 = vmatmul.mubr.f32.gmra.mrb[0].mxu0 %v815
        %v910 = vpop.f32.mrb[0].mxu0
        %v911 = vadd.f32 %v802, %v910
        %v912 = vpop.f32.mrb[0].mxu0
        %913 = vmatprep.mubr.f32.mxu0 0.0
        %914 = vmatmul.mubr.f32.gmra.mrb[0].mxu0 %v818
        %v915 = vpop.f32.mrb[0].mxu0
        %v916 = vadd.f32 %v802, %v915
        %v917 = vpop.f32.mrb[0].mxu0
        %918 = vmatprep.mubr.f32.mxu0 0.0
        %919 = vmatmul.mubr.f32.gmra.mrb[0].mxu0 %v821
        %v920 = vpop.f32.mrb[0].mxu0
        %v921 = vadd.f32 %v802, %v920
        %v922 = vpop.f32.mrb[0].mxu0
        %923 = vmatprep.mubr.f32.mxu0 0.0
        %924 = vmatmul.mubr.f32.gmra.mrb[0].mxu0 %v824
        %v925 = vpop.f32.mrb[0].mxu0
        %v926 = vadd.f32 %v802, %v925
        %v927 = vpop.f32.mrb[0].mxu0
        %928 = vmatprep.mubr.f32.mxu0 0.0
        %929 = vmatmul.mubr.f32.gmra.mrb[0].mxu0 %v827
        %v930 = vpop.f32.mrb[0].mxu0
        %v931 = vadd.f32 %v802, %v930
        %v932 = vpop.f32.mrb[0].mxu0
        %933 = vdwg.mxu0
        %v934 = vld [vmem:[%s5] sm:$0x1]
        %v936 = vlaneseq
        %v937 = vshrl.u32 %v936, 7
        %v938 = vsub.s32 0, %v937
        %v939 = vrot.slane %v934, %v938
        %v941 = vmul.f32 %v896, %v939
        %v942 = vmul.f32 %v901, %v939
        %v943 = vmul.f32 %v906, %v939
        %v944 = vmul.f32 %v911, %v939
        %v945 = vmul.f32 %v916, %v939
        %v946 = vmul.f32 %v921, %v939
        %v947 = vmul.f32 %v926, %v939
        %v948 = vmul.f32 %v931, %v939
        %v949 = vld [vmem:[%s6] sm:$0x1]
        %v951 = vlaneseq
        %v952 = vshrl.u32 %v951, 7
        %v953 = vsub.s32 0, %v952
        %v954 = vrot.slane %v949, %v953
        %v956 = vadd.f32 %v941, %v954
        %v957 = vadd.f32 %v942, %v954
        %v958 = vadd.f32 %v943, %v954
        %v959 = vadd.f32 %v944, %v954
        %v960 = vadd.f32 %v945, %v954
        %v961 = vadd.f32 %v946, %v954
        %v962 = vadd.f32 %v947, %v954
        %v963 = vadd.f32 %v948, %v954
        %v964 = vmax.f32 %v956, 0.0
        %v965 = vmax.f32 %v957, 0.0
        %v966 = vmax.f32 %v958, 0.0
        %v967 = vmax.f32 %v959, 0.0
        %v968 = vmax.f32 %v960, 0.0
        %v969 = vmax.f32 %v961, 0.0
        %v970 = vmax.f32 %v962, 0.0
        %v971 = vmax.f32 %v963, 0.0
        %v972 = vld [vmem:[#allocation9] sm:$0xff]
        %v973 = vld [vmem:[#allocation9 + $0x8] sm:$0xff]
        %v974 = vld [vmem:[#allocation9 + $0x10] sm:$0xff]
        %v975 = vld [vmem:[#allocation9 + $0x18] sm:$0xff]
        %v976 = vld [vmem:[#allocation9 + $0x20] sm:$0xff]
        %v977 = vld [vmem:[#allocation9 + $0x28] sm:$0xff]
        %v978 = vld [vmem:[#allocation9 + $0x30] sm:$0xff]
        %v979 = vld [vmem:[#allocation9 + $0x38] sm:$0xff]
        %v980 = vld [vmem:[#allocation9 + $0x40] sm:$0xff]
        %v981 = vld [vmem:[#allocation9 + $0x48] sm:$0xff]
        %v982 = vld [vmem:[#allocation9 + $0x50] sm:$0xff]
        %v983 = vld [vmem:[#allocation9 + $0x58] sm:$0xff]
        %v984 = vld [vmem:[#allocation9 + $0x60] sm:$0xff]
        %v985 = vld [vmem:[#allocation9 + $0x68] sm:$0xff]
        %v986 = vld [vmem:[#allocation9 + $0x70] sm:$0xff]
        %v987 = vld [vmem:[#allocation9 + $0x78] sm:$0xff]
        %v988 = vld [vmem:[#allocation9 + $0x80] sm:$0xff]
        %v989 = vld [vmem:[#allocation9 + $0x88] sm:$0xff]
        %v990 = vld [vmem:[#allocation9 + $0x90] sm:$0xff]
        %v991 = vld [vmem:[#allocation9 + $0x98] sm:$0xff]
        %v992 = vld [vmem:[#allocation9 + $0xa0] sm:$0xff]
        %v993 = vld [vmem:[#allocation9 + $0xa8] sm:$0xff]
        %v994 = vld [vmem:[#allocation9 + $0xb0] sm:$0xff]
        %v995 = vld [vmem:[#allocation9 + $0xb8] sm:$0xff]
        %v996 = vld [vmem:[#allocation9 + $0xc0] sm:$0xff]
        %v997 = vld [vmem:[#allocation9 + $0xc8] sm:$0xff]
        %v998 = vld [vmem:[#allocation9 + $0xd0] sm:$0xff]
        %v999 = vld [vmem:[#allocation9 + $0xd8] sm:$0xff]
        %v1000 = vld [vmem:[#allocation9 + $0xe0] sm:$0xff]
        %v1001 = vld [vmem:[#allocation9 + $0xe8] sm:$0xff]
        %v1002 = vld [vmem:[#allocation9 + $0xf0] sm:$0xff]
        %v1003 = vld [vmem:[#allocation9 + $0xf8] sm:$0xff]
        %v1004 = vld [vmem:[#allocation9 + $0x100] sm:$0xff]
        %v1005 = vld [vmem:[#allocation9 + $0x108] sm:$0xff]
        %v1006 = vld [vmem:[#allocation9 + $0x110] sm:$0xff]
        %v1007 = vld [vmem:[#allocation9 + $0x118] sm:$0xff]
        %v1008 = vld [vmem:[#allocation9 + $0x120] sm:$0xff]
        %v1009 = vld [vmem:[#allocation9 + $0x128] sm:$0xff]
        %v1010 = vld [vmem:[#allocation9 + $0x130] sm:$0xff]
        %v1011 = vld [vmem:[#allocation9 + $0x138] sm:$0xff]
        %v1012 = vld [vmem:[#allocation9 + $0x140] sm:$0xff]
        %v1013 = vld [vmem:[#allocation9 + $0x148] sm:$0xff]
        %v1014 = vld [vmem:[#allocation9 + $0x150] sm:$0xff]
        %v1015 = vld [vmem:[#allocation9 + $0x158] sm:$0xff]
        %v1016 = vld [vmem:[#allocation9 + $0x160] sm:$0xff]
        %v1017 = vld [vmem:[#allocation9 + $0x168] sm:$0xff]
        %v1018 = vld [vmem:[#allocation9 + $0x170] sm:$0xff]
        %v1019 = vld [vmem:[#allocation9 + $0x178] sm:$0xff]
        %v1020 = vld [vmem:[#allocation9 + $0x180] sm:$0xff]
        %v1021 = vld [vmem:[#allocation9 + $0x188] sm:$0xff]
        %v1022 = vld [vmem:[#allocation9 + $0x190] sm:$0xff]
        %v1023 = vld [vmem:[#allocation9 + $0x198] sm:$0xff]
        %v1024 = vld [vmem:[#allocation9 + $0x1a0] sm:$0xff]
        %v1025 = vld [vmem:[#allocation9 + $0x1a8] sm:$0xff]
        %v1026 = vld [vmem:[#allocation9 + $0x1b0] sm:$0xff]
        %v1027 = vld [vmem:[#allocation9 + $0x1b8] sm:$0xff]
        %v1028 = vld [vmem:[#allocation9 + $0x1c0] sm:$0xff]
        %v1029 = vld [vmem:[#allocation9 + $0x1c8] sm:$0xff]
        %v1030 = vld [vmem:[#allocation9 + $0x1d0] sm:$0xff]
        %v1031 = vld [vmem:[#allocation9 + $0x1d8] sm:$0xff]
        %v1032 = vld [vmem:[#allocation9 + $0x1e0] sm:$0xff]
        %v1033 = vld [vmem:[#allocation9 + $0x1e8] sm:$0xff]
        %v1034 = vld [vmem:[#allocation9 + $0x1f0] sm:$0xff]
        %v1035 = vld [vmem:[#allocation9 + $0x1f8] sm:$0xff]
        %v1036 = vld [vmem:[#allocation9 + $0x200] sm:$0xff]
        %v1037 = vld [vmem:[#allocation9 + $0x208] sm:$0xff]
        %v1038 = vld [vmem:[#allocation9 + $0x210] sm:$0xff]
        %v1039 = vld [vmem:[#allocation9 + $0x218] sm:$0xff]
        %v1040 = vld [vmem:[#allocation9 + $0x220] sm:$0xff]
        %v1041 = vld [vmem:[#allocation9 + $0x228] sm:$0xff]
        %v1042 = vld [vmem:[#allocation9 + $0x230] sm:$0xff]
        %v1043 = vld [vmem:[#allocation9 + $0x238] sm:$0xff]
        %v1044 = vld [vmem:[#allocation9 + $0x240] sm:$0xff]
        %v1045 = vld [vmem:[#allocation9 + $0x248] sm:$0xff]
        %v1046 = vld [vmem:[#allocation9 + $0x250] sm:$0xff]
        %v1047 = vld [vmem:[#allocation9 + $0x258] sm:$0xff]
        %v1048 = vld [vmem:[#allocation9 + $0x260] sm:$0xff]
        %v1049 = vld [vmem:[#allocation9 + $0x268] sm:$0xff]
        %v1050 = vld [vmem:[#allocation9 + $0x270] sm:$0xff]
        %v1051 = vld [vmem:[#allocation9 + $0x278] sm:$0xff]
        %v1052 = vld [vmem:[#allocation9 + $0x280] sm:$0xff]
        %v1053 = vld [vmem:[#allocation9 + $0x288] sm:$0xff]
        %v1054 = vld [vmem:[#allocation9 + $0x290] sm:$0xff]
        %v1055 = vld [vmem:[#allocation9 + $0x298] sm:$0xff]
        %v1056 = vld [vmem:[#allocation9 + $0x2a0] sm:$0xff]
        %v1057 = vld [vmem:[#allocation9 + $0x2a8] sm:$0xff]
        %v1058 = vld [vmem:[#allocation9 + $0x2b0] sm:$0xff]
        %v1059 = vld [vmem:[#allocation9 + $0x2b8] sm:$0xff]
        %v1060 = vld [vmem:[#allocation9 + $0x2c0] sm:$0xff]
        %v1061 = vld [vmem:[#allocation9 + $0x2c8] sm:$0xff]
        %v1062 = vld [vmem:[#allocation9 + $0x2d0] sm:$0xff]
        %v1063 = vld [vmem:[#allocation9 + $0x2d8] sm:$0xff]
        %v1064 = vld [vmem:[#allocation9 + $0x2e0] sm:$0xff]
        %v1065 = vld [vmem:[#allocation9 + $0x2e8] sm:$0xff]
        %v1066 = vld [vmem:[#allocation9 + $0x2f0] sm:$0xff]
        %v1067 = vld [vmem:[#allocation9 + $0x2f8] sm:$0xff]
        %v1068 = vld [vmem:[#allocation9 + $0x300] sm:$0xff]
        %v1069 = vld [vmem:[#allocation9 + $0x308] sm:$0xff]
        %v1070 = vld [vmem:[#allocation9 + $0x310] sm:$0xff]
        %v1071 = vld [vmem:[#allocation9 + $0x318] sm:$0xff]
        %v1072 = vld [vmem:[#allocation9 + $0x320] sm:$0xff]
        %v1073 = vld [vmem:[#allocation9 + $0x328] sm:$0xff]
        %v1074 = vld [vmem:[#allocation9 + $0x330] sm:$0xff]
        %v1075 = vld [vmem:[#allocation9 + $0x338] sm:$0xff]
        %v1076 = vld [vmem:[#allocation9 + $0x340] sm:$0xff]
        %v1077 = vld [vmem:[#allocation9 + $0x348] sm:$0xff]
        %v1078 = vld [vmem:[#allocation9 + $0x350] sm:$0xff]
        %v1079 = vld [vmem:[#allocation9 + $0x358] sm:$0xff]
        %v1080 = vld [vmem:[#allocation9 + $0x360] sm:$0xff]
        %v1081 = vld [vmem:[#allocation9 + $0x368] sm:$0xff]
        %v1082 = vld [vmem:[#allocation9 + $0x370] sm:$0xff]
        %v1083 = vld [vmem:[#allocation9 + $0x378] sm:$0xff]
        %v1084 = vld [vmem:[#allocation9 + $0x380] sm:$0xff]
        %v1085 = vld [vmem:[#allocation9 + $0x388] sm:$0xff]
        %v1086 = vld [vmem:[#allocation9 + $0x390] sm:$0xff]
        %v1087 = vld [vmem:[#allocation9 + $0x398] sm:$0xff]
        %v1088 = vld [vmem:[#allocation9 + $0x3a0] sm:$0xff]
        %v1089 = vld [vmem:[#allocation9 + $0x3a8] sm:$0xff]
        %v1090 = vld [vmem:[#allocation9 + $0x3b0] sm:$0xff]
        %v1091 = vld [vmem:[#allocation9 + $0x3b8] sm:$0xff]
        %v1092 = vld [vmem:[#allocation9 + $0x3c0] sm:$0xff]
        %v1093 = vld [vmem:[#allocation9 + $0x3c8] sm:$0xff]
        %v1094 = vld [vmem:[#allocation9 + $0x3d0] sm:$0xff]
        %v1095 = vld [vmem:[#allocation9 + $0x3d8] sm:$0xff]
        %v1096 = vld [vmem:[#allocation9 + $0x3e0] sm:$0xff]
        %v1097 = vld [vmem:[#allocation9 + $0x3e8] sm:$0xff]
        %v1098 = vld [vmem:[#allocation9 + $0x3f0] sm:$0xff]
        %v1099 = vld [vmem:[#allocation9 + $0x3f8] sm:$0xff]
        %v1100 = vld [vmem:[#allocation10] sm:$0xff]
        %v1102 = vlaneseq
        %v1103 = vshrl.u32 %v1102, 7
        %v1104 = vsub.s32 0, %v1103
        %v1105 = vrot.slane %v1100, %v1104
        %v1106 = vlaneseq
        %v1107 = vshrl.u32 %v1106, 7
        %v1108 = vsub.s32 1, %v1107
        %v1109 = vrot.slane %v1100, %v1108
        %v1110 = vlaneseq
        %v1111 = vshrl.u32 %v1110, 7
        %v1112 = vsub.s32 2, %v1111
        %v1113 = vrot.slane %v1100, %v1112
        %v1114 = vlaneseq
        %v1115 = vshrl.u32 %v1114, 7
        %v1116 = vsub.s32 3, %v1115
        %v1117 = vrot.slane %v1100, %v1116
        %v1118 = vlaneseq
        %v1119 = vshrl.u32 %v1118, 7
        %v1120 = vsub.s32 4, %v1119
        %v1121 = vrot.slane %v1100, %v1120
        %v1122 = vlaneseq
        %v1123 = vshrl.u32 %v1122, 7
        %v1124 = vsub.s32 5, %v1123
        %v1125 = vrot.slane %v1100, %v1124
        %v1126 = vlaneseq
        %v1127 = vshrl.u32 %v1126, 7
        %v1128 = vsub.s32 6, %v1127
        %v1129 = vrot.slane %v1100, %v1128
        %v1130 = vlaneseq
        %v1131 = vshrl.u32 %v1130, 7
        %v1132 = vsub.s32 7, %v1131
        %v1133 = vrot.slane %v1100, %v1132
        %1142 = vmatprep.subr.mxu0 %v973
        %1143 = vmatpush1.msra.mxu0 %v972
        %1144 = vmatprep.subr.mxu0 %v981
        %1145 = vmatpush1.msra.mxu0 %v980
        %1146 = vmatprep.subr.mxu0 %v989
        %1147 = vmatpush1.msra.mxu0 %v988
        %1148 = vmatprep.subr.mxu0 %v997
        %1149 = vmatpush1.msra.mxu0 %v996
        %1150 = vmatprep.subr.mxu0 %v1005
        %1151 = vmatpush1.msra.mxu0 %v1004
        %1152 = vmatprep.subr.mxu0 %v1013
        %1153 = vmatpush1.msra.mxu0 %v1012
        %1154 = vmatprep.subr.mxu0 %v1021
        %1155 = vmatpush1.msra.mxu0 %v1020
        %1156 = vmatprep.subr.mxu0 %v1029
        %1157 = vmatpush1.msra.mxu0 %v1028
        %1158 = vmatprep.subr.mxu0 %v1037
        %1159 = vmatpush1.msra.mxu0 %v1036
        %1160 = vmatprep.subr.mxu0 %v1045
        %1161 = vmatpush1.msra.mxu0 %v1044
        %1162 = vmatprep.subr.mxu0 %v1053
        %1163 = vmatpush1.msra.mxu0 %v1052
        %1164 = vmatprep.subr.mxu0 %v1061
        %1165 = vmatpush1.msra.mxu0 %v1060
        %1166 = vmatprep.subr.mxu0 %v1069
        %1167 = vmatpush1.msra.mxu0 %v1068
        %1168 = vmatprep.subr.mxu0 %v1077
        %1169 = vmatpush1.msra.mxu0 %v1076
        %1170 = vmatprep.subr.mxu0 %v1085
        %1171 = vmatpush1.msra.mxu0 %v1084
        %1172 = vmatprep.subr.mxu0 %v1093
        %1173 = vmatpush1.msra.mxu0 %v1092
        %1174 = vmatprep.subr.mxu0 0.0
        %1175 = vmatpush1.msra.mxu0 0.0
        %1176 = vmatprep.subr.mxu0 0.0
        %1177 = vmatpush1.msra.mxu0 0.0
        %1178 = vmatprep.subr.mxu0 0.0
        %1179 = vmatpush1.msra.mxu0 0.0
        %1180 = vmatprep.subr.mxu0 0.0
        %1181 = vmatpush1.msra.mxu0 0.0
        %1182 = vmatprep.subr.mxu0 0.0
        %1183 = vmatpush1.msra.mxu0 0.0
        %1184 = vmatprep.subr.mxu0 0.0
        %1185 = vmatpush1.msra.mxu0 0.0
        %1186 = vmatprep.subr.mxu0 0.0
        %1187 = vmatpush1.msra.mxu0 0.0
        %1188 = vmatprep.subr.mxu0 0.0
        %1189 = vmatpush1.msra.mxu0 0.0
        %1190 = vmatprep.subr.mxu0 0.0
        %1191 = vmatpush1.msra.mxu0 0.0
        %1192 = vmatprep.subr.mxu0 0.0
        %1193 = vmatpush1.msra.mxu0 0.0
        %1194 = vmatprep.subr.mxu0 0.0
        %1195 = vmatpush1.msra.mxu0 0.0
        %1196 = vmatprep.subr.mxu0 0.0
        %1197 = vmatpush1.msra.mxu0 0.0
        %1198 = vmatprep.subr.mxu0 0.0
        %1199 = vmatpush1.msra.mxu0 0.0
        %1200 = vmatprep.subr.mxu0 0.0
        %1201 = vmatpush1.msra.mxu0 0.0
        %1202 = vmatprep.subr.mxu0 0.0
        %1203 = vmatpush1.msra.mxu0 0.0
        %1204 = vmatprep.subr.mxu0 0.0
        %1205 = vmatpush1.msra.mxu0 0.0
        %1206 = vmatprep.mubr.f32.mxu0 0.0
        %1207 = vmatmul.mubr.f32.gmra.mrb[0].mxu0 %v964
        %v1208 = vpop.f32.mrb[0].mxu0
        %v1209 = vadd.f32 %v1105, %v1208
        %v1210 = vpop.f32.mrb[0].mxu0
        %v1211 = vadd.f32 %v1109, %v1210
        %1212 = vmatprep.mubr.f32.mxu0 0.0
        %1213 = vmatmul.mubr.f32.gmra.mrb[0].mxu0 %v965
        %v1214 = vpop.f32.mrb[0].mxu0
        %v1215 = vadd.f32 %v1105, %v1214
        %v1216 = vpop.f32.mrb[0].mxu0
        %v1217 = vadd.f32 %v1109, %v1216
        %1218 = vmatprep.mubr.f32.mxu0 0.0
        %1219 = vmatmul.mubr.f32.gmra.mrb[0].mxu0 %v966
        %v1220 = vpop.f32.mrb[0].mxu0
        %v1221 = vadd.f32 %v1105, %v1220
        %v1222 = vpop.f32.mrb[0].mxu0
        %v1223 = vadd.f32 %v1109, %v1222
        %1224 = vmatprep.mubr.f32.mxu0 0.0
        %1225 = vmatmul.mubr.f32.gmra.mrb[0].mxu0 %v967
        %v1226 = vpop.f32.mrb[0].mxu0
        %v1227 = vadd.f32 %v1105, %v1226
        %v1228 = vpop.f32.mrb[0].mxu0
        %v1229 = vadd.f32 %v1109, %v1228
        %1230 = vmatprep.mubr.f32.mxu0 0.0
        %1231 = vmatmul.mubr.f32.gmra.mrb[0].mxu0 %v968
        %v1232 = vpop.f32.mrb[0].mxu0
        %v1233 = vadd.f32 %v1105, %v1232
        %v1234 = vpop.f32.mrb[0].mxu0
        %v1235 = vadd.f32 %v1109, %v1234
        %1236 = vmatprep.mubr.f32.mxu0 0.0
        %1237 = vmatmul.mubr.f32.gmra.mrb[0].mxu0 %v969
        %v1238 = vpop.f32.mrb[0].mxu0
        %v1239 = vadd.f32 %v1105, %v1238
        %v1240 = vpop.f32.mrb[0].mxu0
        %v1241 = vadd.f32 %v1109, %v1240
        %1242 = vmatprep.mubr.f32.mxu0 0.0
        %1243 = vmatmul.mubr.f32.gmra.mrb[0].mxu0 %v970
        %v1244 = vpop.f32.mrb[0].mxu0
        %v1245 = vadd.f32 %v1105, %v1244
        %v1246 = vpop.f32.mrb[0].mxu0
        %v1247 = vadd.f32 %v1109, %v1246
        %1248 = vmatprep.mubr.f32.mxu0 0.0
        %1249 = vmatmul.mubr.f32.gmra.mrb[0].mxu0 %v971
        %v1250 = vpop.f32.mrb[0].mxu0
        %v1251 = vadd.f32 %v1105, %v1250
        %v1252 = vpop.f32.mrb[0].mxu0
        %v1253 = vadd.f32 %v1109, %v1252
        %1254 = vdwg.mxu0
        %1255 = vmatprep.subr.mxu0 %v975
        %1256 = vmatpush1.msra.mxu0 %v974
        %1257 = vmatprep.subr.mxu0 %v983
        %1258 = vmatpush1.msra.mxu0 %v982
        %1259 = vmatprep.subr.mxu0 %v991
        %1260 = vmatpush1.msra.mxu0 %v990
        %1261 = vmatprep.subr.mxu0 %v999
        %1262 = vmatpush1.msra.mxu0 %v998
        %1263 = vmatprep.subr.mxu0 %v1007
        %1264 = vmatpush1.msra.mxu0 %v1006
        %1265 = vmatprep.subr.mxu0 %v1015
        %1266 = vmatpush1.msra.mxu0 %v1014
        %1267 = vmatprep.subr.mxu0 %v1023
        %1268 = vmatpush1.msra.mxu0 %v1022
        %1269 = vmatprep.subr.mxu0 %v1031
        %1270 = vmatpush1.msra.mxu0 %v1030
        %1271 = vmatprep.subr.mxu0 %v1039
        %1272 = vmatpush1.msra.mxu0 %v1038
        %1273 = vmatprep.subr.mxu0 %v1047
        %1274 = vmatpush1.msra.mxu0 %v1046
        %1275 = vmatprep.subr.mxu0 %v1055
        %1276 = vmatpush1.msra.mxu0 %v1054
        %1277 = vmatprep.subr.mxu0 %v1063
        %1278 = vmatpush1.msra.mxu0 %v1062
        %1279 = vmatprep.subr.mxu0 %v1071
        %1280 = vmatpush1.msra.mxu0 %v1070
        %1281 = vmatprep.subr.mxu0 %v1079
        %1282 = vmatpush1.msra.mxu0 %v1078
        %1283 = vmatprep.subr.mxu0 %v1087
        %1284 = vmatpush1.msra.mxu0 %v1086
        %1285 = vmatprep.subr.mxu0 %v1095
        %1286 = vmatpush1.msra.mxu0 %v1094
        %1287 = vmatprep.subr.mxu0 0.0
        %1288 = vmatpush1.msra.mxu0 0.0
        %1289 = vmatprep.subr.mxu0 0.0
        %1290 = vmatpush1.msra.mxu0 0.0
        %1291 = vmatprep.subr.mxu0 0.0
        %1292 = vmatpush1.msra.mxu0 0.0
        %1293 = vmatprep.subr.mxu0 0.0
        %1294 = vmatpush1.msra.mxu0 0.0
        %1295 = vmatprep.subr.mxu0 0.0
        %1296 = vmatpush1.msra.mxu0 0.0
        %1297 = vmatprep.subr.mxu0 0.0
        %1298 = vmatpush1.msra.mxu0 0.0
        %1299 = vmatprep.subr.mxu0 0.0
        %1300 = vmatpush1.msra.mxu0 0.0
        %1301 = vmatprep.subr.mxu0 0.0
        %1302 = vmatpush1.msra.mxu0 0.0
        %1303 = vmatprep.subr.mxu0 0.0
        %1304 = vmatpush1.msra.mxu0 0.0
        %1305 = vmatprep.subr.mxu0 0.0
        %1306 = vmatpush1.msra.mxu0 0.0
        %1307 = vmatprep.subr.mxu0 0.0
        %1308 = vmatpush1.msra.mxu0 0.0
        %1309 = vmatprep.subr.mxu0 0.0
        %1310 = vmatpush1.msra.mxu0 0.0
        %1311 = vmatprep.subr.mxu0 0.0
        %1312 = vmatpush1.msra.mxu0 0.0
        %1313 = vmatprep.subr.mxu0 0.0
        %1314 = vmatpush1.msra.mxu0 0.0
        %1315 = vmatprep.subr.mxu0 0.0
        %1316 = vmatpush1.msra.mxu0 0.0
        %1317 = vmatprep.subr.mxu0 0.0
        %1318 = vmatpush1.msra.mxu0 0.0
        %1319 = vmatprep.mubr.f32.mxu0 0.0
        %1320 = vmatmul.mubr.f32.gmra.mrb[0].mxu0 %v964
        %v1321 = vpop.f32.mrb[0].mxu0
        %v1322 = vadd.f32 %v1113, %v1321
        %v1323 = vpop.f32.mrb[0].mxu0
        %v1324 = vadd.f32 %v1117, %v1323
        %1325 = vmatprep.mubr.f32.mxu0 0.0
        %1326 = vmatmul.mubr.f32.gmra.mrb[0].mxu0 %v965
        %v1327 = vpop.f32.mrb[0].mxu0
        %v1328 = vadd.f32 %v1113, %v1327
        %v1329 = vpop.f32.mrb[0].mxu0
        %v1330 = vadd.f32 %v1117, %v1329
        %1331 = vmatprep.mubr.f32.mxu0 0.0
        %1332 = vmatmul.mubr.f32.gmra.mrb[0].mxu0 %v966
        %v1333 = vpop.f32.mrb[0].mxu0
        %v1334 = vadd.f32 %v1113, %v1333
        %v1335 = vpop.f32.mrb[0].mxu0
        %v1336 = vadd.f32 %v1117, %v1335
        %1337 = vmatprep.mubr.f32.mxu0 0.0
        %1338 = vmatmul.mubr.f32.gmra.mrb[0].mxu0 %v967
        %v1339 = vpop.f32.mrb[0].mxu0
        %v1340 = vadd.f32 %v1113, %v1339
        %v1341 = vpop.f32.mrb[0].mxu0
        %v1342 = vadd.f32 %v1117, %v1341
        %1343 = vmatprep.mubr.f32.mxu0 0.0
        %1344 = vmatmul.mubr.f32.gmra.mrb[0].mxu0 %v968
        %v1345 = vpop.f32.mrb[0].mxu0
        %v1346 = vadd.f32 %v1113, %v1345
        %v1347 = vpop.f32.mrb[0].mxu0
        %v1348 = vadd.f32 %v1117, %v1347
        %1349 = vmatprep.mubr.f32.mxu0 0.0
        %1350 = vmatmul.mubr.f32.gmra.mrb[0].mxu0 %v969
        %v1351 = vpop.f32.mrb[0].mxu0
        %v1352 = vadd.f32 %v1113, %v1351
        %v1353 = vpop.f32.mrb[0].mxu0
        %v1354 = vadd.f32 %v1117, %v1353
        %1355 = vmatprep.mubr.f32.mxu0 0.0
        %1356 = vmatmul.mubr.f32.gmra.mrb[0].mxu0 %v970
        %v1357 = vpop.f32.mrb[0].mxu0
        %v1358 = vadd.f32 %v1113, %v1357
        %v1359 = vpop.f32.mrb[0].mxu0
        %v1360 = vadd.f32 %v1117, %v1359
        %1361 = vmatprep.mubr.f32.mxu0 0.0
        %1362 = vmatmul.mubr.f32.gmra.mrb[0].mxu0 %v971
        %v1363 = vpop.f32.mrb[0].mxu0
        %v1364 = vadd.f32 %v1113, %v1363
        %v1365 = vpop.f32.mrb[0].mxu0
        %v1366 = vadd.f32 %v1117, %v1365
        %1367 = vdwg.mxu0
        %1368 = vmatprep.subr.mxu0 %v977
        %1369 = vmatpush1.msra.mxu0 %v976
        %1370 = vmatprep.subr.mxu0 %v985
        %1371 = vmatpush1.msra.mxu0 %v984
        %1372 = vmatprep.subr.mxu0 %v993
        %1373 = vmatpush1.msra.mxu0 %v992
        %1374 = vmatprep.subr.mxu0 %v1001
        %1375 = vmatpush1.msra.mxu0 %v1000
        %1376 = vmatprep.subr.mxu0 %v1009
        %1377 = vmatpush1.msra.mxu0 %v1008
        %1378 = vmatprep.subr.mxu0 %v1017
        %1379 = vmatpush1.msra.mxu0 %v1016
        %1380 = vmatprep.subr.mxu0 %v1025
        %1381 = vmatpush1.msra.mxu0 %v1024
        %1382 = vmatprep.subr.mxu0 %v1033
        %1383 = vmatpush1.msra.mxu0 %v1032
        %1384 = vmatprep.subr.mxu0 %v1041
        %1385 = vmatpush1.msra.mxu0 %v1040
        %1386 = vmatprep.subr.mxu0 %v1049
        %1387 = vmatpush1.msra.mxu0 %v1048
        %1388 = vmatprep.subr.mxu0 %v1057
        %1389 = vmatpush1.msra.mxu0 %v1056
        %1390 = vmatprep.subr.mxu0 %v1065
        %1391 = vmatpush1.msra.mxu0 %v1064
        %1392 = vmatprep.subr.mxu0 %v1073
        %1393 = vmatpush1.msra.mxu0 %v1072
        %1394 = vmatprep.subr.mxu0 %v1081
        %1395 = vmatpush1.msra.mxu0 %v1080
        %1396 = vmatprep.subr.mxu0 %v1089
        %1397 = vmatpush1.msra.mxu0 %v1088
        %1398 = vmatprep.subr.mxu0 %v1097
        %1399 = vmatpush1.msra.mxu0 %v1096
        %1400 = vmatprep.subr.mxu0 0.0
        %1401 = vmatpush1.msra.mxu0 0.0
        %1402 = vmatprep.subr.mxu0 0.0
        %1403 = vmatpush1.msra.mxu0 0.0
        %1404 = vmatprep.subr.mxu0 0.0
        %1405 = vmatpush1.msra.mxu0 0.0
        %1406 = vmatprep.subr.mxu0 0.0
        %1407 = vmatpush1.msra.mxu0 0.0
        %1408 = vmatprep.subr.mxu0 0.0
        %1409 = vmatpush1.msra.mxu0 0.0
        %1410 = vmatprep.subr.mxu0 0.0
        %1411 = vmatpush1.msra.mxu0 0.0
        %1412 = vmatprep.subr.mxu0 0.0
        %1413 = vmatpush1.msra.mxu0 0.0
        %1414 = vmatprep.subr.mxu0 0.0
        %1415 = vmatpush1.msra.mxu0 0.0
        %1416 = vmatprep.subr.mxu0 0.0
        %1417 = vmatpush1.msra.mxu0 0.0
        %1418 = vmatprep.subr.mxu0 0.0
        %1419 = vmatpush1.msra.mxu0 0.0
        %1420 = vmatprep.subr.mxu0 0.0
        %1421 = vmatpush1.msra.mxu0 0.0
        %1422 = vmatprep.subr.mxu0 0.0
        %1423 = vmatpush1.msra.mxu0 0.0
        %1424 = vmatprep.subr.mxu0 0.0
        %1425 = vmatpush1.msra.mxu0 0.0
        %1426 = vmatprep.subr.mxu0 0.0
        %1427 = vmatpush1.msra.mxu0 0.0
        %1428 = vmatprep.subr.mxu0 0.0
        %1429 = vmatpush1.msra.mxu0 0.0
        %1430 = vmatprep.subr.mxu0 0.0
        %1431 = vmatpush1.msra.mxu0 0.0
        %1432 = vmatprep.mubr.f32.mxu0 0.0
        %1433 = vmatmul.mubr.f32.gmra.mrb[0].mxu0 %v964
        %v1434 = vpop.f32.mrb[0].mxu0
        %v1435 = vadd.f32 %v1121, %v1434
        %v1436 = vpop.f32.mrb[0].mxu0
        %v1437 = vadd.f32 %v1125, %v1436
        %1438 = vmatprep.mubr.f32.mxu0 0.0
        %1439 = vmatmul.mubr.f32.gmra.mrb[0].mxu0 %v965
        %v1440 = vpop.f32.mrb[0].mxu0
        %v1441 = vadd.f32 %v1121, %v1440
        %v1442 = vpop.f32.mrb[0].mxu0
        %v1443 = vadd.f32 %v1125, %v1442
        %1444 = vmatprep.mubr.f32.mxu0 0.0
        %1445 = vmatmul.mubr.f32.gmra.mrb[0].mxu0 %v966
        %v1446 = vpop.f32.mrb[0].mxu0
        %v1447 = vadd.f32 %v1121, %v1446
        %v1448 = vpop.f32.mrb[0].mxu0
        %v1449 = vadd.f32 %v1125, %v1448
        %1450 = vmatprep.mubr.f32.mxu0 0.0
        %1451 = vmatmul.mubr.f32.gmra.mrb[0].mxu0 %v967
        %v1452 = vpop.f32.mrb[0].mxu0
        %v1453 = vadd.f32 %v1121, %v1452
        %v1454 = vpop.f32.mrb[0].mxu0
        %v1455 = vadd.f32 %v1125, %v1454
        %1456 = vmatprep.mubr.f32.mxu0 0.0
        %1457 = vmatmul.mubr.f32.gmra.mrb[0].mxu0 %v968
        %v1458 = vpop.f32.mrb[0].mxu0
        %v1459 = vadd.f32 %v1121, %v1458
        %v1460 = vpop.f32.mrb[0].mxu0
        %v1461 = vadd.f32 %v1125, %v1460
        %1462 = vmatprep.mubr.f32.mxu0 0.0
        %1463 = vmatmul.mubr.f32.gmra.mrb[0].mxu0 %v969
        %v1464 = vpop.f32.mrb[0].mxu0
        %v1465 = vadd.f32 %v1121, %v1464
        %v1466 = vpop.f32.mrb[0].mxu0
        %v1467 = vadd.f32 %v1125, %v1466
        %1468 = vmatprep.mubr.f32.mxu0 0.0
        %1469 = vmatmul.mubr.f32.gmra.mrb[0].mxu0 %v970
        %v1470 = vpop.f32.mrb[0].mxu0
        %v1471 = vadd.f32 %v1121, %v1470
        %v1472 = vpop.f32.mrb[0].mxu0
        %v1473 = vadd.f32 %v1125, %v1472
        %1474 = vmatprep.mubr.f32.mxu0 0.0
        %1475 = vmatmul.mubr.f32.gmra.mrb[0].mxu0 %v971
        %v1476 = vpop.f32.mrb[0].mxu0
        %v1477 = vadd.f32 %v1121, %v1476
        %v1478 = vpop.f32.mrb[0].mxu0
        %v1479 = vadd.f32 %v1125, %v1478
        %1480 = vdwg.mxu0
        %1481 = vmatprep.subr.mxu0 %v979
        %1482 = vmatpush1.msra.mxu0 %v978
        %1483 = vmatprep.subr.mxu0 %v987
        %1484 = vmatpush1.msra.mxu0 %v986
        %1485 = vmatprep.subr.mxu0 %v995
        %1486 = vmatpush1.msra.mxu0 %v994
        %1487 = vmatprep.subr.mxu0 %v1003
        %1488 = vmatpush1.msra.mxu0 %v1002
        %1489 = vmatprep.subr.mxu0 %v1011
        %1490 = vmatpush1.msra.mxu0 %v1010
        %1491 = vmatprep.subr.mxu0 %v1019
        %1492 = vmatpush1.msra.mxu0 %v1018
        %1493 = vmatprep.subr.mxu0 %v1027
        %1494 = vmatpush1.msra.mxu0 %v1026
        %1495 = vmatprep.subr.mxu0 %v1035
        %1496 = vmatpush1.msra.mxu0 %v1034
        %1497 = vmatprep.subr.mxu0 %v1043
        %1498 = vmatpush1.msra.mxu0 %v1042
        %1499 = vmatprep.subr.mxu0 %v1051
        %1500 = vmatpush1.msra.mxu0 %v1050
        %1501 = vmatprep.subr.mxu0 %v1059
        %1502 = vmatpush1.msra.mxu0 %v1058
        %1503 = vmatprep.subr.mxu0 %v1067
        %1504 = vmatpush1.msra.mxu0 %v1066
        %1505 = vmatprep.subr.mxu0 %v1075
        %1506 = vmatpush1.msra.mxu0 %v1074
        %1507 = vmatprep.subr.mxu0 %v1083
        %1508 = vmatpush1.msra.mxu0 %v1082
        %1509 = vmatprep.subr.mxu0 %v1091
        %1510 = vmatpush1.msra.mxu0 %v1090
        %1511 = vmatprep.subr.mxu0 %v1099
        %1512 = vmatpush1.msra.mxu0 %v1098
        %1513 = vmatprep.subr.mxu0 0.0
        %1514 = vmatpush1.msra.mxu0 0.0
        %1515 = vmatprep.subr.mxu0 0.0
        %1516 = vmatpush1.msra.mxu0 0.0
        %1517 = vmatprep.subr.mxu0 0.0
        %1518 = vmatpush1.msra.mxu0 0.0
        %1519 = vmatprep.subr.mxu0 0.0
        %1520 = vmatpush1.msra.mxu0 0.0
        %1521 = vmatprep.subr.mxu0 0.0
        %1522 = vmatpush1.msra.mxu0 0.0
        %1523 = vmatprep.subr.mxu0 0.0
        %1524 = vmatpush1.msra.mxu0 0.0
        %1525 = vmatprep.subr.mxu0 0.0
        %1526 = vmatpush1.msra.mxu0 0.0
        %1527 = vmatprep.subr.mxu0 0.0
        %1528 = vmatpush1.msra.mxu0 0.0
        %1529 = vmatprep.subr.mxu0 0.0
        %1530 = vmatpush1.msra.mxu0 0.0
        %1531 = vmatprep.subr.mxu0 0.0
        %1532 = vmatpush1.msra.mxu0 0.0
        %1533 = vmatprep.subr.mxu0 0.0
        %1534 = vmatpush1.msra.mxu0 0.0
        %1535 = vmatprep.subr.mxu0 0.0
        %1536 = vmatpush1.msra.mxu0 0.0
        %1537 = vmatprep.subr.mxu0 0.0
        %1538 = vmatpush1.msra.mxu0 0.0
        %1539 = vmatprep.subr.mxu0 0.0
        %1540 = vmatpush1.msra.mxu0 0.0
        %1541 = vmatprep.subr.mxu0 0.0
        %1542 = vmatpush1.msra.mxu0 0.0
        %1543 = vmatprep.subr.mxu0 0.0
        %1544 = vmatpush1.msra.mxu0 0.0
        %1545 = vmatprep.mubr.f32.mxu0 0.0
        %1546 = vmatmul.mubr.f32.gmra.mrb[0].mxu0 %v964
        %v1547 = vpop.f32.mrb[0].mxu0
        %v1548 = vadd.f32 %v1129, %v1547
        %v1549 = vpop.f32.mrb[0].mxu0
        %v1550 = vadd.f32 %v1133, %v1549
        %1551 = vmatprep.mubr.f32.mxu0 0.0
        %1552 = vmatmul.mubr.f32.gmra.mrb[0].mxu0 %v965
        %v1553 = vpop.f32.mrb[0].mxu0
        %v1554 = vadd.f32 %v1129, %v1553
        %v1555 = vpop.f32.mrb[0].mxu0
        %v1556 = vadd.f32 %v1133, %v1555
        %1557 = vmatprep.mubr.f32.mxu0 0.0
        %1558 = vmatmul.mubr.f32.gmra.mrb[0].mxu0 %v966
        %v1559 = vpop.f32.mrb[0].mxu0
        %v1560 = vadd.f32 %v1129, %v1559
        %v1561 = vpop.f32.mrb[0].mxu0
        %v1562 = vadd.f32 %v1133, %v1561
        %1563 = vmatprep.mubr.f32.mxu0 0.0
        %1564 = vmatmul.mubr.f32.gmra.mrb[0].mxu0 %v967
        %v1565 = vpop.f32.mrb[0].mxu0
        %v1566 = vadd.f32 %v1129, %v1565
        %v1567 = vpop.f32.mrb[0].mxu0
        %v1568 = vadd.f32 %v1133, %v1567
        %1569 = vmatprep.mubr.f32.mxu0 0.0
        %1570 = vmatmul.mubr.f32.gmra.mrb[0].mxu0 %v968
        %v1571 = vpop.f32.mrb[0].mxu0
        %v1572 = vadd.f32 %v1129, %v1571
        %v1573 = vpop.f32.mrb[0].mxu0
        %v1574 = vadd.f32 %v1133, %v1573
        %1575 = vmatprep.mubr.f32.mxu0 0.0
        %1576 = vmatmul.mubr.f32.gmra.mrb[0].mxu0 %v969
        %v1577 = vpop.f32.mrb[0].mxu0
        %v1578 = vadd.f32 %v1129, %v1577
        %v1579 = vpop.f32.mrb[0].mxu0
        %v1580 = vadd.f32 %v1133, %v1579
        %1581 = vmatprep.mubr.f32.mxu0 0.0
        %1582 = vmatmul.mubr.f32.gmra.mrb[0].mxu0 %v970
        %v1583 = vpop.f32.mrb[0].mxu0
        %v1584 = vadd.f32 %v1129, %v1583
        %v1585 = vpop.f32.mrb[0].mxu0
        %v1586 = vadd.f32 %v1133, %v1585
        %1587 = vmatprep.mubr.f32.mxu0 0.0
        %1588 = vmatmul.mubr.f32.gmra.mrb[0].mxu0 %v971
        %v1589 = vpop.f32.mrb[0].mxu0
        %v1590 = vadd.f32 %v1129, %v1589
        %v1591 = vpop.f32.mrb[0].mxu0
        %v1592 = vadd.f32 %v1133, %v1591
        %1593 = vdwg.mxu0
        %v1594 = vadd.f32 %v964, %v965
        %v1595 = vadd.f32 %v1594, %v966
        %v1596 = vadd.f32 %v1595, %v967
        %v1597 = vadd.f32 %v1596, %v968
        %v1598 = vadd.f32 %v1597, %v969
        %v1599 = vadd.f32 %v1598, %v970
        %v1600 = vadd.f32 %v1599, %v971
        %v1601 = vrot.slane %v1600, 4
        %v1602 = vadd.f32 %v1600, %v1601
        %v1603 = vrot.slane %v1602, 2
        %v1604 = vadd.f32 %v1602, %v1603
        %v1605 = vrot.slane %v1604, 1
        %v1606 = vadd.f32 %v1604, %v1605
        %v1607 = vmul.f32 %v1100, 64.0
        %v1609 = vlaneseq
        %v1610 = vshrl.u32 %v1609, 7
        %v1611 = vsub.s32 0, %v1610
        %v1612 = vrot.slane %v1607, %v1611
        %v1613 = vlaneseq
        %v1614 = vshrl.u32 %v1613, 7
        %v1615 = vsub.s32 1, %v1614
        %v1616 = vrot.slane %v1607, %v1615
        %v1617 = vlaneseq
        %v1618 = vshrl.u32 %v1617, 7
        %v1619 = vsub.s32 2, %v1618
        %v1620 = vrot.slane %v1607, %v1619
        %v1621 = vlaneseq
        %v1622 = vshrl.u32 %v1621, 7
        %v1623 = vsub.s32 3, %v1622
        %v1624 = vrot.slane %v1607, %v1623
        %v1625 = vlaneseq
        %v1626 = vshrl.u32 %v1625, 7
        %v1627 = vsub.s32 4, %v1626
        %v1628 = vrot.slane %v1607, %v1627
        %v1629 = vlaneseq
        %v1630 = vshrl.u32 %v1629, 7
        %v1631 = vsub.s32 5, %v1630
        %v1632 = vrot.slane %v1607, %v1631
        %v1633 = vlaneseq
        %v1634 = vshrl.u32 %v1633, 7
        %v1635 = vsub.s32 6, %v1634
        %v1636 = vrot.slane %v1607, %v1635
        %v1637 = vlaneseq
        %v1638 = vshrl.u32 %v1637, 7
        %v1639 = vsub.s32 7, %v1638
        %v1640 = vrot.slane %v1607, %v1639
        %1649 = vmatprep.subr.mxu0 %v973
        %1650 = vmatpush1.msra.mxu0 %v972
        %1651 = vmatprep.subr.mxu0 %v981
        %1652 = vmatpush1.msra.mxu0 %v980
        %1653 = vmatprep.subr.mxu0 %v989
        %1654 = vmatpush1.msra.mxu0 %v988
        %1655 = vmatprep.subr.mxu0 %v997
        %1656 = vmatpush1.msra.mxu0 %v996
        %1657 = vmatprep.subr.mxu0 %v1005
        %1658 = vmatpush1.msra.mxu0 %v1004
        %1659 = vmatprep.subr.mxu0 %v1013
        %1660 = vmatpush1.msra.mxu0 %v1012
        %1661 = vmatprep.subr.mxu0 %v1021
        %1662 = vmatpush1.msra.mxu0 %v1020
        %1663 = vmatprep.subr.mxu0 %v1029
        %1664 = vmatpush1.msra.mxu0 %v1028
        %1665 = vmatprep.subr.mxu0 %v1037
        %1666 = vmatpush1.msra.mxu0 %v1036
        %1667 = vmatprep.subr.mxu0 %v1045
        %1668 = vmatpush1.msra.mxu0 %v1044
        %1669 = vmatprep.subr.mxu0 %v1053
        %1670 = vmatpush1.msra.mxu0 %v1052
        %1671 = vmatprep.subr.mxu0 %v1061
        %1672 = vmatpush1.msra.mxu0 %v1060
        %1673 = vmatprep.subr.mxu0 %v1069
        %1674 = vmatpush1.msra.mxu0 %v1068
        %1675 = vmatprep.subr.mxu0 %v1077
        %1676 = vmatpush1.msra.mxu0 %v1076
        %1677 = vmatprep.subr.mxu0 %v1085
        %1678 = vmatpush1.msra.mxu0 %v1084
        %1679 = vmatprep.subr.mxu0 %v1093
        %1680 = vmatpush1.msra.mxu0 %v1092
        %1681 = vmatprep.subr.mxu0 0.0
        %1682 = vmatpush1.msra.mxu0 0.0
        %1683 = vmatprep.subr.mxu0 0.0
        %1684 = vmatpush1.msra.mxu0 0.0
        %1685 = vmatprep.subr.mxu0 0.0
        %1686 = vmatpush1.msra.mxu0 0.0
        %1687 = vmatprep.subr.mxu0 0.0
        %1688 = vmatpush1.msra.mxu0 0.0
        %1689 = vmatprep.subr.mxu0 0.0
        %1690 = vmatpush1.msra.mxu0 0.0
        %1691 = vmatprep.subr.mxu0 0.0
        %1692 = vmatpush1.msra.mxu0 0.0
        %1693 = vmatprep.subr.mxu0 0.0
        %1694 = vmatpush1.msra.mxu0 0.0
        %1695 = vmatprep.subr.mxu0 0.0
        %1696 = vmatpush1.msra.mxu0 0.0
        %1697 = vmatprep.subr.mxu0 0.0
        %1698 = vmatpush1.msra.mxu0 0.0
        %1699 = vmatprep.subr.mxu0 0.0
        %1700 = vmatpush1.msra.mxu0 0.0
        %1701 = vmatprep.subr.mxu0 0.0
        %1702 = vmatpush1.msra.mxu0 0.0
        %1703 = vmatprep.subr.mxu0 0.0
        %1704 = vmatpush1.msra.mxu0 0.0
        %1705 = vmatprep.subr.mxu0 0.0
        %1706 = vmatpush1.msra.mxu0 0.0
        %1707 = vmatprep.subr.mxu0 0.0
        %1708 = vmatpush1.msra.mxu0 0.0
        %1709 = vmatprep.subr.mxu0 0.0
        %1710 = vmatpush1.msra.mxu0 0.0
        %1711 = vmatprep.subr.mxu0 0.0
        %1712 = vmatpush1.msra.mxu0 0.0
        %1713 = vmatprep.mubr.f32.mxu0 0.0
        %1714 = vmatmul.mubr.f32.gmra.mrb[0].mxu0 %v1606
        %v1715 = vpop.f32.mrb[0].mxu0
        %v1716 = vadd.f32 %v1612, %v1715
        %v1717 = vpop.f32.mrb[0].mxu0
        %v1718 = vadd.f32 %v1616, %v1717
        %1719 = vdwg.mxu0
        %1720 = vmatprep.subr.mxu0 %v975
        %1721 = vmatpush1.msra.mxu0 %v974
        %1722 = vmatprep.subr.mxu0 %v983
        %1723 = vmatpush1.msra.mxu0 %v982
        %1724 = vmatprep.subr.mxu0 %v991
        %1725 = vmatpush1.msra.mxu0 %v990
        %1726 = vmatprep.subr.mxu0 %v999
        %1727 = vmatpush1.msra.mxu0 %v998
        %1728 = vmatprep.subr.mxu0 %v1007
        %1729 = vmatpush1.msra.mxu0 %v1006
        %1730 = vmatprep.subr.mxu0 %v1015
        %1731 = vmatpush1.msra.mxu0 %v1014
        %1732 = vmatprep.subr.mxu0 %v1023
        %1733 = vmatpush1.msra.mxu0 %v1022
        %1734 = vmatprep.subr.mxu0 %v1031
        %1735 = vmatpush1.msra.mxu0 %v1030
        %1736 = vmatprep.subr.mxu0 %v1039
        %1737 = vmatpush1.msra.mxu0 %v1038
        %1738 = vmatprep.subr.mxu0 %v1047
        %1739 = vmatpush1.msra.mxu0 %v1046
        %1740 = vmatprep.subr.mxu0 %v1055
        %1741 = vmatpush1.msra.mxu0 %v1054
        %1742 = vmatprep.subr.mxu0 %v1063
        %1743 = vmatpush1.msra.mxu0 %v1062
        %1744 = vmatprep.subr.mxu0 %v1071
        %1745 = vmatpush1.msra.mxu0 %v1070
        %1746 = vmatprep.subr.mxu0 %v1079
        %1747 = vmatpush1.msra.mxu0 %v1078
        %1748 = vmatprep.subr.mxu0 %v1087
        %1749 = vmatpush1.msra.mxu0 %v1086
        %1750 = vmatprep.subr.mxu0 %v1095
        %1751 = vmatpush1.msra.mxu0 %v1094
        %1752 = vmatprep.subr.mxu0 0.0
        %1753 = vmatpush1.msra.mxu0 0.0
        %1754 = vmatprep.subr.mxu0 0.0
        %1755 = vmatpush1.msra.mxu0 0.0
        %1756 = vmatprep.subr.mxu0 0.0
        %1757 = vmatpush1.msra.mxu0 0.0
        %1758 = vmatprep.subr.mxu0 0.0
        %1759 = vmatpush1.msra.mxu0 0.0
        %1760 = vmatprep.subr.mxu0 0.0
        %1761 = vmatpush1.msra.mxu0 0.0
        %1762 = vmatprep.subr.mxu0 0.0
        %1763 = vmatpush1.msra.mxu0 0.0
        %1764 = vmatprep.subr.mxu0 0.0
        %1765 = vmatpush1.msra.mxu0 0.0
        %1766 = vmatprep.subr.mxu0 0.0
        %1767 = vmatpush1.msra.mxu0 0.0
        %1768 = vmatprep.subr.mxu0 0.0
        %1769 = vmatpush1.msra.mxu0 0.0
        %1770 = vmatprep.subr.mxu0 0.0
        %1771 = vmatpush1.msra.mxu0 0.0
        %1772 = vmatprep.subr.mxu0 0.0
        %1773 = vmatpush1.msra.mxu0 0.0
        %1774 = vmatprep.subr.mxu0 0.0
        %1775 = vmatpush1.msra.mxu0 0.0
        %1776 = vmatprep.subr.mxu0 0.0
        %1777 = vmatpush1.msra.mxu0 0.0
        %1778 = vmatprep.subr.mxu0 0.0
        %1779 = vmatpush1.msra.mxu0 0.0
        %1780 = vmatprep.subr.mxu0 0.0
        %1781 = vmatpush1.msra.mxu0 0.0
        %1782 = vmatprep.subr.mxu0 0.0
        %1783 = vmatpush1.msra.mxu0 0.0
        %1784 = vmatprep.mubr.f32.mxu0 0.0
        %1785 = vmatmul.mubr.f32.gmra.mrb[0].mxu0 %v1606
        %v1786 = vpop.f32.mrb[0].mxu0
        %v1787 = vadd.f32 %v1620, %v1786
        %v1788 = vpop.f32.mrb[0].mxu0
        %v1789 = vadd.f32 %v1624, %v1788
        %1790 = vdwg.mxu0
        %1791 = vmatprep.subr.mxu0 %v977
        %1792 = vmatpush1.msra.mxu0 %v976
        %1793 = vmatprep.subr.mxu0 %v985
        %1794 = vmatpush1.msra.mxu0 %v984
        %1795 = vmatprep.subr.mxu0 %v993
        %1796 = vmatpush1.msra.mxu0 %v992
        %1797 = vmatprep.subr.mxu0 %v1001
        %1798 = vmatpush1.msra.mxu0 %v1000
        %1799 = vmatprep.subr.mxu0 %v1009
        %1800 = vmatpush1.msra.mxu0 %v1008
        %1801 = vmatprep.subr.mxu0 %v1017
        %1802 = vmatpush1.msra.mxu0 %v1016
        %1803 = vmatprep.subr.mxu0 %v1025
        %1804 = vmatpush1.msra.mxu0 %v1024
        %1805 = vmatprep.subr.mxu0 %v1033
        %1806 = vmatpush1.msra.mxu0 %v1032
        %1807 = vmatprep.subr.mxu0 %v1041
        %1808 = vmatpush1.msra.mxu0 %v1040
        %1809 = vmatprep.subr.mxu0 %v1049
        %1810 = vmatpush1.msra.mxu0 %v1048
        %1811 = vmatprep.subr.mxu0 %v1057
        %1812 = vmatpush1.msra.mxu0 %v1056
        %1813 = vmatprep.subr.mxu0 %v1065
        %1814 = vmatpush1.msra.mxu0 %v1064
        %1815 = vmatprep.subr.mxu0 %v1073
        %1816 = vmatpush1.msra.mxu0 %v1072
        %1817 = vmatprep.subr.mxu0 %v1081
        %1818 = vmatpush1.msra.mxu0 %v1080
        %1819 = vmatprep.subr.mxu0 %v1089
        %1820 = vmatpush1.msra.mxu0 %v1088
        %1821 = vmatprep.subr.mxu0 %v1097
        %1822 = vmatpush1.msra.mxu0 %v1096
        %1823 = vmatprep.subr.mxu0 0.0
        %1824 = vmatpush1.msra.mxu0 0.0
        %1825 = vmatprep.subr.mxu0 0.0
        %1826 = vmatpush1.msra.mxu0 0.0
        %1827 = vmatprep.subr.mxu0 0.0
        %1828 = vmatpush1.msra.mxu0 0.0
        %1829 = vmatprep.subr.mxu0 0.0
        %1830 = vmatpush1.msra.mxu0 0.0
        %1831 = vmatprep.subr.mxu0 0.0
        %1832 = vmatpush1.msra.mxu0 0.0
        %1833 = vmatprep.subr.mxu0 0.0
        %1834 = vmatpush1.msra.mxu0 0.0
        %1835 = vmatprep.subr.mxu0 0.0
        %1836 = vmatpush1.msra.mxu0 0.0
        %1837 = vmatprep.subr.mxu0 0.0
        %1838 = vmatpush1.msra.mxu0 0.0
        %1839 = vmatprep.subr.mxu0 0.0
        %1840 = vmatpush1.msra.mxu0 0.0
        %1841 = vmatprep.subr.mxu0 0.0
        %1842 = vmatpush1.msra.mxu0 0.0
        %1843 = vmatprep.subr.mxu0 0.0
        %1844 = vmatpush1.msra.mxu0 0.0
        %1845 = vmatprep.subr.mxu0 0.0
        %1846 = vmatpush1.msra.mxu0 0.0
        %1847 = vmatprep.subr.mxu0 0.0
        %1848 = vmatpush1.msra.mxu0 0.0
        %1849 = vmatprep.subr.mxu0 0.0
        %1850 = vmatpush1.msra.mxu0 0.0
        %1851 = vmatprep.subr.mxu0 0.0
        %1852 = vmatpush1.msra.mxu0 0.0
        %1853 = vmatprep.subr.mxu0 0.0
        %1854 = vmatpush1.msra.mxu0 0.0
        %1855 = vmatprep.mubr.f32.mxu0 0.0
        %1856 = vmatmul.mubr.f32.gmra.mrb[0].mxu0 %v1606
        %v1857 = vpop.f32.mrb[0].mxu0
        %v1858 = vadd.f32 %v1628, %v1857
        %v1859 = vpop.f32.mrb[0].mxu0
        %v1860 = vadd.f32 %v1632, %v1859
        %1861 = vdwg.mxu0
        %1862 = vmatprep.subr.mxu0 %v979
        %1863 = vmatpush1.msra.mxu0 %v978
        %1864 = vmatprep.subr.mxu0 %v987
        %1865 = vmatpush1.msra.mxu0 %v986
        %1866 = vmatprep.subr.mxu0 %v995
        %1867 = vmatpush1.msra.mxu0 %v994
        %1868 = vmatprep.subr.mxu0 %v1003
        %1869 = vmatpush1.msra.mxu0 %v1002
        %1870 = vmatprep.subr.mxu0 %v1011
        %1871 = vmatpush1.msra.mxu0 %v1010
        %1872 = vmatprep.subr.mxu0 %v1019
        %1873 = vmatpush1.msra.mxu0 %v1018
        %1874 = vmatprep.subr.mxu0 %v1027
        %1875 = vmatpush1.msra.mxu0 %v1026
        %1876 = vmatprep.subr.mxu0 %v1035
        %1877 = vmatpush1.msra.mxu0 %v1034
        %1878 = vmatprep.subr.mxu0 %v1043
        %1879 = vmatpush1.msra.mxu0 %v1042
        %1880 = vmatprep.subr.mxu0 %v1051
        %1881 = vmatpush1.msra.mxu0 %v1050
        %1882 = vmatprep.subr.mxu0 %v1059
        %1883 = vmatpush1.msra.mxu0 %v1058
        %1884 = vmatprep.subr.mxu0 %v1067
        %1885 = vmatpush1.msra.mxu0 %v1066
        %1886 = vmatprep.subr.mxu0 %v1075
        %1887 = vmatpush1.msra.mxu0 %v1074
        %1888 = vmatprep.subr.mxu0 %v1083
        %1889 = vmatpush1.msra.mxu0 %v1082
        %1890 = vmatprep.subr.mxu0 %v1091
        %1891 = vmatpush1.msra.mxu0 %v1090
        %1892 = vmatprep.subr.mxu0 %v1099
        %1893 = vmatpush1.msra.mxu0 %v1098
        %1894 = vmatprep.subr.mxu0 0.0
        %1895 = vmatpush1.msra.mxu0 0.0
        %1896 = vmatprep.subr.mxu0 0.0
        %1897 = vmatpush1.msra.mxu0 0.0
        %1898 = vmatprep.subr.mxu0 0.0
        %1899 = vmatpush1.msra.mxu0 0.0
        %1900 = vmatprep.subr.mxu0 0.0
        %1901 = vmatpush1.msra.mxu0 0.0
        %1902 = vmatprep.subr.mxu0 0.0
        %1903 = vmatpush1.msra.mxu0 0.0
        %1904 = vmatprep.subr.mxu0 0.0
        %1905 = vmatpush1.msra.mxu0 0.0
        %1906 = vmatprep.subr.mxu0 0.0
        %1907 = vmatpush1.msra.mxu0 0.0
        %1908 = vmatprep.subr.mxu0 0.0
        %1909 = vmatpush1.msra.mxu0 0.0
        %1910 = vmatprep.subr.mxu0 0.0
        %1911 = vmatpush1.msra.mxu0 0.0
        %1912 = vmatprep.subr.mxu0 0.0
        %1913 = vmatpush1.msra.mxu0 0.0
        %1914 = vmatprep.subr.mxu0 0.0
        %1915 = vmatpush1.msra.mxu0 0.0
        %1916 = vmatprep.subr.mxu0 0.0
        %1917 = vmatpush1.msra.mxu0 0.0
        %1918 = vmatprep.subr.mxu0 0.0
        %1919 = vmatpush1.msra.mxu0 0.0
        %1920 = vmatprep.subr.mxu0 0.0
        %1921 = vmatpush1.msra.mxu0 0.0
        %1922 = vmatprep.subr.mxu0 0.0
        %1923 = vmatpush1.msra.mxu0 0.0
        %1924 = vmatprep.subr.mxu0 0.0
        %1925 = vmatpush1.msra.mxu0 0.0
        %1926 = vmatprep.mubr.f32.mxu0 0.0
        %1927 = vmatmul.mubr.f32.gmra.mrb[0].mxu0 %v1606
        %v1928 = vpop.f32.mrb[0].mxu0
        %v1929 = vadd.f32 %v1636, %v1928
        %v1930 = vpop.f32.mrb[0].mxu0
        %v1931 = vadd.f32 %v1640, %v1930
        %1932 = vdwg.mxu0
        %v1933 = vmul.f32 %v1209, %v1209
        %v1934 = vmul.f32 %v1211, %v1211
        %v1935 = vmul.f32 %v1322, %v1322
        %v1936 = vmul.f32 %v1324, %v1324
        %v1937 = vmul.f32 %v1435, %v1435
        %v1938 = vmul.f32 %v1437, %v1437
        %v1939 = vmul.f32 %v1548, %v1548
        %v1940 = vmul.f32 %v1550, %v1550
        %v1941 = vmul.f32 %v1215, %v1215
        %v1942 = vmul.f32 %v1217, %v1217
        %v1943 = vmul.f32 %v1328, %v1328
        %v1944 = vmul.f32 %v1330, %v1330
        %v1945 = vmul.f32 %v1441, %v1441
        %v1946 = vmul.f32 %v1443, %v1443
        %v1947 = vmul.f32 %v1554, %v1554
        %v1948 = vmul.f32 %v1556, %v1556
        %v1949 = vmul.f32 %v1221, %v1221
        %v1950 = vmul.f32 %v1223, %v1223
        %v1951 = vmul.f32 %v1334, %v1334
        %v1952 = vmul.f32 %v1336, %v1336
        %v1953 = vmul.f32 %v1447, %v1447
        %v1954 = vmul.f32 %v1449, %v1449
        %v1955 = vmul.f32 %v1560, %v1560
        %v1956 = vmul.f32 %v1562, %v1562
        %v1957 = vmul.f32 %v1227, %v1227
        %v1958 = vmul.f32 %v1229, %v1229
        %v1959 = vmul.f32 %v1340, %v1340
        %v1960 = vmul.f32 %v1342, %v1342
        %v1961 = vmul.f32 %v1453, %v1453
        %v1962 = vmul.f32 %v1455, %v1455
        %v1963 = vmul.f32 %v1566, %v1566
        %v1964 = vmul.f32 %v1568, %v1568
        %v1965 = vmul.f32 %v1233, %v1233
        %v1966 = vmul.f32 %v1235, %v1235
        %v1967 = vmul.f32 %v1346, %v1346
        %v1968 = vmul.f32 %v1348, %v1348
        %v1969 = vmul.f32 %v1459, %v1459
        %v1970 = vmul.f32 %v1461, %v1461
        %v1971 = vmul.f32 %v1572, %v1572
        %v1972 = vmul.f32 %v1574, %v1574
        %v1973 = vmul.f32 %v1239, %v1239
        %v1974 = vmul.f32 %v1241, %v1241
        %v1975 = vmul.f32 %v1352, %v1352
        %v1976 = vmul.f32 %v1354, %v1354
        %v1977 = vmul.f32 %v1465, %v1465
        %v1978 = vmul.f32 %v1467, %v1467
        %v1979 = vmul.f32 %v1578, %v1578
        %v1980 = vmul.f32 %v1580, %v1580
        %v1981 = vmul.f32 %v1245, %v1245
        %v1982 = vmul.f32 %v1247, %v1247
        %v1983 = vmul.f32 %v1358, %v1358
        %v1984 = vmul.f32 %v1360, %v1360
        %v1985 = vmul.f32 %v1471, %v1471
        %v1986 = vmul.f32 %v1473, %v1473
        %v1987 = vmul.f32 %v1584, %v1584
        %v1988 = vmul.f32 %v1586, %v1586
        %v1989 = vmul.f32 %v1251, %v1251
        %v1990 = vmul.f32 %v1253, %v1253
        %v1991 = vmul.f32 %v1364, %v1364
        %v1992 = vmul.f32 %v1366, %v1366
        %v1993 = vmul.f32 %v1477, %v1477
        %v1994 = vmul.f32 %v1479, %v1479
        %v1995 = vmul.f32 %v1590, %v1590
        %v1996 = vmul.f32 %v1592, %v1592
        %v1997 = vadd.f32 %v1933, %v1941
        %v1998 = vadd.f32 %v1997, %v1949
        %v1999 = vadd.f32 %v1998, %v1957
        %v2000 = vadd.f32 %v1999, %v1965
        %v2001 = vadd.f32 %v2000, %v1973
        %v2002 = vadd.f32 %v2001, %v1981
        %v2003 = vadd.f32 %v2002, %v1989
        %v2004 = vrot.slane %v2003, 4
        %v2005 = vadd.f32 %v2003, %v2004
        %v2006 = vrot.slane %v2005, 2
        %v2007 = vadd.f32 %v2005, %v2006
        %v2008 = vrot.slane %v2007, 1
        %v2009 = vadd.f32 %v2007, %v2008
        %v2010 = vadd.f32 %v1934, %v1942
        %v2011 = vadd.f32 %v2010, %v1950
        %v2012 = vadd.f32 %v2011, %v1958
        %v2013 = vadd.f32 %v2012, %v1966
        %v2014 = vadd.f32 %v2013, %v1974
        %v2015 = vadd.f32 %v2014, %v1982
        %v2016 = vadd.f32 %v2015, %v1990
        %v2017 = vrot.slane %v2016, 4
        %v2018 = vadd.f32 %v2016, %v2017
        %v2019 = vrot.slane %v2018, 2
        %v2020 = vadd.f32 %v2018, %v2019
        %v2021 = vrot.slane %v2020, 1
        %v2022 = vadd.f32 %v2020, %v2021
        %v2023 = vadd.f32 %v1935, %v1943
        %v2024 = vadd.f32 %v2023, %v1951
        %v2025 = vadd.f32 %v2024, %v1959
        %v2026 = vadd.f32 %v2025, %v1967
        %v2027 = vadd.f32 %v2026, %v1975
        %v2028 = vadd.f32 %v2027, %v1983
        %v2029 = vadd.f32 %v2028, %v1991
        %v2030 = vrot.slane %v2029, 4
        %v2031 = vadd.f32 %v2029, %v2030
        %v2032 = vrot.slane %v2031, 2
        %v2033 = vadd.f32 %v2031, %v2032
        %v2034 = vrot.slane %v2033, 1
        %v2035 = vadd.f32 %v2033, %v2034
        %v2036 = vadd.f32 %v1936, %v1944
        %v2037 = vadd.f32 %v2036, %v1952
        %v2038 = vadd.f32 %v2037, %v1960
        %v2039 = vadd.f32 %v2038, %v1968
        %v2040 = vadd.f32 %v2039, %v1976
        %v2041 = vadd.f32 %v2040, %v1984
        %v2042 = vadd.f32 %v2041, %v1992
        %v2043 = vrot.slane %v2042, 4
        %v2044 = vadd.f32 %v2042, %v2043
        %v2045 = vrot.slane %v2044, 2
        %v2046 = vadd.f32 %v2044, %v2045
        %v2047 = vrot.slane %v2046, 1
        %v2048 = vadd.f32 %v2046, %v2047
        %v2049 = vadd.f32 %v1937, %v1945
        %v2050 = vadd.f32 %v2049, %v1953
        %v2051 = vadd.f32 %v2050, %v1961
        %v2052 = vadd.f32 %v2051, %v1969
        %v2053 = vadd.f32 %v2052, %v1977
        %v2054 = vadd.f32 %v2053, %v1985
        %v2055 = vadd.f32 %v2054, %v1993
        %v2056 = vrot.slane %v2055, 4
        %v2057 = vadd.f32 %v2055, %v2056
        %v2058 = vrot.slane %v2057, 2
        %v2059 = vadd.f32 %v2057, %v2058
        %v2060 = vrot.slane %v2059, 1
        %v2061 = vadd.f32 %v2059, %v2060
        %v2062 = vadd.f32 %v1938, %v1946
        %v2063 = vadd.f32 %v2062, %v1954
        %v2064 = vadd.f32 %v2063, %v1962
        %v2065 = vadd.f32 %v2064, %v1970
        %v2066 = vadd.f32 %v2065, %v1978
        %v2067 = vadd.f32 %v2066, %v1986
        %v2068 = vadd.f32 %v2067, %v1994
        %v2069 = vrot.slane %v2068, 4
        %v2070 = vadd.f32 %v2068, %v2069
        %v2071 = vrot.slane %v2070, 2
        %v2072 = vadd.f32 %v2070, %v2071
        %v2073 = vrot.slane %v2072, 1
        %v2074 = vadd.f32 %v2072, %v2073
        %v2075 = vadd.f32 %v1939, %v1947
        %v2076 = vadd.f32 %v2075, %v1955
        %v2077 = vadd.f32 %v2076, %v1963
        %v2078 = vadd.f32 %v2077, %v1971
        %v2079 = vadd.f32 %v2078, %v1979
        %v2080 = vadd.f32 %v2079, %v1987
        %v2081 = vadd.f32 %v2080, %v1995
        %v2082 = vrot.slane %v2081, 4
        %v2083 = vadd.f32 %v2081, %v2082
        %v2084 = vrot.slane %v2083, 2
        %v2085 = vadd.f32 %v2083, %v2084
        %v2086 = vrot.slane %v2085, 1
        %v2087 = vadd.f32 %v2085, %v2086
        %v2088 = vadd.f32 %v1940, %v1948
        %v2089 = vadd.f32 %v2088, %v1956
        %v2090 = vadd.f32 %v2089, %v1964
        %v2091 = vadd.f32 %v2090, %v1972
        %v2092 = vadd.f32 %v2091, %v1980
        %v2093 = vadd.f32 %v2092, %v1988
        %v2094 = vadd.f32 %v2093, %v1996
        %v2095 = vrot.slane %v2094, 4
        %v2096 = vadd.f32 %v2094, %v2095
        %v2097 = vrot.slane %v2096, 2
        %v2098 = vadd.f32 %v2096, %v2097
        %v2099 = vrot.slane %v2098, 1
        %v2100 = vadd.f32 %v2098, %v2099
        %v2101 = vmax.f32 %v1209, %v1215
        %v2102 = vmax.f32 %v2101, %v1221
        %v2103 = vmax.f32 %v2102, %v1227
        %v2104 = vmax.f32 %v2103, %v1233
        %v2105 = vmax.f32 %v2104, %v1239
        %v2106 = vmax.f32 %v2105, %v1245
        %v2107 = vmax.f32 %v2106, %v1251
        %v2108 = vrot.slane %v2107, 4
        %v2109 = vmax.f32 %v2107, %v2108
        %v2110 = vrot.slane %v2109, 2
        %v2111 = vmax.f32 %v2109, %v2110
        %v2112 = vrot.slane %v2111, 1
        %v2113 = vmax.f32 %v2111, %v2112
        %v2114 = vmax.f32 %v1211, %v1217
        %v2115 = vmax.f32 %v2114, %v1223
        %v2116 = vmax.f32 %v2115, %v1229
        %v2117 = vmax.f32 %v2116, %v1235
        %v2118 = vmax.f32 %v2117, %v1241
        %v2119 = vmax.f32 %v2118, %v1247
        %v2120 = vmax.f32 %v2119, %v1253
        %v2121 = vrot.slane %v2120, 4
        %v2122 = vmax.f32 %v2120, %v2121
        %v2123 = vrot.slane %v2122, 2
        %v2124 = vmax.f32 %v2122, %v2123
        %v2125 = vrot.slane %v2124, 1
        %v2126 = vmax.f32 %v2124, %v2125
        %v2127 = vmax.f32 %v1322, %v1328
        %v2128 = vmax.f32 %v2127, %v1334
        %v2129 = vmax.f32 %v2128, %v1340
        %v2130 = vmax.f32 %v2129, %v1346
        %v2131 = vmax.f32 %v2130, %v1352
        %v2132 = vmax.f32 %v2131, %v1358
        %v2133 = vmax.f32 %v2132, %v1364
        %v2134 = vrot.slane %v2133, 4
        %v2135 = vmax.f32 %v2133, %v2134
        %v2136 = vrot.slane %v2135, 2
        %v2137 = vmax.f32 %v2135, %v2136
        %v2138 = vrot.slane %v2137, 1
        %v2139 = vmax.f32 %v2137, %v2138
        %v2140 = vmax.f32 %v1324, %v1330
        %v2141 = vmax.f32 %v2140, %v1336
        %v2142 = vmax.f32 %v2141, %v1342
        %v2143 = vmax.f32 %v2142, %v1348
        %v2144 = vmax.f32 %v2143, %v1354
        %v2145 = vmax.f32 %v2144, %v1360
        %v2146 = vmax.f32 %v2145, %v1366
        %v2147 = vrot.slane %v2146, 4
        %v2148 = vmax.f32 %v2146, %v2147
        %v2149 = vrot.slane %v2148, 2
        %v2150 = vmax.f32 %v2148, %v2149
        %v2151 = vrot.slane %v2150, 1
        %v2152 = vmax.f32 %v2150, %v2151
        %v2153 = vmax.f32 %v1435, %v1441
        %v2154 = vmax.f32 %v2153, %v1447
        %v2155 = vmax.f32 %v2154, %v1453
        %v2156 = vmax.f32 %v2155, %v1459
        %v2157 = vmax.f32 %v2156, %v1465
        %v2158 = vmax.f32 %v2157, %v1471
        %v2159 = vmax.f32 %v2158, %v1477
        %v2160 = vrot.slane %v2159, 4
        %v2161 = vmax.f32 %v2159, %v2160
        %v2162 = vrot.slane %v2161, 2
        %v2163 = vmax.f32 %v2161, %v2162
        %v2164 = vrot.slane %v2163, 1
        %v2165 = vmax.f32 %v2163, %v2164
        %v2166 = vmax.f32 %v1437, %v1443
        %v2167 = vmax.f32 %v2166, %v1449
        %v2168 = vmax.f32 %v2167, %v1455
        %v2169 = vmax.f32 %v2168, %v1461
        %v2170 = vmax.f32 %v2169, %v1467
        %v2171 = vmax.f32 %v2170, %v1473
        %v2172 = vmax.f32 %v2171, %v1479
        %v2173 = vrot.slane %v2172, 4
        %v2174 = vmax.f32 %v2172, %v2173
        %v2175 = vrot.slane %v2174, 2
        %v2176 = vmax.f32 %v2174, %v2175
        %v2177 = vrot.slane %v2176, 1
        %v2178 = vmax.f32 %v2176, %v2177
        %v2179 = vmax.f32 %v1548, %v1554
        %v2180 = vmax.f32 %v2179, %v1560
        %v2181 = vmax.f32 %v2180, %v1566
        %v2182 = vmax.f32 %v2181, %v1572
        %v2183 = vmax.f32 %v2182, %v1578
        %v2184 = vmax.f32 %v2183, %v1584
        %v2185 = vmax.f32 %v2184, %v1590
        %v2186 = vrot.slane %v2185, 4
        %v2187 = vmax.f32 %v2185, %v2186
        %v2188 = vrot.slane %v2187, 2
        %v2189 = vmax.f32 %v2187, %v2188
        %v2190 = vrot.slane %v2189, 1
        %v2191 = vmax.f32 %v2189, %v2190
        %v2192 = vmax.f32 %v1550, %v1556
        %v2193 = vmax.f32 %v2192, %v1562
        %v2194 = vmax.f32 %v2193, %v1568
        %v2195 = vmax.f32 %v2194, %v1574
        %v2196 = vmax.f32 %v2195, %v1580
        %v2197 = vmax.f32 %v2196, %v1586
        %v2198 = vmax.f32 %v2197, %v1592
        %v2199 = vrot.slane %v2198, 4
        %v2200 = vmax.f32 %v2198, %v2199
        %v2201 = vrot.slane %v2200, 2
        %v2202 = vmax.f32 %v2200, %v2201
        %v2203 = vrot.slane %v2202, 1
        %v2204 = vmax.f32 %v2202, %v2203
        %v2205 = vmin.f32 %v1209, %v1215
        %v2206 = vmin.f32 %v2205, %v1221
        %v2207 = vmin.f32 %v2206, %v1227
        %v2208 = vmin.f32 %v2207, %v1233
        %v2209 = vmin.f32 %v2208, %v1239
        %v2210 = vmin.f32 %v2209, %v1245
        %v2211 = vmin.f32 %v2210, %v1251
        %v2212 = vrot.slane %v2211, 4
        %v2213 = vmin.f32 %v2211, %v2212
        %v2214 = vrot.slane %v2213, 2
        %v2215 = vmin.f32 %v2213, %v2214
        %v2216 = vrot.slane %v2215, 1
        %v2217 = vmin.f32 %v2215, %v2216
        %v2218 = vmin.f32 %v1211, %v1217
        %v2219 = vmin.f32 %v2218, %v1223
        %v2220 = vmin.f32 %v2219, %v1229
        %v2221 = vmin.f32 %v2220, %v1235
        %v2222 = vmin.f32 %v2221, %v1241
        %v2223 = vmin.f32 %v2222, %v1247
        %v2224 = vmin.f32 %v2223, %v1253
        %v2225 = vrot.slane %v2224, 4
        %v2226 = vmin.f32 %v2224, %v2225
        %v2227 = vrot.slane %v2226, 2
        %v2228 = vmin.f32 %v2226, %v2227
        %v2229 = vrot.slane %v2228, 1
        %v2230 = vmin.f32 %v2228, %v2229
        %v2231 = vmin.f32 %v1322, %v1328
        %v2232 = vmin.f32 %v2231, %v1334
        %v2233 = vmin.f32 %v2232, %v1340
        %v2234 = vmin.f32 %v2233, %v1346
        %v2235 = vmin.f32 %v2234, %v1352
        %v2236 = vmin.f32 %v2235, %v1358
        %v2237 = vmin.f32 %v2236, %v1364
        %v2238 = vrot.slane %v2237, 4
        %v2239 = vmin.f32 %v2237, %v2238
        %v2240 = vrot.slane %v2239, 2
        %v2241 = vmin.f32 %v2239, %v2240
        %v2242 = vrot.slane %v2241, 1
        %v2243 = vmin.f32 %v2241, %v2242
        %v2244 = vmin.f32 %v1324, %v1330
        %v2245 = vmin.f32 %v2244, %v1336
        %v2246 = vmin.f32 %v2245, %v1342
        %v2247 = vmin.f32 %v2246, %v1348
        %v2248 = vmin.f32 %v2247, %v1354
        %v2249 = vmin.f32 %v2248, %v1360
        %v2250 = vmin.f32 %v2249, %v1366
        %v2251 = vrot.slane %v2250, 4
        %v2252 = vmin.f32 %v2250, %v2251
        %v2253 = vrot.slane %v2252, 2
        %v2254 = vmin.f32 %v2252, %v2253
        %v2255 = vrot.slane %v2254, 1
        %v2256 = vmin.f32 %v2254, %v2255
        %v2257 = vmin.f32 %v1435, %v1441
        %v2258 = vmin.f32 %v2257, %v1447
        %v2259 = vmin.f32 %v2258, %v1453
        %v2260 = vmin.f32 %v2259, %v1459
        %v2261 = vmin.f32 %v2260, %v1465
        %v2262 = vmin.f32 %v2261, %v1471
        %v2263 = vmin.f32 %v2262, %v1477
        %v2264 = vrot.slane %v2263, 4
        %v2265 = vmin.f32 %v2263, %v2264
        %v2266 = vrot.slane %v2265, 2
        %v2267 = vmin.f32 %v2265, %v2266
        %v2268 = vrot.slane %v2267, 1
        %v2269 = vmin.f32 %v2267, %v2268
        %v2270 = vmin.f32 %v1437, %v1443
        %v2271 = vmin.f32 %v2270, %v1449
        %v2272 = vmin.f32 %v2271, %v1455
        %v2273 = vmin.f32 %v2272, %v1461
        %v2274 = vmin.f32 %v2273, %v1467
        %v2275 = vmin.f32 %v2274, %v1473
        %v2276 = vmin.f32 %v2275, %v1479
        %v2277 = vrot.slane %v2276, 4
        %v2278 = vmin.f32 %v2276, %v2277
        %v2279 = vrot.slane %v2278, 2
        %v2280 = vmin.f32 %v2278, %v2279
        %v2281 = vrot.slane %v2280, 1
        %v2282 = vmin.f32 %v2280, %v2281
        %v2283 = vmin.f32 %v1548, %v1554
        %v2284 = vmin.f32 %v2283, %v1560
        %v2285 = vmin.f32 %v2284, %v1566
        %v2286 = vmin.f32 %v2285, %v1572
        %v2287 = vmin.f32 %v2286, %v1578
        %v2288 = vmin.f32 %v2287, %v1584
        %v2289 = vmin.f32 %v2288, %v1590
        %v2290 = vrot.slane %v2289, 4
        %v2291 = vmin.f32 %v2289, %v2290
        %v2292 = vrot.slane %v2291, 2
        %v2293 = vmin.f32 %v2291, %v2292
        %v2294 = vrot.slane %v2293, 1
        %v2295 = vmin.f32 %v2293, %v2294
        %v2296 = vmin.f32 %v1550, %v1556
        %v2297 = vmin.f32 %v2296, %v1562
        %v2298 = vmin.f32 %v2297, %v1568
        %v2299 = vmin.f32 %v2298, %v1574
        %v2300 = vmin.f32 %v2299, %v1580
        %v2301 = vmin.f32 %v2300, %v1586
        %v2302 = vmin.f32 %v2301, %v1592
        %v2303 = vrot.slane %v2302, 4
        %v2304 = vmin.f32 %v2302, %v2303
        %v2305 = vrot.slane %v2304, 2
        %v2306 = vmin.f32 %v2304, %v2305
        %v2307 = vrot.slane %v2306, 1
        %v2308 = vmin.f32 %v2306, %v2307
        %p2309 = scmp.eq.s32.totalorder %s35, 0
        // Predicated region
        $region89: #{input_transform_net.6} parent=63 // pred_check
          %p2310 = pneg %p2309
        $region90: #{input_transform_net.6} parent=63 // pred_check_branch
          %2312 = sbr.rel (%p2310) target = $region92
        $region91: #{input_transform_net.6} parent=63 // pred_region
          %v2321 = vcombine.low %v1716, %v1718
          %v2322 = vcombine.low %v1787, %v1789
          %v2323 = vcombine.low %v1858, %v1860
          %v2324 = vcombine.low %v1929, %v1931
          %v2326 = vunpack.c.l.s4 1966171168
          %v2327 = vunpack.c.0.s8 %v2326
          %v2328 = vlaneseq
          %v2329 = vshrl.u32 %v2328, 7
          %v2330 = vsub.s32 %v2327, %v2329
          %v2331 = vrot.slane %v2321, %v2330
          %v2333 = vunpack.c.l.s4 1966171168
          %v2334 = vunpack.c.0.s8 %v2333
          %v2335 = vlaneseq
          %v2336 = vshrl.u32 %v2335, 7
          %v2337 = vsub.s32 %v2334, %v2336
          %v2338 = vrot.slane %v2322, %v2337
          %v2340 = vunpack.c.l.s4 1966171168
          %v2341 = vunpack.c.0.s8 %v2340
          %v2342 = vlaneseq
          %v2343 = vshrl.u32 %v2342, 7
          %v2344 = vsub.s32 %v2341, %v2343
          %v2345 = vrot.slane %v2323, %v2344
          %v2347 = vunpack.c.l.s4 1966171168
          %v2348 = vunpack.c.0.s8 %v2347
          %v2349 = vlaneseq
          %v2350 = vshrl.u32 %v2349, 7
          %v2351 = vsub.s32 %v2348, %v2350
          %v2352 = vrot.slane %v2324, %v2351
          %v2353 = vcombine.low %v2331, %v2338
          %v2354 = vcombine.low %v2345, %v2352
          %v2356 = vunpack.c.l.s4 1966171168
          %v2357 = vunpack.c.0.s8 %v2356
          %v2358 = vlaneseq
          %v2359 = vshrl.u32 %v2358, 7
          %v2360 = vsub.s32 %v2357, %v2359
          %v2361 = vrot.slane %v2353, %v2360
          %v2363 = vunpack.c.l.s4 1966171168
          %v2364 = vunpack.c.0.s8 %v2363
          %v2365 = vlaneseq
          %v2366 = vshrl.u32 %v2365, 7
          %v2367 = vsub.s32 %v2364, %v2366
          %v2368 = vrot.slane %v2354, %v2367
          %v2369 = vcombine.low %v2361, %v2368
          %2371 = vst [vmem:[%s587] sm:$0xff] %v2369
          %v2380 = vcombine.low %v2009, %v2022
          %v2381 = vcombine.low %v2035, %v2048
          %v2382 = vcombine.low %v2061, %v2074
          %v2383 = vcombine.low %v2087, %v2100
          %v2385 = vunpack.c.l.s4 1966171168
          %v2386 = vunpack.c.0.s8 %v2385
          %v2387 = vlaneseq
          %v2388 = vshrl.u32 %v2387, 7
          %v2389 = vsub.s32 %v2386, %v2388
          %v2390 = vrot.slane %v2380, %v2389
          %v2392 = vunpack.c.l.s4 1966171168
          %v2393 = vunpack.c.0.s8 %v2392
          %v2394 = vlaneseq
          %v2395 = vshrl.u32 %v2394, 7
          %v2396 = vsub.s32 %v2393, %v2395
          %v2397 = vrot.slane %v2381, %v2396
          %v2399 = vunpack.c.l.s4 1966171168
          %v2400 = vunpack.c.0.s8 %v2399
          %v2401 = vlaneseq
          %v2402 = vshrl.u32 %v2401, 7
          %v2403 = vsub.s32 %v2400, %v2402
          %v2404 = vrot.slane %v2382, %v2403
          %v2406 = vunpack.c.l.s4 1966171168
          %v2407 = vunpack.c.0.s8 %v2406
          %v2408 = vlaneseq
          %v2409 = vshrl.u32 %v2408, 7
          %v2410 = vsub.s32 %v2407, %v2409
          %v2411 = vrot.slane %v2383, %v2410
          %v2412 = vcombine.low %v2390, %v2397
          %v2413 = vcombine.low %v2404, %v2411
          %v2415 = vunpack.c.l.s4 1966171168
          %v2416 = vunpack.c.0.s8 %v2415
          %v2417 = vlaneseq
          %v2418 = vshrl.u32 %v2417, 7
          %v2419 = vsub.s32 %v2416, %v2418
          %v2420 = vrot.slane %v2412, %v2419
          %v2422 = vunpack.c.l.s4 1966171168
          %v2423 = vunpack.c.0.s8 %v2422
          %v2424 = vlaneseq
          %v2425 = vshrl.u32 %v2424, 7
          %v2426 = vsub.s32 %v2423, %v2425
          %v2427 = vrot.slane %v2413, %v2426
          %v2428 = vcombine.low %v2420, %v2427
          %2430 = vst [vmem:[%s591] sm:$0xff] %v2428
          %v2439 = vcombine.low %v2113, %v2126
          %v2440 = vcombine.low %v2139, %v2152
          %v2441 = vcombine.low %v2165, %v2178
          %v2442 = vcombine.low %v2191, %v2204
          %v2444 = vunpack.c.l.s4 1966171168
          %v2445 = vunpack.c.0.s8 %v2444
          %v2446 = vlaneseq
          %v2447 = vshrl.u32 %v2446, 7
          %v2448 = vsub.s32 %v2445, %v2447
          %v2449 = vrot.slane %v2439, %v2448
          %v2451 = vunpack.c.l.s4 1966171168
          %v2452 = vunpack.c.0.s8 %v2451
          %v2453 = vlaneseq
          %v2454 = vshrl.u32 %v2453, 7
          %v2455 = vsub.s32 %v2452, %v2454
          %v2456 = vrot.slane %v2440, %v2455
          %v2458 = vunpack.c.l.s4 1966171168
          %v2459 = vunpack.c.0.s8 %v2458
          %v2460 = vlaneseq
          %v2461 = vshrl.u32 %v2460, 7
          %v2462 = vsub.s32 %v2459, %v2461
          %v2463 = vrot.slane %v2441, %v2462
          %v2465 = vunpack.c.l.s4 1966171168
          %v2466 = vunpack.c.0.s8 %v2465
          %v2467 = vlaneseq
          %v2468 = vshrl.u32 %v2467, 7
          %v2469 = vsub.s32 %v2466, %v2468
          %v2470 = vrot.slane %v2442, %v2469
          %v2471 = vcombine.low %v2449, %v2456
          %v2472 = vcombine.low %v2463, %v2470
          %v2474 = vunpack.c.l.s4 1966171168
          %v2475 = vunpack.c.0.s8 %v2474
          %v2476 = vlaneseq
          %v2477 = vshrl.u32 %v2476, 7
          %v2478 = vsub.s32 %v2475, %v2477
          %v2479 = vrot.slane %v2471, %v2478
          %v2481 = vunpack.c.l.s4 1966171168
          %v2482 = vunpack.c.0.s8 %v2481
          %v2483 = vlaneseq
          %v2484 = vshrl.u32 %v2483, 7
          %v2485 = vsub.s32 %v2482, %v2484
          %v2486 = vrot.slane %v2472, %v2485
          %v2487 = vcombine.low %v2479, %v2486
          %2489 = vst [vmem:[%s595] sm:$0xff] %v2487
          %v2498 = vcombine.low %v2217, %v2230
          %v2499 = vcombine.low %v2243, %v2256
          %v2500 = vcombine.low %v2269, %v2282
          %v2501 = vcombine.low %v2295, %v2308
          %v2503 = vunpack.c.l.s4 1966171168
          %v2504 = vunpack.c.0.s8 %v2503
          %v2505 = vlaneseq
          %v2506 = vshrl.u32 %v2505, 7
          %v2507 = vsub.s32 %v2504, %v2506
          %v2508 = vrot.slane %v2498, %v2507
          %v2510 = vunpack.c.l.s4 1966171168
          %v2511 = vunpack.c.0.s8 %v2510
          %v2512 = vlaneseq
          %v2513 = vshrl.u32 %v2512, 7
          %v2514 = vsub.s32 %v2511, %v2513
          %v2515 = vrot.slane %v2499, %v2514
          %v2517 = vunpack.c.l.s4 1966171168
          %v2518 = vunpack.c.0.s8 %v2517
          %v2519 = vlaneseq
          %v2520 = vshrl.u32 %v2519, 7
          %v2521 = vsub.s32 %v2518, %v2520
          %v2522 = vrot.slane %v2500, %v2521
          %v2524 = vunpack.c.l.s4 1966171168
          %v2525 = vunpack.c.0.s8 %v2524
          %v2526 = vlaneseq
          %v2527 = vshrl.u32 %v2526, 7
          %v2528 = vsub.s32 %v2525, %v2527
          %v2529 = vrot.slane %v2501, %v2528
          %v2530 = vcombine.low %v2508, %v2515
          %v2531 = vcombine.low %v2522, %v2529
          %v2533 = vunpack.c.l.s4 1966171168
          %v2534 = vunpack.c.0.s8 %v2533
          %v2535 = vlaneseq
          %v2536 = vshrl.u32 %v2535, 7
          %v2537 = vsub.s32 %v2534, %v2536
          %v2538 = vrot.slane %v2530, %v2537
          %v2540 = vunpack.c.l.s4 1966171168
          %v2541 = vunpack.c.0.s8 %v2540
          %v2542 = vlaneseq
          %v2543 = vshrl.u32 %v2542, 7
          %v2544 = vsub.s32 %v2541, %v2543
          %v2545 = vrot.slane %v2531, %v2544
          %v2546 = vcombine.low %v2538, %v2545
          %2548 = vst [vmem:[%s599] sm:$0xff] %v2546
        $region92: #{input_transform_net.6} parent=63 // pred_fallthru
          _
        %p2549 = scmp.gt.s32.totalorder %s35, 0
        // Predicated region
        $region93: #{input_transform_net.6} parent=63 // pred_check
          %p2550 = pneg %p2549
        $region94: #{input_transform_net.6} parent=63 // pred_check_branch
          %2552 = sbr.rel (%p2550) target = $region96
        $region95: #{input_transform_net.6} parent=63 // pred_region
          %v2553 = vld [vmem:[%s587] sm:$0xff]
          %v2562 = vcombine.low %v1716, %v1718
          %v2563 = vcombine.low %v1787, %v1789
          %v2564 = vcombine.low %v1858, %v1860
          %v2565 = vcombine.low %v1929, %v1931
          %v2567 = vunpack.c.l.s4 1966171168
          %v2568 = vunpack.c.0.s8 %v2567
          %v2569 = vlaneseq
          %v2570 = vshrl.u32 %v2569, 7
          %v2571 = vsub.s32 %v2568, %v2570
          %v2572 = vrot.slane %v2562, %v2571
          %v2574 = vunpack.c.l.s4 1966171168
          %v2575 = vunpack.c.0.s8 %v2574
          %v2576 = vlaneseq
          %v2577 = vshrl.u32 %v2576, 7
          %v2578 = vsub.s32 %v2575, %v2577
          %v2579 = vrot.slane %v2563, %v2578
          %v2581 = vunpack.c.l.s4 1966171168
          %v2582 = vunpack.c.0.s8 %v2581
          %v2583 = vlaneseq
          %v2584 = vshrl.u32 %v2583, 7
          %v2585 = vsub.s32 %v2582, %v2584
          %v2586 = vrot.slane %v2564, %v2585
          %v2588 = vunpack.c.l.s4 1966171168
          %v2589 = vunpack.c.0.s8 %v2588
          %v2590 = vlaneseq
          %v2591 = vshrl.u32 %v2590, 7
          %v2592 = vsub.s32 %v2589, %v2591
          %v2593 = vrot.slane %v2565, %v2592
          %v2594 = vcombine.low %v2572, %v2579
          %v2595 = vcombine.low %v2586, %v2593
          %v2597 = vunpack.c.l.s4 1966171168
          %v2598 = vunpack.c.0.s8 %v2597
          %v2599 = vlaneseq
          %v2600 = vshrl.u32 %v2599, 7
          %v2601 = vsub.s32 %v2598, %v2600
          %v2602 = vrot.slane %v2594, %v2601
          %v2604 = vunpack.c.l.s4 1966171168
          %v2605 = vunpack.c.0.s8 %v2604
          %v2606 = vlaneseq
          %v2607 = vshrl.u32 %v2606, 7
          %v2608 = vsub.s32 %v2605, %v2607
          %v2609 = vrot.slane %v2595, %v2608
          %v2610 = vcombine.low %v2602, %v2609
          %v2612 = vadd.f32 %v2553, %v2610
          %2613 = vst [vmem:[%s587] sm:$0xff] %v2612
          %v2614 = vld [vmem:[%s591] sm:$0xff]
          %v2623 = vcombine.low %v2009, %v2022
          %v2624 = vcombine.low %v2035, %v2048
          %v2625 = vcombine.low %v2061, %v2074
          %v2626 = vcombine.low %v2087, %v2100
          %v2628 = vunpack.c.l.s4 1966171168
          %v2629 = vunpack.c.0.s8 %v2628
          %v2630 = vlaneseq
          %v2631 = vshrl.u32 %v2630, 7
          %v2632 = vsub.s32 %v2629, %v2631
          %v2633 = vrot.slane %v2623, %v2632
          %v2635 = vunpack.c.l.s4 1966171168
          %v2636 = vunpack.c.0.s8 %v2635
          %v2637 = vlaneseq
          %v2638 = vshrl.u32 %v2637, 7
          %v2639 = vsub.s32 %v2636, %v2638
          %v2640 = vrot.slane %v2624, %v2639
          %v2642 = vunpack.c.l.s4 1966171168
          %v2643 = vunpack.c.0.s8 %v2642
          %v2644 = vlaneseq
          %v2645 = vshrl.u32 %v2644, 7
          %v2646 = vsub.s32 %v2643, %v2645
          %v2647 = vrot.slane %v2625, %v2646
          %v2649 = vunpack.c.l.s4 1966171168
          %v2650 = vunpack.c.0.s8 %v2649
          %v2651 = vlaneseq
          %v2652 = vshrl.u32 %v2651, 7
          %v2653 = vsub.s32 %v2650, %v2652
          %v2654 = vrot.slane %v2626, %v2653
          %v2655 = vcombine.low %v2633, %v2640
          %v2656 = vcombine.low %v2647, %v2654
          %v2658 = vunpack.c.l.s4 1966171168
          %v2659 = vunpack.c.0.s8 %v2658
          %v2660 = vlaneseq
          %v2661 = vshrl.u32 %v2660, 7
          %v2662 = vsub.s32 %v2659, %v2661
          %v2663 = vrot.slane %v2655, %v2662
          %v2665 = vunpack.c.l.s4 1966171168
          %v2666 = vunpack.c.0.s8 %v2665
          %v2667 = vlaneseq
          %v2668 = vshrl.u32 %v2667, 7
          %v2669 = vsub.s32 %v2666, %v2668
          %v2670 = vrot.slane %v2656, %v2669
          %v2671 = vcombine.low %v2663, %v2670
          %v2673 = vadd.f32 %v2614, %v2671
          %2674 = vst [vmem:[%s591] sm:$0xff] %v2673
          %v2675 = vld [vmem:[%s595] sm:$0xff]
          %v2684 = vcombine.low %v2113, %v2126
          %v2685 = vcombine.low %v2139, %v2152
          %v2686 = vcombine.low %v2165, %v2178
          %v2687 = vcombine.low %v2191, %v2204
          %v2689 = vunpack.c.l.s4 1966171168
          %v2690 = vunpack.c.0.s8 %v2689
          %v2691 = vlaneseq
          %v2692 = vshrl.u32 %v2691, 7
          %v2693 = vsub.s32 %v2690, %v2692
          %v2694 = vrot.slane %v2684, %v2693
          %v2696 = vunpack.c.l.s4 1966171168
          %v2697 = vunpack.c.0.s8 %v2696
          %v2698 = vlaneseq
          %v2699 = vshrl.u32 %v2698, 7
          %v2700 = vsub.s32 %v2697, %v2699
          %v2701 = vrot.slane %v2685, %v2700
          %v2703 = vunpack.c.l.s4 1966171168
          %v2704 = vunpack.c.0.s8 %v2703
          %v2705 = vlaneseq
          %v2706 = vshrl.u32 %v2705, 7
          %v2707 = vsub.s32 %v2704, %v2706
          %v2708 = vrot.slane %v2686, %v2707
          %v2710 = vunpack.c.l.s4 1966171168
          %v2711 = vunpack.c.0.s8 %v2710
          %v2712 = vlaneseq
          %v2713 = vshrl.u32 %v2712, 7
          %v2714 = vsub.s32 %v2711, %v2713
          %v2715 = vrot.slane %v2687, %v2714
          %v2716 = vcombine.low %v2694, %v2701
          %v2717 = vcombine.low %v2708, %v2715
          %v2719 = vunpack.c.l.s4 1966171168
          %v2720 = vunpack.c.0.s8 %v2719
          %v2721 = vlaneseq
          %v2722 = vshrl.u32 %v2721, 7
          %v2723 = vsub.s32 %v2720, %v2722
          %v2724 = vrot.slane %v2716, %v2723
          %v2726 = vunpack.c.l.s4 1966171168
          %v2727 = vunpack.c.0.s8 %v2726
          %v2728 = vlaneseq
          %v2729 = vshrl.u32 %v2728, 7
          %v2730 = vsub.s32 %v2727, %v2729
          %v2731 = vrot.slane %v2717, %v2730
          %v2732 = vcombine.low %v2724, %v2731
          %v2734 = vmax.f32 %v2675, %v2732
          %2735 = vst [vmem:[%s595] sm:$0xff] %v2734
          %v2736 = vld [vmem:[%s599] sm:$0xff]
          %v2745 = vcombine.low %v2217, %v2230
          %v2746 = vcombine.low %v2243, %v2256
          %v2747 = vcombine.low %v2269, %v2282
          %v2748 = vcombine.low %v2295, %v2308
          %v2750 = vunpack.c.l.s4 1966171168
          %v2751 = vunpack.c.0.s8 %v2750
          %v2752 = vlaneseq
          %v2753 = vshrl.u32 %v2752, 7
          %v2754 = vsub.s32 %v2751, %v2753
          %v2755 = vrot.slane %v2745, %v2754
          %v2757 = vunpack.c.l.s4 1966171168
          %v2758 = vunpack.c.0.s8 %v2757
          %v2759 = vlaneseq
          %v2760 = vshrl.u32 %v2759, 7
          %v2761 = vsub.s32 %v2758, %v2760
          %v2762 = vrot.slane %v2746, %v2761
          %v2764 = vunpack.c.l.s4 1966171168
          %v2765 = vunpack.c.0.s8 %v2764
          %v2766 = vlaneseq
          %v2767 = vshrl.u32 %v2766, 7
          %v2768 = vsub.s32 %v2765, %v2767
          %v2769 = vrot.slane %v2747, %v2768
          %v2771 = vunpack.c.l.s4 1966171168
          %v2772 = vunpack.c.0.s8 %v2771
          %v2773 = vlaneseq
          %v2774 = vshrl.u32 %v2773, 7
          %v2775 = vsub.s32 %v2772, %v2774
          %v2776 = vrot.slane %v2748, %v2775
          %v2777 = vcombine.low %v2755, %v2762
          %v2778 = vcombine.low %v2769, %v2776
          %v2780 = vunpack.c.l.s4 1966171168
          %v2781 = vunpack.c.0.s8 %v2780
          %v2782 = vlaneseq
          %v2783 = vshrl.u32 %v2782, 7
          %v2784 = vsub.s32 %v2781, %v2783
          %v2785 = vrot.slane %v2777, %v2784
          %v2787 = vunpack.c.l.s4 1966171168
          %v2788 = vunpack.c.0.s8 %v2787
          %v2789 = vlaneseq
          %v2790 = vshrl.u32 %v2789, 7
          %v2791 = vsub.s32 %v2788, %v2790
          %v2792 = vrot.slane %v2778, %v2791
          %v2793 = vcombine.low %v2785, %v2792
          %v2795 = vmin.f32 %v2736, %v2793
          %2796 = vst [vmem:[%s599] sm:$0xff] %v2795
        $region96: #{input_transform_net.6} parent=63 // pred_fallthru
          _
        %p2797 = scmp.lt.s32.totalorder %s34, 3
        %s2798 = scalar_select %p2797, %s34, 3
        %s2799 = smul.addr %s2798, 8
        %s2800 = scalar_lea.vmem %s11, %s2799
        %p2801 = scmp.lt.s32.totalorder %s34, 3
        %s2802 = scalar_select %p2801, %s34, 3
        %s2803 = smul.addr %s2802, 8
        %s2804 = scalar_lea.vmem %s12, %s2803
        %p2805 = scmp.lt.s32.totalorder %s34, 3
        %s2806 = scalar_select %p2805, %s34, 3
        %s2807 = smul.addr %s2806, 8
        %s2808 = scalar_lea.vmem %s13, %s2807
        %p2809 = scmp.lt.s32.totalorder %s34, 3
        %s2810 = scalar_select %p2809, %s34, 3
        %s2811 = smul.addr %s2810, 8
        %s2812 = scalar_lea.vmem %s14, %s2811
        // Predicated region
        $region97: #{input_transform_net.6} parent=63 // pred_check
          %p2813 = pneg %p298
        $region98: #{input_transform_net.6} parent=63 // pred_check_branch
          %2815 = sbr.rel (%p2813) target = $region100
        $region99: #{input_transform_net.6} parent=63 // pred_region
          _
        $region100: #{input_transform_net.6} parent=63 // pred_fallthru
          _
        // Predicated region
        $region101: #{input_transform_net.6} parent=63 // pred_check
          %p2816 = pneg %p324
        $region102: #{input_transform_net.6} parent=63 // pred_check_branch
          %2818 = sbr.rel (%p2816) target = $region104
        $region103: #{input_transform_net.6} parent=63 // pred_region
          _
        $region104: #{input_transform_net.6} parent=63 // pred_fallthru
          _
        // Predicated region
        $region105: #{input_transform_net.6} parent=63 // pred_check
          %p2819 = pneg %p350
        $region106: #{input_transform_net.6} parent=63 // pred_check_branch
          %2821 = sbr.rel (%p2819) target = $region108
        $region107: #{input_transform_net.6} parent=63 // pred_region
          _
        $region108: #{input_transform_net.6} parent=63 // pred_fallthru
          _
        // Predicated region
        $region109: #{input_transform_net.6} parent=63 // pred_check
          %p2822 = pneg %p376
        $region110: #{input_transform_net.6} parent=63 // pred_check_branch
          %2824 = sbr.rel (%p2822) target = $region112
        $region111: #{input_transform_net.6} parent=63 // pred_region
          _
        $region112: #{input_transform_net.6} parent=63 // pred_fallthru
          _
      $region64: #{input_transform_net.6} parent=5 // pred_fallthru
        _
      %p2825 = scmp.le.s32.totalorder 2, %s25
      // Predicated region
      $region113: #{input_transform_net.6} parent=5 // pred_check
        %p2826 = pneg %p2825
      $region114: #{input_transform_net.6} parent=5 // pred_check_branch
        %2828 = sbr.rel (%p2826) target = $region116
      $region115: #{input_transform_net.6} parent=5 // pred_region
        %s2829 = ssub.s32 %s25, 2
        // Predicated region
        $region117: #{input_transform_net.6} parent=115 // pred_check
          %p2830 = pneg %p304
        $region118: #{input_transform_net.6} parent=115 // pred_check_branch
          %2832 = sbr.rel (%p2830) target = $region120
        $region119: #{input_transform_net.6} parent=115 // pred_region
          %p2833 = scmp.lt.s32.totalorder %s36, 3
          %s2834 = scalar_select %p2833, %s36, 3
          %s2835 = smul.addr %s2834, 8
          %s2836 = scalar_lea.vmem %s11, %s2835
        $region120: #{input_transform_net.6} parent=115 // pred_fallthru
          _
        // Predicated region
        $region121: #{input_transform_net.6} parent=115 // pred_check
          %p2837 = pneg %p330
        $region122: #{input_transform_net.6} parent=115 // pred_check_branch
          %2839 = sbr.rel (%p2837) target = $region124
        $region123: #{input_transform_net.6} parent=115 // pred_region
          %p2840 = scmp.lt.s32.totalorder %s36, 3
          %s2841 = scalar_select %p2840, %s36, 3
          %s2842 = smul.addr %s2841, 8
          %s2843 = scalar_lea.vmem %s12, %s2842
        $region124: #{input_transform_net.6} parent=115 // pred_fallthru
          _
        // Predicated region
        $region125: #{input_transform_net.6} parent=115 // pred_check
          %p2844 = pneg %p356
        $region126: #{input_transform_net.6} parent=115 // pred_check_branch
          %2846 = sbr.rel (%p2844) target = $region128
        $region127: #{input_transform_net.6} parent=115 // pred_region
          %p2847 = scmp.lt.s32.totalorder %s36, 3
          %s2848 = scalar_select %p2847, %s36, 3
          %s2849 = smul.addr %s2848, 8
          %s2850 = scalar_lea.vmem %s13, %s2849
        $region128: #{input_transform_net.6} parent=115 // pred_fallthru
          _
        // Predicated region
        $region129: #{input_transform_net.6} parent=115 // pred_check
          %p2851 = pneg %p382
        $region130: #{input_transform_net.6} parent=115 // pred_check_branch
          %2853 = sbr.rel (%p2851) target = $region132
        $region131: #{input_transform_net.6} parent=115 // pred_region
          %p2854 = scmp.lt.s32.totalorder %s36, 3
          %s2855 = scalar_select %p2854, %s36, 3
          %s2856 = smul.addr %s2855, 8
          %s2857 = scalar_lea.vmem %s14, %s2856
        $region132: #{input_transform_net.6} parent=115 // pred_fallthru
          _
      $region116: #{input_transform_net.6} parent=5 // pred_fallthru
        _
    $region6: #{input_transform_net.6} parent=1 // loop_footer
      %s29 = sadd.s32 1, %s25
    $region7: #{input_transform_net.6} parent=1 // loop_footer_branch
      %24 = sbr.rel target = $region3
    $region8: #{input_transform_net.6} parent=1 // loop_exit
      _
    %2858 = vsyncpa [#allocation3], 1
    %s2859 = scalar_lea.sflag [#allocation3], 1
    %2860 = vsyncpa %s2859, 1
    %2861 = vsyncpa [#allocation5], 1
    %2862 = vsyncpa [#allocation8], 1
    %2863 = vsyncpa [#allocation11], 1

// kernel: input_transform_net.7
$region0: #{input_transform_net.7}
  #allocation0 [shape = 'u32[]', space=smem, size = 0x4, offset = 0x4, fixed_abs, tag = 'smem constant byte address 0x4 - core index']
  #allocation1 [shape = 'u32[144,128]{1,0:T(1,128)}', space=vmem, size = 0x12000, scoped, tag = 'internal scratch']
  %s0 = inlined_call_operand.vmem [shape: f32[4,1024], index: 0, kind: input, shape index: {}]
  %s1 = inlined_call_operand.vmem [shape: f32[4,1024], index: 1, kind: input, shape index: {}]
  %s2 = inlined_call_operand.vmem [shape: f32[1,1024], index: 2, kind: input, shape index: {}]
  %s3 = inlined_call_operand.vmem [shape: f32[1,1024], index: 3, kind: input, shape index: {}]
  %s4 = inlined_call_operand.hbm [shape: f32[1024,512], index: 4, kind: input, shape index: {}]
  %s5 = inlined_call_operand.vmem [shape: f32[1,512], index: 5, kind: input, shape index: {}]
  %s6 = inlined_call_operand.vmem [shape: f32[1,512], index: 6, kind: input, shape index: {}]
  %s7 = inlined_call_operand.vmem [shape: f32[1,512], index: 7, kind: input, shape index: {}]
  %s8 = inlined_call_operand.vmem [shape: f32[512,256], index: 8, kind: input, shape index: {}]
  %s9 = inlined_call_operand.vmem [shape: f32[1,256], index: 9, kind: input, shape index: {}]
  %s10 = inlined_call_operand.vmem [shape: f32[1,256], index: 10, kind: input, shape index: {}]
  %s11 = inlined_call_operand.vmem [shape: f32[1,256], index: 11, kind: input, shape index: {}]
  %s12 = inlined_call_operand.vmem [shape: f32[256,128], index: 12, kind: input, shape index: {}]
  %s13 = inlined_call_operand.vmem [shape: f32[1,128], index: 13, kind: input, shape index: {}]
  %s14 = inlined_call_operand.vmem [shape: f32[4,128], index: 14, kind: output, shape index: {}]
  %s15 = sld [smem:[#allocation0]]
  $region70: #{input_transform_net.7} parent=0
    _
  %s17 = ssub.s32 1, %s15
  %s18 = scalar_select 0, %s17, %s15
  $region1: #{input_transform_net.7} parent=0
    #allocation2 [shape = 'u8[2097152]{0}', space=vmem, size = 0x200000, scoped, tag = 'input window, operand 4, single buffered']
    #allocation3 [shape = 's32[1]{0}', space=sflag, size = 0x4, scoped, tag = 'scoped memory for input_transform_net.7']
    %19 = vsyncpa [#allocation3], 0
    // Predicated region
    $region2: #{input_transform_net.7} parent=1 // pred_check
      _
    $region3: #{input_transform_net.7} parent=1 // pred_check_branch
      %21 = sbr.rel (0) target = $region5
    $region4: #{input_transform_net.7} parent=1 // pred_region
      _
    $region5: #{input_transform_net.7} parent=1 // pred_fallthru
      _
    // Predicated region
    $region6: #{input_transform_net.7} parent=1 // pred_check
      _
    $region7: #{input_transform_net.7} parent=1 // pred_check_branch
      %23 = sbr.rel (0) target = $region9
    $region8: #{input_transform_net.7} parent=1 // pred_region
      _
    $region9: #{input_transform_net.7} parent=1 // pred_fallthru
      _
    // Predicated region
    $region10: #{input_transform_net.7} parent=1 // pred_check
      _
    $region11: #{input_transform_net.7} parent=1 // pred_check_branch
      %25 = sbr.rel (0) target = $region13
    $region12: #{input_transform_net.7} parent=1 // pred_region
      _
    $region13: #{input_transform_net.7} parent=1 // pred_fallthru
      _
    // Predicated region
    $region14: #{input_transform_net.7} parent=1 // pred_check
      _
    $region15: #{input_transform_net.7} parent=1 // pred_check_branch
      %27 = sbr.rel (0) target = $region17
    $region16: #{input_transform_net.7} parent=1 // pred_region
      _
    $region17: #{input_transform_net.7} parent=1 // pred_fallthru
      _
    // Predicated region
    $region18: #{input_transform_net.7} parent=1 // pred_check
      _
    $region19: #{input_transform_net.7} parent=1 // pred_check_branch
      %29 = sbr.rel (0) target = $region21
    $region20: #{input_transform_net.7} parent=1 // pred_region
      %s31 = ssub.s32 65536, 65536
      %32 = vsyncadd [#allocation3], %s31
      %s33 = sshll.u32 [#allocation2], 4
      %s34 = int_to_ptr.vmem [resolvable:$true] %s33
      %39 = dma.hbm_to_vmem [thread:$0]  %s4, 65536, %s34, [#allocation3], 512, 512, 32
    $region21: #{input_transform_net.7} parent=1 // pred_fallthru
      _
    // Predicated region
    $region22: #{input_transform_net.7} parent=1 // pred_check
      _
    $region23: #{input_transform_net.7} parent=1 // pred_check_branch
      %41 = sbr.rel (0) target = $region25
    $region24: #{input_transform_net.7} parent=1 // pred_region
      _
    $region25: #{input_transform_net.7} parent=1 // pred_fallthru
      _
    // Predicated region
    $region26: #{input_transform_net.7} parent=1 // pred_check
      _
    $region27: #{input_transform_net.7} parent=1 // pred_check_branch
      %43 = sbr.rel (0) target = $region29
    $region28: #{input_transform_net.7} parent=1 // pred_region
      _
    $region29: #{input_transform_net.7} parent=1 // pred_fallthru
      _
    // Predicated region
    $region30: #{input_transform_net.7} parent=1 // pred_check
      _
    $region31: #{input_transform_net.7} parent=1 // pred_check_branch
      %45 = sbr.rel (0) target = $region33
    $region32: #{input_transform_net.7} parent=1 // pred_region
      _
    $region33: #{input_transform_net.7} parent=1 // pred_fallthru
      _
    // Predicated region
    $region34: #{input_transform_net.7} parent=1 // pred_check
      _
    $region35: #{input_transform_net.7} parent=1 // pred_check_branch
      %47 = sbr.rel (0) target = $region37
    $region36: #{input_transform_net.7} parent=1 // pred_region
      _
    $region37: #{input_transform_net.7} parent=1 // pred_fallthru
      _
    // Predicated region
    $region38: #{input_transform_net.7} parent=1 // pred_check
      _
    $region39: #{input_transform_net.7} parent=1 // pred_check_branch
      %49 = sbr.rel (0) target = $region41
    $region40: #{input_transform_net.7} parent=1 // pred_region
      _
    $region41: #{input_transform_net.7} parent=1 // pred_fallthru
      _
    // Predicated region
    $region42: #{input_transform_net.7} parent=1 // pred_check
      _
    $region43: #{input_transform_net.7} parent=1 // pred_check_branch
      %51 = sbr.rel (0) target = $region45
    $region44: #{input_transform_net.7} parent=1 // pred_region
      _
    $region45: #{input_transform_net.7} parent=1 // pred_fallthru
      _
    // Predicated region
    $region46: #{input_transform_net.7} parent=1 // pred_check
      _
    $region47: #{input_transform_net.7} parent=1 // pred_check_branch
      %53 = sbr.rel (0) target = $region49
    $region48: #{input_transform_net.7} parent=1 // pred_region
      _
    $region49: #{input_transform_net.7} parent=1 // pred_fallthru
      _
    // Predicated region
    $region50: #{input_transform_net.7} parent=1 // pred_check
      _
    $region51: #{input_transform_net.7} parent=1 // pred_check_branch
      %55 = sbr.rel (0) target = $region53
    $region52: #{input_transform_net.7} parent=1 // pred_region
      _
    $region53: #{input_transform_net.7} parent=1 // pred_fallthru
      _
    // Predicated region
    $region54: #{input_transform_net.7} parent=1 // pred_check
      _
    $region55: #{input_transform_net.7} parent=1 // pred_check_branch
      %57 = sbr.rel (0) target = $region57
    $region56: #{input_transform_net.7} parent=1 // pred_region
      _
    $region57: #{input_transform_net.7} parent=1 // pred_fallthru
      _
    // Predicated region
    $region58: #{input_transform_net.7} parent=1 // pred_check
      _
    $region59: #{input_transform_net.7} parent=1 // pred_check_branch
      %59 = sbr.rel (0) target = $region61
    $region60: #{input_transform_net.7} parent=1 // pred_region
      %60 = dma.done [#allocation3], 65536
    $region61: #{input_transform_net.7} parent=1 // pred_fallthru
      _
    %v61 = vld [vmem:[%s2] sm:$0xff]
    %v62 = vld [vmem:[%s3] sm:$0xff]
    %vm63 = vcmp.ge.f32.partialorder %v61, 0.0
    %v64 = vld [vmem:[%s0] sm:$0xff]
    %v65 = vld [vmem:[%s0 + $0x8] sm:$0xff]
    %v66 = vld [vmem:[%s0 + $0x10] sm:$0xff]
    %v67 = vld [vmem:[%s0 + $0x18] sm:$0xff]
    %v69 = vlaneseq
    %v70 = vshrl.u32 %v69, 7
    %v71 = vsub.s32 0, %v70
    %v72 = vrot.slane %v61, %v71
    %v73 = vlaneseq
    %v74 = vshrl.u32 %v73, 7
    %v75 = vsub.s32 1, %v74
    %v76 = vrot.slane %v61, %v75
    %v77 = vlaneseq
    %v78 = vshrl.u32 %v77, 7
    %v79 = vsub.s32 2, %v78
    %v80 = vrot.slane %v61, %v79
    %v81 = vlaneseq
    %v82 = vshrl.u32 %v81, 7
    %v83 = vsub.s32 3, %v82
    %v84 = vrot.slane %v61, %v83
    %v85 = vlaneseq
    %v86 = vshrl.u32 %v85, 7
    %v87 = vsub.s32 4, %v86
    %v88 = vrot.slane %v61, %v87
    %v89 = vlaneseq
    %v90 = vshrl.u32 %v89, 7
    %v91 = vsub.s32 5, %v90
    %v92 = vrot.slane %v61, %v91
    %v93 = vlaneseq
    %v94 = vshrl.u32 %v93, 7
    %v95 = vsub.s32 6, %v94
    %v96 = vrot.slane %v61, %v95
    %v97 = vlaneseq
    %v98 = vshrl.u32 %v97, 7
    %v99 = vsub.s32 7, %v98
    %v100 = vrot.slane %v61, %v99
    %v101 = vcombine.low %v72, %v76
    %v102 = vcombine.low %v80, %v84
    %v103 = vcombine.low %v88, %v92
    %v104 = vcombine.low %v96, %v100
    %v109 = vmul.f32 %v64, %v101
    %v110 = vmul.f32 %v65, %v102
    %v111 = vmul.f32 %v66, %v103
    %v112 = vmul.f32 %v67, %v104
    %v113 = vld [vmem:[%s1] sm:$0xff]
    %v114 = vld [vmem:[%s1 + $0x8] sm:$0xff]
    %v115 = vld [vmem:[%s1 + $0x10] sm:$0xff]
    %v116 = vld [vmem:[%s1 + $0x18] sm:$0xff]
    %v117 = vmul.f32 %v113, %v101
    %v118 = vmul.f32 %v114, %v102
    %v119 = vmul.f32 %v115, %v103
    %v120 = vmul.f32 %v116, %v104
    %v121 = vsel %vm63, 1, 0
    %v122 = vlaneseq
    %v123 = vshrl.u32 %v122, 7
    %v124 = vsub.s32 0, %v123
    %v125 = vrot.slane %v121, %v124
    %v126 = vlaneseq
    %v127 = vshrl.u32 %v126, 7
    %v128 = vsub.s32 1, %v127
    %v129 = vrot.slane %v121, %v128
    %v130 = vlaneseq
    %v131 = vshrl.u32 %v130, 7
    %v132 = vsub.s32 2, %v131
    %v133 = vrot.slane %v121, %v132
    %v134 = vlaneseq
    %v135 = vshrl.u32 %v134, 7
    %v136 = vsub.s32 3, %v135
    %v137 = vrot.slane %v121, %v136
    %v138 = vlaneseq
    %v139 = vshrl.u32 %v138, 7
    %v140 = vsub.s32 4, %v139
    %v141 = vrot.slane %v121, %v140
    %v142 = vlaneseq
    %v143 = vshrl.u32 %v142, 7
    %v144 = vsub.s32 5, %v143
    %v145 = vrot.slane %v121, %v144
    %v146 = vlaneseq
    %v147 = vshrl.u32 %v146, 7
    %v148 = vsub.s32 6, %v147
    %v149 = vrot.slane %v121, %v148
    %v150 = vlaneseq
    %v151 = vshrl.u32 %v150, 7
    %v152 = vsub.s32 7, %v151
    %v153 = vrot.slane %v121, %v152
    %vm154 = vcmp.eq.s32.totalorder %v125, 1
    %vm155 = vcmp.eq.s32.totalorder %v129, 1
    %vm156 = vcmp.eq.s32.totalorder %v133, 1
    %vm157 = vcmp.eq.s32.totalorder %v137, 1
    %vm158 = vcmp.eq.s32.totalorder %v141, 1
    %vm159 = vcmp.eq.s32.totalorder %v145, 1
    %vm160 = vcmp.eq.s32.totalorder %v149, 1
    %vm161 = vcmp.eq.s32.totalorder %v153, 1
    %v166 = vcombine.high %v109, %v109
    %v167 = vcombine.high %v110, %v110
    %v168 = vcombine.high %v111, %v111
    %v169 = vcombine.high %v112, %v112
    %v178 = vcombine.high %v117, %v117
    %v179 = vcombine.high %v118, %v118
    %v180 = vcombine.high %v119, %v119
    %v181 = vcombine.high %v120, %v120
    %v186 = vsel %vm154, %v109, %v117
    %v187 = vsel %vm155, %v166, %v178
    %v188 = vsel %vm156, %v110, %v118
    %v189 = vsel %vm157, %v167, %v179
    %v190 = vsel %vm158, %v111, %v119
    %v191 = vsel %vm159, %v168, %v180
    %v192 = vsel %vm160, %v112, %v120
    %v193 = vsel %vm161, %v169, %v181
    %v195 = vlaneseq
    %v196 = vshrl.u32 %v195, 7
    %v197 = vsub.s32 0, %v196
    %v198 = vrot.slane %v62, %v197
    %v199 = vlaneseq
    %v200 = vshrl.u32 %v199, 7
    %v201 = vsub.s32 1, %v200
    %v202 = vrot.slane %v62, %v201
    %v203 = vlaneseq
    %v204 = vshrl.u32 %v203, 7
    %v205 = vsub.s32 2, %v204
    %v206 = vrot.slane %v62, %v205
    %v207 = vlaneseq
    %v208 = vshrl.u32 %v207, 7
    %v209 = vsub.s32 3, %v208
    %v210 = vrot.slane %v62, %v209
    %v211 = vlaneseq
    %v212 = vshrl.u32 %v211, 7
    %v213 = vsub.s32 4, %v212
    %v214 = vrot.slane %v62, %v213
    %v215 = vlaneseq
    %v216 = vshrl.u32 %v215, 7
    %v217 = vsub.s32 5, %v216
    %v218 = vrot.slane %v62, %v217
    %v219 = vlaneseq
    %v220 = vshrl.u32 %v219, 7
    %v221 = vsub.s32 6, %v220
    %v222 = vrot.slane %v62, %v221
    %v223 = vlaneseq
    %v224 = vshrl.u32 %v223, 7
    %v225 = vsub.s32 7, %v224
    %v226 = vrot.slane %v62, %v225
    %v235 = vadd.f32 %v186, %v198
    %v236 = vadd.f32 %v187, %v202
    %v237 = vadd.f32 %v188, %v206
    %v238 = vadd.f32 %v189, %v210
    %v239 = vadd.f32 %v190, %v214
    %v240 = vadd.f32 %v191, %v218
    %v241 = vadd.f32 %v192, %v222
    %v242 = vadd.f32 %v193, %v226
    %v243 = vmax.f32 %v235, 0.0
    %v244 = vmax.f32 %v236, 0.0
    %v245 = vmax.f32 %v237, 0.0
    %v246 = vmax.f32 %v238, 0.0
    %v247 = vmax.f32 %v239, 0.0
    %v248 = vmax.f32 %v240, 0.0
    %v249 = vmax.f32 %v241, 0.0
    %v250 = vmax.f32 %v242, 0.0
    %v251 = vld [vmem:[#allocation2] sm:$0xff]
    %v252 = vld [vmem:[#allocation2 + $0x8] sm:$0xff]
    %v253 = vld [vmem:[#allocation2 + $0x10] sm:$0xff]
    %v254 = vld [vmem:[#allocation2 + $0x18] sm:$0xff]
    %v255 = vld [vmem:[#allocation2 + $0x20] sm:$0xff]
    %v256 = vld [vmem:[#allocation2 + $0x28] sm:$0xff]
    %v257 = vld [vmem:[#allocation2 + $0x30] sm:$0xff]
    %v258 = vld [vmem:[#allocation2 + $0x38] sm:$0xff]
    %v259 = vld [vmem:[#allocation2 + $0x40] sm:$0xff]
    %v260 = vld [vmem:[#allocation2 + $0x48] sm:$0xff]
    %v261 = vld [vmem:[#allocation2 + $0x50] sm:$0xff]
    %v262 = vld [vmem:[#allocation2 + $0x58] sm:$0xff]
    %v263 = vld [vmem:[#allocation2 + $0x60] sm:$0xff]
    %v264 = vld [vmem:[#allocation2 + $0x68] sm:$0xff]
    %v265 = vld [vmem:[#allocation2 + $0x70] sm:$0xff]
    %v266 = vld [vmem:[#allocation2 + $0x78] sm:$0xff]
    %v267 = vld [vmem:[#allocation2 + $0x80] sm:$0xff]
    %v268 = vld [vmem:[#allocation2 + $0x88] sm:$0xff]
    %v269 = vld [vmem:[#allocation2 + $0x90] sm:$0xff]
    %v270 = vld [vmem:[#allocation2 + $0x98] sm:$0xff]
    %v271 = vld [vmem:[#allocation2 + $0xa0] sm:$0xff]
    %v272 = vld [vmem:[#allocation2 + $0xa8] sm:$0xff]
    %v273 = vld [vmem:[#allocation2 + $0xb0] sm:$0xff]
    %v274 = vld [vmem:[#allocation2 + $0xb8] sm:$0xff]
    %v275 = vld [vmem:[#allocation2 + $0xc0] sm:$0xff]
    %v276 = vld [vmem:[#allocation2 + $0xc8] sm:$0xff]
    %v277 = vld [vmem:[#allocation2 + $0xd0] sm:$0xff]
    %v278 = vld [vmem:[#allocation2 + $0xd8] sm:$0xff]
    %v279 = vld [vmem:[#allocation2 + $0xe0] sm:$0xff]
    %v280 = vld [vmem:[#allocation2 + $0xe8] sm:$0xff]
    %v281 = vld [vmem:[#allocation2 + $0xf0] sm:$0xff]
    %v282 = vld [vmem:[#allocation2 + $0xf8] sm:$0xff]
    %v283 = vld [vmem:[#allocation2 + $0x100] sm:$0xff]
    %v284 = vld [vmem:[#allocation2 + $0x108] sm:$0xff]
    %v285 = vld [vmem:[#allocation2 + $0x110] sm:$0xff]
    %v286 = vld [vmem:[#allocation2 + $0x118] sm:$0xff]
    %v287 = vld [vmem:[#allocation2 + $0x120] sm:$0xff]
    %v288 = vld [vmem:[#allocation2 + $0x128] sm:$0xff]
    %v289 = vld [vmem:[#allocation2 + $0x130] sm:$0xff]
    %v290 = vld [vmem:[#allocation2 + $0x138] sm:$0xff]
    %v291 = vld [vmem:[#allocation2 + $0x140] sm:$0xff]
    %v292 = vld [vmem:[#allocation2 + $0x148] sm:$0xff]
    %v293 = vld [vmem:[#allocation2 + $0x150] sm:$0xff]
    %v294 = vld [vmem:[#allocation2 + $0x158] sm:$0xff]
    %v295 = vld [vmem:[#allocation2 + $0x160] sm:$0xff]
    %v296 = vld [vmem:[#allocation2 + $0x168] sm:$0xff]
    %v297 = vld [vmem:[#allocation2 + $0x170] sm:$0xff]
    %v298 = vld [vmem:[#allocation2 + $0x178] sm:$0xff]
    %v299 = vld [vmem:[#allocation2 + $0x180] sm:$0xff]
    %v300 = vld [vmem:[#allocation2 + $0x188] sm:$0xff]
    %v301 = vld [vmem:[#allocation2 + $0x190] sm:$0xff]
    %v302 = vld [vmem:[#allocation2 + $0x198] sm:$0xff]
    %v303 = vld [vmem:[#allocation2 + $0x1a0] sm:$0xff]
    %v304 = vld [vmem:[#allocation2 + $0x1a8] sm:$0xff]
    %v305 = vld [vmem:[#allocation2 + $0x1b0] sm:$0xff]
    %v306 = vld [vmem:[#allocation2 + $0x1b8] sm:$0xff]
    %v307 = vld [vmem:[#allocation2 + $0x1c0] sm:$0xff]
    %v308 = vld [vmem:[#allocation2 + $0x1c8] sm:$0xff]
    %v309 = vld [vmem:[#allocation2 + $0x1d0] sm:$0xff]
    %v310 = vld [vmem:[#allocation2 + $0x1d8] sm:$0xff]
    %v311 = vld [vmem:[#allocation2 + $0x1e0] sm:$0xff]
    %v312 = vld [vmem:[#allocation2 + $0x1e8] sm:$0xff]
    %v313 = vld [vmem:[#allocation2 + $0x1f0] sm:$0xff]
    %v314 = vld [vmem:[#allocation2 + $0x1f8] sm:$0xff]
    %v315 = vld [vmem:[#allocation2 + $0x200] sm:$0xff]
    %v316 = vld [vmem:[#allocation2 + $0x208] sm:$0xff]
    %v317 = vld [vmem:[#allocation2 + $0x210] sm:$0xff]
    %v318 = vld [vmem:[#allocation2 + $0x218] sm:$0xff]
    %v319 = vld [vmem:[#allocation2 + $0x220] sm:$0xff]
    %v320 = vld [vmem:[#allocation2 + $0x228] sm:$0xff]
    %v321 = vld [vmem:[#allocation2 + $0x230] sm:$0xff]
    %v322 = vld [vmem:[#allocation2 + $0x238] sm:$0xff]
    %v323 = vld [vmem:[#allocation2 + $0x240] sm:$0xff]
    %v324 = vld [vmem:[#allocation2 + $0x248] sm:$0xff]
    %v325 = vld [vmem:[#allocation2 + $0x250] sm:$0xff]
    %v326 = vld [vmem:[#allocation2 + $0x258] sm:$0xff]
    %v327 = vld [vmem:[#allocation2 + $0x260] sm:$0xff]
    %v328 = vld [vmem:[#allocation2 + $0x268] sm:$0xff]
    %v329 = vld [vmem:[#allocation2 + $0x270] sm:$0xff]
    %v330 = vld [vmem:[#allocation2 + $0x278] sm:$0xff]
    %v331 = vld [vmem:[#allocation2 + $0x280] sm:$0xff]
    %v332 = vld [vmem:[#allocation2 + $0x288] sm:$0xff]
    %v333 = vld [vmem:[#allocation2 + $0x290] sm:$0xff]
    %v334 = vld [vmem:[#allocation2 + $0x298] sm:$0xff]
    %v335 = vld [vmem:[#allocation2 + $0x2a0] sm:$0xff]
    %v336 = vld [vmem:[#allocation2 + $0x2a8] sm:$0xff]
    %v337 = vld [vmem:[#allocation2 + $0x2b0] sm:$0xff]
    %v338 = vld [vmem:[#allocation2 + $0x2b8] sm:$0xff]
    %v339 = vld [vmem:[#allocation2 + $0x2c0] sm:$0xff]
    %v340 = vld [vmem:[#allocation2 + $0x2c8] sm:$0xff]
    %v341 = vld [vmem:[#allocation2 + $0x2d0] sm:$0xff]
    %v342 = vld [vmem:[#allocation2 + $0x2d8] sm:$0xff]
    %v343 = vld [vmem:[#allocation2 + $0x2e0] sm:$0xff]
    %v344 = vld [vmem:[#allocation2 + $0x2e8] sm:$0xff]
    %v345 = vld [vmem:[#allocation2 + $0x2f0] sm:$0xff]
    %v346 = vld [vmem:[#allocation2 + $0x2f8] sm:$0xff]
    %v347 = vld [vmem:[#allocation2 + $0x300] sm:$0xff]
    %v348 = vld [vmem:[#allocation2 + $0x308] sm:$0xff]
    %v349 = vld [vmem:[#allocation2 + $0x310] sm:$0xff]
    %v350 = vld [vmem:[#allocation2 + $0x318] sm:$0xff]
    %v351 = vld [vmem:[#allocation2 + $0x320] sm:$0xff]
    %v352 = vld [vmem:[#allocation2 + $0x328] sm:$0xff]
    %v353 = vld [vmem:[#allocation2 + $0x330] sm:$0xff]
    %v354 = vld [vmem:[#allocation2 + $0x338] sm:$0xff]
    %v355 = vld [vmem:[#allocation2 + $0x340] sm:$0xff]
    %v356 = vld [vmem:[#allocation2 + $0x348] sm:$0xff]
    %v357 = vld [vmem:[#allocation2 + $0x350] sm:$0xff]
    %v358 = vld [vmem:[#allocation2 + $0x358] sm:$0xff]
    %v359 = vld [vmem:[#allocation2 + $0x360] sm:$0xff]
    %v360 = vld [vmem:[#allocation2 + $0x368] sm:$0xff]
    %v361 = vld [vmem:[#allocation2 + $0x370] sm:$0xff]
    %v362 = vld [vmem:[#allocation2 + $0x378] sm:$0xff]
    %v363 = vld [vmem:[#allocation2 + $0x380] sm:$0xff]
    %v364 = vld [vmem:[#allocation2 + $0x388] sm:$0xff]
    %v365 = vld [vmem:[#allocation2 + $0x390] sm:$0xff]
    %v366 = vld [vmem:[#allocation2 + $0x398] sm:$0xff]
    %v367 = vld [vmem:[#allocation2 + $0x3a0] sm:$0xff]
    %v368 = vld [vmem:[#allocation2 + $0x3a8] sm:$0xff]
    %v369 = vld [vmem:[#allocation2 + $0x3b0] sm:$0xff]
    %v370 = vld [vmem:[#allocation2 + $0x3b8] sm:$0xff]
    %v371 = vld [vmem:[#allocation2 + $0x3c0] sm:$0xff]
    %v372 = vld [vmem:[#allocation2 + $0x3c8] sm:$0xff]
    %v373 = vld [vmem:[#allocation2 + $0x3d0] sm:$0xff]
    %v374 = vld [vmem:[#allocation2 + $0x3d8] sm:$0xff]
    %v375 = vld [vmem:[#allocation2 + $0x3e0] sm:$0xff]
    %v376 = vld [vmem:[#allocation2 + $0x3e8] sm:$0xff]
    %v377 = vld [vmem:[#allocation2 + $0x3f0] sm:$0xff]
    %v378 = vld [vmem:[#allocation2 + $0x3f8] sm:$0xff]
    %v379 = vld [vmem:[#allocation2 + $0x400] sm:$0xff]
    %v380 = vld [vmem:[#allocation2 + $0x408] sm:$0xff]
    %v381 = vld [vmem:[#allocation2 + $0x410] sm:$0xff]
    %v382 = vld [vmem:[#allocation2 + $0x418] sm:$0xff]
    %v383 = vld [vmem:[#allocation2 + $0x420] sm:$0xff]
    %v384 = vld [vmem:[#allocation2 + $0x428] sm:$0xff]
    %v385 = vld [vmem:[#allocation2 + $0x430] sm:$0xff]
    %v386 = vld [vmem:[#allocation2 + $0x438] sm:$0xff]
    %v387 = vld [vmem:[#allocation2 + $0x440] sm:$0xff]
    %v388 = vld [vmem:[#allocation2 + $0x448] sm:$0xff]
    %v389 = vld [vmem:[#allocation2 + $0x450] sm:$0xff]
    %v390 = vld [vmem:[#allocation2 + $0x458] sm:$0xff]
    %v391 = vld [vmem:[#allocation2 + $0x460] sm:$0xff]
    %v392 = vld [vmem:[#allocation2 + $0x468] sm:$0xff]
    %v393 = vld [vmem:[#allocation2 + $0x470] sm:$0xff]
    %v394 = vld [vmem:[#allocation2 + $0x478] sm:$0xff]
    %v395 = vld [vmem:[#allocation2 + $0x480] sm:$0xff]
    %v396 = vld [vmem:[#allocation2 + $0x488] sm:$0xff]
    %v397 = vld [vmem:[#allocation2 + $0x490] sm:$0xff]
    %v398 = vld [vmem:[#allocation2 + $0x498] sm:$0xff]
    %v399 = vld [vmem:[#allocation2 + $0x4a0] sm:$0xff]
    %v400 = vld [vmem:[#allocation2 + $0x4a8] sm:$0xff]
    %v401 = vld [vmem:[#allocation2 + $0x4b0] sm:$0xff]
    %v402 = vld [vmem:[#allocation2 + $0x4b8] sm:$0xff]
    %v403 = vld [vmem:[#allocation2 + $0x4c0] sm:$0xff]
    %v404 = vld [vmem:[#allocation2 + $0x4c8] sm:$0xff]
    %v405 = vld [vmem:[#allocation2 + $0x4d0] sm:$0xff]
    %v406 = vld [vmem:[#allocation2 + $0x4d8] sm:$0xff]
    %v407 = vld [vmem:[#allocation2 + $0x4e0] sm:$0xff]
    %v408 = vld [vmem:[#allocation2 + $0x4e8] sm:$0xff]
    %v409 = vld [vmem:[#allocation2 + $0x4f0] sm:$0xff]
    %v410 = vld [vmem:[#allocation2 + $0x4f8] sm:$0xff]
    %v411 = vld [vmem:[#allocation2 + $0x500] sm:$0xff]
    %v412 = vld [vmem:[#allocation2 + $0x508] sm:$0xff]
    %v413 = vld [vmem:[#allocation2 + $0x510] sm:$0xff]
    %v414 = vld [vmem:[#allocation2 + $0x518] sm:$0xff]
    %v415 = vld [vmem:[#allocation2 + $0x520] sm:$0xff]
    %v416 = vld [vmem:[#allocation2 + $0x528] sm:$0xff]
    %v417 = vld [vmem:[#allocation2 + $0x530] sm:$0xff]
    %v418 = vld [vmem:[#allocation2 + $0x538] sm:$0xff]
    %v419 = vld [vmem:[#allocation2 + $0x540] sm:$0xff]
    %v420 = vld [vmem:[#allocation2 + $0x548] sm:$0xff]
    %v421 = vld [vmem:[#allocation2 + $0x550] sm:$0xff]
    %v422 = vld [vmem:[#allocation2 + $0x558] sm:$0xff]
    %v423 = vld [vmem:[#allocation2 + $0x560] sm:$0xff]
    %v424 = vld [vmem:[#allocation2 + $0x568] sm:$0xff]
    %v425 = vld [vmem:[#allocation2 + $0x570] sm:$0xff]
    %v426 = vld [vmem:[#allocation2 + $0x578] sm:$0xff]
    %v427 = vld [vmem:[#allocation2 + $0x580] sm:$0xff]
    %v428 = vld [vmem:[#allocation2 + $0x588] sm:$0xff]
    %v429 = vld [vmem:[#allocation2 + $0x590] sm:$0xff]
    %v430 = vld [vmem:[#allocation2 + $0x598] sm:$0xff]
    %v431 = vld [vmem:[#allocation2 + $0x5a0] sm:$0xff]
    %v432 = vld [vmem:[#allocation2 + $0x5a8] sm:$0xff]
    %v433 = vld [vmem:[#allocation2 + $0x5b0] sm:$0xff]
    %v434 = vld [vmem:[#allocation2 + $0x5b8] sm:$0xff]
    %v435 = vld [vmem:[#allocation2 + $0x5c0] sm:$0xff]
    %v436 = vld [vmem:[#allocation2 + $0x5c8] sm:$0xff]
    %v437 = vld [vmem:[#allocation2 + $0x5d0] sm:$0xff]
    %v438 = vld [vmem:[#allocation2 + $0x5d8] sm:$0xff]
    %v439 = vld [vmem:[#allocation2 + $0x5e0] sm:$0xff]
    %v440 = vld [vmem:[#allocation2 + $0x5e8] sm:$0xff]
    %v441 = vld [vmem:[#allocation2 + $0x5f0] sm:$0xff]
    %v442 = vld [vmem:[#allocation2 + $0x5f8] sm:$0xff]
    %v443 = vld [vmem:[#allocation2 + $0x600] sm:$0xff]
    %v444 = vld [vmem:[#allocation2 + $0x608] sm:$0xff]
    %v445 = vld [vmem:[#allocation2 + $0x610] sm:$0xff]
    %v446 = vld [vmem:[#allocation2 + $0x618] sm:$0xff]
    %v447 = vld [vmem:[#allocation2 + $0x620] sm:$0xff]
    %v448 = vld [vmem:[#allocation2 + $0x628] sm:$0xff]
    %v449 = vld [vmem:[#allocation2 + $0x630] sm:$0xff]
    %v450 = vld [vmem:[#allocation2 + $0x638] sm:$0xff]
    %v451 = vld [vmem:[#allocation2 + $0x640] sm:$0xff]
    %v452 = vld [vmem:[#allocation2 + $0x648] sm:$0xff]
    %v453 = vld [vmem:[#allocation2 + $0x650] sm:$0xff]
    %v454 = vld [vmem:[#allocation2 + $0x658] sm:$0xff]
    %v455 = vld [vmem:[#allocation2 + $0x660] sm:$0xff]
    %v456 = vld [vmem:[#allocation2 + $0x668] sm:$0xff]
    %v457 = vld [vmem:[#allocation2 + $0x670] sm:$0xff]
    %v458 = vld [vmem:[#allocation2 + $0x678] sm:$0xff]
    %v459 = vld [vmem:[#allocation2 + $0x680] sm:$0xff]
    %v460 = vld [vmem:[#allocation2 + $0x688] sm:$0xff]
    %v461 = vld [vmem:[#allocation2 + $0x690] sm:$0xff]
    %v462 = vld [vmem:[#allocation2 + $0x698] sm:$0xff]
    %v463 = vld [vmem:[#allocation2 + $0x6a0] sm:$0xff]
    %v464 = vld [vmem:[#allocation2 + $0x6a8] sm:$0xff]
    %v465 = vld [vmem:[#allocation2 + $0x6b0] sm:$0xff]
    %v466 = vld [vmem:[#allocation2 + $0x6b8] sm:$0xff]
    %v467 = vld [vmem:[#allocation2 + $0x6c0] sm:$0xff]
    %v468 = vld [vmem:[#allocation2 + $0x6c8] sm:$0xff]
    %v469 = vld [vmem:[#allocation2 + $0x6d0] sm:$0xff]
    %v470 = vld [vmem:[#allocation2 + $0x6d8] sm:$0xff]
    %v471 = vld [vmem:[#allocation2 + $0x6e0] sm:$0xff]
    %v472 = vld [vmem:[#allocation2 + $0x6e8] sm:$0xff]
    %v473 = vld [vmem:[#allocation2 + $0x6f0] sm:$0xff]
    %v474 = vld [vmem:[#allocation2 + $0x6f8] sm:$0xff]
    %v475 = vld [vmem:[#allocation2 + $0x700] sm:$0xff]
    %v476 = vld [vmem:[#allocation2 + $0x708] sm:$0xff]
    %v477 = vld [vmem:[#allocation2 + $0x710] sm:$0xff]
    %v478 = vld [vmem:[#allocation2 + $0x718] sm:$0xff]
    %v479 = vld [vmem:[#allocation2 + $0x720] sm:$0xff]
    %v480 = vld [vmem:[#allocation2 + $0x728] sm:$0xff]
    %v481 = vld [vmem:[#allocation2 + $0x730] sm:$0xff]
    %v482 = vld [vmem:[#allocation2 + $0x738] sm:$0xff]
    %v483 = vld [vmem:[#allocation2 + $0x740] sm:$0xff]
    %v484 = vld [vmem:[#allocation2 + $0x748] sm:$0xff]
    %v485 = vld [vmem:[#allocation2 + $0x750] sm:$0xff]
    %v486 = vld [vmem:[#allocation2 + $0x758] sm:$0xff]
    %v487 = vld [vmem:[#allocation2 + $0x760] sm:$0xff]
    %v488 = vld [vmem:[#allocation2 + $0x768] sm:$0xff]
    %v489 = vld [vmem:[#allocation2 + $0x770] sm:$0xff]
    %v490 = vld [vmem:[#allocation2 + $0x778] sm:$0xff]
    %v491 = vld [vmem:[#allocation2 + $0x780] sm:$0xff]
    %v492 = vld [vmem:[#allocation2 + $0x788] sm:$0xff]
    %v493 = vld [vmem:[#allocation2 + $0x790] sm:$0xff]
    %v494 = vld [vmem:[#allocation2 + $0x798] sm:$0xff]
    %v495 = vld [vmem:[#allocation2 + $0x7a0] sm:$0xff]
    %v496 = vld [vmem:[#allocation2 + $0x7a8] sm:$0xff]
    %v497 = vld [vmem:[#allocation2 + $0x7b0] sm:$0xff]
    %v498 = vld [vmem:[#allocation2 + $0x7b8] sm:$0xff]
    %v499 = vld [vmem:[#allocation2 + $0x7c0] sm:$0xff]
    %v500 = vld [vmem:[#allocation2 + $0x7c8] sm:$0xff]
    %v501 = vld [vmem:[#allocation2 + $0x7d0] sm:$0xff]
    %v502 = vld [vmem:[#allocation2 + $0x7d8] sm:$0xff]
    %v503 = vld [vmem:[#allocation2 + $0x7e0] sm:$0xff]
    %v504 = vld [vmem:[#allocation2 + $0x7e8] sm:$0xff]
    %v505 = vld [vmem:[#allocation2 + $0x7f0] sm:$0xff]
    %v506 = vld [vmem:[#allocation2 + $0x7f8] sm:$0xff]
    %v507 = vld [vmem:[#allocation2 + $0x800] sm:$0xff]
    %v508 = vld [vmem:[#allocation2 + $0x808] sm:$0xff]
    %v509 = vld [vmem:[#allocation2 + $0x810] sm:$0xff]
    %v510 = vld [vmem:[#allocation2 + $0x818] sm:$0xff]
    %v511 = vld [vmem:[#allocation2 + $0x820] sm:$0xff]
    %v512 = vld [vmem:[#allocation2 + $0x828] sm:$0xff]
    %v513 = vld [vmem:[#allocation2 + $0x830] sm:$0xff]
    %v514 = vld [vmem:[#allocation2 + $0x838] sm:$0xff]
    %v515 = vld [vmem:[#allocation2 + $0x840] sm:$0xff]
    %v516 = vld [vmem:[#allocation2 + $0x848] sm:$0xff]
    %v517 = vld [vmem:[#allocation2 + $0x850] sm:$0xff]
    %v518 = vld [vmem:[#allocation2 + $0x858] sm:$0xff]
    %v519 = vld [vmem:[#allocation2 + $0x860] sm:$0xff]
    %v520 = vld [vmem:[#allocation2 + $0x868] sm:$0xff]
    %v521 = vld [vmem:[#allocation2 + $0x870] sm:$0xff]
    %v522 = vld [vmem:[#allocation2 + $0x878] sm:$0xff]
    %v523 = vld [vmem:[#allocation2 + $0x880] sm:$0xff]
    %v524 = vld [vmem:[#allocation2 + $0x888] sm:$0xff]
    %v525 = vld [vmem:[#allocation2 + $0x890] sm:$0xff]
    %v526 = vld [vmem:[#allocation2 + $0x898] sm:$0xff]
    %v527 = vld [vmem:[#allocation2 + $0x8a0] sm:$0xff]
    %v528 = vld [vmem:[#allocation2 + $0x8a8] sm:$0xff]
    %v529 = vld [vmem:[#allocation2 + $0x8b0] sm:$0xff]
    %v530 = vld [vmem:[#allocation2 + $0x8b8] sm:$0xff]
    %v531 = vld [vmem:[#allocation2 + $0x8c0] sm:$0xff]
    %v532 = vld [vmem:[#allocation2 + $0x8c8] sm:$0xff]
    %v533 = vld [vmem:[#allocation2 + $0x8d0] sm:$0xff]
    %v534 = vld [vmem:[#allocation2 + $0x8d8] sm:$0xff]
    %v535 = vld [vmem:[#allocation2 + $0x8e0] sm:$0xff]
    %v536 = vld [vmem:[#allocation2 + $0x8e8] sm:$0xff]
    %v537 = vld [vmem:[#allocation2 + $0x8f0] sm:$0xff]
    %v538 = vld [vmem:[#allocation2 + $0x8f8] sm:$0xff]
    %v539 = vld [vmem:[#allocation2 + $0x900] sm:$0xff]
    %v540 = vld [vmem:[#allocation2 + $0x908] sm:$0xff]
    %v541 = vld [vmem:[#allocation2 + $0x910] sm:$0xff]
    %v542 = vld [vmem:[#allocation2 + $0x918] sm:$0xff]
    %v543 = vld [vmem:[#allocation2 + $0x920] sm:$0xff]
    %v544 = vld [vmem:[#allocation2 + $0x928] sm:$0xff]
    %v545 = vld [vmem:[#allocation2 + $0x930] sm:$0xff]
    %v546 = vld [vmem:[#allocation2 + $0x938] sm:$0xff]
    %v547 = vld [vmem:[#allocation2 + $0x940] sm:$0xff]
    %v548 = vld [vmem:[#allocation2 + $0x948] sm:$0xff]
    %v549 = vld [vmem:[#allocation2 + $0x950] sm:$0xff]
    %v550 = vld [vmem:[#allocation2 + $0x958] sm:$0xff]
    %v551 = vld [vmem:[#allocation2 + $0x960] sm:$0xff]
    %v552 = vld [vmem:[#allocation2 + $0x968] sm:$0xff]
    %v553 = vld [vmem:[#allocation2 + $0x970] sm:$0xff]
    %v554 = vld [vmem:[#allocation2 + $0x978] sm:$0xff]
    %v555 = vld [vmem:[#allocation2 + $0x980] sm:$0xff]
    %v556 = vld [vmem:[#allocation2 + $0x988] sm:$0xff]
    %v557 = vld [vmem:[#allocation2 + $0x990] sm:$0xff]
    %v558 = vld [vmem:[#allocation2 + $0x998] sm:$0xff]
    %v559 = vld [vmem:[#allocation2 + $0x9a0] sm:$0xff]
    %v560 = vld [vmem:[#allocation2 + $0x9a8] sm:$0xff]
    %v561 = vld [vmem:[#allocation2 + $0x9b0] sm:$0xff]
    %v562 = vld [vmem:[#allocation2 + $0x9b8] sm:$0xff]
    %v563 = vld [vmem:[#allocation2 + $0x9c0] sm:$0xff]
    %v564 = vld [vmem:[#allocation2 + $0x9c8] sm:$0xff]
    %v565 = vld [vmem:[#allocation2 + $0x9d0] sm:$0xff]
    %v566 = vld [vmem:[#allocation2 + $0x9d8] sm:$0xff]
    %v567 = vld [vmem:[#allocation2 + $0x9e0] sm:$0xff]
    %v568 = vld [vmem:[#allocation2 + $0x9e8] sm:$0xff]
    %v569 = vld [vmem:[#allocation2 + $0x9f0] sm:$0xff]
    %v570 = vld [vmem:[#allocation2 + $0x9f8] sm:$0xff]
    %v571 = vld [vmem:[#allocation2 + $0xa00] sm:$0xff]
    %v572 = vld [vmem:[#allocation2 + $0xa08] sm:$0xff]
    %v573 = vld [vmem:[#allocation2 + $0xa10] sm:$0xff]
    %v574 = vld [vmem:[#allocation2 + $0xa18] sm:$0xff]
    %v575 = vld [vmem:[#allocation2 + $0xa20] sm:$0xff]
    %v576 = vld [vmem:[#allocation2 + $0xa28] sm:$0xff]
    %v577 = vld [vmem:[#allocation2 + $0xa30] sm:$0xff]
    %v578 = vld [vmem:[#allocation2 + $0xa38] sm:$0xff]
    %v579 = vld [vmem:[#allocation2 + $0xa40] sm:$0xff]
    %v580 = vld [vmem:[#allocation2 + $0xa48] sm:$0xff]
    %v581 = vld [vmem:[#allocation2 + $0xa50] sm:$0xff]
    %v582 = vld [vmem:[#allocation2 + $0xa58] sm:$0xff]
    %v583 = vld [vmem:[#allocation2 + $0xa60] sm:$0xff]
    %v584 = vld [vmem:[#allocation2 + $0xa68] sm:$0xff]
    %v585 = vld [vmem:[#allocation2 + $0xa70] sm:$0xff]
    %v586 = vld [vmem:[#allocation2 + $0xa78] sm:$0xff]
    %v587 = vld [vmem:[#allocation2 + $0xa80] sm:$0xff]
    %v588 = vld [vmem:[#allocation2 + $0xa88] sm:$0xff]
    %v589 = vld [vmem:[#allocation2 + $0xa90] sm:$0xff]
    %v590 = vld [vmem:[#allocation2 + $0xa98] sm:$0xff]
    %v591 = vld [vmem:[#allocation2 + $0xaa0] sm:$0xff]
    %v592 = vld [vmem:[#allocation2 + $0xaa8] sm:$0xff]
    %v593 = vld [vmem:[#allocation2 + $0xab0] sm:$0xff]
    %v594 = vld [vmem:[#allocation2 + $0xab8] sm:$0xff]
    %v595 = vld [vmem:[#allocation2 + $0xac0] sm:$0xff]
    %v596 = vld [vmem:[#allocation2 + $0xac8] sm:$0xff]
    %v597 = vld [vmem:[#allocation2 + $0xad0] sm:$0xff]
    %v598 = vld [vmem:[#allocation2 + $0xad8] sm:$0xff]
    %v599 = vld [vmem:[#allocation2 + $0xae0] sm:$0xff]
    %v600 = vld [vmem:[#allocation2 + $0xae8] sm:$0xff]
    %v601 = vld [vmem:[#allocation2 + $0xaf0] sm:$0xff]
    %v602 = vld [vmem:[#allocation2 + $0xaf8] sm:$0xff]
    %v603 = vld [vmem:[#allocation2 + $0xb00] sm:$0xff]
    %v604 = vld [vmem:[#allocation2 + $0xb08] sm:$0xff]
    %v605 = vld [vmem:[#allocation2 + $0xb10] sm:$0xff]
    %v606 = vld [vmem:[#allocation2 + $0xb18] sm:$0xff]
    %v607 = vld [vmem:[#allocation2 + $0xb20] sm:$0xff]
    %v608 = vld [vmem:[#allocation2 + $0xb28] sm:$0xff]
    %v609 = vld [vmem:[#allocation2 + $0xb30] sm:$0xff]
    %v610 = vld [vmem:[#allocation2 + $0xb38] sm:$0xff]
    %v611 = vld [vmem:[#allocation2 + $0xb40] sm:$0xff]
    %v612 = vld [vmem:[#allocation2 + $0xb48] sm:$0xff]
    %v613 = vld [vmem:[#allocation2 + $0xb50] sm:$0xff]
    %v614 = vld [vmem:[#allocation2 + $0xb58] sm:$0xff]
    %v615 = vld [vmem:[#allocation2 + $0xb60] sm:$0xff]
    %v616 = vld [vmem:[#allocation2 + $0xb68] sm:$0xff]
    %v617 = vld [vmem:[#allocation2 + $0xb70] sm:$0xff]
    %v618 = vld [vmem:[#allocation2 + $0xb78] sm:$0xff]
    %v619 = vld [vmem:[#allocation2 + $0xb80] sm:$0xff]
    %v620 = vld [vmem:[#allocation2 + $0xb88] sm:$0xff]
    %v621 = vld [vmem:[#allocation2 + $0xb90] sm:$0xff]
    %v622 = vld [vmem:[#allocation2 + $0xb98] sm:$0xff]
    %v623 = vld [vmem:[#allocation2 + $0xba0] sm:$0xff]
    %v624 = vld [vmem:[#allocation2 + $0xba8] sm:$0xff]
    %v625 = vld [vmem:[#allocation2 + $0xbb0] sm:$0xff]
    %v626 = vld [vmem:[#allocation2 + $0xbb8] sm:$0xff]
    %v627 = vld [vmem:[#allocation2 + $0xbc0] sm:$0xff]
    %v628 = vld [vmem:[#allocation2 + $0xbc8] sm:$0xff]
    %v629 = vld [vmem:[#allocation2 + $0xbd0] sm:$0xff]
    %v630 = vld [vmem:[#allocation2 + $0xbd8] sm:$0xff]
    %v631 = vld [vmem:[#allocation2 + $0xbe0] sm:$0xff]
    %v632 = vld [vmem:[#allocation2 + $0xbe8] sm:$0xff]
    %v633 = vld [vmem:[#allocation2 + $0xbf0] sm:$0xff]
    %v634 = vld [vmem:[#allocation2 + $0xbf8] sm:$0xff]
    %v635 = vld [vmem:[#allocation2 + $0xc00] sm:$0xff]
    %v636 = vld [vmem:[#allocation2 + $0xc08] sm:$0xff]
    %v637 = vld [vmem:[#allocation2 + $0xc10] sm:$0xff]
    %v638 = vld [vmem:[#allocation2 + $0xc18] sm:$0xff]
    %v639 = vld [vmem:[#allocation2 + $0xc20] sm:$0xff]
    %v640 = vld [vmem:[#allocation2 + $0xc28] sm:$0xff]
    %v641 = vld [vmem:[#allocation2 + $0xc30] sm:$0xff]
    %v642 = vld [vmem:[#allocation2 + $0xc38] sm:$0xff]
    %v643 = vld [vmem:[#allocation2 + $0xc40] sm:$0xff]
    %v644 = vld [vmem:[#allocation2 + $0xc48] sm:$0xff]
    %v645 = vld [vmem:[#allocation2 + $0xc50] sm:$0xff]
    %v646 = vld [vmem:[#allocation2 + $0xc58] sm:$0xff]
    %v647 = vld [vmem:[#allocation2 + $0xc60] sm:$0xff]
    %v648 = vld [vmem:[#allocation2 + $0xc68] sm:$0xff]
    %v649 = vld [vmem:[#allocation2 + $0xc70] sm:$0xff]
    %v650 = vld [vmem:[#allocation2 + $0xc78] sm:$0xff]
    %v651 = vld [vmem:[#allocation2 + $0xc80] sm:$0xff]
    %v652 = vld [vmem:[#allocation2 + $0xc88] sm:$0xff]
    %v653 = vld [vmem:[#allocation2 + $0xc90] sm:$0xff]
    %v654 = vld [vmem:[#allocation2 + $0xc98] sm:$0xff]
    %v655 = vld [vmem:[#allocation2 + $0xca0] sm:$0xff]
    %v656 = vld [vmem:[#allocation2 + $0xca8] sm:$0xff]
    %v657 = vld [vmem:[#allocation2 + $0xcb0] sm:$0xff]
    %v658 = vld [vmem:[#allocation2 + $0xcb8] sm:$0xff]
    %v659 = vld [vmem:[#allocation2 + $0xcc0] sm:$0xff]
    %v660 = vld [vmem:[#allocation2 + $0xcc8] sm:$0xff]
    %v661 = vld [vmem:[#allocation2 + $0xcd0] sm:$0xff]
    %v662 = vld [vmem:[#allocation2 + $0xcd8] sm:$0xff]
    %v663 = vld [vmem:[#allocation2 + $0xce0] sm:$0xff]
    %v664 = vld [vmem:[#allocation2 + $0xce8] sm:$0xff]
    %v665 = vld [vmem:[#allocation2 + $0xcf0] sm:$0xff]
    %v666 = vld [vmem:[#allocation2 + $0xcf8] sm:$0xff]
    %v667 = vld [vmem:[#allocation2 + $0xd00] sm:$0xff]
    %v668 = vld [vmem:[#allocation2 + $0xd08] sm:$0xff]
    %v669 = vld [vmem:[#allocation2 + $0xd10] sm:$0xff]
    %v670 = vld [vmem:[#allocation2 + $0xd18] sm:$0xff]
    %v671 = vld [vmem:[#allocation2 + $0xd20] sm:$0xff]
    %v672 = vld [vmem:[#allocation2 + $0xd28] sm:$0xff]
    %v673 = vld [vmem:[#allocation2 + $0xd30] sm:$0xff]
    %v674 = vld [vmem:[#allocation2 + $0xd38] sm:$0xff]
    %v675 = vld [vmem:[#allocation2 + $0xd40] sm:$0xff]
    %v676 = vld [vmem:[#allocation2 + $0xd48] sm:$0xff]
    %v677 = vld [vmem:[#allocation2 + $0xd50] sm:$0xff]
    %v678 = vld [vmem:[#allocation2 + $0xd58] sm:$0xff]
    %v679 = vld [vmem:[#allocation2 + $0xd60] sm:$0xff]
    %v680 = vld [vmem:[#allocation2 + $0xd68] sm:$0xff]
    %v681 = vld [vmem:[#allocation2 + $0xd70] sm:$0xff]
    %v682 = vld [vmem:[#allocation2 + $0xd78] sm:$0xff]
    %v683 = vld [vmem:[#allocation2 + $0xd80] sm:$0xff]
    %v684 = vld [vmem:[#allocation2 + $0xd88] sm:$0xff]
    %v685 = vld [vmem:[#allocation2 + $0xd90] sm:$0xff]
    %v686 = vld [vmem:[#allocation2 + $0xd98] sm:$0xff]
    %v687 = vld [vmem:[#allocation2 + $0xda0] sm:$0xff]
    %v688 = vld [vmem:[#allocation2 + $0xda8] sm:$0xff]
    %v689 = vld [vmem:[#allocation2 + $0xdb0] sm:$0xff]
    %v690 = vld [vmem:[#allocation2 + $0xdb8] sm:$0xff]
    %v691 = vld [vmem:[#allocation2 + $0xdc0] sm:$0xff]
    %v692 = vld [vmem:[#allocation2 + $0xdc8] sm:$0xff]
    %v693 = vld [vmem:[#allocation2 + $0xdd0] sm:$0xff]
    %v694 = vld [vmem:[#allocation2 + $0xdd8] sm:$0xff]
    %v695 = vld [vmem:[#allocation2 + $0xde0] sm:$0xff]
    %v696 = vld [vmem:[#allocation2 + $0xde8] sm:$0xff]
    %v697 = vld [vmem:[#allocation2 + $0xdf0] sm:$0xff]
    %v698 = vld [vmem:[#allocation2 + $0xdf8] sm:$0xff]
    %v699 = vld [vmem:[#allocation2 + $0xe00] sm:$0xff]
    %v700 = vld [vmem:[#allocation2 + $0xe08] sm:$0xff]
    %v701 = vld [vmem:[#allocation2 + $0xe10] sm:$0xff]
    %v702 = vld [vmem:[#allocation2 + $0xe18] sm:$0xff]
    %v703 = vld [vmem:[#allocation2 + $0xe20] sm:$0xff]
    %v704 = vld [vmem:[#allocation2 + $0xe28] sm:$0xff]
    %v705 = vld [vmem:[#allocation2 + $0xe30] sm:$0xff]
    %v706 = vld [vmem:[#allocation2 + $0xe38] sm:$0xff]
    %v707 = vld [vmem:[#allocation2 + $0xe40] sm:$0xff]
    %v708 = vld [vmem:[#allocation2 + $0xe48] sm:$0xff]
    %v709 = vld [vmem:[#allocation2 + $0xe50] sm:$0xff]
    %v710 = vld [vmem:[#allocation2 + $0xe58] sm:$0xff]
    %v711 = vld [vmem:[#allocation2 + $0xe60] sm:$0xff]
    %v712 = vld [vmem:[#allocation2 + $0xe68] sm:$0xff]
    %v713 = vld [vmem:[#allocation2 + $0xe70] sm:$0xff]
    %v714 = vld [vmem:[#allocation2 + $0xe78] sm:$0xff]
    %v715 = vld [vmem:[#allocation2 + $0xe80] sm:$0xff]
    %v716 = vld [vmem:[#allocation2 + $0xe88] sm:$0xff]
    %v717 = vld [vmem:[#allocation2 + $0xe90] sm:$0xff]
    %v718 = vld [vmem:[#allocation2 + $0xe98] sm:$0xff]
    %v719 = vld [vmem:[#allocation2 + $0xea0] sm:$0xff]
    %v720 = vld [vmem:[#allocation2 + $0xea8] sm:$0xff]
    %v721 = vld [vmem:[#allocation2 + $0xeb0] sm:$0xff]
    %v722 = vld [vmem:[#allocation2 + $0xeb8] sm:$0xff]
    %v723 = vld [vmem:[#allocation2 + $0xec0] sm:$0xff]
    %v724 = vld [vmem:[#allocation2 + $0xec8] sm:$0xff]
    %v725 = vld [vmem:[#allocation2 + $0xed0] sm:$0xff]
    %v726 = vld [vmem:[#allocation2 + $0xed8] sm:$0xff]
    %v727 = vld [vmem:[#allocation2 + $0xee0] sm:$0xff]
    %v728 = vld [vmem:[#allocation2 + $0xee8] sm:$0xff]
    %v729 = vld [vmem:[#allocation2 + $0xef0] sm:$0xff]
    %v730 = vld [vmem:[#allocation2 + $0xef8] sm:$0xff]
    %v731 = vld [vmem:[#allocation2 + $0xf00] sm:$0xff]
    %v732 = vld [vmem:[#allocation2 + $0xf08] sm:$0xff]
    %v733 = vld [vmem:[#allocation2 + $0xf10] sm:$0xff]
    %v734 = vld [vmem:[#allocation2 + $0xf18] sm:$0xff]
    %v735 = vld [vmem:[#allocation2 + $0xf20] sm:$0xff]
    %v736 = vld [vmem:[#allocation2 + $0xf28] sm:$0xff]
    %v737 = vld [vmem:[#allocation2 + $0xf30] sm:$0xff]
    %v738 = vld [vmem:[#allocation2 + $0xf38] sm:$0xff]
    %v739 = vld [vmem:[#allocation2 + $0xf40] sm:$0xff]
    %v740 = vld [vmem:[#allocation2 + $0xf48] sm:$0xff]
    %v741 = vld [vmem:[#allocation2 + $0xf50] sm:$0xff]
    %v742 = vld [vmem:[#allocation2 + $0xf58] sm:$0xff]
    %v743 = vld [vmem:[#allocation2 + $0xf60] sm:$0xff]
    %v744 = vld [vmem:[#allocation2 + $0xf68] sm:$0xff]
    %v745 = vld [vmem:[#allocation2 + $0xf70] sm:$0xff]
    %v746 = vld [vmem:[#allocation2 + $0xf78] sm:$0xff]
    %v747 = vld [vmem:[#allocation2 + $0xf80] sm:$0xff]
    %v748 = vld [vmem:[#allocation2 + $0xf88] sm:$0xff]
    %v749 = vld [vmem:[#allocation2 + $0xf90] sm:$0xff]
    %v750 = vld [vmem:[#allocation2 + $0xf98] sm:$0xff]
    %v751 = vld [vmem:[#allocation2 + $0xfa0] sm:$0xff]
    %v752 = vld [vmem:[#allocation2 + $0xfa8] sm:$0xff]
    %v753 = vld [vmem:[#allocation2 + $0xfb0] sm:$0xff]
    %v754 = vld [vmem:[#allocation2 + $0xfb8] sm:$0xff]
    %v755 = vld [vmem:[#allocation2 + $0xfc0] sm:$0xff]
    %v756 = vld [vmem:[#allocation2 + $0xfc8] sm:$0xff]
    %v757 = vld [vmem:[#allocation2 + $0xfd0] sm:$0xff]
    %v758 = vld [vmem:[#allocation2 + $0xfd8] sm:$0xff]
    %v759 = vld [vmem:[#allocation2 + $0xfe0] sm:$0xff]
    %v760 = vld [vmem:[#allocation2 + $0xfe8] sm:$0xff]
    %v761 = vld [vmem:[#allocation2 + $0xff0] sm:$0xff]
    %v762 = vld [vmem:[#allocation2 + $0xff8] sm:$0xff]
    %v763 = vld [vmem:[%s5] sm:$0xf]
    %v765 = vlaneseq
    %v766 = vshrl.u32 %v765, 7
    %v767 = vsub.s32 0, %v766
    %v768 = vrot.slane %v763, %v767
    %v769 = vlaneseq
    %v770 = vshrl.u32 %v769, 7
    %v771 = vsub.s32 1, %v770
    %v772 = vrot.slane %v763, %v771
    %v773 = vlaneseq
    %v774 = vshrl.u32 %v773, 7
    %v775 = vsub.s32 2, %v774
    %v776 = vrot.slane %v763, %v775
    %v777 = vlaneseq
    %v778 = vshrl.u32 %v777, 7
    %v779 = vsub.s32 3, %v778
    %v780 = vrot.slane %v763, %v779
    %785 = vmatprep.subr.mxu0 %v252
    %786 = vmatpush1.msra.mxu0 %v251
    %787 = vmatprep.subr.mxu0 %v256
    %788 = vmatpush1.msra.mxu0 %v255
    %789 = vmatprep.subr.mxu0 %v260
    %790 = vmatpush1.msra.mxu0 %v259
    %791 = vmatprep.subr.mxu0 %v264
    %792 = vmatpush1.msra.mxu0 %v263
    %793 = vmatprep.subr.mxu0 %v268
    %794 = vmatpush1.msra.mxu0 %v267
    %795 = vmatprep.subr.mxu0 %v272
    %796 = vmatpush1.msra.mxu0 %v271
    %797 = vmatprep.subr.mxu0 %v276
    %798 = vmatpush1.msra.mxu0 %v275
    %799 = vmatprep.subr.mxu0 %v280
    %800 = vmatpush1.msra.mxu0 %v279
    %801 = vmatprep.subr.mxu0 %v284
    %802 = vmatpush1.msra.mxu0 %v283
    %803 = vmatprep.subr.mxu0 %v288
    %804 = vmatpush1.msra.mxu0 %v287
    %805 = vmatprep.subr.mxu0 %v292
    %806 = vmatpush1.msra.mxu0 %v291
    %807 = vmatprep.subr.mxu0 %v296
    %808 = vmatpush1.msra.mxu0 %v295
    %809 = vmatprep.subr.mxu0 %v300
    %810 = vmatpush1.msra.mxu0 %v299
    %811 = vmatprep.subr.mxu0 %v304
    %812 = vmatpush1.msra.mxu0 %v303
    %813 = vmatprep.subr.mxu0 %v308
    %814 = vmatpush1.msra.mxu0 %v307
    %815 = vmatprep.subr.mxu0 %v312
    %816 = vmatpush1.msra.mxu0 %v311
    %817 = vmatprep.subr.mxu0 %v316
    %818 = vmatpush1.msra.mxu0 %v315
    %819 = vmatprep.subr.mxu0 %v320
    %820 = vmatpush1.msra.mxu0 %v319
    %821 = vmatprep.subr.mxu0 %v324
    %822 = vmatpush1.msra.mxu0 %v323
    %823 = vmatprep.subr.mxu0 %v328
    %824 = vmatpush1.msra.mxu0 %v327
    %825 = vmatprep.subr.mxu0 %v332
    %826 = vmatpush1.msra.mxu0 %v331
    %827 = vmatprep.subr.mxu0 %v336
    %828 = vmatpush1.msra.mxu0 %v335
    %829 = vmatprep.subr.mxu0 %v340
    %830 = vmatpush1.msra.mxu0 %v339
    %831 = vmatprep.subr.mxu0 %v344
    %832 = vmatpush1.msra.mxu0 %v343
    %833 = vmatprep.subr.mxu0 %v348
    %834 = vmatpush1.msra.mxu0 %v347
    %835 = vmatprep.subr.mxu0 %v352
    %836 = vmatpush1.msra.mxu0 %v351
    %837 = vmatprep.subr.mxu0 %v356
    %838 = vmatpush1.msra.mxu0 %v355
    %839 = vmatprep.subr.mxu0 %v360
    %840 = vmatpush1.msra.mxu0 %v359
    %841 = vmatprep.subr.mxu0 %v364
    %842 = vmatpush1.msra.mxu0 %v363
    %843 = vmatprep.subr.mxu0 %v368
    %844 = vmatpush1.msra.mxu0 %v367
    %845 = vmatprep.subr.mxu0 %v372
    %846 = vmatpush1.msra.mxu0 %v371
    %847 = vmatprep.subr.mxu0 %v376
    %848 = vmatpush1.msra.mxu0 %v375
    %849 = vmatprep.mubr.f32.mxu0 %v244
    %850 = vmatmul.mubr.f32.gmra.mrb[0].mxu0 %v243
    %v851 = vpop.f32.mrb[0].mxu0
    %v852 = vadd.f32 %v768, %v851
    %v853 = vpop.f32.mrb[0].mxu0
    %v854 = vadd.f32 %v772, %v853
    %855 = vdwg.mxu0
    %856 = vmatprep.subr.mxu0 %v380
    %857 = vmatpush1.msra.mxu0 %v379
    %858 = vmatprep.subr.mxu0 %v384
    %859 = vmatpush1.msra.mxu0 %v383
    %860 = vmatprep.subr.mxu0 %v388
    %861 = vmatpush1.msra.mxu0 %v387
    %862 = vmatprep.subr.mxu0 %v392
    %863 = vmatpush1.msra.mxu0 %v391
    %864 = vmatprep.subr.mxu0 %v396
    %865 = vmatpush1.msra.mxu0 %v395
    %866 = vmatprep.subr.mxu0 %v400
    %867 = vmatpush1.msra.mxu0 %v399
    %868 = vmatprep.subr.mxu0 %v404
    %869 = vmatpush1.msra.mxu0 %v403
    %870 = vmatprep.subr.mxu0 %v408
    %871 = vmatpush1.msra.mxu0 %v407
    %872 = vmatprep.subr.mxu0 %v412
    %873 = vmatpush1.msra.mxu0 %v411
    %874 = vmatprep.subr.mxu0 %v416
    %875 = vmatpush1.msra.mxu0 %v415
    %876 = vmatprep.subr.mxu0 %v420
    %877 = vmatpush1.msra.mxu0 %v419
    %878 = vmatprep.subr.mxu0 %v424
    %879 = vmatpush1.msra.mxu0 %v423
    %880 = vmatprep.subr.mxu0 %v428
    %881 = vmatpush1.msra.mxu0 %v427
    %882 = vmatprep.subr.mxu0 %v432
    %883 = vmatpush1.msra.mxu0 %v431
    %884 = vmatprep.subr.mxu0 %v436
    %885 = vmatpush1.msra.mxu0 %v435
    %886 = vmatprep.subr.mxu0 %v440
    %887 = vmatpush1.msra.mxu0 %v439
    %888 = vmatprep.subr.mxu0 %v444
    %889 = vmatpush1.msra.mxu0 %v443
    %890 = vmatprep.subr.mxu0 %v448
    %891 = vmatpush1.msra.mxu0 %v447
    %892 = vmatprep.subr.mxu0 %v452
    %893 = vmatpush1.msra.mxu0 %v451
    %894 = vmatprep.subr.mxu0 %v456
    %895 = vmatpush1.msra.mxu0 %v455
    %896 = vmatprep.subr.mxu0 %v460
    %897 = vmatpush1.msra.mxu0 %v459
    %898 = vmatprep.subr.mxu0 %v464
    %899 = vmatpush1.msra.mxu0 %v463
    %900 = vmatprep.subr.mxu0 %v468
    %901 = vmatpush1.msra.mxu0 %v467
    %902 = vmatprep.subr.mxu0 %v472
    %903 = vmatpush1.msra.mxu0 %v471
    %904 = vmatprep.subr.mxu0 %v476
    %905 = vmatpush1.msra.mxu0 %v475
    %906 = vmatprep.subr.mxu0 %v480
    %907 = vmatpush1.msra.mxu0 %v479
    %908 = vmatprep.subr.mxu0 %v484
    %909 = vmatpush1.msra.mxu0 %v483
    %910 = vmatprep.subr.mxu0 %v488
    %911 = vmatpush1.msra.mxu0 %v487
    %912 = vmatprep.subr.mxu0 %v492
    %913 = vmatpush1.msra.mxu0 %v491
    %914 = vmatprep.subr.mxu0 %v496
    %915 = vmatpush1.msra.mxu0 %v495
    %916 = vmatprep.subr.mxu0 %v500
    %917 = vmatpush1.msra.mxu0 %v499
    %918 = vmatprep.subr.mxu0 %v504
    %919 = vmatpush1.msra.mxu0 %v503
    %920 = vmatprep.mubr.f32.mxu0 %v246
    %921 = vmatmul.mubr.f32.gmra.mrb[0].mxu0 %v245
    %v922 = vpop.f32.mrb[0].mxu0
    %v923 = vadd.f32 %v852, %v922
    %v924 = vpop.f32.mrb[0].mxu0
    %v925 = vadd.f32 %v854, %v924
    %926 = vdwg.mxu0
    %927 = vmatprep.subr.mxu0 %v508
    %928 = vmatpush1.msra.mxu0 %v507
    %929 = vmatprep.subr.mxu0 %v512
    %930 = vmatpush1.msra.mxu0 %v511
    %931 = vmatprep.subr.mxu0 %v516
    %932 = vmatpush1.msra.mxu0 %v515
    %933 = vmatprep.subr.mxu0 %v520
    %934 = vmatpush1.msra.mxu0 %v519
    %935 = vmatprep.subr.mxu0 %v524
    %936 = vmatpush1.msra.mxu0 %v523
    %937 = vmatprep.subr.mxu0 %v528
    %938 = vmatpush1.msra.mxu0 %v527
    %939 = vmatprep.subr.mxu0 %v532
    %940 = vmatpush1.msra.mxu0 %v531
    %941 = vmatprep.subr.mxu0 %v536
    %942 = vmatpush1.msra.mxu0 %v535
    %943 = vmatprep.subr.mxu0 %v540
    %944 = vmatpush1.msra.mxu0 %v539
    %945 = vmatprep.subr.mxu0 %v544
    %946 = vmatpush1.msra.mxu0 %v543
    %947 = vmatprep.subr.mxu0 %v548
    %948 = vmatpush1.msra.mxu0 %v547
    %949 = vmatprep.subr.mxu0 %v552
    %950 = vmatpush1.msra.mxu0 %v551
    %951 = vmatprep.subr.mxu0 %v556
    %952 = vmatpush1.msra.mxu0 %v555
    %953 = vmatprep.subr.mxu0 %v560
    %954 = vmatpush1.msra.mxu0 %v559
    %955 = vmatprep.subr.mxu0 %v564
    %956 = vmatpush1.msra.mxu0 %v563
    %957 = vmatprep.subr.mxu0 %v568
    %958 = vmatpush1.msra.mxu0 %v567
    %959 = vmatprep.subr.mxu0 %v572
    %960 = vmatpush1.msra.mxu0 %v571
    %961 = vmatprep.subr.mxu0 %v576
    %962 = vmatpush1.msra.mxu0 %v575
    %963 = vmatprep.subr.mxu0 %v580
    %964 = vmatpush1.msra.mxu0 %v579
    %965 = vmatprep.subr.mxu0 %v584
    %966 = vmatpush1.msra.mxu0 %v583
    %967 = vmatprep.subr.mxu0 %v588
    %968 = vmatpush1.msra.mxu0 %v587
    %969 = vmatprep.subr.mxu0 %v592
    %970 = vmatpush1.msra.mxu0 %v591
    %971 = vmatprep.subr.mxu0 %v596
    %972 = vmatpush1.msra.mxu0 %v595
    %973 = vmatprep.subr.mxu0 %v600
    %974 = vmatpush1.msra.mxu0 %v599
    %975 = vmatprep.subr.mxu0 %v604
    %976 = vmatpush1.msra.mxu0 %v603
    %977 = vmatprep.subr.mxu0 %v608
    %978 = vmatpush1.msra.mxu0 %v607
    %979 = vmatprep.subr.mxu0 %v612
    %980 = vmatpush1.msra.mxu0 %v611
    %981 = vmatprep.subr.mxu0 %v616
    %982 = vmatpush1.msra.mxu0 %v615
    %983 = vmatprep.subr.mxu0 %v620
    %984 = vmatpush1.msra.mxu0 %v619
    %985 = vmatprep.subr.mxu0 %v624
    %986 = vmatpush1.msra.mxu0 %v623
    %987 = vmatprep.subr.mxu0 %v628
    %988 = vmatpush1.msra.mxu0 %v627
    %989 = vmatprep.subr.mxu0 %v632
    %990 = vmatpush1.msra.mxu0 %v631
    %991 = vmatprep.mubr.f32.mxu0 %v248
    %992 = vmatmul.mubr.f32.gmra.mrb[0].mxu0 %v247
    %v993 = vpop.f32.mrb[0].mxu0
    %v994 = vadd.f32 %v923, %v993
    %v995 = vpop.f32.mrb[0].mxu0
    %v996 = vadd.f32 %v925, %v995
    %997 = vdwg.mxu0
    %998 = vmatprep.subr.mxu0 %v636
    %999 = vmatpush1.msra.mxu0 %v635
    %1000 = vmatprep.subr.mxu0 %v640
    %1001 = vmatpush1.msra.mxu0 %v639
    %1002 = vmatprep.subr.mxu0 %v644
    %1003 = vmatpush1.msra.mxu0 %v643
    %1004 = vmatprep.subr.mxu0 %v648
    %1005 = vmatpush1.msra.mxu0 %v647
    %1006 = vmatprep.subr.mxu0 %v652
    %1007 = vmatpush1.msra.mxu0 %v651
    %1008 = vmatprep.subr.mxu0 %v656
    %1009 = vmatpush1.msra.mxu0 %v655
    %1010 = vmatprep.subr.mxu0 %v660
    %1011 = vmatpush1.msra.mxu0 %v659
    %1012 = vmatprep.subr.mxu0 %v664
    %1013 = vmatpush1.msra.mxu0 %v663
    %1014 = vmatprep.subr.mxu0 %v668
    %1015 = vmatpush1.msra.mxu0 %v667
    %1016 = vmatprep.subr.mxu0 %v672
    %1017 = vmatpush1.msra.mxu0 %v671
    %1018 = vmatprep.subr.mxu0 %v676
    %1019 = vmatpush1.msra.mxu0 %v675
    %1020 = vmatprep.subr.mxu0 %v680
    %1021 = vmatpush1.msra.mxu0 %v679
    %1022 = vmatprep.subr.mxu0 %v684
    %1023 = vmatpush1.msra.mxu0 %v683
    %1024 = vmatprep.subr.mxu0 %v688
    %1025 = vmatpush1.msra.mxu0 %v687
    %1026 = vmatprep.subr.mxu0 %v692
    %1027 = vmatpush1.msra.mxu0 %v691
    %1028 = vmatprep.subr.mxu0 %v696
    %1029 = vmatpush1.msra.mxu0 %v695
    %1030 = vmatprep.subr.mxu0 %v700
    %1031 = vmatpush1.msra.mxu0 %v699
    %1032 = vmatprep.subr.mxu0 %v704
    %1033 = vmatpush1.msra.mxu0 %v703
    %1034 = vmatprep.subr.mxu0 %v708
    %1035 = vmatpush1.msra.mxu0 %v707
    %1036 = vmatprep.subr.mxu0 %v712
    %1037 = vmatpush1.msra.mxu0 %v711
    %1038 = vmatprep.subr.mxu0 %v716
    %1039 = vmatpush1.msra.mxu0 %v715
    %1040 = vmatprep.subr.mxu0 %v720
    %1041 = vmatpush1.msra.mxu0 %v719
    %1042 = vmatprep.subr.mxu0 %v724
    %1043 = vmatpush1.msra.mxu0 %v723
    %1044 = vmatprep.subr.mxu0 %v728
    %1045 = vmatpush1.msra.mxu0 %v727
    %1046 = vmatprep.subr.mxu0 %v732
    %1047 = vmatpush1.msra.mxu0 %v731
    %1048 = vmatprep.subr.mxu0 %v736
    %1049 = vmatpush1.msra.mxu0 %v735
    %1050 = vmatprep.subr.mxu0 %v740
    %1051 = vmatpush1.msra.mxu0 %v739
    %1052 = vmatprep.subr.mxu0 %v744
    %1053 = vmatpush1.msra.mxu0 %v743
    %1054 = vmatprep.subr.mxu0 %v748
    %1055 = vmatpush1.msra.mxu0 %v747
    %1056 = vmatprep.subr.mxu0 %v752
    %1057 = vmatpush1.msra.mxu0 %v751
    %1058 = vmatprep.subr.mxu0 %v756
    %1059 = vmatpush1.msra.mxu0 %v755
    %1060 = vmatprep.subr.mxu0 %v760
    %1061 = vmatpush1.msra.mxu0 %v759
    %1062 = vmatprep.mubr.f32.mxu0 %v250
    %1063 = vmatmul.mubr.f32.gmra.mrb[0].mxu0 %v249
    %v1064 = vpop.f32.mrb[0].mxu0
    %v1065 = vadd.f32 %v994, %v1064
    %v1066 = vpop.f32.mrb[0].mxu0
    %v1067 = vadd.f32 %v996, %v1066
    %1068 = vdwg.mxu0
    %1069 = vmatprep.subr.mxu0 %v254
    %1070 = vmatpush1.msra.mxu0 %v253
    %1071 = vmatprep.subr.mxu0 %v258
    %1072 = vmatpush1.msra.mxu0 %v257
    %1073 = vmatprep.subr.mxu0 %v262
    %1074 = vmatpush1.msra.mxu0 %v261
    %1075 = vmatprep.subr.mxu0 %v266
    %1076 = vmatpush1.msra.mxu0 %v265
    %1077 = vmatprep.subr.mxu0 %v270
    %1078 = vmatpush1.msra.mxu0 %v269
    %1079 = vmatprep.subr.mxu0 %v274
    %1080 = vmatpush1.msra.mxu0 %v273
    %1081 = vmatprep.subr.mxu0 %v278
    %1082 = vmatpush1.msra.mxu0 %v277
    %1083 = vmatprep.subr.mxu0 %v282
    %1084 = vmatpush1.msra.mxu0 %v281
    %1085 = vmatprep.subr.mxu0 %v286
    %1086 = vmatpush1.msra.mxu0 %v285
    %1087 = vmatprep.subr.mxu0 %v290
    %1088 = vmatpush1.msra.mxu0 %v289
    %1089 = vmatprep.subr.mxu0 %v294
    %1090 = vmatpush1.msra.mxu0 %v293
    %1091 = vmatprep.subr.mxu0 %v298
    %1092 = vmatpush1.msra.mxu0 %v297
    %1093 = vmatprep.subr.mxu0 %v302
    %1094 = vmatpush1.msra.mxu0 %v301
    %1095 = vmatprep.subr.mxu0 %v306
    %1096 = vmatpush1.msra.mxu0 %v305
    %1097 = vmatprep.subr.mxu0 %v310
    %1098 = vmatpush1.msra.mxu0 %v309
    %1099 = vmatprep.subr.mxu0 %v314
    %1100 = vmatpush1.msra.mxu0 %v313
    %1101 = vmatprep.subr.mxu0 %v318
    %1102 = vmatpush1.msra.mxu0 %v317
    %1103 = vmatprep.subr.mxu0 %v322
    %1104 = vmatpush1.msra.mxu0 %v321
    %1105 = vmatprep.subr.mxu0 %v326
    %1106 = vmatpush1.msra.mxu0 %v325
    %1107 = vmatprep.subr.mxu0 %v330
    %1108 = vmatpush1.msra.mxu0 %v329
    %1109 = vmatprep.subr.mxu0 %v334
    %1110 = vmatpush1.msra.mxu0 %v333
    %1111 = vmatprep.subr.mxu0 %v338
    %1112 = vmatpush1.msra.mxu0 %v337
    %1113 = vmatprep.subr.mxu0 %v342
    %1114 = vmatpush1.msra.mxu0 %v341
    %1115 = vmatprep.subr.mxu0 %v346
    %1116 = vmatpush1.msra.mxu0 %v345
    %1117 = vmatprep.subr.mxu0 %v350
    %1118 = vmatpush1.msra.mxu0 %v349
    %1119 = vmatprep.subr.mxu0 %v354
    %1120 = vmatpush1.msra.mxu0 %v353
    %1121 = vmatprep.subr.mxu0 %v358
    %1122 = vmatpush1.msra.mxu0 %v357
    %1123 = vmatprep.subr.mxu0 %v362
    %1124 = vmatpush1.msra.mxu0 %v361
    %1125 = vmatprep.subr.mxu0 %v366
    %1126 = vmatpush1.msra.mxu0 %v365
    %1127 = vmatprep.subr.mxu0 %v370
    %1128 = vmatpush1.msra.mxu0 %v369
    %1129 = vmatprep.subr.mxu0 %v374
    %1130 = vmatpush1.msra.mxu0 %v373
    %1131 = vmatprep.subr.mxu0 %v378
    %1132 = vmatpush1.msra.mxu0 %v377
    %1133 = vmatprep.mubr.f32.mxu0 %v244
    %1134 = vmatmul.mubr.f32.gmra.mrb[0].mxu0 %v243
    %v1135 = vpop.f32.mrb[0].mxu0
    %v1136 = vadd.f32 %v776, %v1135
    %v1137 = vpop.f32.mrb[0].mxu0
    %v1138 = vadd.f32 %v780, %v1137
    %1139 = vdwg.mxu0
    %1140 = vmatprep.subr.mxu0 %v382
    %1141 = vmatpush1.msra.mxu0 %v381
    %1142 = vmatprep.subr.mxu0 %v386
    %1143 = vmatpush1.msra.mxu0 %v385
    %1144 = vmatprep.subr.mxu0 %v390
    %1145 = vmatpush1.msra.mxu0 %v389
    %1146 = vmatprep.subr.mxu0 %v394
    %1147 = vmatpush1.msra.mxu0 %v393
    %1148 = vmatprep.subr.mxu0 %v398
    %1149 = vmatpush1.msra.mxu0 %v397
    %1150 = vmatprep.subr.mxu0 %v402
    %1151 = vmatpush1.msra.mxu0 %v401
    %1152 = vmatprep.subr.mxu0 %v406
    %1153 = vmatpush1.msra.mxu0 %v405
    %1154 = vmatprep.subr.mxu0 %v410
    %1155 = vmatpush1.msra.mxu0 %v409
    %1156 = vmatprep.subr.mxu0 %v414
    %1157 = vmatpush1.msra.mxu0 %v413
    %1158 = vmatprep.subr.mxu0 %v418
    %1159 = vmatpush1.msra.mxu0 %v417
    %1160 = vmatprep.subr.mxu0 %v422
    %1161 = vmatpush1.msra.mxu0 %v421
    %1162 = vmatprep.subr.mxu0 %v426
    %1163 = vmatpush1.msra.mxu0 %v425
    %1164 = vmatprep.subr.mxu0 %v430
    %1165 = vmatpush1.msra.mxu0 %v429
    %1166 = vmatprep.subr.mxu0 %v434
    %1167 = vmatpush1.msra.mxu0 %v433
    %1168 = vmatprep.subr.mxu0 %v438
    %1169 = vmatpush1.msra.mxu0 %v437
    %1170 = vmatprep.subr.mxu0 %v442
    %1171 = vmatpush1.msra.mxu0 %v441
    %1172 = vmatprep.subr.mxu0 %v446
    %1173 = vmatpush1.msra.mxu0 %v445
    %1174 = vmatprep.subr.mxu0 %v450
    %1175 = vmatpush1.msra.mxu0 %v449
    %1176 = vmatprep.subr.mxu0 %v454
    %1177 = vmatpush1.msra.mxu0 %v453
    %1178 = vmatprep.subr.mxu0 %v458
    %1179 = vmatpush1.msra.mxu0 %v457
    %1180 = vmatprep.subr.mxu0 %v462
    %1181 = vmatpush1.msra.mxu0 %v461
    %1182 = vmatprep.subr.mxu0 %v466
    %1183 = vmatpush1.msra.mxu0 %v465
    %1184 = vmatprep.subr.mxu0 %v470
    %1185 = vmatpush1.msra.mxu0 %v469
    %1186 = vmatprep.subr.mxu0 %v474
    %1187 = vmatpush1.msra.mxu0 %v473
    %1188 = vmatprep.subr.mxu0 %v478
    %1189 = vmatpush1.msra.mxu0 %v477
    %1190 = vmatprep.subr.mxu0 %v482
    %1191 = vmatpush1.msra.mxu0 %v481
    %1192 = vmatprep.subr.mxu0 %v486
    %1193 = vmatpush1.msra.mxu0 %v485
    %1194 = vmatprep.subr.mxu0 %v490
    %1195 = vmatpush1.msra.mxu0 %v489
    %1196 = vmatprep.subr.mxu0 %v494
    %1197 = vmatpush1.msra.mxu0 %v493
    %1198 = vmatprep.subr.mxu0 %v498
    %1199 = vmatpush1.msra.mxu0 %v497
    %1200 = vmatprep.subr.mxu0 %v502
    %1201 = vmatpush1.msra.mxu0 %v501
    %1202 = vmatprep.subr.mxu0 %v506
    %1203 = vmatpush1.msra.mxu0 %v505
    %1204 = vmatprep.mubr.f32.mxu0 %v246
    %1205 = vmatmul.mubr.f32.gmra.mrb[0].mxu0 %v245
    %v1206 = vpop.f32.mrb[0].mxu0
    %v1207 = vadd.f32 %v1136, %v1206
    %v1208 = vpop.f32.mrb[0].mxu0
    %v1209 = vadd.f32 %v1138, %v1208
    %1210 = vdwg.mxu0
    %1211 = vmatprep.subr.mxu0 %v510
    %1212 = vmatpush1.msra.mxu0 %v509
    %1213 = vmatprep.subr.mxu0 %v514
    %1214 = vmatpush1.msra.mxu0 %v513
    %1215 = vmatprep.subr.mxu0 %v518
    %1216 = vmatpush1.msra.mxu0 %v517
    %1217 = vmatprep.subr.mxu0 %v522
    %1218 = vmatpush1.msra.mxu0 %v521
    %1219 = vmatprep.subr.mxu0 %v526
    %1220 = vmatpush1.msra.mxu0 %v525
    %1221 = vmatprep.subr.mxu0 %v530
    %1222 = vmatpush1.msra.mxu0 %v529
    %1223 = vmatprep.subr.mxu0 %v534
    %1224 = vmatpush1.msra.mxu0 %v533
    %1225 = vmatprep.subr.mxu0 %v538
    %1226 = vmatpush1.msra.mxu0 %v537
    %1227 = vmatprep.subr.mxu0 %v542
    %1228 = vmatpush1.msra.mxu0 %v541
    %1229 = vmatprep.subr.mxu0 %v546
    %1230 = vmatpush1.msra.mxu0 %v545
    %1231 = vmatprep.subr.mxu0 %v550
    %1232 = vmatpush1.msra.mxu0 %v549
    %1233 = vmatprep.subr.mxu0 %v554
    %1234 = vmatpush1.msra.mxu0 %v553
    %1235 = vmatprep.subr.mxu0 %v558
    %1236 = vmatpush1.msra.mxu0 %v557
    %1237 = vmatprep.subr.mxu0 %v562
    %1238 = vmatpush1.msra.mxu0 %v561
    %1239 = vmatprep.subr.mxu0 %v566
    %1240 = vmatpush1.msra.mxu0 %v565
    %1241 = vmatprep.subr.mxu0 %v570
    %1242 = vmatpush1.msra.mxu0 %v569
    %1243 = vmatprep.subr.mxu0 %v574
    %1244 = vmatpush1.msra.mxu0 %v573
    %1245 = vmatprep.subr.mxu0 %v578
    %1246 = vmatpush1.msra.mxu0 %v577
    %1247 = vmatprep.subr.mxu0 %v582
    %1248 = vmatpush1.msra.mxu0 %v581
    %1249 = vmatprep.subr.mxu0 %v586
    %1250 = vmatpush1.msra.mxu0 %v585
    %1251 = vmatprep.subr.mxu0 %v590
    %1252 = vmatpush1.msra.mxu0 %v589
    %1253 = vmatprep.subr.mxu0 %v594
    %1254 = vmatpush1.msra.mxu0 %v593
    %1255 = vmatprep.subr.mxu0 %v598
    %1256 = vmatpush1.msra.mxu0 %v597
    %1257 = vmatprep.subr.mxu0 %v602
    %1258 = vmatpush1.msra.mxu0 %v601
    %1259 = vmatprep.subr.mxu0 %v606
    %1260 = vmatpush1.msra.mxu0 %v605
    %1261 = vmatprep.subr.mxu0 %v610
    %1262 = vmatpush1.msra.mxu0 %v609
    %1263 = vmatprep.subr.mxu0 %v614
    %1264 = vmatpush1.msra.mxu0 %v613
    %1265 = vmatprep.subr.mxu0 %v618
    %1266 = vmatpush1.msra.mxu0 %v617
    %1267 = vmatprep.subr.mxu0 %v622
    %1268 = vmatpush1.msra.mxu0 %v621
    %1269 = vmatprep.subr.mxu0 %v626
    %1270 = vmatpush1.msra.mxu0 %v625
    %1271 = vmatprep.subr.mxu0 %v630
    %1272 = vmatpush1.msra.mxu0 %v629
    %1273 = vmatprep.subr.mxu0 %v634
    %1274 = vmatpush1.msra.mxu0 %v633
    %1275 = vmatprep.mubr.f32.mxu0 %v248
    %1276 = vmatmul.mubr.f32.gmra.mrb[0].mxu0 %v247
    %v1277 = vpop.f32.mrb[0].mxu0
    %v1278 = vadd.f32 %v1207, %v1277
    %v1279 = vpop.f32.mrb[0].mxu0
    %v1280 = vadd.f32 %v1209, %v1279
    %1281 = vdwg.mxu0
    %1282 = vmatprep.subr.mxu0 %v638
    %1283 = vmatpush1.msra.mxu0 %v637
    %1284 = vmatprep.subr.mxu0 %v642
    %1285 = vmatpush1.msra.mxu0 %v641
    %1286 = vmatprep.subr.mxu0 %v646
    %1287 = vmatpush1.msra.mxu0 %v645
    %1288 = vmatprep.subr.mxu0 %v650
    %1289 = vmatpush1.msra.mxu0 %v649
    %1290 = vmatprep.subr.mxu0 %v654
    %1291 = vmatpush1.msra.mxu0 %v653
    %1292 = vmatprep.subr.mxu0 %v658
    %1293 = vmatpush1.msra.mxu0 %v657
    %1294 = vmatprep.subr.mxu0 %v662
    %1295 = vmatpush1.msra.mxu0 %v661
    %1296 = vmatprep.subr.mxu0 %v666
    %1297 = vmatpush1.msra.mxu0 %v665
    %1298 = vmatprep.subr.mxu0 %v670
    %1299 = vmatpush1.msra.mxu0 %v669
    %1300 = vmatprep.subr.mxu0 %v674
    %1301 = vmatpush1.msra.mxu0 %v673
    %1302 = vmatprep.subr.mxu0 %v678
    %1303 = vmatpush1.msra.mxu0 %v677
    %1304 = vmatprep.subr.mxu0 %v682
    %1305 = vmatpush1.msra.mxu0 %v681
    %1306 = vmatprep.subr.mxu0 %v686
    %1307 = vmatpush1.msra.mxu0 %v685
    %1308 = vmatprep.subr.mxu0 %v690
    %1309 = vmatpush1.msra.mxu0 %v689
    %1310 = vmatprep.subr.mxu0 %v694
    %1311 = vmatpush1.msra.mxu0 %v693
    %1312 = vmatprep.subr.mxu0 %v698
    %1313 = vmatpush1.msra.mxu0 %v697
    %1314 = vmatprep.subr.mxu0 %v702
    %1315 = vmatpush1.msra.mxu0 %v701
    %1316 = vmatprep.subr.mxu0 %v706
    %1317 = vmatpush1.msra.mxu0 %v705
    %1318 = vmatprep.subr.mxu0 %v710
    %1319 = vmatpush1.msra.mxu0 %v709
    %1320 = vmatprep.subr.mxu0 %v714
    %1321 = vmatpush1.msra.mxu0 %v713
    %1322 = vmatprep.subr.mxu0 %v718
    %1323 = vmatpush1.msra.mxu0 %v717
    %1324 = vmatprep.subr.mxu0 %v722
    %1325 = vmatpush1.msra.mxu0 %v721
    %1326 = vmatprep.subr.mxu0 %v726
    %1327 = vmatpush1.msra.mxu0 %v725
    %1328 = vmatprep.subr.mxu0 %v730
    %1329 = vmatpush1.msra.mxu0 %v729
    %1330 = vmatprep.subr.mxu0 %v734
    %1331 = vmatpush1.msra.mxu0 %v733
    %1332 = vmatprep.subr.mxu0 %v738
    %1333 = vmatpush1.msra.mxu0 %v737
    %1334 = vmatprep.subr.mxu0 %v742
    %1335 = vmatpush1.msra.mxu0 %v741
    %1336 = vmatprep.subr.mxu0 %v746
    %1337 = vmatpush1.msra.mxu0 %v745
    %1338 = vmatprep.subr.mxu0 %v750
    %1339 = vmatpush1.msra.mxu0 %v749
    %1340 = vmatprep.subr.mxu0 %v754
    %1341 = vmatpush1.msra.mxu0 %v753
    %1342 = vmatprep.subr.mxu0 %v758
    %1343 = vmatpush1.msra.mxu0 %v757
    %1344 = vmatprep.subr.mxu0 %v762
    %1345 = vmatpush1.msra.mxu0 %v761
    %1346 = vmatprep.mubr.f32.mxu0 %v250
    %1347 = vmatmul.mubr.f32.gmra.mrb[0].mxu0 %v249
    %v1348 = vpop.f32.mrb[0].mxu0
    %v1349 = vadd.f32 %v1278, %v1348
    %v1350 = vpop.f32.mrb[0].mxu0
    %v1351 = vadd.f32 %v1280, %v1350
    %1352 = vdwg.mxu0
    %vm1353 = vcmask 1043456
    %v1354 = vsel %vm1353, %v1065, 0.0
    %v1355 = vrot.slane %v1354, 4
    %v1356 = vadd.f32 %v1354, %v1355
    %v1357 = vrot.slane %v1356, 2
    %v1358 = vadd.f32 %v1356, %v1357
    %v1359 = vrot.slane %v1358, 1
    %v1360 = vadd.f32 %v1358, %v1359
    %v1361 = vsel %vm1353, %v1067, 0.0
    %v1362 = vrot.slane %v1361, 4
    %v1363 = vadd.f32 %v1361, %v1362
    %v1364 = vrot.slane %v1363, 2
    %v1365 = vadd.f32 %v1363, %v1364
    %v1366 = vrot.slane %v1365, 1
    %v1367 = vadd.f32 %v1365, %v1366
    %v1368 = vsel %vm1353, %v1349, 0.0
    %v1369 = vrot.slane %v1368, 4
    %v1370 = vadd.f32 %v1368, %v1369
    %v1371 = vrot.slane %v1370, 2
    %v1372 = vadd.f32 %v1370, %v1371
    %v1373 = vrot.slane %v1372, 1
    %v1374 = vadd.f32 %v1372, %v1373
    %v1375 = vsel %vm1353, %v1351, 0.0
    %v1376 = vrot.slane %v1375, 4
    %v1377 = vadd.f32 %v1375, %v1376
    %v1378 = vrot.slane %v1377, 2
    %v1379 = vadd.f32 %v1377, %v1378
    %v1380 = vrot.slane %v1379, 1
    %v1381 = vadd.f32 %v1379, %v1380
    %v1382 = vrcp.pop 4.0
    %v1383 = vmul.f32 %v1360, %v1382
    %v1384 = vmul.f32 %v1367, %v1382
    %v1385 = vmul.f32 %v1374, %v1382
    %v1386 = vmul.f32 %v1381, %v1382
    %v1387 = vsub.f32 %v1065, %v1383
    %v1388 = vsub.f32 %v1067, %v1384
    %v1389 = vsub.f32 %v1349, %v1385
    %v1390 = vsub.f32 %v1351, %v1386
    %v1391 = vmul.f32 %v1387, %v1387
    %v1392 = vmul.f32 %v1388, %v1388
    %v1393 = vmul.f32 %v1389, %v1389
    %v1394 = vmul.f32 %v1390, %v1390
    %v1395 = vsel %vm1353, %v1391, 0.0
    %v1396 = vrot.slane %v1395, 4
    %v1397 = vadd.f32 %v1395, %v1396
    %v1398 = vrot.slane %v1397, 2
    %v1399 = vadd.f32 %v1397, %v1398
    %v1400 = vrot.slane %v1399, 1
    %v1401 = vadd.f32 %v1399, %v1400
    %v1402 = vsel %vm1353, %v1392, 0.0
    %v1403 = vrot.slane %v1402, 4
    %v1404 = vadd.f32 %v1402, %v1403
    %v1405 = vrot.slane %v1404, 2
    %v1406 = vadd.f32 %v1404, %v1405
    %v1407 = vrot.slane %v1406, 1
    %v1408 = vadd.f32 %v1406, %v1407
    %v1409 = vsel %vm1353, %v1393, 0.0
    %v1410 = vrot.slane %v1409, 4
    %v1411 = vadd.f32 %v1409, %v1410
    %v1412 = vrot.slane %v1411, 2
    %v1413 = vadd.f32 %v1411, %v1412
    %v1414 = vrot.slane %v1413, 1
    %v1415 = vadd.f32 %v1413, %v1414
    %v1416 = vsel %vm1353, %v1394, 0.0
    %v1417 = vrot.slane %v1416, 4
    %v1418 = vadd.f32 %v1416, %v1417
    %v1419 = vrot.slane %v1418, 2
    %v1420 = vadd.f32 %v1418, %v1419
    %v1421 = vrot.slane %v1420, 1
    %v1422 = vadd.f32 %v1420, %v1421
    %v1423 = vmul.f32 %v1401, %v1382
    %v1424 = vmul.f32 %v1408, %v1382
    %v1425 = vmul.f32 %v1415, %v1382
    %v1426 = vmul.f32 %v1422, %v1382
    %v1427 = vld [vmem:[%s6] sm:$0xf]
    %v1428 = vadd.f32 %v1423, 1e-05
    %v1429 = vadd.f32 %v1424, 1e-05
    %v1430 = vadd.f32 %v1425, 1e-05
    %v1431 = vadd.f32 %v1426, 1e-05
    %v1432 = vrsqrt.pop %v1428
    %v1433 = vrsqrt.pop %v1429
    %v1434 = vrsqrt.pop %v1430
    %v1435 = vrsqrt.pop %v1431
    %v1440 = vcombine.low %v1432, %v1433
    %v1441 = vcombine.low %v1434, %v1435
    %v1443 = vunpack.c.l.s4 1966171168
    %v1444 = vunpack.c.0.s8 %v1443
    %v1445 = vlaneseq
    %v1446 = vshrl.u32 %v1445, 7
    %v1447 = vsub.s32 %v1444, %v1446
    %v1448 = vrot.slane %v1440, %v1447
    %v1450 = vunpack.c.l.s4 1966171168
    %v1451 = vunpack.c.0.s8 %v1450
    %v1452 = vlaneseq
    %v1453 = vshrl.u32 %v1452, 7
    %v1454 = vsub.s32 %v1451, %v1453
    %v1455 = vrot.slane %v1441, %v1454
    %v1456 = vcombine.low %v1448, %v1455
    %v1458 = vunpack.c.l.s4 1966171168
    %v1459 = vunpack.c.0.s8 %v1458
    %v1460 = vlaneseq
    %v1461 = vshrl.u32 %v1460, 7
    %v1462 = vsub.s32 %v1459, %v1461
    %v1463 = vrot.slane %v1456, %v1462
    %v1465 = vmul.f32 %v1427, %v1463
    %v1467 = vlaneseq
    %v1468 = vshrl.u32 %v1467, 7
    %v1469 = vsub.s32 0, %v1468
    %v1470 = vrot.slane %v1465, %v1469
    %v1471 = vlaneseq
    %v1472 = vshrl.u32 %v1471, 7
    %v1473 = vsub.s32 1, %v1472
    %v1474 = vrot.slane %v1465, %v1473
    %v1475 = vlaneseq
    %v1476 = vshrl.u32 %v1475, 7
    %v1477 = vsub.s32 2, %v1476
    %v1478 = vrot.slane %v1465, %v1477
    %v1479 = vlaneseq
    %v1480 = vshrl.u32 %v1479, 7
    %v1481 = vsub.s32 3, %v1480
    %v1482 = vrot.slane %v1465, %v1481
    %v1487 = vmul.f32 %v1387, %v1470
    %v1488 = vmul.f32 %v1388, %v1474
    %v1489 = vmul.f32 %v1389, %v1478
    %v1490 = vmul.f32 %v1390, %v1482
    %v1491 = vld [vmem:[%s7] sm:$0xf]
    %v1493 = vlaneseq
    %v1494 = vshrl.u32 %v1493, 7
    %v1495 = vsub.s32 0, %v1494
    %v1496 = vrot.slane %v1491, %v1495
    %v1497 = vlaneseq
    %v1498 = vshrl.u32 %v1497, 7
    %v1499 = vsub.s32 1, %v1498
    %v1500 = vrot.slane %v1491, %v1499
    %v1501 = vlaneseq
    %v1502 = vshrl.u32 %v1501, 7
    %v1503 = vsub.s32 2, %v1502
    %v1504 = vrot.slane %v1491, %v1503
    %v1505 = vlaneseq
    %v1506 = vshrl.u32 %v1505, 7
    %v1507 = vsub.s32 3, %v1506
    %v1508 = vrot.slane %v1491, %v1507
    %v1513 = vadd.f32 %v1487, %v1496
    %v1514 = vadd.f32 %v1488, %v1500
    %v1515 = vadd.f32 %v1489, %v1504
    %v1516 = vadd.f32 %v1490, %v1508
    %v1517 = vmax.f32 %v1513, 0.0
    %v1518 = vmax.f32 %v1514, 0.0
    %v1519 = vmax.f32 %v1515, 0.0
    %v1520 = vmax.f32 %v1516, 0.0
    %v1521 = vld [vmem:[%s8] sm:$0xff]
    %v1522 = vld [vmem:[%s8 + $0x8] sm:$0xff]
    %v1523 = vld [vmem:[%s8 + $0x10] sm:$0xff]
    %v1524 = vld [vmem:[%s8 + $0x18] sm:$0xff]
    %v1525 = vld [vmem:[%s8 + $0x20] sm:$0xff]
    %v1526 = vld [vmem:[%s8 + $0x28] sm:$0xff]
    %v1527 = vld [vmem:[%s8 + $0x30] sm:$0xff]
    %v1528 = vld [vmem:[%s8 + $0x38] sm:$0xff]
    %v1529 = vld [vmem:[%s8 + $0x40] sm:$0xff]
    %v1530 = vld [vmem:[%s8 + $0x48] sm:$0xff]
    %v1531 = vld [vmem:[%s8 + $0x50] sm:$0xff]
    %v1532 = vld [vmem:[%s8 + $0x58] sm:$0xff]
    %v1533 = vld [vmem:[%s8 + $0x60] sm:$0xff]
    %v1534 = vld [vmem:[%s8 + $0x68] sm:$0xff]
    %v1535 = vld [vmem:[%s8 + $0x70] sm:$0xff]
    %v1536 = vld [vmem:[%s8 + $0x78] sm:$0xff]
    %v1537 = vld [vmem:[%s8 + $0x80] sm:$0xff]
    %v1538 = vld [vmem:[%s8 + $0x88] sm:$0xff]
    %v1539 = vld [vmem:[%s8 + $0x90] sm:$0xff]
    %v1540 = vld [vmem:[%s8 + $0x98] sm:$0xff]
    %v1541 = vld [vmem:[%s8 + $0xa0] sm:$0xff]
    %v1542 = vld [vmem:[%s8 + $0xa8] sm:$0xff]
    %v1543 = vld [vmem:[%s8 + $0xb0] sm:$0xff]
    %v1544 = vld [vmem:[%s8 + $0xb8] sm:$0xff]
    %v1545 = vld [vmem:[%s8 + $0xc0] sm:$0xff]
    %v1546 = vld [vmem:[%s8 + $0xc8] sm:$0xff]
    %v1547 = vld [vmem:[%s8 + $0xd0] sm:$0xff]
    %v1548 = vld [vmem:[%s8 + $0xd8] sm:$0xff]
    %v1549 = vld [vmem:[%s8 + $0xe0] sm:$0xff]
    %v1550 = vld [vmem:[%s8 + $0xe8] sm:$0xff]
    %v1551 = vld [vmem:[%s8 + $0xf0] sm:$0xff]
    %v1552 = vld [vmem:[%s8 + $0xf8] sm:$0xff]
    %v1553 = vld [vmem:[%s8 + $0x100] sm:$0xff]
    %v1554 = vld [vmem:[%s8 + $0x108] sm:$0xff]
    %v1555 = vld [vmem:[%s8 + $0x110] sm:$0xff]
    %v1556 = vld [vmem:[%s8 + $0x118] sm:$0xff]
    %v1557 = vld [vmem:[%s8 + $0x120] sm:$0xff]
    %v1558 = vld [vmem:[%s8 + $0x128] sm:$0xff]
    %v1559 = vld [vmem:[%s8 + $0x130] sm:$0xff]
    %v1560 = vld [vmem:[%s8 + $0x138] sm:$0xff]
    %v1561 = vld [vmem:[%s8 + $0x140] sm:$0xff]
    %v1562 = vld [vmem:[%s8 + $0x148] sm:$0xff]
    %v1563 = vld [vmem:[%s8 + $0x150] sm:$0xff]
    %v1564 = vld [vmem:[%s8 + $0x158] sm:$0xff]
    %v1565 = vld [vmem:[%s8 + $0x160] sm:$0xff]
    %v1566 = vld [vmem:[%s8 + $0x168] sm:$0xff]
    %v1567 = vld [vmem:[%s8 + $0x170] sm:$0xff]
    %v1568 = vld [vmem:[%s8 + $0x178] sm:$0xff]
    %v1569 = vld [vmem:[%s8 + $0x180] sm:$0xff]
    %v1570 = vld [vmem:[%s8 + $0x188] sm:$0xff]
    %v1571 = vld [vmem:[%s8 + $0x190] sm:$0xff]
    %v1572 = vld [vmem:[%s8 + $0x198] sm:$0xff]
    %v1573 = vld [vmem:[%s8 + $0x1a0] sm:$0xff]
    %v1574 = vld [vmem:[%s8 + $0x1a8] sm:$0xff]
    %v1575 = vld [vmem:[%s8 + $0x1b0] sm:$0xff]
    %v1576 = vld [vmem:[%s8 + $0x1b8] sm:$0xff]
    %v1577 = vld [vmem:[%s8 + $0x1c0] sm:$0xff]
    %v1578 = vld [vmem:[%s8 + $0x1c8] sm:$0xff]
    %v1579 = vld [vmem:[%s8 + $0x1d0] sm:$0xff]
    %v1580 = vld [vmem:[%s8 + $0x1d8] sm:$0xff]
    %v1581 = vld [vmem:[%s8 + $0x1e0] sm:$0xff]
    %v1582 = vld [vmem:[%s8 + $0x1e8] sm:$0xff]
    %v1583 = vld [vmem:[%s8 + $0x1f0] sm:$0xff]
    %v1584 = vld [vmem:[%s8 + $0x1f8] sm:$0xff]
    %v1585 = vld [vmem:[%s8 + $0x200] sm:$0xff]
    %v1586 = vld [vmem:[%s8 + $0x208] sm:$0xff]
    %v1587 = vld [vmem:[%s8 + $0x210] sm:$0xff]
    %v1588 = vld [vmem:[%s8 + $0x218] sm:$0xff]
    %v1589 = vld [vmem:[%s8 + $0x220] sm:$0xff]
    %v1590 = vld [vmem:[%s8 + $0x228] sm:$0xff]
    %v1591 = vld [vmem:[%s8 + $0x230] sm:$0xff]
    %v1592 = vld [vmem:[%s8 + $0x238] sm:$0xff]
    %v1593 = vld [vmem:[%s8 + $0x240] sm:$0xff]
    %v1594 = vld [vmem:[%s8 + $0x248] sm:$0xff]
    %v1595 = vld [vmem:[%s8 + $0x250] sm:$0xff]
    %v1596 = vld [vmem:[%s8 + $0x258] sm:$0xff]
    %v1597 = vld [vmem:[%s8 + $0x260] sm:$0xff]
    %v1598 = vld [vmem:[%s8 + $0x268] sm:$0xff]
    %v1599 = vld [vmem:[%s8 + $0x270] sm:$0xff]
    %v1600 = vld [vmem:[%s8 + $0x278] sm:$0xff]
    %v1601 = vld [vmem:[%s8 + $0x280] sm:$0xff]
    %v1602 = vld [vmem:[%s8 + $0x288] sm:$0xff]
    %v1603 = vld [vmem:[%s8 + $0x290] sm:$0xff]
    %v1604 = vld [vmem:[%s8 + $0x298] sm:$0xff]
    %v1605 = vld [vmem:[%s8 + $0x2a0] sm:$0xff]
    %v1606 = vld [vmem:[%s8 + $0x2a8] sm:$0xff]
    %v1607 = vld [vmem:[%s8 + $0x2b0] sm:$0xff]
    %v1608 = vld [vmem:[%s8 + $0x2b8] sm:$0xff]
    %v1609 = vld [vmem:[%s8 + $0x2c0] sm:$0xff]
    %v1610 = vld [vmem:[%s8 + $0x2c8] sm:$0xff]
    %v1611 = vld [vmem:[%s8 + $0x2d0] sm:$0xff]
    %v1612 = vld [vmem:[%s8 + $0x2d8] sm:$0xff]
    %v1613 = vld [vmem:[%s8 + $0x2e0] sm:$0xff]
    %v1614 = vld [vmem:[%s8 + $0x2e8] sm:$0xff]
    %v1615 = vld [vmem:[%s8 + $0x2f0] sm:$0xff]
    %v1616 = vld [vmem:[%s8 + $0x2f8] sm:$0xff]
    %v1617 = vld [vmem:[%s8 + $0x300] sm:$0xff]
    %v1618 = vld [vmem:[%s8 + $0x308] sm:$0xff]
    %v1619 = vld [vmem:[%s8 + $0x310] sm:$0xff]
    %v1620 = vld [vmem:[%s8 + $0x318] sm:$0xff]
    %v1621 = vld [vmem:[%s8 + $0x320] sm:$0xff]
    %v1622 = vld [vmem:[%s8 + $0x328] sm:$0xff]
    %v1623 = vld [vmem:[%s8 + $0x330] sm:$0xff]
    %v1624 = vld [vmem:[%s8 + $0x338] sm:$0xff]
    %v1625 = vld [vmem:[%s8 + $0x340] sm:$0xff]
    %v1626 = vld [vmem:[%s8 + $0x348] sm:$0xff]
    %v1627 = vld [vmem:[%s8 + $0x350] sm:$0xff]
    %v1628 = vld [vmem:[%s8 + $0x358] sm:$0xff]
    %v1629 = vld [vmem:[%s8 + $0x360] sm:$0xff]
    %v1630 = vld [vmem:[%s8 + $0x368] sm:$0xff]
    %v1631 = vld [vmem:[%s8 + $0x370] sm:$0xff]
    %v1632 = vld [vmem:[%s8 + $0x378] sm:$0xff]
    %v1633 = vld [vmem:[%s8 + $0x380] sm:$0xff]
    %v1634 = vld [vmem:[%s8 + $0x388] sm:$0xff]
    %v1635 = vld [vmem:[%s8 + $0x390] sm:$0xff]
    %v1636 = vld [vmem:[%s8 + $0x398] sm:$0xff]
    %v1637 = vld [vmem:[%s8 + $0x3a0] sm:$0xff]
    %v1638 = vld [vmem:[%s8 + $0x3a8] sm:$0xff]
    %v1639 = vld [vmem:[%s8 + $0x3b0] sm:$0xff]
    %v1640 = vld [vmem:[%s8 + $0x3b8] sm:$0xff]
    %v1641 = vld [vmem:[%s8 + $0x3c0] sm:$0xff]
    %v1642 = vld [vmem:[%s8 + $0x3c8] sm:$0xff]
    %v1643 = vld [vmem:[%s8 + $0x3d0] sm:$0xff]
    %v1644 = vld [vmem:[%s8 + $0x3d8] sm:$0xff]
    %v1645 = vld [vmem:[%s8 + $0x3e0] sm:$0xff]
    %v1646 = vld [vmem:[%s8 + $0x3e8] sm:$0xff]
    %v1647 = vld [vmem:[%s8 + $0x3f0] sm:$0xff]
    %v1648 = vld [vmem:[%s8 + $0x3f8] sm:$0xff]
    %v1649 = vld [vmem:[%s9] sm:$0x3]
    %v1651 = vlaneseq
    %v1652 = vshrl.u32 %v1651, 7
    %v1653 = vsub.s32 0, %v1652
    %v1654 = vrot.slane %v1649, %v1653
    %v1655 = vlaneseq
    %v1656 = vshrl.u32 %v1655, 7
    %v1657 = vsub.s32 1, %v1656
    %v1658 = vrot.slane %v1649, %v1657
    %1661 = vmatprep.subr.mxu0 %v1522
    %1662 = vmatpush1.msra.mxu0 %v1521
    %1663 = vmatprep.subr.mxu0 %v1524
    %1664 = vmatpush1.msra.mxu0 %v1523
    %1665 = vmatprep.subr.mxu0 %v1526
    %1666 = vmatpush1.msra.mxu0 %v1525
    %1667 = vmatprep.subr.mxu0 %v1528
    %1668 = vmatpush1.msra.mxu0 %v1527
    %1669 = vmatprep.subr.mxu0 %v1530
    %1670 = vmatpush1.msra.mxu0 %v1529
    %1671 = vmatprep.subr.mxu0 %v1532
    %1672 = vmatpush1.msra.mxu0 %v1531
    %1673 = vmatprep.subr.mxu0 %v1534
    %1674 = vmatpush1.msra.mxu0 %v1533
    %1675 = vmatprep.subr.mxu0 %v1536
    %1676 = vmatpush1.msra.mxu0 %v1535
    %1677 = vmatprep.subr.mxu0 %v1538
    %1678 = vmatpush1.msra.mxu0 %v1537
    %1679 = vmatprep.subr.mxu0 %v1540
    %1680 = vmatpush1.msra.mxu0 %v1539
    %1681 = vmatprep.subr.mxu0 %v1542
    %1682 = vmatpush1.msra.mxu0 %v1541
    %1683 = vmatprep.subr.mxu0 %v1544
    %1684 = vmatpush1.msra.mxu0 %v1543
    %1685 = vmatprep.subr.mxu0 %v1546
    %1686 = vmatpush1.msra.mxu0 %v1545
    %1687 = vmatprep.subr.mxu0 %v1548
    %1688 = vmatpush1.msra.mxu0 %v1547
    %1689 = vmatprep.subr.mxu0 %v1550
    %1690 = vmatpush1.msra.mxu0 %v1549
    %1691 = vmatprep.subr.mxu0 %v1552
    %1692 = vmatpush1.msra.mxu0 %v1551
    %1693 = vmatprep.subr.mxu0 %v1554
    %1694 = vmatpush1.msra.mxu0 %v1553
    %1695 = vmatprep.subr.mxu0 %v1556
    %1696 = vmatpush1.msra.mxu0 %v1555
    %1697 = vmatprep.subr.mxu0 %v1558
    %1698 = vmatpush1.msra.mxu0 %v1557
    %1699 = vmatprep.subr.mxu0 %v1560
    %1700 = vmatpush1.msra.mxu0 %v1559
    %1701 = vmatprep.subr.mxu0 %v1562
    %1702 = vmatpush1.msra.mxu0 %v1561
    %1703 = vmatprep.subr.mxu0 %v1564
    %1704 = vmatpush1.msra.mxu0 %v1563
    %1705 = vmatprep.subr.mxu0 %v1566
    %1706 = vmatpush1.msra.mxu0 %v1565
    %1707 = vmatprep.subr.mxu0 %v1568
    %1708 = vmatpush1.msra.mxu0 %v1567
    %1709 = vmatprep.subr.mxu0 %v1570
    %1710 = vmatpush1.msra.mxu0 %v1569
    %1711 = vmatprep.subr.mxu0 %v1572
    %1712 = vmatpush1.msra.mxu0 %v1571
    %1713 = vmatprep.subr.mxu0 %v1574
    %1714 = vmatpush1.msra.mxu0 %v1573
    %1715 = vmatprep.subr.mxu0 %v1576
    %1716 = vmatpush1.msra.mxu0 %v1575
    %1717 = vmatprep.subr.mxu0 %v1578
    %1718 = vmatpush1.msra.mxu0 %v1577
    %1719 = vmatprep.subr.mxu0 %v1580
    %1720 = vmatpush1.msra.mxu0 %v1579
    %1721 = vmatprep.subr.mxu0 %v1582
    %1722 = vmatpush1.msra.mxu0 %v1581
    %1723 = vmatprep.subr.mxu0 %v1584
    %1724 = vmatpush1.msra.mxu0 %v1583
    %1725 = vmatprep.mubr.f32.mxu0 %v1518
    %1726 = vmatmul.mubr.f32.gmra.mrb[0].mxu0 %v1517
    %v1727 = vpop.f32.mrb[0].mxu0
    %v1728 = vadd.f32 %v1654, %v1727
    %v1729 = vpop.f32.mrb[0].mxu0
    %v1730 = vadd.f32 %v1658, %v1729
    %1731 = vdwg.mxu0
    %1732 = vmatprep.subr.mxu0 %v1586
    %1733 = vmatpush1.msra.mxu0 %v1585
    %1734 = vmatprep.subr.mxu0 %v1588
    %1735 = vmatpush1.msra.mxu0 %v1587
    %1736 = vmatprep.subr.mxu0 %v1590
    %1737 = vmatpush1.msra.mxu0 %v1589
    %1738 = vmatprep.subr.mxu0 %v1592
    %1739 = vmatpush1.msra.mxu0 %v1591
    %1740 = vmatprep.subr.mxu0 %v1594
    %1741 = vmatpush1.msra.mxu0 %v1593
    %1742 = vmatprep.subr.mxu0 %v1596
    %1743 = vmatpush1.msra.mxu0 %v1595
    %1744 = vmatprep.subr.mxu0 %v1598
    %1745 = vmatpush1.msra.mxu0 %v1597
    %1746 = vmatprep.subr.mxu0 %v1600
    %1747 = vmatpush1.msra.mxu0 %v1599
    %1748 = vmatprep.subr.mxu0 %v1602
    %1749 = vmatpush1.msra.mxu0 %v1601
    %1750 = vmatprep.subr.mxu0 %v1604
    %1751 = vmatpush1.msra.mxu0 %v1603
    %1752 = vmatprep.subr.mxu0 %v1606
    %1753 = vmatpush1.msra.mxu0 %v1605
    %1754 = vmatprep.subr.mxu0 %v1608
    %1755 = vmatpush1.msra.mxu0 %v1607
    %1756 = vmatprep.subr.mxu0 %v1610
    %1757 = vmatpush1.msra.mxu0 %v1609
    %1758 = vmatprep.subr.mxu0 %v1612
    %1759 = vmatpush1.msra.mxu0 %v1611
    %1760 = vmatprep.subr.mxu0 %v1614
    %1761 = vmatpush1.msra.mxu0 %v1613
    %1762 = vmatprep.subr.mxu0 %v1616
    %1763 = vmatpush1.msra.mxu0 %v1615
    %1764 = vmatprep.subr.mxu0 %v1618
    %1765 = vmatpush1.msra.mxu0 %v1617
    %1766 = vmatprep.subr.mxu0 %v1620
    %1767 = vmatpush1.msra.mxu0 %v1619
    %1768 = vmatprep.subr.mxu0 %v1622
    %1769 = vmatpush1.msra.mxu0 %v1621
    %1770 = vmatprep.subr.mxu0 %v1624
    %1771 = vmatpush1.msra.mxu0 %v1623
    %1772 = vmatprep.subr.mxu0 %v1626
    %1773 = vmatpush1.msra.mxu0 %v1625
    %1774 = vmatprep.subr.mxu0 %v1628
    %1775 = vmatpush1.msra.mxu0 %v1627
    %1776 = vmatprep.subr.mxu0 %v1630
    %1777 = vmatpush1.msra.mxu0 %v1629
    %1778 = vmatprep.subr.mxu0 %v1632
    %1779 = vmatpush1.msra.mxu0 %v1631
    %1780 = vmatprep.subr.mxu0 %v1634
    %1781 = vmatpush1.msra.mxu0 %v1633
    %1782 = vmatprep.subr.mxu0 %v1636
    %1783 = vmatpush1.msra.mxu0 %v1635
    %1784 = vmatprep.subr.mxu0 %v1638
    %1785 = vmatpush1.msra.mxu0 %v1637
    %1786 = vmatprep.subr.mxu0 %v1640
    %1787 = vmatpush1.msra.mxu0 %v1639
    %1788 = vmatprep.subr.mxu0 %v1642
    %1789 = vmatpush1.msra.mxu0 %v1641
    %1790 = vmatprep.subr.mxu0 %v1644
    %1791 = vmatpush1.msra.mxu0 %v1643
    %1792 = vmatprep.subr.mxu0 %v1646
    %1793 = vmatpush1.msra.mxu0 %v1645
    %1794 = vmatprep.subr.mxu0 %v1648
    %1795 = vmatpush1.msra.mxu0 %v1647
    %1796 = vmatprep.mubr.f32.mxu0 %v1520
    %1797 = vmatmul.mubr.f32.gmra.mrb[0].mxu0 %v1519
    %v1798 = vpop.f32.mrb[0].mxu0
    %v1799 = vadd.f32 %v1728, %v1798
    %v1800 = vpop.f32.mrb[0].mxu0
    %v1801 = vadd.f32 %v1730, %v1800
    %1802 = vdwg.mxu0
    %v1803 = vsel %vm1353, %v1799, 0.0
    %v1804 = vrot.slane %v1803, 4
    %v1805 = vadd.f32 %v1803, %v1804
    %v1806 = vrot.slane %v1805, 2
    %v1807 = vadd.f32 %v1805, %v1806
    %v1808 = vrot.slane %v1807, 1
    %v1809 = vadd.f32 %v1807, %v1808
    %v1810 = vsel %vm1353, %v1801, 0.0
    %v1811 = vrot.slane %v1810, 4
    %v1812 = vadd.f32 %v1810, %v1811
    %v1813 = vrot.slane %v1812, 2
    %v1814 = vadd.f32 %v1812, %v1813
    %v1815 = vrot.slane %v1814, 1
    %v1816 = vadd.f32 %v1814, %v1815
    %v1817 = vmul.f32 %v1809, %v1382
    %v1818 = vmul.f32 %v1816, %v1382
    %v1819 = vsub.f32 %v1799, %v1817
    %v1820 = vsub.f32 %v1801, %v1818
    %v1821 = vmul.f32 %v1819, %v1819
    %v1822 = vmul.f32 %v1820, %v1820
    %v1823 = vsel %vm1353, %v1821, 0.0
    %v1824 = vrot.slane %v1823, 4
    %v1825 = vadd.f32 %v1823, %v1824
    %v1826 = vrot.slane %v1825, 2
    %v1827 = vadd.f32 %v1825, %v1826
    %v1828 = vrot.slane %v1827, 1
    %v1829 = vadd.f32 %v1827, %v1828
    %v1830 = vsel %vm1353, %v1822, 0.0
    %v1831 = vrot.slane %v1830, 4
    %v1832 = vadd.f32 %v1830, %v1831
    %v1833 = vrot.slane %v1832, 2
    %v1834 = vadd.f32 %v1832, %v1833
    %v1835 = vrot.slane %v1834, 1
    %v1836 = vadd.f32 %v1834, %v1835
    %v1837 = vmul.f32 %v1829, %v1382
    %v1838 = vmul.f32 %v1836, %v1382
    %v1839 = vld [vmem:[%s10] sm:$0x3]
    %v1840 = vadd.f32 %v1837, 1e-05
    %v1841 = vadd.f32 %v1838, 1e-05
    %v1842 = vrsqrt.pop %v1840
    %v1843 = vrsqrt.pop %v1841
    %v1846 = vcombine.low %v1842, %v1843
    %v1848 = vunpack.c.l.s4 1966171168
    %v1849 = vunpack.c.0.s8 %v1848
    %v1850 = vlaneseq
    %v1851 = vshrl.u32 %v1850, 7
    %v1852 = vsub.s32 %v1849, %v1851
    %v1853 = vrot.slane %v1846, %v1852
    %v1855 = vunpack.c.l.s4 1966171168
    %v1856 = vunpack.c.0.s8 %v1855
    %v1857 = vlaneseq
    %v1858 = vshrl.u32 %v1857, 7
    %v1859 = vsub.s32 %v1856, %v1858
    %v1860 = vrot.slane %v1853, %v1859
    %v1862 = vmul.f32 %v1839, %v1860
    %v1864 = vlaneseq
    %v1865 = vshrl.u32 %v1864, 7
    %v1866 = vsub.s32 0, %v1865
    %v1867 = vrot.slane %v1862, %v1866
    %v1868 = vlaneseq
    %v1869 = vshrl.u32 %v1868, 7
    %v1870 = vsub.s32 1, %v1869
    %v1871 = vrot.slane %v1862, %v1870
    %v1874 = vmul.f32 %v1819, %v1867
    %v1875 = vmul.f32 %v1820, %v1871
    %v1876 = vld [vmem:[%s11] sm:$0x3]
    %v1878 = vlaneseq
    %v1879 = vshrl.u32 %v1878, 7
    %v1880 = vsub.s32 0, %v1879
    %v1881 = vrot.slane %v1876, %v1880
    %v1882 = vlaneseq
    %v1883 = vshrl.u32 %v1882, 7
    %v1884 = vsub.s32 1, %v1883
    %v1885 = vrot.slane %v1876, %v1884
    %v1888 = vadd.f32 %v1874, %v1881
    %v1889 = vadd.f32 %v1875, %v1885
    %v1890 = vmax.f32 %v1888, 0.0
    %v1891 = vmax.f32 %v1889, 0.0
    %v1892 = vld [vmem:[%s12] sm:$0xff]
    %v1893 = vld [vmem:[%s12 + $0x8] sm:$0xff]
    %v1894 = vld [vmem:[%s12 + $0x10] sm:$0xff]
    %v1895 = vld [vmem:[%s12 + $0x18] sm:$0xff]
    %v1896 = vld [vmem:[%s12 + $0x20] sm:$0xff]
    %v1897 = vld [vmem:[%s12 + $0x28] sm:$0xff]
    %v1898 = vld [vmem:[%s12 + $0x30] sm:$0xff]
    %v1899 = vld [vmem:[%s12 + $0x38] sm:$0xff]
    %v1900 = vld [vmem:[%s12 + $0x40] sm:$0xff]
    %v1901 = vld [vmem:[%s12 + $0x48] sm:$0xff]
    %v1902 = vld [vmem:[%s12 + $0x50] sm:$0xff]
    %v1903 = vld [vmem:[%s12 + $0x58] sm:$0xff]
    %v1904 = vld [vmem:[%s12 + $0x60] sm:$0xff]
    %v1905 = vld [vmem:[%s12 + $0x68] sm:$0xff]
    %v1906 = vld [vmem:[%s12 + $0x70] sm:$0xff]
    %v1907 = vld [vmem:[%s12 + $0x78] sm:$0xff]
    %v1908 = vld [vmem:[%s12 + $0x80] sm:$0xff]
    %v1909 = vld [vmem:[%s12 + $0x88] sm:$0xff]
    %v1910 = vld [vmem:[%s12 + $0x90] sm:$0xff]
    %v1911 = vld [vmem:[%s12 + $0x98] sm:$0xff]
    %v1912 = vld [vmem:[%s12 + $0xa0] sm:$0xff]
    %v1913 = vld [vmem:[%s12 + $0xa8] sm:$0xff]
    %v1914 = vld [vmem:[%s12 + $0xb0] sm:$0xff]
    %v1915 = vld [vmem:[%s12 + $0xb8] sm:$0xff]
    %v1916 = vld [vmem:[%s12 + $0xc0] sm:$0xff]
    %v1917 = vld [vmem:[%s12 + $0xc8] sm:$0xff]
    %v1918 = vld [vmem:[%s12 + $0xd0] sm:$0xff]
    %v1919 = vld [vmem:[%s12 + $0xd8] sm:$0xff]
    %v1920 = vld [vmem:[%s12 + $0xe0] sm:$0xff]
    %v1921 = vld [vmem:[%s12 + $0xe8] sm:$0xff]
    %v1922 = vld [vmem:[%s12 + $0xf0] sm:$0xff]
    %v1923 = vld [vmem:[%s12 + $0xf8] sm:$0xff]
    %v1924 = vld [vmem:[%s13] sm:$0x1]
    %v1926 = vlaneseq
    %v1927 = vshrl.u32 %v1926, 7
    %v1928 = vsub.s32 0, %v1927
    %v1929 = vrot.slane %v1924, %v1928
    %1931 = vmatprep.subr.mxu0 0.0
    %1932 = vmatpush1.msra.mxu0 %v1892
    %1933 = vmatprep.subr.mxu0 0.0
    %1934 = vmatpush1.msra.mxu0 %v1893
    %1935 = vmatprep.subr.mxu0 0.0
    %1936 = vmatpush1.msra.mxu0 %v1894
    %1937 = vmatprep.subr.mxu0 0.0
    %1938 = vmatpush1.msra.mxu0 %v1895
    %1939 = vmatprep.subr.mxu0 0.0
    %1940 = vmatpush1.msra.mxu0 %v1896
    %1941 = vmatprep.subr.mxu0 0.0
    %1942 = vmatpush1.msra.mxu0 %v1897
    %1943 = vmatprep.subr.mxu0 0.0
    %1944 = vmatpush1.msra.mxu0 %v1898
    %1945 = vmatprep.subr.mxu0 0.0
    %1946 = vmatpush1.msra.mxu0 %v1899
    %1947 = vmatprep.subr.mxu0 0.0
    %1948 = vmatpush1.msra.mxu0 %v1900
    %1949 = vmatprep.subr.mxu0 0.0
    %1950 = vmatpush1.msra.mxu0 %v1901
    %1951 = vmatprep.subr.mxu0 0.0
    %1952 = vmatpush1.msra.mxu0 %v1902
    %1953 = vmatprep.subr.mxu0 0.0
    %1954 = vmatpush1.msra.mxu0 %v1903
    %1955 = vmatprep.subr.mxu0 0.0
    %1956 = vmatpush1.msra.mxu0 %v1904
    %1957 = vmatprep.subr.mxu0 0.0
    %1958 = vmatpush1.msra.mxu0 %v1905
    %1959 = vmatprep.subr.mxu0 0.0
    %1960 = vmatpush1.msra.mxu0 %v1906
    %1961 = vmatprep.subr.mxu0 0.0
    %1962 = vmatpush1.msra.mxu0 %v1907
    %1963 = vmatprep.subr.mxu0 0.0
    %1964 = vmatpush1.msra.mxu0 %v1908
    %1965 = vmatprep.subr.mxu0 0.0
    %1966 = vmatpush1.msra.mxu0 %v1909
    %1967 = vmatprep.subr.mxu0 0.0
    %1968 = vmatpush1.msra.mxu0 %v1910
    %1969 = vmatprep.subr.mxu0 0.0
    %1970 = vmatpush1.msra.mxu0 %v1911
    %1971 = vmatprep.subr.mxu0 0.0
    %1972 = vmatpush1.msra.mxu0 %v1912
    %1973 = vmatprep.subr.mxu0 0.0
    %1974 = vmatpush1.msra.mxu0 %v1913
    %1975 = vmatprep.subr.mxu0 0.0
    %1976 = vmatpush1.msra.mxu0 %v1914
    %1977 = vmatprep.subr.mxu0 0.0
    %1978 = vmatpush1.msra.mxu0 %v1915
    %1979 = vmatprep.subr.mxu0 0.0
    %1980 = vmatpush1.msra.mxu0 %v1916
    %1981 = vmatprep.subr.mxu0 0.0
    %1982 = vmatpush1.msra.mxu0 %v1917
    %1983 = vmatprep.subr.mxu0 0.0
    %1984 = vmatpush1.msra.mxu0 %v1918
    %1985 = vmatprep.subr.mxu0 0.0
    %1986 = vmatpush1.msra.mxu0 %v1919
    %1987 = vmatprep.subr.mxu0 0.0
    %1988 = vmatpush1.msra.mxu0 %v1920
    %1989 = vmatprep.subr.mxu0 0.0
    %1990 = vmatpush1.msra.mxu0 %v1921
    %1991 = vmatprep.subr.mxu0 0.0
    %1992 = vmatpush1.msra.mxu0 %v1922
    %1993 = vmatprep.subr.mxu0 0.0
    %1994 = vmatpush1.msra.mxu0 %v1923
    %1995 = vmatprep.mubr.f32.mxu0 %v1891
    %1996 = vmatmul.mubr.f32.gmra.mrb[0].mxu0 %v1890
    %v1997 = vpop.f32.mrb[0].mxu0
    %v1998 = vadd.f32 %v1929, %v1997
    %v1999 = vpop.f32.mrb[0].mxu0
    %2000 = vdwg.mxu0
    %2001 = vst [vmem:[%s14] sm:$0xf] %v1998
    // Predicated region
    $region62: #{input_transform_net.7} parent=1 // pred_check
      _
    $region63: #{input_transform_net.7} parent=1 // pred_check_branch
      %2003 = sbr.rel (0) target = $region65
    $region64: #{input_transform_net.7} parent=1 // pred_region
      _
    $region65: #{input_transform_net.7} parent=1 // pred_fallthru
      _
    // Predicated region
    $region66: #{input_transform_net.7} parent=1 // pred_check
      _
    $region67: #{input_transform_net.7} parent=1 // pred_check_branch
      %2005 = sbr.rel (0) target = $region69
    $region68: #{input_transform_net.7} parent=1 // pred_region
      _
    $region69: #{input_transform_net.7} parent=1 // pred_fallthru
      _
    %2006 = vsyncpa [#allocation3], 1

</llo_original>
